<compile_context>
chip_gen: v5e
topology: v5e:2x2
jax: 0.10.0
libtpu: 0.0.40
codegen_flags: <defaults>
</compile_context>

<pallas_src>
import functools
import math

import jax
import jax.numpy as jnp
from jax.experimental import pallas as pl
from jax.experimental.pallas import tpu as pltpu

# ---------------- model hyper-parameters (small synthetic config) -----------
COMMON_DIM = 64          # common_dim
NUM_TOKENS = 8           # num_tokens_per_modality
NUM_BINS   = 21          # num_score_bins
DEPTH      = 2           # ccmt_depth
HEADS      = 4           # ccmt_heads
MLP_DIM    = 128         # ccmt_mlp_dim
D_AUDIO    = 96          # audio encoder hidden size (stand-in for 768)
D_EN       = 80          # english encoder hidden size
D_VI       = 80          # vietnamese encoder hidden size
LN_EPS     = 1e-5
SCORE_LANES = 128        # lane-dense packed score output width

DH    = COMMON_DIM // HEADS
P1    = 3 * NUM_TOKENS + 1                 # tokens + cls (cls is LAST row)
D_MAX = max(D_AUDIO, D_EN, D_VI)           # padded input dim for packed proj weights


def _round_up(x, m):
    return (x + m - 1) // m * m


# ---- f32 vector-parameter slab layout (row indices, width = COMMON_DIM) ----
VROW_CLS      = 0
VROW_LNFG     = 1
VROW_LNFB     = 2
VROW_BH       = 3                          # head bias (first NUM_BINS lanes)
VROW_BINS     = 4                          # score bins (first NUM_BINS lanes)
VROW_POS      = 8                          # P1 rows, sublane-aligned start
VROW_PROJB    = _round_up(VROW_POS + P1, 8)    # 3 rows: proj bias  (audio,en,vi)
VROW_PROJG    = VROW_PROJB + 3                 # 3 rows: proj LN gamma
VROW_PROJBETA = VROW_PROJG + 3                 # 3 rows: proj LN beta
VROW_LAYER    = VROW_PROJBETA + 3              # 6 rows / layer: ln1g,ln1b,bo,ln2g,ln2b,bm2
VEC_ROWS      = _round_up(VROW_LAYER + 6 * DEPTH, 8)


# ---------------- elementwise helpers (run inside kernel) -------------------
def _gelu(x):
    # tanh-approx GELU; tanh routes to the EUP slot.
    return 0.5 * x * (1.0 + jnp.tanh(0.7978845608028654 * (x + 0.044715 * x * x * x)))


def _layernorm(x, g, b):
    mu = jnp.mean(x, axis=-1, keepdims=True)
    var = jnp.mean((x - mu) ** 2, axis=-1, keepdims=True)
    return (x - mu) * jax.lax.rsqrt(var + LN_EPS) * g + b


def _softmax_lastdim(x):
    z = x - jnp.max(x, axis=-1, keepdims=True)
    e = jnp.exp(z)
    return e * pl.reciprocal(jnp.sum(e, axis=-1, keepdims=True), approx=True)


# ---------------- fused forward kernel ---------------------------------------
def _fused_kernel(audio_ref, en_ref, vi_ref,
                  wproj_ref, vec_ref, wqkv_ref, wo_ref, wm1_ref, wm2_ref,
                  bwide_ref, wh_ref,
                  feats_ref, scores_ref,
                  *, bb, seq_lens, seq_pads):
    bf16 = jnp.bfloat16
    f32 = jnp.float32
    T, C, K = NUM_TOKENS, COMMON_DIM, NUM_BINS
    s_e, s_v, s_a = seq_lens          # true per-sample seq lens (en, vi, audio)
    p_e, p_v, p_a = seq_pads          # 8-aligned padded per-sample seq lens

    # ---- MultiModalProjection: Linear -> LayerNorm -> GELU (dropout = id) ----
    # One matmul per modality over the whole batch slab ([bb*Sp, Din]).
    def project(x2d_ref, midx, din):
        w = wproj_ref[midx][0:din, :]                                  # [din, C] bf16
        bias = vec_ref[VROW_PROJB + midx:VROW_PROJB + midx + 1, :]
        g = vec_ref[VROW_PROJG + midx:VROW_PROJG + midx + 1, :]
        beta = vec_ref[VROW_PROJBETA + midx:VROW_PROJBETA + midx + 1, :]
        y = jnp.dot(x2d_ref[...].astype(bf16), w,
                    preferred_element_type=f32) + bias
        return _gelu(_layernorm(y, g, beta))                           # [bb*Sp, C]

    ya = project(audio_ref, 0, D_AUDIO)
    ye = project(en_ref, 1, D_EN)
    yv = project(vi_ref, 2, D_VI)

    cls = vec_ref[VROW_CLS:VROW_CLS + 1, :]                            # [1, C]
    pos = vec_ref[VROW_POS:VROW_POS + P1, :]                           # [P1, C]
    lnfg = vec_ref[VROW_LNFG:VROW_LNFG + 1, :]
    lnfb = vec_ref[VROW_LNFB:VROW_LNFB + 1, :]

    def take_tokens(y, b, sp, s):
        # TokenSampler: seq_len <= num_tokens -> zero-pad to NUM_TOKENS rows.
        # TODO(synk): random sub-sampling branch (torch.randperm) not reproduced.
        rows = y[b * sp:b * sp + min(s, T), :]
        if s >= T:
            return rows
        return jnp.concatenate([rows, jnp.zeros((T - s, C), f32)], axis=0)

    scale = 1.0 / math.sqrt(DH)
    cls_feats = []
    for b in range(bb):
        # ---- token assembly: [english | vietnamese | audio] + cls at row 3T ----
        tok = jnp.concatenate([take_tokens(ye, b, p_e, s_e),
                               take_tokens(yv, b, p_v, s_v),
                               take_tokens(ya, b, p_a, s_a)], axis=0)  # [3T, C]
        feats_ref[b] = tok
        x = jnp.concatenate([tok, cls], axis=0) + pos                  # [P1, C]

        # ---- CCMT (ViT-style stand-in): pre-norm transformer blocks ----
        for l in range(DEPTH):
            base = VROW_LAYER + 6 * l
            ln1g = vec_ref[base + 0:base + 1, :]
            ln1b = vec_ref[base + 1:base + 2, :]
            bo   = vec_ref[base + 2:base + 3, :]
            ln2g = vec_ref[base + 3:base + 4, :]
            ln2b = vec_ref[base + 4:base + 5, :]
            bm2  = vec_ref[base + 5:base + 6, :]
            bqkv = bwide_ref[l:l + 1, :]                               # [1, 3C]
            bm1  = bwide_ref[DEPTH + l:DEPTH + l + 1, 0:MLP_DIM]       # [1, M]

            # fused QKV projection: one [P1,C]x[C,3C] matmul (lanes = Q|K|V,
            # head-major inside each third).
            h1 = _layernorm(x, ln1g, ln1b).astype(bf16)
            qkv = jnp.dot(h1, wqkv_ref[l], preferred_element_type=f32) + bqkv

            o_heads = []
            for h in range(HEADS):
                q = qkv[:, h * DH:(h + 1) * DH].astype(bf16)
                k = qkv[:, C + h * DH:C + (h + 1) * DH].astype(bf16)
                v = qkv[:, 2 * C + h * DH:2 * C + (h + 1) * DH].astype(bf16)
                att = jnp.einsum('pd,qd->pq', q, k,
                                 preferred_element_type=f32) * scale   # [P1, P1]
                p = _softmax_lastdim(att)
                o_heads.append(jnp.dot(p.astype(bf16), v,
                                       preferred_element_type=f32))    # [P1, DH]
            # fused output projection: concat heads on lanes, one dot, no head-sum.
            o = jnp.concatenate(o_heads, axis=-1).astype(bf16)         # [P1, C]
            x = x + jnp.dot(o, wo_ref[l], preferred_element_type=f32) + bo

            h2 = _layernorm(x, ln2g, ln2b).astype(bf16)
            m = jnp.dot(h2, wm1_ref[l], preferred_element_type=f32) + bm1
            m = _gelu(m).astype(bf16)
            x = x + jnp.dot(m, wm2_ref[l], preferred_element_type=f32) + bm2

        xf = _layernorm(x, lnfg, lnfb)
        cls_feats.append(xf[3 * T:3 * T + 1, :])                       # cls row (aligned)

    # ---- score head + fused softmax / expected-score epilogue (batched) ----
    cls_all = jnp.concatenate(cls_feats, axis=0).astype(bf16)          # [bb, C]
    logits = jnp.dot(cls_all, wh_ref[...], preferred_element_type=f32) \
        + vec_ref[VROW_BH:VROW_BH + 1, 0:K]                            # [bb, K]
    probs = _softmax_lastdim(logits)
    bins = vec_ref[VROW_BINS:VROW_BINS + 1, 0:K]
    expected = jnp.sum(probs * bins, axis=-1, keepdims=True)           # [bb, 1]
    pad = jnp.zeros((bb, SCORE_LANES - (2 * K + 1)), f32)
    packed = jnp.concatenate([logits, probs, expected, pad], axis=-1)  # [bb, 128]
    for b in range(bb):
        scores_ref[b] = packed[b:b + 1]


# ---------------- parameter construction & packing ----------------------------
def init_params(key):
    keys = jax.random.split(key, 10)
    C, K, D, M = COMMON_DIM, NUM_BINS, DEPTH, MLP_DIM

    def nrm(k, shape, scale=0.02):
        return jax.random.normal(k, shape, jnp.float32) * scale

    def proj(k, din):
        return {"w": nrm(k, (din, C)).astype(jnp.bfloat16),
                "b": jnp.zeros((C,), jnp.float32),
                "g": jnp.ones((C,), jnp.float32),
                "beta": jnp.zeros((C,), jnp.float32)}

    params = {
        "audio_proj": proj(keys[0], D_AUDIO),
        "en_proj": proj(keys[1], D_EN),
        "vi_proj": proj(keys[2], D_VI),
        "ccmt": {
            "cls": nrm(keys[3], (C,)),
            "pos": nrm(keys[4], (P1, C)),
            "ln1g": jnp.ones((D, C), jnp.float32), "ln1b": jnp.zeros((D, C), jnp.float32),
            # fused QKV weight, lanes = [Q | K | V], head-major within each third
            "wqkv": nrm(keys[5], (D, C, 3 * C)).astype(jnp.bfloat16),
            "bqkv": jnp.zeros((D, 3 * C), jnp.float32),
            "wo": nrm(keys[6], (D, C, C)).astype(jnp.bfloat16),
            "bo": jnp.zeros((D, C), jnp.float32),
            "ln2g": jnp.ones((D, C), jnp.float32), "ln2b": jnp.zeros((D, C), jnp.float32),
            "wm1": nrm(keys[7], (D, C, M)).astype(jnp.bfloat16),
            "bm1": jnp.zeros((D, M), jnp.float32),
            "wm2": nrm(keys[8], (D, M, C)).astype(jnp.bfloat16),
            "bm2": jnp.zeros((D, C), jnp.float32),
            "lnfg": jnp.ones((C,), jnp.float32), "lnfb": jnp.zeros((C,), jnp.float32),
            "wh": nrm(keys[9], (C, K)).astype(jnp.bfloat16),
            "bh": jnp.zeros((K,), jnp.float32),
        }}
    return params


def _pack_params(params):
    """Pack ~30 tiny parameter tensors into 8 kernel buffers."""
    C, K, D, M = COMMON_DIM, NUM_BINS, DEPTH, MLP_DIM
    pa, pe, pv, pc = (params["audio_proj"], params["en_proj"],
                      params["vi_proj"], params["ccmt"])

    def pad_rows(w):
        return jnp.pad(w, ((0, D_MAX - w.shape[0]), (0, 0)))

    w_proj = jnp.stack([pad_rows(pa["w"]), pad_rows(pe["w"]), pad_rows(pv["w"])], axis=0)

    def pad_c(v):
        return jnp.pad(v, (0, C - v.shape[0]))

    vec = jnp.zeros((VEC_ROWS, C), jnp.float32)
    vec = vec.at[VROW_CLS].set(pc["cls"])
    vec = vec.at[VROW_LNFG].set(pc["lnfg"])
    vec = vec.at[VROW_LNFB].set(pc["lnfb"])
    vec = vec.at[VROW_BH].set(pad_c(pc["bh"]))
    vec = vec.at[VROW_BINS].set(pad_c(jnp.linspace(0.0, 10.0, K, dtype=jnp.float32)))
    vec = vec.at[VROW_POS:VROW_POS + P1].set(pc["pos"])
    for m_idx, p in enumerate((pa, pe, pv)):
        vec = vec.at[VROW_PROJB + m_idx].set(p["b"])
        vec = vec.at[VROW_PROJG + m_idx].set(p["g"])
        vec = vec.at[VROW_PROJBETA + m_idx].set(p["beta"])
    for l in range(D):
        base = VROW_LAYER + 6 * l
        vec = vec.at[base + 0].set(pc["ln1g"][l])
        vec = vec.at[base + 1].set(pc["ln1b"][l])
        vec = vec.at[base + 2].set(pc["bo"][l])
        vec = vec.at[base + 3].set(pc["ln2g"][l])
        vec = vec.at[base + 4].set(pc["ln2b"][l])
        vec = vec.at[base + 5].set(pc["bm2"][l])

    bwide = jnp.concatenate(
        [pc["bqkv"], jnp.pad(pc["bm1"], ((0, 0), (0, 3 * C - M)))], axis=0)   # [2D, 3C]

    return (w_proj, vec, pc["wqkv"], pc["wo"], pc["wm1"], pc["wm2"], bwide, pc["wh"])


# ---------------- full forward (single pallas_call) ----------------------------
def esl_ccmt_forward(params, audio_hidden, english_hidden, vietnamese_hidden,
                     *, num_batch_blocks=1):
    B = audio_hidden.shape[0]
    s_a, s_e, s_v = (audio_hidden.shape[1], english_hidden.shape[1],
                     vietnamese_hidden.shape[1])
    T, C, K = NUM_TOKENS, COMMON_DIM, NUM_BINS
    assert B % num_batch_blocks == 0
    assert s_a <= T and s_e <= T and s_v <= T   # deterministic zero-pad path only
    bb = B // num_batch_blocks

    def flat_pad(x):
        # pad each sample's seq to a multiple of 8 and flatten to [B*Sp, Din]
        # so per-sample row offsets in the kernel stay sublane-aligned.
        Bx, S, Din = x.shape
        Sp = _round_up(S, 8)
        if Sp != S:
            x = jnp.pad(x, ((0, 0), (0, Sp - S), (0, 0)))
        return x.reshape(Bx * Sp, Din), Sp

    audio2d, p_a = flat_pad(audio_hidden)
    en2d, p_e = flat_pad(english_hidden)
    vi2d, p_v = flat_pad(vietnamese_hidden)

    w_proj, vec, wqkv, wo, wm1, wm2, bwide, wh = _pack_params(params)

    kernel = functools.partial(_fused_kernel, bb=bb,
                               seq_lens=(s_e, s_v, s_a),
                               seq_pads=(p_e, p_v, p_a))

    def dspec(rows, cols):
        return pl.BlockSpec((rows, cols), lambda i: (i, 0))

    def cspec(shape):
        n = len(shape)
        return pl.BlockSpec(tuple(shape), lambda i, _n=n: (0,) * _n)

    in_specs = [dspec(bb * p_a, D_AUDIO), dspec(bb * p_e, D_EN), dspec(bb * p_v, D_VI),
                cspec(w_proj.shape), cspec(vec.shape), cspec(wqkv.shape),
                cspec(wo.shape), cspec(wm1.shape), cspec(wm2.shape),
                cspec(bwide.shape), cspec(wh.shape)]
    out_shapes = (jax.ShapeDtypeStruct((B, 3 * T, C), jnp.float32),
                  jax.ShapeDtypeStruct((B, 1, SCORE_LANES), jnp.float32))
    out_specs = (pl.BlockSpec((bb, 3 * T, C), lambda i: (i, 0, 0)),
                 pl.BlockSpec((bb, 1, SCORE_LANES), lambda i: (i, 0, 0)))

    feats, scores = pl.pallas_call(
        kernel,
        out_shape=out_shapes,
        grid=(num_batch_blocks,),
        in_specs=in_specs,
        out_specs=out_specs,
        compiler_params=pltpu.CompilerParams(dimension_semantics=("parallel",)),
    )(audio2d, en2d, vi2d, w_proj, vec, wqkv, wo, wm1, wm2, bwide, wh)

    logits = scores[:, 0, 0:K]
    probs = scores[:, 0, K:2 * K]
    expected_score = scores[:, 0, 2 * K]
    return {"logits": logits, "probs": probs, "expected_score": expected_score,
            "multimodal_features": feats}


# ---------------- main ----------------------------------------------------------
if __name__ == "__main__":
    key = jax.random.PRNGKey(0)
    pk, k_a, k_e, k_v = jax.random.split(key, 4)
    params = init_params(pk)

    B = 2
    # pre-encoded hidden states (stand-ins for HF encoder outputs)
    audio_hidden = jax.random.normal(k_a, (B, 6, D_AUDIO), jnp.float32)
    english_hidden = jax.random.normal(k_e, (B, 7, D_EN), jnp.float32)
    vietnamese_hidden = jax.random.normal(k_v, (B, 5, D_VI), jnp.float32)

    # num_batch_blocks=1: whole batch in a single grid step (best for single-TC
    # v5e/v6e).  On v7x, pass num_batch_blocks=2 so each TensorCore gets a slab.
    fwd = jax.jit(functools.partial(esl_ccmt_forward, num_batch_blocks=1))
    out = fwd(params, audio_hidden, english_hidden, vietnamese_hidden)
    jax.block_until_ready(out)

    assert out["logits"].shape == (B, NUM_BINS)
    assert out["probs"].shape == (B, NUM_BINS)
    assert out["expected_score"].shape == (B,)
    assert out["multimodal_features"].shape == (B, 3 * NUM_TOKENS, COMMON_DIM)
    for name in ("logits", "probs", "expected_score", "multimodal_features"):
        assert bool(jnp.all(jnp.isfinite(out[name])))
    print("KERNEL_OK")
</pallas_src>

<mosaic_0001>
module attributes {stable_mosaic.version = 11 : i64} {
  func.func @_fused_kernel(%arg0: i32, %arg1: memref<16x96xf32, #tpu.memory_space<vmem>>, %arg2: memref<16x80xf32, #tpu.memory_space<vmem>>, %arg3: memref<16x80xf32, #tpu.memory_space<vmem>>, %arg4: memref<3x96x64xbf16, #tpu.memory_space<vmem>>, %arg5: memref<64x64xf32, #tpu.memory_space<vmem>>, %arg6: memref<2x64x192xbf16, #tpu.memory_space<vmem>>, %arg7: memref<2x64x64xbf16, #tpu.memory_space<vmem>>, %arg8: memref<2x64x128xbf16, #tpu.memory_space<vmem>>, %arg9: memref<2x128x64xbf16, #tpu.memory_space<vmem>>, %arg10: memref<4x192xf32, #tpu.memory_space<vmem>>, %arg11: memref<64x21xbf16, #tpu.memory_space<vmem>>, %arg12: memref<2x24x64xf32, #tpu.memory_space<vmem>>, %arg13: memref<2x1x128xf32, #tpu.memory_space<vmem>>) attributes {dimension_semantics = [#tpu.dimension_semantics<parallel>], iteration_bounds = array<i64: 1>, scalar_prefetch = 0 : i64, scratch_operands = 0 : i64, tpu.core_type = #tpu.core_type<tc>, window_params = [{transform_indices = @transform_0, window_bounds = array<i64: 16, 96>}, {transform_indices = @transform_1, window_bounds = array<i64: 16, 80>}, {transform_indices = @transform_2, window_bounds = array<i64: 16, 80>}, {pipeline_mode = #tpu.pipeline_mode<synchronous>, transform_indices = @transform_3, window_bounds = array<i64: 3, 96, 64>}, {pipeline_mode = #tpu.pipeline_mode<synchronous>, transform_indices = @transform_4, window_bounds = array<i64: 64, 64>}, {pipeline_mode = #tpu.pipeline_mode<synchronous>, transform_indices = @transform_5, window_bounds = array<i64: 2, 64, 192>}, {pipeline_mode = #tpu.pipeline_mode<synchronous>, transform_indices = @transform_6, window_bounds = array<i64: 2, 64, 64>}, {pipeline_mode = #tpu.pipeline_mode<synchronous>, transform_indices = @transform_7, window_bounds = array<i64: 2, 64, 128>}, {pipeline_mode = #tpu.pipeline_mode<synchronous>, transform_indices = @transform_8, window_bounds = array<i64: 2, 128, 64>}, {pipeline_mode = #tpu.pipeline_mode<synchronous>, transform_indices = @transform_9, window_bounds = array<i64: 4, 192>}, {pipeline_mode = #tpu.pipeline_mode<synchronous>, transform_indices = @transform_10, window_bounds = array<i64: 64, 21>}, {transform_indices = @transform_11, window_bounds = array<i64: 2, 24, 64>}, {transform_indices = @transform_12, window_bounds = array<i64: 2, 1, 128>}]} {
    %c0 = arith.constant 0 : index
    %c0_0 = arith.constant 0 : index
    %c0_1 = arith.constant 0 : index
    %0 = vector.load %arg4[%c0, %c0_0, %c0_1] : memref<3x96x64xbf16, #tpu.memory_space<vmem>>, vector<1x96x64xbf16>
    %1 = vector.shape_cast %0 : vector<1x96x64xbf16> to vector<96x64xbf16>
    %c40 = arith.constant 40 : index
    %c0_2 = arith.constant 0 : index
    %2 = vector.load %arg5[%c40, %c0_2] : memref<64x64xf32, #tpu.memory_space<vmem>>, vector<1x64xf32>
    %c43 = arith.constant 43 : index
    %c0_3 = arith.constant 0 : index
    %3 = vector.load %arg5[%c43, %c0_3] : memref<64x64xf32, #tpu.memory_space<vmem>>, vector<1x64xf32>
    %c46 = arith.constant 46 : index
    %c0_4 = arith.constant 0 : index
    %4 = vector.load %arg5[%c46, %c0_4] : memref<64x64xf32, #tpu.memory_space<vmem>>, vector<1x64xf32>
    %c0_5 = arith.constant 0 : index
    %c0_6 = arith.constant 0 : index
    %5 = vector.load %arg1[%c0_5, %c0_6] : memref<16x96xf32, #tpu.memory_space<vmem>>, vector<16x96xf32>
    %6 = arith.truncf %5 : vector<16x96xf32> to vector<16x96xbf16>
    %cst = arith.constant dense<0.000000e+00> : vector<16x64xf32>
    %7 = tpu.matmul %6, %1, %cst {dimension_numbers = #tpu.dot_dimension_numbers<[1], [0], [0], [1], [0, 0, 1, 1], [], []>} : vector<16x96xbf16>, vector<96x64xbf16>, vector<16x64xf32> -> vector<16x64xf32>
    %8 = vector.broadcast %2 : vector<1x64xf32> to vector<16x64xf32>
    %9 = arith.addf %7, %8 : vector<16x64xf32>
    %cst_7 = arith.constant dense<0.000000e+00> : vector<16xf32>
    %10 = vector.multi_reduction <add>, %9, %cst_7 [1] : vector<16x64xf32> to vector<16xf32>
    %11 = vector.shape_cast %10 : vector<16xf32> to vector<16x1xf32>
    %cst_8 = arith.constant 6.400000e+01 : f32
    %12 = vector.broadcast %cst_8 : f32 to vector<16x1xf32>
    %13 = arith.divf %11, %12 : vector<16x1xf32>
    %14 = vector.broadcast %13 : vector<16x1xf32> to vector<16x64xf32>
    %15 = arith.subf %9, %14 : vector<16x64xf32>
    %16 = arith.mulf %15, %15 : vector<16x64xf32>
    %cst_9 = arith.constant dense<0.000000e+00> : vector<16xf32>
    %17 = vector.multi_reduction <add>, %16, %cst_9 [1] : vector<16x64xf32> to vector<16xf32>
    %18 = vector.shape_cast %17 : vector<16xf32> to vector<16x1xf32>
    %cst_10 = arith.constant 6.400000e+01 : f32
    %19 = vector.broadcast %cst_10 : f32 to vector<16x1xf32>
    %20 = arith.divf %18, %19 : vector<16x1xf32>
    %21 = vector.broadcast %13 : vector<16x1xf32> to vector<16x64xf32>
    %22 = arith.subf %9, %21 : vector<16x64xf32>
    %cst_11 = arith.constant 9.99999974E-6 : f32
    %23 = vector.broadcast %cst_11 : f32 to vector<16x1xf32>
    %24 = arith.addf %20, %23 : vector<16x1xf32>
    %25 = math.rsqrt %24 : vector<16x1xf32>
    %26 = vector.broadcast %25 : vector<16x1xf32> to vector<16x64xf32>
    %27 = arith.mulf %22, %26 : vector<16x64xf32>
    %28 = vector.broadcast %3 : vector<1x64xf32> to vector<16x64xf32>
    %29 = arith.mulf %27, %28 : vector<16x64xf32>
    %30 = vector.broadcast %4 : vector<1x64xf32> to vector<16x64xf32>
    %31 = arith.addf %29, %30 : vector<16x64xf32>
    %cst_12 = arith.constant 5.000000e-01 : f32
    %32 = vector.broadcast %cst_12 : f32 to vector<16x64xf32>
    %33 = arith.mulf %32, %31 : vector<16x64xf32>
    %cst_13 = arith.constant 4.471500e-02 : f32
    %34 = vector.broadcast %cst_13 : f32 to vector<16x64xf32>
    %35 = arith.mulf %34, %31 : vector<16x64xf32>
    %36 = arith.mulf %35, %31 : vector<16x64xf32>
    %37 = arith.mulf %36, %31 : vector<16x64xf32>
    %38 = arith.addf %31, %37 : vector<16x64xf32>
    %cst_14 = arith.constant 0.797884583 : f32
    %39 = vector.broadcast %cst_14 : f32 to vector<16x64xf32>
    %40 = arith.mulf %39, %38 : vector<16x64xf32>
    %41 = math.tanh %40 : vector<16x64xf32>
    %cst_15 = arith.constant 1.000000e+00 : f32
    %42 = vector.broadcast %cst_15 : f32 to vector<16x64xf32>
    %43 = arith.addf %42, %41 : vector<16x64xf32>
    %44 = arith.mulf %33, %43 : vector<16x64xf32>
    %c1 = arith.constant 1 : index
    %c0_16 = arith.constant 0 : index
    %c0_17 = arith.constant 0 : index
    %45 = vector.load %arg4[%c1, %c0_16, %c0_17] : memref<3x96x64xbf16, #tpu.memory_space<vmem>>, vector<1x96x64xbf16>
    %46 = vector.shape_cast %45 : vector<1x96x64xbf16> to vector<96x64xbf16>
    %47 = vector.extract_strided_slice %46 {offsets = [0, 0], sizes = [80, 64], strides = [1, 1]} : vector<96x64xbf16> to vector<80x64xbf16>
    %c41 = arith.constant 41 : index
    %c0_18 = arith.constant 0 : index
    %48 = vector.load %arg5[%c41, %c0_18] : memref<64x64xf32, #tpu.memory_space<vmem>>, vector<1x64xf32>
    %c44 = arith.constant 44 : index
    %c0_19 = arith.constant 0 : index
    %49 = vector.load %arg5[%c44, %c0_19] : memref<64x64xf32, #tpu.memory_space<vmem>>, vector<1x64xf32>
    %c47 = arith.constant 47 : index
    %c0_20 = arith.constant 0 : index
    %50 = vector.load %arg5[%c47, %c0_20] : memref<64x64xf32, #tpu.memory_space<vmem>>, vector<1x64xf32>
    %c0_21 = arith.constant 0 : index
    %c0_22 = arith.constant 0 : index
    %51 = vector.load %arg2[%c0_21, %c0_22] : memref<16x80xf32, #tpu.memory_space<vmem>>, vector<16x80xf32>
    %52 = arith.truncf %51 : vector<16x80xf32> to vector<16x80xbf16>
    %cst_23 = arith.constant dense<0.000000e+00> : vector<16x64xf32>
    %53 = tpu.matmul %52, %47, %cst_23 {dimension_numbers = #tpu.dot_dimension_numbers<[1], [0], [0], [1], [0, 0, 1, 1], [], []>} : vector<16x80xbf16>, vector<80x64xbf16>, vector<16x64xf32> -> vector<16x64xf32>
    %54 = vector.broadcast %48 : vector<1x64xf32> to vector<16x64xf32>
    %55 = arith.addf %53, %54 : vector<16x64xf32>
    %cst_24 = arith.constant dense<0.000000e+00> : vector<16xf32>
    %56 = vector.multi_reduction <add>, %55, %cst_24 [1] : vector<16x64xf32> to vector<16xf32>
    %57 = vector.shape_cast %56 : vector<16xf32> to vector<16x1xf32>
    %cst_25 = arith.constant 6.400000e+01 : f32
    %58 = vector.broadcast %cst_25 : f32 to vector<16x1xf32>
    %59 = arith.divf %57, %58 : vector<16x1xf32>
    %60 = vector.broadcast %59 : vector<16x1xf32> to vector<16x64xf32>
    %61 = arith.subf %55, %60 : vector<16x64xf32>
    %62 = arith.mulf %61, %61 : vector<16x64xf32>
    %cst_26 = arith.constant dense<0.000000e+00> : vector<16xf32>
    %63 = vector.multi_reduction <add>, %62, %cst_26 [1] : vector<16x64xf32> to vector<16xf32>
    %64 = vector.shape_cast %63 : vector<16xf32> to vector<16x1xf32>
    %cst_27 = arith.constant 6.400000e+01 : f32
    %65 = vector.broadcast %cst_27 : f32 to vector<16x1xf32>
    %66 = arith.divf %64, %65 : vector<16x1xf32>
    %67 = vector.broadcast %59 : vector<16x1xf32> to vector<16x64xf32>
    %68 = arith.subf %55, %67 : vector<16x64xf32>
    %cst_28 = arith.constant 9.99999974E-6 : f32
    %69 = vector.broadcast %cst_28 : f32 to vector<16x1xf32>
    %70 = arith.addf %66, %69 : vector<16x1xf32>
    %71 = math.rsqrt %70 : vector<16x1xf32>
    %72 = vector.broadcast %71 : vector<16x1xf32> to vector<16x64xf32>
    %73 = arith.mulf %68, %72 : vector<16x64xf32>
    %74 = vector.broadcast %49 : vector<1x64xf32> to vector<16x64xf32>
    %75 = arith.mulf %73, %74 : vector<16x64xf32>
    %76 = vector.broadcast %50 : vector<1x64xf32> to vector<16x64xf32>
    %77 = arith.addf %75, %76 : vector<16x64xf32>
    %cst_29 = arith.constant 5.000000e-01 : f32
    %78 = vector.broadcast %cst_29 : f32 to vector<16x64xf32>
    %79 = arith.mulf %78, %77 : vector<16x64xf32>
    %cst_30 = arith.constant 4.471500e-02 : f32
    %80 = vector.broadcast %cst_30 : f32 to vector<16x64xf32>
    %81 = arith.mulf %80, %77 : vector<16x64xf32>
    %82 = arith.mulf %81, %77 : vector<16x64xf32>
    %83 = arith.mulf %82, %77 : vector<16x64xf32>
    %84 = arith.addf %77, %83 : vector<16x64xf32>
    %cst_31 = arith.constant 0.797884583 : f32
    %85 = vector.broadcast %cst_31 : f32 to vector<16x64xf32>
    %86 = arith.mulf %85, %84 : vector<16x64xf32>
    %87 = math.tanh %86 : vector<16x64xf32>
    %cst_32 = arith.constant 1.000000e+00 : f32
    %88 = vector.broadcast %cst_32 : f32 to vector<16x64xf32>
    %89 = arith.addf %88, %87 : vector<16x64xf32>
    %90 = arith.mulf %79, %89 : vector<16x64xf32>
    %c2 = arith.constant 2 : index
    %c0_33 = arith.constant 0 : index
    %c0_34 = arith.constant 0 : index
    %91 = vector.load %arg4[%c2, %c0_33, %c0_34] : memref<3x96x64xbf16, #tpu.memory_space<vmem>>, vector<1x96x64xbf16>
    %92 = vector.shape_cast %91 : vector<1x96x64xbf16> to vector<96x64xbf16>
    %93 = vector.extract_strided_slice %92 {offsets = [0, 0], sizes = [80, 64], strides = [1, 1]} : vector<96x64xbf16> to vector<80x64xbf16>
    %c42 = arith.constant 42 : index
    %c0_35 = arith.constant 0 : index
    %94 = vector.load %arg5[%c42, %c0_35] : memref<64x64xf32, #tpu.memory_space<vmem>>, vector<1x64xf32>
    %c45 = arith.constant 45 : index
    %c0_36 = arith.constant 0 : index
    %95 = vector.load %arg5[%c45, %c0_36] : memref<64x64xf32, #tpu.memory_space<vmem>>, vector<1x64xf32>
    %c48 = arith.constant 48 : index
    %c0_37 = arith.constant 0 : index
    %96 = vector.load %arg5[%c48, %c0_37] : memref<64x64xf32, #tpu.memory_space<vmem>>, vector<1x64xf32>
    %c0_38 = arith.constant 0 : index
    %c0_39 = arith.constant 0 : index
    %97 = vector.load %arg3[%c0_38, %c0_39] : memref<16x80xf32, #tpu.memory_space<vmem>>, vector<16x80xf32>
    %98 = arith.truncf %97 : vector<16x80xf32> to vector<16x80xbf16>
    %cst_40 = arith.constant dense<0.000000e+00> : vector<16x64xf32>
    %99 = tpu.matmul %98, %93, %cst_40 {dimension_numbers = #tpu.dot_dimension_numbers<[1], [0], [0], [1], [0, 0, 1, 1], [], []>} : vector<16x80xbf16>, vector<80x64xbf16>, vector<16x64xf32> -> vector<16x64xf32>
    %100 = vector.broadcast %94 : vector<1x64xf32> to vector<16x64xf32>
    %101 = arith.addf %99, %100 : vector<16x64xf32>
    %cst_41 = arith.constant dense<0.000000e+00> : vector<16xf32>
    %102 = vector.multi_reduction <add>, %101, %cst_41 [1] : vector<16x64xf32> to vector<16xf32>
    %103 = vector.shape_cast %102 : vector<16xf32> to vector<16x1xf32>
    %cst_42 = arith.constant 6.400000e+01 : f32
    %104 = vector.broadcast %cst_42 : f32 to vector<16x1xf32>
    %105 = arith.divf %103, %104 : vector<16x1xf32>
    %106 = vector.broadcast %105 : vector<16x1xf32> to vector<16x64xf32>
    %107 = arith.subf %101, %106 : vector<16x64xf32>
    %108 = arith.mulf %107, %107 : vector<16x64xf32>
    %cst_43 = arith.constant dense<0.000000e+00> : vector<16xf32>
    %109 = vector.multi_reduction <add>, %108, %cst_43 [1] : vector<16x64xf32> to vector<16xf32>
    %110 = vector.shape_cast %109 : vector<16xf32> to vector<16x1xf32>
    %cst_44 = arith.constant 6.400000e+01 : f32
    %111 = vector.broadcast %cst_44 : f32 to vector<16x1xf32>
    %112 = arith.divf %110, %111 : vector<16x1xf32>
    %113 = vector.broadcast %105 : vector<16x1xf32> to vector<16x64xf32>
    %114 = arith.subf %101, %113 : vector<16x64xf32>
    %cst_45 = arith.constant 9.99999974E-6 : f32
    %115 = vector.broadcast %cst_45 : f32 to vector<16x1xf32>
    %116 = arith.addf %112, %115 : vector<16x1xf32>
    %117 = math.rsqrt %116 : vector<16x1xf32>
    %118 = vector.broadcast %117 : vector<16x1xf32> to vector<16x64xf32>
    %119 = arith.mulf %114, %118 : vector<16x64xf32>
    %120 = vector.broadcast %95 : vector<1x64xf32> to vector<16x64xf32>
    %121 = arith.mulf %119, %120 : vector<16x64xf32>
    %122 = vector.broadcast %96 : vector<1x64xf32> to vector<16x64xf32>
    %123 = arith.addf %121, %122 : vector<16x64xf32>
    %cst_46 = arith.constant 5.000000e-01 : f32
    %124 = vector.broadcast %cst_46 : f32 to vector<16x64xf32>
    %125 = arith.mulf %124, %123 : vector<16x64xf32>
    %cst_47 = arith.constant 4.471500e-02 : f32
    %126 = vector.broadcast %cst_47 : f32 to vector<16x64xf32>
    %127 = arith.mulf %126, %123 : vector<16x64xf32>
    %128 = arith.mulf %127, %123 : vector<16x64xf32>
    %129 = arith.mulf %128, %123 : vector<16x64xf32>
    %130 = arith.addf %123, %129 : vector<16x64xf32>
    %cst_48 = arith.constant 0.797884583 : f32
    %131 = vector.broadcast %cst_48 : f32 to vector<16x64xf32>
    %132 = arith.mulf %131, %130 : vector<16x64xf32>
    %133 = math.tanh %132 : vector<16x64xf32>
    %cst_49 = arith.constant 1.000000e+00 : f32
    %134 = vector.broadcast %cst_49 : f32 to vector<16x64xf32>
    %135 = arith.addf %134, %133 : vector<16x64xf32>
    %136 = arith.mulf %125, %135 : vector<16x64xf32>
    %c0_50 = arith.constant 0 : index
    %c0_51 = arith.constant 0 : index
    %137 = vector.load %arg5[%c0_50, %c0_51] : memref<64x64xf32, #tpu.memory_space<vmem>>, vector<1x64xf32>
    %c8 = arith.constant 8 : index
    %c0_52 = arith.constant 0 : index
    %138 = vector.load %arg5[%c8, %c0_52] : memref<64x64xf32, #tpu.memory_space<vmem>>, vector<25x64xf32>
    %c1_53 = arith.constant 1 : index
    %c0_54 = arith.constant 0 : index
    %139 = vector.load %arg5[%c1_53, %c0_54] : memref<64x64xf32, #tpu.memory_space<vmem>>, vector<1x64xf32>
    %c2_55 = arith.constant 2 : index
    %c0_56 = arith.constant 0 : index
    %140 = vector.load %arg5[%c2_55, %c0_56] : memref<64x64xf32, #tpu.memory_space<vmem>>, vector<1x64xf32>
    %141 = vector.extract_strided_slice %90 {offsets = [0, 0], sizes = [7, 64], strides = [1, 1]} : vector<16x64xf32> to vector<7x64xf32>
    %cst_57 = arith.constant 0.000000e+00 : f32
    %142 = vector.broadcast %cst_57 : f32 to vector<1x64xf32>
    %143 = tpu.concatenate %141, %142 in 0 : vector<7x64xf32>, vector<1x64xf32> -> vector<8x64xf32>
    %144 = vector.extract_strided_slice %136 {offsets = [0, 0], sizes = [5, 64], strides = [1, 1]} : vector<16x64xf32> to vector<5x64xf32>
    %cst_58 = arith.constant 0.000000e+00 : f32
    %145 = vector.broadcast %cst_58 : f32 to vector<3x64xf32>
    %146 = tpu.concatenate %144, %145 in 0 : vector<5x64xf32>, vector<3x64xf32> -> vector<8x64xf32>
    %147 = vector.extract_strided_slice %44 {offsets = [0, 0], sizes = [6, 64], strides = [1, 1]} : vector<16x64xf32> to vector<6x64xf32>
    %cst_59 = arith.constant 0.000000e+00 : f32
    %148 = vector.broadcast %cst_59 : f32 to vector<2x64xf32>
    %149 = tpu.concatenate %147, %148 in 0 : vector<6x64xf32>, vector<2x64xf32> -> vector<8x64xf32>
    %150 = tpu.concatenate %143, %146, %149 in 0 : vector<8x64xf32>, vector<8x64xf32>, vector<8x64xf32> -> vector<24x64xf32>
    %c0_60 = arith.constant 0 : index
    %c0_61 = arith.constant 0 : index
    %c0_62 = arith.constant 0 : index
    %151 = vector.load %arg12[%c0_60, %c0_61, %c0_62] : memref<2x24x64xf32, #tpu.memory_space<vmem>>, vector<1x24x64xf32>
    %152 = vector.shape_cast %151 : vector<1x24x64xf32> to vector<24x64xf32>
    %153 = vector.shape_cast %150 : vector<24x64xf32> to vector<1x24x64xf32>
    tpu.vector_store %arg12[%c0_60, %c0_61, %c0_62], %153 {strides = array<i32>} : memref<2x24x64xf32, #tpu.memory_space<vmem>>, vector<1x24x64xf32>,
    %154 = tpu.concatenate %150, %137 in 0 : vector<24x64xf32>, vector<1x64xf32> -> vector<25x64xf32>
    %155 = arith.addf %154, %138 : vector<25x64xf32>
    %c49 = arith.constant 49 : index
    %c0_63 = arith.constant 0 : index
    %156 = vector.load %arg5[%c49, %c0_63] : memref<64x64xf32, #tpu.memory_space<vmem>>, vector<1x64xf32>
    %c50 = arith.constant 50 : index
    %c0_64 = arith.constant 0 : index
    %157 = vector.load %arg5[%c50, %c0_64] : memref<64x64xf32, #tpu.memory_space<vmem>>, vector<1x64xf32>
    %c51 = arith.constant 51 : index
    %c0_65 = arith.constant 0 : index
    %158 = vector.load %arg5[%c51, %c0_65] : memref<64x64xf32, #tpu.memory_space<vmem>>, vector<1x64xf32>
    %c52 = arith.constant 52 : index
    %c0_66 = arith.constant 0 : index
    %159 = vector.load %arg5[%c52, %c0_66] : memref<64x64xf32, #tpu.memory_space<vmem>>, vector<1x64xf32>
    %c53 = arith.constant 53 : index
    %c0_67 = arith.constant 0 : index
    %160 = vector.load %arg5[%c53, %c0_67] : memref<64x64xf32, #tpu.memory_space<vmem>>, vector<1x64xf32>
    %c54 = arith.constant 54 : index
    %c0_68 = arith.constant 0 : index
    %161 = vector.load %arg5[%c54, %c0_68] : memref<64x64xf32, #tpu.memory_space<vmem>>, vector<1x64xf32>
    %c0_69 = arith.constant 0 : index
    %c0_70 = arith.constant 0 : index
    %162 = vector.load %arg10[%c0_69, %c0_70] : memref<4x192xf32, #tpu.memory_space<vmem>>, vector<1x192xf32>
    %c2_71 = arith.constant 2 : index
    %c0_72 = arith.constant 0 : index
    %163 = vector.load %arg10[%c2_71, %c0_72] : memref<4x192xf32, #tpu.memory_space<vmem>>, vector<1x128xf32>
    %cst_73 = arith.constant dense<0.000000e+00> : vector<25xf32>
    %164 = vector.multi_reduction <add>, %155, %cst_73 [1] : vector<25x64xf32> to vector<25xf32>
    %165 = vector.shape_cast %164 : vector<25xf32> to vector<25x1xf32>
    %cst_74 = arith.constant 6.400000e+01 : f32
    %166 = vector.broadcast %cst_74 : f32 to vector<25x1xf32>
    %167 = arith.divf %165, %166 : vector<25x1xf32>
    %168 = vector.broadcast %167 : vector<25x1xf32> to vector<25x64xf32>
    %169 = arith.subf %155, %168 : vector<25x64xf32>
    %170 = arith.mulf %169, %169 : vector<25x64xf32>
    %cst_75 = arith.constant dense<0.000000e+00> : vector<25xf32>
    %171 = vector.multi_reduction <add>, %170, %cst_75 [1] : vector<25x64xf32> to vector<25xf32>
    %172 = vector.shape_cast %171 : vector<25xf32> to vector<25x1xf32>
    %cst_76 = arith.constant 6.400000e+01 : f32
    %173 = vector.broadcast %cst_76 : f32 to vector<25x1xf32>
    %174 = arith.divf %172, %173 : vector<25x1xf32>
    %175 = vector.broadcast %167 : vector<25x1xf32> to vector<25x64xf32>
    %176 = arith.subf %155, %175 : vector<25x64xf32>
    %cst_77 = arith.constant 9.99999974E-6 : f32
    %177 = vector.broadcast %cst_77 : f32 to vector<25x1xf32>
    %178 = arith.addf %174, %177 : vector<25x1xf32>
    %179 = math.rsqrt %178 : vector<25x1xf32>
    %180 = vector.broadcast %179 : vector<25x1xf32> to vector<25x64xf32>
    %181 = arith.mulf %176, %180 : vector<25x64xf32>
    %182 = vector.broadcast %156 : vector<1x64xf32> to vector<25x64xf32>
    %183 = arith.mulf %181, %182 : vector<25x64xf32>
    %184 = vector.broadcast %157 : vector<1x64xf32> to vector<25x64xf32>
    %185 = arith.addf %183, %184 : vector<25x64xf32>
    %186 = arith.truncf %185 : vector<25x64xf32> to vector<25x64xbf16>
    %c0_78 = arith.constant 0 : index
    %c0_79 = arith.constant 0 : index
    %c0_80 = arith.constant 0 : index
    %187 = vector.load %arg6[%c0_78, %c0_79, %c0_80] : memref<2x64x192xbf16, #tpu.memory_space<vmem>>, vector<1x64x192xbf16>
    %188 = vector.shape_cast %187 : vector<1x64x192xbf16> to vector<64x192xbf16>
    %cst_81 = arith.constant dense<0.000000e+00> : vector<25x192xf32>
    %189 = tpu.matmul %186, %188, %cst_81 {dimension_numbers = #tpu.dot_dimension_numbers<[1], [0], [0], [1], [0, 0, 1, 1], [], []>} : vector<25x64xbf16>, vector<64x192xbf16>, vector<25x192xf32> -> vector<25x192xf32>
    %190 = vector.broadcast %162 : vector<1x192xf32> to vector<25x192xf32>
    %191 = arith.addf %189, %190 : vector<25x192xf32>
    %192 = vector.extract_strided_slice %191 {offsets = [0, 0], sizes = [25, 16], strides = [1, 1]} : vector<25x192xf32> to vector<25x16xf32>
    %193 = arith.truncf %192 : vector<25x16xf32> to vector<25x16xbf16>
    %194 = vector.extract_strided_slice %191 {offsets = [0, 64], sizes = [25, 16], strides = [1, 1]} : vector<25x192xf32> to vector<25x16xf32>
    %195 = arith.truncf %194 : vector<25x16xf32> to vector<25x16xbf16>
    %196 = vector.extract_strided_slice %191 {offsets = [0, 128], sizes = [25, 16], strides = [1, 1]} : vector<25x192xf32> to vector<25x16xf32>
    %197 = arith.truncf %196 : vector<25x16xf32> to vector<25x16xbf16>
    "tpu.trace_start"() <{level = 10 : i32, message = "pd,qd->pq"}> : () -> ()
    %cst_82 = arith.constant dense<0.000000e+00> : vector<25x25xf32>
    %198 = tpu.matmul %193, %195, %cst_82 {dimension_numbers = #tpu.dot_dimension_numbers<[1], [1], [0], [0], [0, 0, 1, 0], [], []>} : vector<25x16xbf16>, vector<25x16xbf16>, vector<25x25xf32> -> vector<25x25xf32>
    "tpu.trace_stop"() : () -> ()
    %cst_83 = arith.constant 2.500000e-01 : f32
    %199 = vector.broadcast %cst_83 : f32 to vector<25x25xf32>
    %200 = arith.mulf %198, %199 : vector<25x25xf32>
    %cst_84 = arith.constant dense<0xFF800000> : vector<25xf32>
    %201 = vector.multi_reduction <maximumf>, %200, %cst_84 [1] : vector<25x25xf32> to vector<25xf32>
    %202 = vector.shape_cast %201 : vector<25xf32> to vector<25x1xf32>
    %203 = vector.broadcast %202 : vector<25x1xf32> to vector<25x25xf32>
    %204 = arith.subf %200, %203 : vector<25x25xf32>
    %205 = math.exp %204 : vector<25x25xf32>
    %cst_85 = arith.constant dense<0.000000e+00> : vector<25xf32>
    %206 = vector.multi_reduction <add>, %205, %cst_85 [1] : vector<25x25xf32> to vector<25xf32>
    %207 = vector.shape_cast %206 : vector<25xf32> to vector<25x1xf32>
    %208 = tpu.reciprocal %207 {approx = true} : vector<25x1xf32> -> vector<25x1xf32>
    %209 = vector.broadcast %208 : vector<25x1xf32> to vector<25x25xf32>
    %210 = arith.mulf %205, %209 : vector<25x25xf32>
    %211 = arith.truncf %210 : vector<25x25xf32> to vector<25x25xbf16>
    %cst_86 = arith.constant dense<0.000000e+00> : vector<25x16xf32>
    %212 = tpu.matmul %211, %197, %cst_86 {dimension_numbers = #tpu.dot_dimension_numbers<[1], [0], [0], [1], [0, 0, 1, 1], [], []>} : vector<25x25xbf16>, vector<25x16xbf16>, vector<25x16xf32> -> vector<25x16xf32>
    %213 = vector.extract_strided_slice %191 {offsets = [0, 16], sizes = [25, 16], strides = [1, 1]} : vector<25x192xf32> to vector<25x16xf32>
    %214 = arith.truncf %213 : vector<25x16xf32> to vector<25x16xbf16>
    %215 = vector.extract_strided_slice %191 {offsets = [0, 80], sizes = [25, 16], strides = [1, 1]} : vector<25x192xf32> to vector<25x16xf32>
    %216 = arith.truncf %215 : vector<25x16xf32> to vector<25x16xbf16>
    %217 = vector.extract_strided_slice %191 {offsets = [0, 144], sizes = [25, 16], strides = [1, 1]} : vector<25x192xf32> to vector<25x16xf32>
    %218 = arith.truncf %217 : vector<25x16xf32> to vector<25x16xbf16>
    "tpu.trace_start"() <{level = 10 : i32, message = "pd,qd->pq"}> : () -> ()
    %cst_87 = arith.constant dense<0.000000e+00> : vector<25x25xf32>
    %219 = tpu.matmul %214, %216, %cst_87 {dimension_numbers = #tpu.dot_dimension_numbers<[1], [1], [0], [0], [0, 0, 1, 0], [], []>} : vector<25x16xbf16>, vector<25x16xbf16>, vector<25x25xf32> -> vector<25x25xf32>
    "tpu.trace_stop"() : () -> ()
    %cst_88 = arith.constant 2.500000e-01 : f32
    %220 = vector.broadcast %cst_88 : f32 to vector<25x25xf32>
    %221 = arith.mulf %219, %220 : vector<25x25xf32>
    %cst_89 = arith.constant dense<0xFF800000> : vector<25xf32>
    %222 = vector.multi_reduction <maximumf>, %221, %cst_89 [1] : vector<25x25xf32> to vector<25xf32>
    %223 = vector.shape_cast %222 : vector<25xf32> to vector<25x1xf32>
    %224 = vector.broadcast %223 : vector<25x1xf32> to vector<25x25xf32>
    %225 = arith.subf %221, %224 : vector<25x25xf32>
    %226 = math.exp %225 : vector<25x25xf32>
    %cst_90 = arith.constant dense<0.000000e+00> : vector<25xf32>
    %227 = vector.multi_reduction <add>, %226, %cst_90 [1] : vector<25x25xf32> to vector<25xf32>
    %228 = vector.shape_cast %227 : vector<25xf32> to vector<25x1xf32>
    %229 = tpu.reciprocal %228 {approx = true} : vector<25x1xf32> -> vector<25x1xf32>
    %230 = vector.broadcast %229 : vector<25x1xf32> to vector<25x25xf32>
    %231 = arith.mulf %226, %230 : vector<25x25xf32>
    %232 = arith.truncf %231 : vector<25x25xf32> to vector<25x25xbf16>
    %cst_91 = arith.constant dense<0.000000e+00> : vector<25x16xf32>
    %233 = tpu.matmul %232, %218, %cst_91 {dimension_numbers = #tpu.dot_dimension_numbers<[1], [0], [0], [1], [0, 0, 1, 1], [], []>} : vector<25x25xbf16>, vector<25x16xbf16>, vector<25x16xf32> -> vector<25x16xf32>
    %234 = vector.extract_strided_slice %191 {offsets = [0, 32], sizes = [25, 16], strides = [1, 1]} : vector<25x192xf32> to vector<25x16xf32>
    %235 = arith.truncf %234 : vector<25x16xf32> to vector<25x16xbf16>
    %236 = vector.extract_strided_slice %191 {offsets = [0, 96], sizes = [25, 16], strides = [1, 1]} : vector<25x192xf32> to vector<25x16xf32>
    %237 = arith.truncf %236 : vector<25x16xf32> to vector<25x16xbf16>
    %238 = vector.extract_strided_slice %191 {offsets = [0, 160], sizes = [25, 16], strides = [1, 1]} : vector<25x192xf32> to vector<25x16xf32>
    %239 = arith.truncf %238 : vector<25x16xf32> to vector<25x16xbf16>
    "tpu.trace_start"() <{level = 10 : i32, message = "pd,qd->pq"}> : () -> ()
    %cst_92 = arith.constant dense<0.000000e+00> : vector<25x25xf32>
    %240 = tpu.matmul %235, %237, %cst_92 {dimension_numbers = #tpu.dot_dimension_numbers<[1], [1], [0], [0], [0, 0, 1, 0], [], []>} : vector<25x16xbf16>, vector<25x16xbf16>, vector<25x25xf32> -> vector<25x25xf32>
    "tpu.trace_stop"() : () -> ()
    %cst_93 = arith.constant 2.500000e-01 : f32
    %241 = vector.broadcast %cst_93 : f32 to vector<25x25xf32>
    %242 = arith.mulf %240, %241 : vector<25x25xf32>
    %cst_94 = arith.constant dense<0xFF800000> : vector<25xf32>
    %243 = vector.multi_reduction <maximumf>, %242, %cst_94 [1] : vector<25x25xf32> to vector<25xf32>
    %244 = vector.shape_cast %243 : vector<25xf32> to vector<25x1xf32>
    %245 = vector.broadcast %244 : vector<25x1xf32> to vector<25x25xf32>
    %246 = arith.subf %242, %245 : vector<25x25xf32>
    %247 = math.exp %246 : vector<25x25xf32>
    %cst_95 = arith.constant dense<0.000000e+00> : vector<25xf32>
    %248 = vector.multi_reduction <add>, %247, %cst_95 [1] : vector<25x25xf32> to vector<25xf32>
    %249 = vector.shape_cast %248 : vector<25xf32> to vector<25x1xf32>
    %250 = tpu.reciprocal %249 {approx = true} : vector<25x1xf32> -> vector<25x1xf32>
    %251 = vector.broadcast %250 : vector<25x1xf32> to vector<25x25xf32>
    %252 = arith.mulf %247, %251 : vector<25x25xf32>
    %253 = arith.truncf %252 : vector<25x25xf32> to vector<25x25xbf16>
    %cst_96 = arith.constant dense<0.000000e+00> : vector<25x16xf32>
    %254 = tpu.matmul %253, %239, %cst_96 {dimension_numbers = #tpu.dot_dimension_numbers<[1], [0], [0], [1], [0, 0, 1, 1], [], []>} : vector<25x25xbf16>, vector<25x16xbf16>, vector<25x16xf32> -> vector<25x16xf32>
    %255 = vector.extract_strided_slice %191 {offsets = [0, 48], sizes = [25, 16], strides = [1, 1]} : vector<25x192xf32> to vector<25x16xf32>
    %256 = arith.truncf %255 : vector<25x16xf32> to vector<25x16xbf16>
    %257 = vector.extract_strided_slice %191 {offsets = [0, 112], sizes = [25, 16], strides = [1, 1]} : vector<25x192xf32> to vector<25x16xf32>
    %258 = arith.truncf %257 : vector<25x16xf32> to vector<25x16xbf16>
    %259 = vector.extract_strided_slice %191 {offsets = [0, 176], sizes = [25, 16], strides = [1, 1]} : vector<25x192xf32> to vector<25x16xf32>
    %260 = arith.truncf %259 : vector<25x16xf32> to vector<25x16xbf16>
    "tpu.trace_start"() <{level = 10 : i32, message = "pd,qd->pq"}> : () -> ()
    %cst_97 = arith.constant dense<0.000000e+00> : vector<25x25xf32>
    %261 = tpu.matmul %256, %258, %cst_97 {dimension_numbers = #tpu.dot_dimension_numbers<[1], [1], [0], [0], [0, 0, 1, 0], [], []>} : vector<25x16xbf16>, vector<25x16xbf16>, vector<25x25xf32> -> vector<25x25xf32>
    "tpu.trace_stop"() : () -> ()
    %cst_98 = arith.constant 2.500000e-01 : f32
    %262 = vector.broadcast %cst_98 : f32 to vector<25x25xf32>
    %263 = arith.mulf %261, %262 : vector<25x25xf32>
    %cst_99 = arith.constant dense<0xFF800000> : vector<25xf32>
    %264 = vector.multi_reduction <maximumf>, %263, %cst_99 [1] : vector<25x25xf32> to vector<25xf32>
    %265 = vector.shape_cast %264 : vector<25xf32> to vector<25x1xf32>
    %266 = vector.broadcast %265 : vector<25x1xf32> to vector<25x25xf32>
    %267 = arith.subf %263, %266 : vector<25x25xf32>
    %268 = math.exp %267 : vector<25x25xf32>
    %cst_100 = arith.constant dense<0.000000e+00> : vector<25xf32>
    %269 = vector.multi_reduction <add>, %268, %cst_100 [1] : vector<25x25xf32> to vector<25xf32>
    %270 = vector.shape_cast %269 : vector<25xf32> to vector<25x1xf32>
    %271 = tpu.reciprocal %270 {approx = true} : vector<25x1xf32> -> vector<25x1xf32>
    %272 = vector.broadcast %271 : vector<25x1xf32> to vector<25x25xf32>
    %273 = arith.mulf %268, %272 : vector<25x25xf32>
    %274 = arith.truncf %273 : vector<25x25xf32> to vector<25x25xbf16>
    %cst_101 = arith.constant dense<0.000000e+00> : vector<25x16xf32>
    %275 = tpu.matmul %274, %260, %cst_101 {dimension_numbers = #tpu.dot_dimension_numbers<[1], [0], [0], [1], [0, 0, 1, 1], [], []>} : vector<25x25xbf16>, vector<25x16xbf16>, vector<25x16xf32> -> vector<25x16xf32>
    %276 = tpu.concatenate %212, %233, %254, %275 in 1 : vector<25x16xf32>, vector<25x16xf32>, vector<25x16xf32>, vector<25x16xf32> -> vector<25x64xf32>
    %277 = arith.truncf %276 : vector<25x64xf32> to vector<25x64xbf16>
    %c0_102 = arith.constant 0 : index
    %c0_103 = arith.constant 0 : index
    %c0_104 = arith.constant 0 : index
    %278 = vector.load %arg7[%c0_102, %c0_103, %c0_104] : memref<2x64x64xbf16, #tpu.memory_space<vmem>>, vector<1x64x64xbf16>
    %279 = vector.shape_cast %278 : vector<1x64x64xbf16> to vector<64x64xbf16>
    %cst_105 = arith.constant dense<0.000000e+00> : vector<25x64xf32>
    %280 = tpu.matmul %277, %279, %cst_105 {dimension_numbers = #tpu.dot_dimension_numbers<[1], [0], [0], [1], [0, 0, 1, 1], [], []>} : vector<25x64xbf16>, vector<64x64xbf16>, vector<25x64xf32> -> vector<25x64xf32>
    %281 = arith.addf %155, %280 : vector<25x64xf32>
    %282 = vector.broadcast %158 : vector<1x64xf32> to vector<25x64xf32>
    %283 = arith.addf %281, %282 : vector<25x64xf32>
    %cst_106 = arith.constant dense<0.000000e+00> : vector<25xf32>
    %284 = vector.multi_reduction <add>, %283, %cst_106 [1] : vector<25x64xf32> to vector<25xf32>
    %285 = vector.shape_cast %284 : vector<25xf32> to vector<25x1xf32>
    %cst_107 = arith.constant 6.400000e+01 : f32
    %286 = vector.broadcast %cst_107 : f32 to vector<25x1xf32>
    %287 = arith.divf %285, %286 : vector<25x1xf32>
    %288 = vector.broadcast %287 : vector<25x1xf32> to vector<25x64xf32>
    %289 = arith.subf %283, %288 : vector<25x64xf32>
    %290 = arith.mulf %289, %289 : vector<25x64xf32>
    %cst_108 = arith.constant dense<0.000000e+00> : vector<25xf32>
    %291 = vector.multi_reduction <add>, %290, %cst_108 [1] : vector<25x64xf32> to vector<25xf32>
    %292 = vector.shape_cast %291 : vector<25xf32> to vector<25x1xf32>
    %cst_109 = arith.constant 6.400000e+01 : f32
    %293 = vector.broadcast %cst_109 : f32 to vector<25x1xf32>
    %294 = arith.divf %292, %293 : vector<25x1xf32>
    %295 = vector.broadcast %287 : vector<25x1xf32> to vector<25x64xf32>
    %296 = arith.subf %283, %295 : vector<25x64xf32>
    %cst_110 = arith.constant 9.99999974E-6 : f32
    %297 = vector.broadcast %cst_110 : f32 to vector<25x1xf32>
    %298 = arith.addf %294, %297 : vector<25x1xf32>
    %299 = math.rsqrt %298 : vector<25x1xf32>
    %300 = vector.broadcast %299 : vector<25x1xf32> to vector<25x64xf32>
    %301 = arith.mulf %296, %300 : vector<25x64xf32>
    %302 = vector.broadcast %159 : vector<1x64xf32> to vector<25x64xf32>
    %303 = arith.mulf %301, %302 : vector<25x64xf32>
    %304 = vector.broadcast %160 : vector<1x64xf32> to vector<25x64xf32>
    %305 = arith.addf %303, %304 : vector<25x64xf32>
    %306 = arith.truncf %305 : vector<25x64xf32> to vector<25x64xbf16>
    %c0_111 = arith.constant 0 : index
    %c0_112 = arith.constant 0 : index
    %c0_113 = arith.constant 0 : index
    %307 = vector.load %arg8[%c0_111, %c0_112, %c0_113] : memref<2x64x128xbf16, #tpu.memory_space<vmem>>, vector<1x64x128xbf16>
    %308 = vector.shape_cast %307 : vector<1x64x128xbf16> to vector<64x128xbf16>
    %cst_114 = arith.constant dense<0.000000e+00> : vector<25x128xf32>
    %309 = tpu.matmul %306, %308, %cst_114 {dimension_numbers = #tpu.dot_dimension_numbers<[1], [0], [0], [1], [0, 0, 1, 1], [], []>} : vector<25x64xbf16>, vector<64x128xbf16>, vector<25x128xf32> -> vector<25x128xf32>
    %310 = vector.broadcast %163 : vector<1x128xf32> to vector<25x128xf32>
    %311 = arith.addf %309, %310 : vector<25x128xf32>
    %cst_115 = arith.constant 5.000000e-01 : f32
    %312 = vector.broadcast %cst_115 : f32 to vector<25x128xf32>
    %313 = arith.mulf %312, %311 : vector<25x128xf32>
    %cst_116 = arith.constant 4.471500e-02 : f32
    %314 = vector.broadcast %cst_116 : f32 to vector<25x128xf32>
    %315 = arith.mulf %314, %311 : vector<25x128xf32>
    %316 = arith.mulf %315, %311 : vector<25x128xf32>
    %317 = arith.mulf %316, %311 : vector<25x128xf32>
    %318 = arith.addf %311, %317 : vector<25x128xf32>
    %cst_117 = arith.constant 0.797884583 : f32
    %319 = vector.broadcast %cst_117 : f32 to vector<25x128xf32>
    %320 = arith.mulf %319, %318 : vector<25x128xf32>
    %321 = math.tanh %320 : vector<25x128xf32>
    %cst_118 = arith.constant 1.000000e+00 : f32
    %322 = vector.broadcast %cst_118 : f32 to vector<25x128xf32>
    %323 = arith.addf %322, %321 : vector<25x128xf32>
    %324 = arith.mulf %313, %323 : vector<25x128xf32>
    %325 = arith.truncf %324 : vector<25x128xf32> to vector<25x128xbf16>
    %c0_119 = arith.constant 0 : index
    %c0_120 = arith.constant 0 : index
    %c0_121 = arith.constant 0 : index
    %326 = vector.load %arg9[%c0_119, %c0_120, %c0_121] : memref<2x128x64xbf16, #tpu.memory_space<vmem>>, vector<1x128x64xbf16>
    %327 = vector.shape_cast %326 : vector<1x128x64xbf16> to vector<128x64xbf16>
    %cst_122 = arith.constant dense<0.000000e+00> : vector<25x64xf32>
    %328 = tpu.matmul %325, %327, %cst_122 {dimension_numbers = #tpu.dot_dimension_numbers<[1], [0], [0], [1], [0, 0, 1, 1], [], []>} : vector<25x128xbf16>, vector<128x64xbf16>, vector<25x64xf32> -> vector<25x64xf32>
    %329 = arith.addf %283, %328 : vector<25x64xf32>
    %330 = vector.broadcast %161 : vector<1x64xf32> to vector<25x64xf32>
    %331 = arith.addf %329, %330 : vector<25x64xf32>
    %c55 = arith.constant 55 : index
    %c0_123 = arith.constant 0 : index
    %332 = vector.load %arg5[%c55, %c0_123] : memref<64x64xf32, #tpu.memory_space<vmem>>, vector<1x64xf32>
    %c56 = arith.constant 56 : index
    %c0_124 = arith.constant 0 : index
    %333 = vector.load %arg5[%c56, %c0_124] : memref<64x64xf32, #tpu.memory_space<vmem>>, vector<1x64xf32>
    %c57 = arith.constant 57 : index
    %c0_125 = arith.constant 0 : index
    %334 = vector.load %arg5[%c57, %c0_125] : memref<64x64xf32, #tpu.memory_space<vmem>>, vector<1x64xf32>
    %c58 = arith.constant 58 : index
    %c0_126 = arith.constant 0 : index
    %335 = vector.load %arg5[%c58, %c0_126] : memref<64x64xf32, #tpu.memory_space<vmem>>, vector<1x64xf32>
    %c59 = arith.constant 59 : index
    %c0_127 = arith.constant 0 : index
    %336 = vector.load %arg5[%c59, %c0_127] : memref<64x64xf32, #tpu.memory_space<vmem>>, vector<1x64xf32>
    %c60 = arith.constant 60 : index
    %c0_128 = arith.constant 0 : index
    %337 = vector.load %arg5[%c60, %c0_128] : memref<64x64xf32, #tpu.memory_space<vmem>>, vector<1x64xf32>
    %c1_129 = arith.constant 1 : index
    %c0_130 = arith.constant 0 : index
    %338 = vector.load %arg10[%c1_129, %c0_130] : memref<4x192xf32, #tpu.memory_space<vmem>>, vector<1x192xf32>
    %c3 = arith.constant 3 : index
    %c0_131 = arith.constant 0 : index
    %339 = vector.load %arg10[%c3, %c0_131] : memref<4x192xf32, #tpu.memory_space<vmem>>, vector<1x128xf32>
    %cst_132 = arith.constant dense<0.000000e+00> : vector<25xf32>
    %340 = vector.multi_reduction <add>, %331, %cst_132 [1] : vector<25x64xf32> to vector<25xf32>
    %341 = vector.shape_cast %340 : vector<25xf32> to vector<25x1xf32>
    %cst_133 = arith.constant 6.400000e+01 : f32
    %342 = vector.broadcast %cst_133 : f32 to vector<25x1xf32>
    %343 = arith.divf %341, %342 : vector<25x1xf32>
    %344 = vector.broadcast %343 : vector<25x1xf32> to vector<25x64xf32>
    %345 = arith.subf %331, %344 : vector<25x64xf32>
    %346 = arith.mulf %345, %345 : vector<25x64xf32>
    %cst_134 = arith.constant dense<0.000000e+00> : vector<25xf32>
    %347 = vector.multi_reduction <add>, %346, %cst_134 [1] : vector<25x64xf32> to vector<25xf32>
    %348 = vector.shape_cast %347 : vector<25xf32> to vector<25x1xf32>
    %cst_135 = arith.constant 6.400000e+01 : f32
    %349 = vector.broadcast %cst_135 : f32 to vector<25x1xf32>
    %350 = arith.divf %348, %349 : vector<25x1xf32>
    %351 = vector.broadcast %343 : vector<25x1xf32> to vector<25x64xf32>
    %352 = arith.subf %331, %351 : vector<25x64xf32>
    %cst_136 = arith.constant 9.99999974E-6 : f32
    %353 = vector.broadcast %cst_136 : f32 to vector<25x1xf32>
    %354 = arith.addf %350, %353 : vector<25x1xf32>
    %355 = math.rsqrt %354 : vector<25x1xf32>
    %356 = vector.broadcast %355 : vector<25x1xf32> to vector<25x64xf32>
    %357 = arith.mulf %352, %356 : vector<25x64xf32>
    %358 = vector.broadcast %332 : vector<1x64xf32> to vector<25x64xf32>
    %359 = arith.mulf %357, %358 : vector<25x64xf32>
    %360 = vector.broadcast %333 : vector<1x64xf32> to vector<25x64xf32>
    %361 = arith.addf %359, %360 : vector<25x64xf32>
    %362 = arith.truncf %361 : vector<25x64xf32> to vector<25x64xbf16>
    %c1_137 = arith.constant 1 : index
    %c0_138 = arith.constant 0 : index
    %c0_139 = arith.constant 0 : index
    %363 = vector.load %arg6[%c1_137, %c0_138, %c0_139] : memref<2x64x192xbf16, #tpu.memory_space<vmem>>, vector<1x64x192xbf16>
    %364 = vector.shape_cast %363 : vector<1x64x192xbf16> to vector<64x192xbf16>
    %cst_140 = arith.constant dense<0.000000e+00> : vector<25x192xf32>
    %365 = tpu.matmul %362, %364, %cst_140 {dimension_numbers = #tpu.dot_dimension_numbers<[1], [0], [0], [1], [0, 0, 1, 1], [], []>} : vector<25x64xbf16>, vector<64x192xbf16>, vector<25x192xf32> -> vector<25x192xf32>
    %366 = vector.broadcast %338 : vector<1x192xf32> to vector<25x192xf32>
    %367 = arith.addf %365, %366 : vector<25x192xf32>
    %368 = vector.extract_strided_slice %367 {offsets = [0, 0], sizes = [25, 16], strides = [1, 1]} : vector<25x192xf32> to vector<25x16xf32>
    %369 = arith.truncf %368 : vector<25x16xf32> to vector<25x16xbf16>
    %370 = vector.extract_strided_slice %367 {offsets = [0, 64], sizes = [25, 16], strides = [1, 1]} : vector<25x192xf32> to vector<25x16xf32>
    %371 = arith.truncf %370 : vector<25x16xf32> to vector<25x16xbf16>
    %372 = vector.extract_strided_slice %367 {offsets = [0, 128], sizes = [25, 16], strides = [1, 1]} : vector<25x192xf32> to vector<25x16xf32>
    %373 = arith.truncf %372 : vector<25x16xf32> to vector<25x16xbf16>
    "tpu.trace_start"() <{level = 10 : i32, message = "pd,qd->pq"}> : () -> ()
    %cst_141 = arith.constant dense<0.000000e+00> : vector<25x25xf32>
    %374 = tpu.matmul %369, %371, %cst_141 {dimension_numbers = #tpu.dot_dimension_numbers<[1], [1], [0], [0], [0, 0, 1, 0], [], []>} : vector<25x16xbf16>, vector<25x16xbf16>, vector<25x25xf32> -> vector<25x25xf32>
    "tpu.trace_stop"() : () -> ()
    %cst_142 = arith.constant 2.500000e-01 : f32
    %375 = vector.broadcast %cst_142 : f32 to vector<25x25xf32>
    %376 = arith.mulf %374, %375 : vector<25x25xf32>
    %cst_143 = arith.constant dense<0xFF800000> : vector<25xf32>
    %377 = vector.multi_reduction <maximumf>, %376, %cst_143 [1] : vector<25x25xf32> to vector<25xf32>
    %378 = vector.shape_cast %377 : vector<25xf32> to vector<25x1xf32>
    %379 = vector.broadcast %378 : vector<25x1xf32> to vector<25x25xf32>
    %380 = arith.subf %376, %379 : vector<25x25xf32>
    %381 = math.exp %380 : vector<25x25xf32>
    %cst_144 = arith.constant dense<0.000000e+00> : vector<25xf32>
    %382 = vector.multi_reduction <add>, %381, %cst_144 [1] : vector<25x25xf32> to vector<25xf32>
    %383 = vector.shape_cast %382 : vector<25xf32> to vector<25x1xf32>
    %384 = tpu.reciprocal %383 {approx = true} : vector<25x1xf32> -> vector<25x1xf32>
    %385 = vector.broadcast %384 : vector<25x1xf32> to vector<25x25xf32>
    %386 = arith.mulf %381, %385 : vector<25x25xf32>
    %387 = arith.truncf %386 : vector<25x25xf32> to vector<25x25xbf16>
    %cst_145 = arith.constant dense<0.000000e+00> : vector<25x16xf32>
    %388 = tpu.matmul %387, %373, %cst_145 {dimension_numbers = #tpu.dot_dimension_numbers<[1], [0], [0], [1], [0, 0, 1, 1], [], []>} : vector<25x25xbf16>, vector<25x16xbf16>, vector<25x16xf32> -> vector<25x16xf32>
    %389 = vector.extract_strided_slice %367 {offsets = [0, 16], sizes = [25, 16], strides = [1, 1]} : vector<25x192xf32> to vector<25x16xf32>
    %390 = arith.truncf %389 : vector<25x16xf32> to vector<25x16xbf16>
    %391 = vector.extract_strided_slice %367 {offsets = [0, 80], sizes = [25, 16], strides = [1, 1]} : vector<25x192xf32> to vector<25x16xf32>
    %392 = arith.truncf %391 : vector<25x16xf32> to vector<25x16xbf16>
    %393 = vector.extract_strided_slice %367 {offsets = [0, 144], sizes = [25, 16], strides = [1, 1]} : vector<25x192xf32> to vector<25x16xf32>
    %394 = arith.truncf %393 : vector<25x16xf32> to vector<25x16xbf16>
    "tpu.trace_start"() <{level = 10 : i32, message = "pd,qd->pq"}> : () -> ()
    %cst_146 = arith.constant dense<0.000000e+00> : vector<25x25xf32>
    %395 = tpu.matmul %390, %392, %cst_146 {dimension_numbers = #tpu.dot_dimension_numbers<[1], [1], [0], [0], [0, 0, 1, 0], [], []>} : vector<25x16xbf16>, vector<25x16xbf16>, vector<25x25xf32> -> vector<25x25xf32>
    "tpu.trace_stop"() : () -> ()
    %cst_147 = arith.constant 2.500000e-01 : f32
    %396 = vector.broadcast %cst_147 : f32 to vector<25x25xf32>
    %397 = arith.mulf %395, %396 : vector<25x25xf32>
    %cst_148 = arith.constant dense<0xFF800000> : vector<25xf32>
    %398 = vector.multi_reduction <maximumf>, %397, %cst_148 [1] : vector<25x25xf32> to vector<25xf32>
    %399 = vector.shape_cast %398 : vector<25xf32> to vector<25x1xf32>
    %400 = vector.broadcast %399 : vector<25x1xf32> to vector<25x25xf32>
    %401 = arith.subf %397, %400 : vector<25x25xf32>
    %402 = math.exp %401 : vector<25x25xf32>
    %cst_149 = arith.constant dense<0.000000e+00> : vector<25xf32>
    %403 = vector.multi_reduction <add>, %402, %cst_149 [1] : vector<25x25xf32> to vector<25xf32>
    %404 = vector.shape_cast %403 : vector<25xf32> to vector<25x1xf32>
    %405 = tpu.reciprocal %404 {approx = true} : vector<25x1xf32> -> vector<25x1xf32>
    %406 = vector.broadcast %405 : vector<25x1xf32> to vector<25x25xf32>
    %407 = arith.mulf %402, %406 : vector<25x25xf32>
    %408 = arith.truncf %407 : vector<25x25xf32> to vector<25x25xbf16>
    %cst_150 = arith.constant dense<0.000000e+00> : vector<25x16xf32>
    %409 = tpu.matmul %408, %394, %cst_150 {dimension_numbers = #tpu.dot_dimension_numbers<[1], [0], [0], [1], [0, 0, 1, 1], [], []>} : vector<25x25xbf16>, vector<25x16xbf16>, vector<25x16xf32> -> vector<25x16xf32>
    %410 = vector.extract_strided_slice %367 {offsets = [0, 32], sizes = [25, 16], strides = [1, 1]} : vector<25x192xf32> to vector<25x16xf32>
    %411 = arith.truncf %410 : vector<25x16xf32> to vector<25x16xbf16>
    %412 = vector.extract_strided_slice %367 {offsets = [0, 96], sizes = [25, 16], strides = [1, 1]} : vector<25x192xf32> to vector<25x16xf32>
    %413 = arith.truncf %412 : vector<25x16xf32> to vector<25x16xbf16>
    %414 = vector.extract_strided_slice %367 {offsets = [0, 160], sizes = [25, 16], strides = [1, 1]} : vector<25x192xf32> to vector<25x16xf32>
    %415 = arith.truncf %414 : vector<25x16xf32> to vector<25x16xbf16>
    "tpu.trace_start"() <{level = 10 : i32, message = "pd,qd->pq"}> : () -> ()
    %cst_151 = arith.constant dense<0.000000e+00> : vector<25x25xf32>
    %416 = tpu.matmul %411, %413, %cst_151 {dimension_numbers = #tpu.dot_dimension_numbers<[1], [1], [0], [0], [0, 0, 1, 0], [], []>} : vector<25x16xbf16>, vector<25x16xbf16>, vector<25x25xf32> -> vector<25x25xf32>
    "tpu.trace_stop"() : () -> ()
    %cst_152 = arith.constant 2.500000e-01 : f32
    %417 = vector.broadcast %cst_152 : f32 to vector<25x25xf32>
    %418 = arith.mulf %416, %417 : vector<25x25xf32>
    %cst_153 = arith.constant dense<0xFF800000> : vector<25xf32>
    %419 = vector.multi_reduction <maximumf>, %418, %cst_153 [1] : vector<25x25xf32> to vector<25xf32>
    %420 = vector.shape_cast %419 : vector<25xf32> to vector<25x1xf32>
    %421 = vector.broadcast %420 : vector<25x1xf32> to vector<25x25xf32>
    %422 = arith.subf %418, %421 : vector<25x25xf32>
    %423 = math.exp %422 : vector<25x25xf32>
    %cst_154 = arith.constant dense<0.000000e+00> : vector<25xf32>
    %424 = vector.multi_reduction <add>, %423, %cst_154 [1] : vector<25x25xf32> to vector<25xf32>
    %425 = vector.shape_cast %424 : vector<25xf32> to vector<25x1xf32>
    %426 = tpu.reciprocal %425 {approx = true} : vector<25x1xf32> -> vector<25x1xf32>
    %427 = vector.broadcast %426 : vector<25x1xf32> to vector<25x25xf32>
    %428 = arith.mulf %423, %427 : vector<25x25xf32>
    %429 = arith.truncf %428 : vector<25x25xf32> to vector<25x25xbf16>
    %cst_155 = arith.constant dense<0.000000e+00> : vector<25x16xf32>
    %430 = tpu.matmul %429, %415, %cst_155 {dimension_numbers = #tpu.dot_dimension_numbers<[1], [0], [0], [1], [0, 0, 1, 1], [], []>} : vector<25x25xbf16>, vector<25x16xbf16>, vector<25x16xf32> -> vector<25x16xf32>
    %431 = vector.extract_strided_slice %367 {offsets = [0, 48], sizes = [25, 16], strides = [1, 1]} : vector<25x192xf32> to vector<25x16xf32>
    %432 = arith.truncf %431 : vector<25x16xf32> to vector<25x16xbf16>
    %433 = vector.extract_strided_slice %367 {offsets = [0, 112], sizes = [25, 16], strides = [1, 1]} : vector<25x192xf32> to vector<25x16xf32>
    %434 = arith.truncf %433 : vector<25x16xf32> to vector<25x16xbf16>
    %435 = vector.extract_strided_slice %367 {offsets = [0, 176], sizes = [25, 16], strides = [1, 1]} : vector<25x192xf32> to vector<25x16xf32>
    %436 = arith.truncf %435 : vector<25x16xf32> to vector<25x16xbf16>
    "tpu.trace_start"() <{level = 10 : i32, message = "pd,qd->pq"}> : () -> ()
    %cst_156 = arith.constant dense<0.000000e+00> : vector<25x25xf32>
    %437 = tpu.matmul %432, %434, %cst_156 {dimension_numbers = #tpu.dot_dimension_numbers<[1], [1], [0], [0], [0, 0, 1, 0], [], []>} : vector<25x16xbf16>, vector<25x16xbf16>, vector<25x25xf32> -> vector<25x25xf32>
    "tpu.trace_stop"() : () -> ()
    %cst_157 = arith.constant 2.500000e-01 : f32
    %438 = vector.broadcast %cst_157 : f32 to vector<25x25xf32>
    %439 = arith.mulf %437, %438 : vector<25x25xf32>
    %cst_158 = arith.constant dense<0xFF800000> : vector<25xf32>
    %440 = vector.multi_reduction <maximumf>, %439, %cst_158 [1] : vector<25x25xf32> to vector<25xf32>
    %441 = vector.shape_cast %440 : vector<25xf32> to vector<25x1xf32>
    %442 = vector.broadcast %441 : vector<25x1xf32> to vector<25x25xf32>
    %443 = arith.subf %439, %442 : vector<25x25xf32>
    %444 = math.exp %443 : vector<25x25xf32>
    %cst_159 = arith.constant dense<0.000000e+00> : vector<25xf32>
    %445 = vector.multi_reduction <add>, %444, %cst_159 [1] : vector<25x25xf32> to vector<25xf32>
    %446 = vector.shape_cast %445 : vector<25xf32> to vector<25x1xf32>
    %447 = tpu.reciprocal %446 {approx = true} : vector<25x1xf32> -> vector<25x1xf32>
    %448 = vector.broadcast %447 : vector<25x1xf32> to vector<25x25xf32>
    %449 = arith.mulf %444, %448 : vector<25x25xf32>
    %450 = arith.truncf %449 : vector<25x25xf32> to vector<25x25xbf16>
    %cst_160 = arith.constant dense<0.000000e+00> : vector<25x16xf32>
    %451 = tpu.matmul %450, %436, %cst_160 {dimension_numbers = #tpu.dot_dimension_numbers<[1], [0], [0], [1], [0, 0, 1, 1], [], []>} : vector<25x25xbf16>, vector<25x16xbf16>, vector<25x16xf32> -> vector<25x16xf32>
    %452 = tpu.concatenate %388, %409, %430, %451 in 1 : vector<25x16xf32>, vector<25x16xf32>, vector<25x16xf32>, vector<25x16xf32> -> vector<25x64xf32>
    %453 = arith.truncf %452 : vector<25x64xf32> to vector<25x64xbf16>
    %c1_161 = arith.constant 1 : index
    %c0_162 = arith.constant 0 : index
    %c0_163 = arith.constant 0 : index
    %454 = vector.load %arg7[%c1_161, %c0_162, %c0_163] : memref<2x64x64xbf16, #tpu.memory_space<vmem>>, vector<1x64x64xbf16>
    %455 = vector.shape_cast %454 : vector<1x64x64xbf16> to vector<64x64xbf16>
    %cst_164 = arith.constant dense<0.000000e+00> : vector<25x64xf32>
    %456 = tpu.matmul %453, %455, %cst_164 {dimension_numbers = #tpu.dot_dimension_numbers<[1], [0], [0], [1], [0, 0, 1, 1], [], []>} : vector<25x64xbf16>, vector<64x64xbf16>, vector<25x64xf32> -> vector<25x64xf32>
    %457 = arith.addf %331, %456 : vector<25x64xf32>
    %458 = vector.broadcast %334 : vector<1x64xf32> to vector<25x64xf32>
    %459 = arith.addf %457, %458 : vector<25x64xf32>
    %cst_165 = arith.constant dense<0.000000e+00> : vector<25xf32>
    %460 = vector.multi_reduction <add>, %459, %cst_165 [1] : vector<25x64xf32> to vector<25xf32>
    %461 = vector.shape_cast %460 : vector<25xf32> to vector<25x1xf32>
    %cst_166 = arith.constant 6.400000e+01 : f32
    %462 = vector.broadcast %cst_166 : f32 to vector<25x1xf32>
    %463 = arith.divf %461, %462 : vector<25x1xf32>
    %464 = vector.broadcast %463 : vector<25x1xf32> to vector<25x64xf32>
    %465 = arith.subf %459, %464 : vector<25x64xf32>
    %466 = arith.mulf %465, %465 : vector<25x64xf32>
    %cst_167 = arith.constant dense<0.000000e+00> : vector<25xf32>
    %467 = vector.multi_reduction <add>, %466, %cst_167 [1] : vector<25x64xf32> to vector<25xf32>
    %468 = vector.shape_cast %467 : vector<25xf32> to vector<25x1xf32>
    %cst_168 = arith.constant 6.400000e+01 : f32
    %469 = vector.broadcast %cst_168 : f32 to vector<25x1xf32>
    %470 = arith.divf %468, %469 : vector<25x1xf32>
    %471 = vector.broadcast %463 : vector<25x1xf32> to vector<25x64xf32>
    %472 = arith.subf %459, %471 : vector<25x64xf32>
    %cst_169 = arith.constant 9.99999974E-6 : f32
    %473 = vector.broadcast %cst_169 : f32 to vector<25x1xf32>
    %474 = arith.addf %470, %473 : vector<25x1xf32>
    %475 = math.rsqrt %474 : vector<25x1xf32>
    %476 = vector.broadcast %475 : vector<25x1xf32> to vector<25x64xf32>
    %477 = arith.mulf %472, %476 : vector<25x64xf32>
    %478 = vector.broadcast %335 : vector<1x64xf32> to vector<25x64xf32>
    %479 = arith.mulf %477, %478 : vector<25x64xf32>
    %480 = vector.broadcast %336 : vector<1x64xf32> to vector<25x64xf32>
    %481 = arith.addf %479, %480 : vector<25x64xf32>
    %482 = arith.truncf %481 : vector<25x64xf32> to vector<25x64xbf16>
    %c1_170 = arith.constant 1 : index
    %c0_171 = arith.constant 0 : index
    %c0_172 = arith.constant 0 : index
    %483 = vector.load %arg8[%c1_170, %c0_171, %c0_172] : memref<2x64x128xbf16, #tpu.memory_space<vmem>>, vector<1x64x128xbf16>
    %484 = vector.shape_cast %483 : vector<1x64x128xbf16> to vector<64x128xbf16>
    %cst_173 = arith.constant dense<0.000000e+00> : vector<25x128xf32>
    %485 = tpu.matmul %482, %484, %cst_173 {dimension_numbers = #tpu.dot_dimension_numbers<[1], [0], [0], [1], [0, 0, 1, 1], [], []>} : vector<25x64xbf16>, vector<64x128xbf16>, vector<25x128xf32> -> vector<25x128xf32>
    %486 = vector.broadcast %339 : vector<1x128xf32> to vector<25x128xf32>
    %487 = arith.addf %485, %486 : vector<25x128xf32>
    %cst_174 = arith.constant 5.000000e-01 : f32
    %488 = vector.broadcast %cst_174 : f32 to vector<25x128xf32>
    %489 = arith.mulf %488, %487 : vector<25x128xf32>
    %cst_175 = arith.constant 4.471500e-02 : f32
    %490 = vector.broadcast %cst_175 : f32 to vector<25x128xf32>
    %491 = arith.mulf %490, %487 : vector<25x128xf32>
    %492 = arith.mulf %491, %487 : vector<25x128xf32>
    %493 = arith.mulf %492, %487 : vector<25x128xf32>
    %494 = arith.addf %487, %493 : vector<25x128xf32>
    %cst_176 = arith.constant 0.797884583 : f32
    %495 = vector.broadcast %cst_176 : f32 to vector<25x128xf32>
    %496 = arith.mulf %495, %494 : vector<25x128xf32>
    %497 = math.tanh %496 : vector<25x128xf32>
    %cst_177 = arith.constant 1.000000e+00 : f32
    %498 = vector.broadcast %cst_177 : f32 to vector<25x128xf32>
    %499 = arith.addf %498, %497 : vector<25x128xf32>
    %500 = arith.mulf %489, %499 : vector<25x128xf32>
    %501 = arith.truncf %500 : vector<25x128xf32> to vector<25x128xbf16>
    %c1_178 = arith.constant 1 : index
    %c0_179 = arith.constant 0 : index
    %c0_180 = arith.constant 0 : index
    %502 = vector.load %arg9[%c1_178, %c0_179, %c0_180] : memref<2x128x64xbf16, #tpu.memory_space<vmem>>, vector<1x128x64xbf16>
    %503 = vector.shape_cast %502 : vector<1x128x64xbf16> to vector<128x64xbf16>
    %cst_181 = arith.constant dense<0.000000e+00> : vector<25x64xf32>
    %504 = tpu.matmul %501, %503, %cst_181 {dimension_numbers = #tpu.dot_dimension_numbers<[1], [0], [0], [1], [0, 0, 1, 1], [], []>} : vector<25x128xbf16>, vector<128x64xbf16>, vector<25x64xf32> -> vector<25x64xf32>
    %505 = arith.addf %459, %504 : vector<25x64xf32>
    %506 = vector.broadcast %337 : vector<1x64xf32> to vector<25x64xf32>
    %507 = arith.addf %505, %506 : vector<25x64xf32>
    %cst_182 = arith.constant dense<0.000000e+00> : vector<25xf32>
    %508 = vector.multi_reduction <add>, %507, %cst_182 [1] : vector<25x64xf32> to vector<25xf32>
    %509 = vector.shape_cast %508 : vector<25xf32> to vector<25x1xf32>
    %cst_183 = arith.constant 6.400000e+01 : f32
    %510 = vector.broadcast %cst_183 : f32 to vector<25x1xf32>
    %511 = arith.divf %509, %510 : vector<25x1xf32>
    %512 = vector.broadcast %511 : vector<25x1xf32> to vector<25x64xf32>
    %513 = arith.subf %507, %512 : vector<25x64xf32>
    %514 = arith.mulf %513, %513 : vector<25x64xf32>
    %cst_184 = arith.constant dense<0.000000e+00> : vector<25xf32>
    %515 = vector.multi_reduction <add>, %514, %cst_184 [1] : vector<25x64xf32> to vector<25xf32>
    %516 = vector.shape_cast %515 : vector<25xf32> to vector<25x1xf32>
    %cst_185 = arith.constant 6.400000e+01 : f32
    %517 = vector.broadcast %cst_185 : f32 to vector<25x1xf32>
    %518 = arith.divf %516, %517 : vector<25x1xf32>
    %519 = vector.broadcast %511 : vector<25x1xf32> to vector<25x64xf32>
    %520 = arith.subf %507, %519 : vector<25x64xf32>
    %cst_186 = arith.constant 9.99999974E-6 : f32
    %521 = vector.broadcast %cst_186 : f32 to vector<25x1xf32>
    %522 = arith.addf %518, %521 : vector<25x1xf32>
    %523 = math.rsqrt %522 : vector<25x1xf32>
    %524 = vector.broadcast %523 : vector<25x1xf32> to vector<25x64xf32>
    %525 = arith.mulf %520, %524 : vector<25x64xf32>
    %526 = vector.broadcast %139 : vector<1x64xf32> to vector<25x64xf32>
    %527 = arith.mulf %525, %526 : vector<25x64xf32>
    %528 = vector.broadcast %140 : vector<1x64xf32> to vector<25x64xf32>
    %529 = arith.addf %527, %528 : vector<25x64xf32>
    %530 = vector.extract_strided_slice %529 {offsets = [24, 0], sizes = [1, 64], strides = [1, 1]} : vector<25x64xf32> to vector<1x64xf32>
    %531 = vector.extract_strided_slice %90 {offsets = [8, 0], sizes = [7, 64], strides = [1, 1]} : vector<16x64xf32> to vector<7x64xf32>
    %cst_187 = arith.constant 0.000000e+00 : f32
    %532 = vector.broadcast %cst_187 : f32 to vector<1x64xf32>
    %533 = tpu.concatenate %531, %532 in 0 : vector<7x64xf32>, vector<1x64xf32> -> vector<8x64xf32>
    %534 = vector.extract_strided_slice %136 {offsets = [8, 0], sizes = [5, 64], strides = [1, 1]} : vector<16x64xf32> to vector<5x64xf32>
    %cst_188 = arith.constant 0.000000e+00 : f32
    %535 = vector.broadcast %cst_188 : f32 to vector<3x64xf32>
    %536 = tpu.concatenate %534, %535 in 0 : vector<5x64xf32>, vector<3x64xf32> -> vector<8x64xf32>
    %537 = vector.extract_strided_slice %44 {offsets = [8, 0], sizes = [6, 64], strides = [1, 1]} : vector<16x64xf32> to vector<6x64xf32>
    %cst_189 = arith.constant 0.000000e+00 : f32
    %538 = vector.broadcast %cst_189 : f32 to vector<2x64xf32>
    %539 = tpu.concatenate %537, %538 in 0 : vector<6x64xf32>, vector<2x64xf32> -> vector<8x64xf32>
    %540 = tpu.concatenate %533, %536, %539 in 0 : vector<8x64xf32>, vector<8x64xf32>, vector<8x64xf32> -> vector<24x64xf32>
    %c1_190 = arith.constant 1 : index
    %c0_191 = arith.constant 0 : index
    %c0_192 = arith.constant 0 : index
    %541 = vector.load %arg12[%c1_190, %c0_191, %c0_192] : memref<2x24x64xf32, #tpu.memory_space<vmem>>, vector<1x24x64xf32>
    %542 = vector.shape_cast %541 : vector<1x24x64xf32> to vector<24x64xf32>
    %543 = vector.shape_cast %540 : vector<24x64xf32> to vector<1x24x64xf32>
    tpu.vector_store %arg12[%c1_190, %c0_191, %c0_192], %543 {strides = array<i32>} : memref<2x24x64xf32, #tpu.memory_space<vmem>>, vector<1x24x64xf32>,
    %544 = tpu.concatenate %540, %137 in 0 : vector<24x64xf32>, vector<1x64xf32> -> vector<25x64xf32>
    %545 = arith.addf %544, %138 : vector<25x64xf32>
    %c49_193 = arith.constant 49 : index
    %c0_194 = arith.constant 0 : index
    %546 = vector.load %arg5[%c49_193, %c0_194] : memref<64x64xf32, #tpu.memory_space<vmem>>, vector<1x64xf32>
    %c50_195 = arith.constant 50 : index
    %c0_196 = arith.constant 0 : index
    %547 = vector.load %arg5[%c50_195, %c0_196] : memref<64x64xf32, #tpu.memory_space<vmem>>, vector<1x64xf32>
    %c51_197 = arith.constant 51 : index
    %c0_198 = arith.constant 0 : index
    %548 = vector.load %arg5[%c51_197, %c0_198] : memref<64x64xf32, #tpu.memory_space<vmem>>, vector<1x64xf32>
    %c52_199 = arith.constant 52 : index
    %c0_200 = arith.constant 0 : index
    %549 = vector.load %arg5[%c52_199, %c0_200] : memref<64x64xf32, #tpu.memory_space<vmem>>, vector<1x64xf32>
    %c53_201 = arith.constant 53 : index
    %c0_202 = arith.constant 0 : index
    %550 = vector.load %arg5[%c53_201, %c0_202] : memref<64x64xf32, #tpu.memory_space<vmem>>, vector<1x64xf32>
    %c54_203 = arith.constant 54 : index
    %c0_204 = arith.constant 0 : index
    %551 = vector.load %arg5[%c54_203, %c0_204] : memref<64x64xf32, #tpu.memory_space<vmem>>, vector<1x64xf32>
    %c0_205 = arith.constant 0 : index
    %c0_206 = arith.constant 0 : index
    %552 = vector.load %arg10[%c0_205, %c0_206] : memref<4x192xf32, #tpu.memory_space<vmem>>, vector<1x192xf32>
    %c2_207 = arith.constant 2 : index
    %c0_208 = arith.constant 0 : index
    %553 = vector.load %arg10[%c2_207, %c0_208] : memref<4x192xf32, #tpu.memory_space<vmem>>, vector<1x128xf32>
    %cst_209 = arith.constant dense<0.000000e+00> : vector<25xf32>
    %554 = vector.multi_reduction <add>, %545, %cst_209 [1] : vector<25x64xf32> to vector<25xf32>
    %555 = vector.shape_cast %554 : vector<25xf32> to vector<25x1xf32>
    %cst_210 = arith.constant 6.400000e+01 : f32
    %556 = vector.broadcast %cst_210 : f32 to vector<25x1xf32>
    %557 = arith.divf %555, %556 : vector<25x1xf32>
    %558 = vector.broadcast %557 : vector<25x1xf32> to vector<25x64xf32>
    %559 = arith.subf %545, %558 : vector<25x64xf32>
    %560 = arith.mulf %559, %559 : vector<25x64xf32>
    %cst_211 = arith.constant dense<0.000000e+00> : vector<25xf32>
    %561 = vector.multi_reduction <add>, %560, %cst_211 [1] : vector<25x64xf32> to vector<25xf32>
    %562 = vector.shape_cast %561 : vector<25xf32> to vector<25x1xf32>
    %cst_212 = arith.constant 6.400000e+01 : f32
    %563 = vector.broadcast %cst_212 : f32 to vector<25x1xf32>
    %564 = arith.divf %562, %563 : vector<25x1xf32>
    %565 = vector.broadcast %557 : vector<25x1xf32> to vector<25x64xf32>
    %566 = arith.subf %545, %565 : vector<25x64xf32>
    %cst_213 = arith.constant 9.99999974E-6 : f32
    %567 = vector.broadcast %cst_213 : f32 to vector<25x1xf32>
    %568 = arith.addf %564, %567 : vector<25x1xf32>
    %569 = math.rsqrt %568 : vector<25x1xf32>
    %570 = vector.broadcast %569 : vector<25x1xf32> to vector<25x64xf32>
    %571 = arith.mulf %566, %570 : vector<25x64xf32>
    %572 = vector.broadcast %546 : vector<1x64xf32> to vector<25x64xf32>
    %573 = arith.mulf %571, %572 : vector<25x64xf32>
    %574 = vector.broadcast %547 : vector<1x64xf32> to vector<25x64xf32>
    %575 = arith.addf %573, %574 : vector<25x64xf32>
    %576 = arith.truncf %575 : vector<25x64xf32> to vector<25x64xbf16>
    %c0_214 = arith.constant 0 : index
    %c0_215 = arith.constant 0 : index
    %c0_216 = arith.constant 0 : index
    %577 = vector.load %arg6[%c0_214, %c0_215, %c0_216] : memref<2x64x192xbf16, #tpu.memory_space<vmem>>, vector<1x64x192xbf16>
    %578 = vector.shape_cast %577 : vector<1x64x192xbf16> to vector<64x192xbf16>
    %cst_217 = arith.constant dense<0.000000e+00> : vector<25x192xf32>
    %579 = tpu.matmul %576, %578, %cst_217 {dimension_numbers = #tpu.dot_dimension_numbers<[1], [0], [0], [1], [0, 0, 1, 1], [], []>} : vector<25x64xbf16>, vector<64x192xbf16>, vector<25x192xf32> -> vector<25x192xf32>
    %580 = vector.broadcast %552 : vector<1x192xf32> to vector<25x192xf32>
    %581 = arith.addf %579, %580 : vector<25x192xf32>
    %582 = vector.extract_strided_slice %581 {offsets = [0, 0], sizes = [25, 16], strides = [1, 1]} : vector<25x192xf32> to vector<25x16xf32>
    %583 = arith.truncf %582 : vector<25x16xf32> to vector<25x16xbf16>
    %584 = vector.extract_strided_slice %581 {offsets = [0, 64], sizes = [25, 16], strides = [1, 1]} : vector<25x192xf32> to vector<25x16xf32>
    %585 = arith.truncf %584 : vector<25x16xf32> to vector<25x16xbf16>
    %586 = vector.extract_strided_slice %581 {offsets = [0, 128], sizes = [25, 16], strides = [1, 1]} : vector<25x192xf32> to vector<25x16xf32>
    %587 = arith.truncf %586 : vector<25x16xf32> to vector<25x16xbf16>
    "tpu.trace_start"() <{level = 10 : i32, message = "pd,qd->pq"}> : () -> ()
    %cst_218 = arith.constant dense<0.000000e+00> : vector<25x25xf32>
    %588 = tpu.matmul %583, %585, %cst_218 {dimension_numbers = #tpu.dot_dimension_numbers<[1], [1], [0], [0], [0, 0, 1, 0], [], []>} : vector<25x16xbf16>, vector<25x16xbf16>, vector<25x25xf32> -> vector<25x25xf32>
    "tpu.trace_stop"() : () -> ()
    %cst_219 = arith.constant 2.500000e-01 : f32
    %589 = vector.broadcast %cst_219 : f32 to vector<25x25xf32>
    %590 = arith.mulf %588, %589 : vector<25x25xf32>
    %cst_220 = arith.constant dense<0xFF800000> : vector<25xf32>
    %591 = vector.multi_reduction <maximumf>, %590, %cst_220 [1] : vector<25x25xf32> to vector<25xf32>
    %592 = vector.shape_cast %591 : vector<25xf32> to vector<25x1xf32>
    %593 = vector.broadcast %592 : vector<25x1xf32> to vector<25x25xf32>
    %594 = arith.subf %590, %593 : vector<25x25xf32>
    %595 = math.exp %594 : vector<25x25xf32>
    %cst_221 = arith.constant dense<0.000000e+00> : vector<25xf32>
    %596 = vector.multi_reduction <add>, %595, %cst_221 [1] : vector<25x25xf32> to vector<25xf32>
    %597 = vector.shape_cast %596 : vector<25xf32> to vector<25x1xf32>
    %598 = tpu.reciprocal %597 {approx = true} : vector<25x1xf32> -> vector<25x1xf32>
    %599 = vector.broadcast %598 : vector<25x1xf32> to vector<25x25xf32>
    %600 = arith.mulf %595, %599 : vector<25x25xf32>
    %601 = arith.truncf %600 : vector<25x25xf32> to vector<25x25xbf16>
    %cst_222 = arith.constant dense<0.000000e+00> : vector<25x16xf32>
    %602 = tpu.matmul %601, %587, %cst_222 {dimension_numbers = #tpu.dot_dimension_numbers<[1], [0], [0], [1], [0, 0, 1, 1], [], []>} : vector<25x25xbf16>, vector<25x16xbf16>, vector<25x16xf32> -> vector<25x16xf32>
    %603 = vector.extract_strided_slice %581 {offsets = [0, 16], sizes = [25, 16], strides = [1, 1]} : vector<25x192xf32> to vector<25x16xf32>
    %604 = arith.truncf %603 : vector<25x16xf32> to vector<25x16xbf16>
    %605 = vector.extract_strided_slice %581 {offsets = [0, 80], sizes = [25, 16], strides = [1, 1]} : vector<25x192xf32> to vector<25x16xf32>
    %606 = arith.truncf %605 : vector<25x16xf32> to vector<25x16xbf16>
    %607 = vector.extract_strided_slice %581 {offsets = [0, 144], sizes = [25, 16], strides = [1, 1]} : vector<25x192xf32> to vector<25x16xf32>
    %608 = arith.truncf %607 : vector<25x16xf32> to vector<25x16xbf16>
    "tpu.trace_start"() <{level = 10 : i32, message = "pd,qd->pq"}> : () -> ()
    %cst_223 = arith.constant dense<0.000000e+00> : vector<25x25xf32>
    %609 = tpu.matmul %604, %606, %cst_223 {dimension_numbers = #tpu.dot_dimension_numbers<[1], [1], [0], [0], [0, 0, 1, 0], [], []>} : vector<25x16xbf16>, vector<25x16xbf16>, vector<25x25xf32> -> vector<25x25xf32>
    "tpu.trace_stop"() : () -> ()
    %cst_224 = arith.constant 2.500000e-01 : f32
    %610 = vector.broadcast %cst_224 : f32 to vector<25x25xf32>
    %611 = arith.mulf %609, %610 : vector<25x25xf32>
    %cst_225 = arith.constant dense<0xFF800000> : vector<25xf32>
    %612 = vector.multi_reduction <maximumf>, %611, %cst_225 [1] : vector<25x25xf32> to vector<25xf32>
    %613 = vector.shape_cast %612 : vector<25xf32> to vector<25x1xf32>
    %614 = vector.broadcast %613 : vector<25x1xf32> to vector<25x25xf32>
    %615 = arith.subf %611, %614 : vector<25x25xf32>
    %616 = math.exp %615 : vector<25x25xf32>
    %cst_226 = arith.constant dense<0.000000e+00> : vector<25xf32>
    %617 = vector.multi_reduction <add>, %616, %cst_226 [1] : vector<25x25xf32> to vector<25xf32>
    %618 = vector.shape_cast %617 : vector<25xf32> to vector<25x1xf32>
    %619 = tpu.reciprocal %618 {approx = true} : vector<25x1xf32> -> vector<25x1xf32>
    %620 = vector.broadcast %619 : vector<25x1xf32> to vector<25x25xf32>
    %621 = arith.mulf %616, %620 : vector<25x25xf32>
    %622 = arith.truncf %621 : vector<25x25xf32> to vector<25x25xbf16>
    %cst_227 = arith.constant dense<0.000000e+00> : vector<25x16xf32>
    %623 = tpu.matmul %622, %608, %cst_227 {dimension_numbers = #tpu.dot_dimension_numbers<[1], [0], [0], [1], [0, 0, 1, 1], [], []>} : vector<25x25xbf16>, vector<25x16xbf16>, vector<25x16xf32> -> vector<25x16xf32>
    %624 = vector.extract_strided_slice %581 {offsets = [0, 32], sizes = [25, 16], strides = [1, 1]} : vector<25x192xf32> to vector<25x16xf32>
    %625 = arith.truncf %624 : vector<25x16xf32> to vector<25x16xbf16>
    %626 = vector.extract_strided_slice %581 {offsets = [0, 96], sizes = [25, 16], strides = [1, 1]} : vector<25x192xf32> to vector<25x16xf32>
    %627 = arith.truncf %626 : vector<25x16xf32> to vector<25x16xbf16>
    %628 = vector.extract_strided_slice %581 {offsets = [0, 160], sizes = [25, 16], strides = [1, 1]} : vector<25x192xf32> to vector<25x16xf32>
    %629 = arith.truncf %628 : vector<25x16xf32> to vector<25x16xbf16>
    "tpu.trace_start"() <{level = 10 : i32, message = "pd,qd->pq"}> : () -> ()
    %cst_228 = arith.constant dense<0.000000e+00> : vector<25x25xf32>
    %630 = tpu.matmul %625, %627, %cst_228 {dimension_numbers = #tpu.dot_dimension_numbers<[1], [1], [0], [0], [0, 0, 1, 0], [], []>} : vector<25x16xbf16>, vector<25x16xbf16>, vector<25x25xf32> -> vector<25x25xf32>
    "tpu.trace_stop"() : () -> ()
    %cst_229 = arith.constant 2.500000e-01 : f32
    %631 = vector.broadcast %cst_229 : f32 to vector<25x25xf32>
    %632 = arith.mulf %630, %631 : vector<25x25xf32>
    %cst_230 = arith.constant dense<0xFF800000> : vector<25xf32>
    %633 = vector.multi_reduction <maximumf>, %632, %cst_230 [1] : vector<25x25xf32> to vector<25xf32>
    %634 = vector.shape_cast %633 : vector<25xf32> to vector<25x1xf32>
    %635 = vector.broadcast %634 : vector<25x1xf32> to vector<25x25xf32>
    %636 = arith.subf %632, %635 : vector<25x25xf32>
    %637 = math.exp %636 : vector<25x25xf32>
    %cst_231 = arith.constant dense<0.000000e+00> : vector<25xf32>
    %638 = vector.multi_reduction <add>, %637, %cst_231 [1] : vector<25x25xf32> to vector<25xf32>
    %639 = vector.shape_cast %638 : vector<25xf32> to vector<25x1xf32>
    %640 = tpu.reciprocal %639 {approx = true} : vector<25x1xf32> -> vector<25x1xf32>
    %641 = vector.broadcast %640 : vector<25x1xf32> to vector<25x25xf32>
    %642 = arith.mulf %637, %641 : vector<25x25xf32>
    %643 = arith.truncf %642 : vector<25x25xf32> to vector<25x25xbf16>
    %cst_232 = arith.constant dense<0.000000e+00> : vector<25x16xf32>
    %644 = tpu.matmul %643, %629, %cst_232 {dimension_numbers = #tpu.dot_dimension_numbers<[1], [0], [0], [1], [0, 0, 1, 1], [], []>} : vector<25x25xbf16>, vector<25x16xbf16>, vector<25x16xf32> -> vector<25x16xf32>
    %645 = vector.extract_strided_slice %581 {offsets = [0, 48], sizes = [25, 16], strides = [1, 1]} : vector<25x192xf32> to vector<25x16xf32>
    %646 = arith.truncf %645 : vector<25x16xf32> to vector<25x16xbf16>
    %647 = vector.extract_strided_slice %581 {offsets = [0, 112], sizes = [25, 16], strides = [1, 1]} : vector<25x192xf32> to vector<25x16xf32>
    %648 = arith.truncf %647 : vector<25x16xf32> to vector<25x16xbf16>
    %649 = vector.extract_strided_slice %581 {offsets = [0, 176], sizes = [25, 16], strides = [1, 1]} : vector<25x192xf32> to vector<25x16xf32>
    %650 = arith.truncf %649 : vector<25x16xf32> to vector<25x16xbf16>
    "tpu.trace_start"() <{level = 10 : i32, message = "pd,qd->pq"}> : () -> ()
    %cst_233 = arith.constant dense<0.000000e+00> : vector<25x25xf32>
    %651 = tpu.matmul %646, %648, %cst_233 {dimension_numbers = #tpu.dot_dimension_numbers<[1], [1], [0], [0], [0, 0, 1, 0], [], []>} : vector<25x16xbf16>, vector<25x16xbf16>, vector<25x25xf32> -> vector<25x25xf32>
    "tpu.trace_stop"() : () -> ()
    %cst_234 = arith.constant 2.500000e-01 : f32
    %652 = vector.broadcast %cst_234 : f32 to vector<25x25xf32>
    %653 = arith.mulf %651, %652 : vector<25x25xf32>
    %cst_235 = arith.constant dense<0xFF800000> : vector<25xf32>
    %654 = vector.multi_reduction <maximumf>, %653, %cst_235 [1] : vector<25x25xf32> to vector<25xf32>
    %655 = vector.shape_cast %654 : vector<25xf32> to vector<25x1xf32>
    %656 = vector.broadcast %655 : vector<25x1xf32> to vector<25x25xf32>
    %657 = arith.subf %653, %656 : vector<25x25xf32>
    %658 = math.exp %657 : vector<25x25xf32>
    %cst_236 = arith.constant dense<0.000000e+00> : vector<25xf32>
    %659 = vector.multi_reduction <add>, %658, %cst_236 [1] : vector<25x25xf32> to vector<25xf32>
    %660 = vector.shape_cast %659 : vector<25xf32> to vector<25x1xf32>
    %661 = tpu.reciprocal %660 {approx = true} : vector<25x1xf32> -> vector<25x1xf32>
    %662 = vector.broadcast %661 : vector<25x1xf32> to vector<25x25xf32>
    %663 = arith.mulf %658, %662 : vector<25x25xf32>
    %664 = arith.truncf %663 : vector<25x25xf32> to vector<25x25xbf16>
    %cst_237 = arith.constant dense<0.000000e+00> : vector<25x16xf32>
    %665 = tpu.matmul %664, %650, %cst_237 {dimension_numbers = #tpu.dot_dimension_numbers<[1], [0], [0], [1], [0, 0, 1, 1], [], []>} : vector<25x25xbf16>, vector<25x16xbf16>, vector<25x16xf32> -> vector<25x16xf32>
    %666 = tpu.concatenate %602, %623, %644, %665 in 1 : vector<25x16xf32>, vector<25x16xf32>, vector<25x16xf32>, vector<25x16xf32> -> vector<25x64xf32>
    %667 = arith.truncf %666 : vector<25x64xf32> to vector<25x64xbf16>
    %c0_238 = arith.constant 0 : index
    %c0_239 = arith.constant 0 : index
    %c0_240 = arith.constant 0 : index
    %668 = vector.load %arg7[%c0_238, %c0_239, %c0_240] : memref<2x64x64xbf16, #tpu.memory_space<vmem>>, vector<1x64x64xbf16>
    %669 = vector.shape_cast %668 : vector<1x64x64xbf16> to vector<64x64xbf16>
    %cst_241 = arith.constant dense<0.000000e+00> : vector<25x64xf32>
    %670 = tpu.matmul %667, %669, %cst_241 {dimension_numbers = #tpu.dot_dimension_numbers<[1], [0], [0], [1], [0, 0, 1, 1], [], []>} : vector<25x64xbf16>, vector<64x64xbf16>, vector<25x64xf32> -> vector<25x64xf32>
    %671 = arith.addf %545, %670 : vector<25x64xf32>
    %672 = vector.broadcast %548 : vector<1x64xf32> to vector<25x64xf32>
    %673 = arith.addf %671, %672 : vector<25x64xf32>
    %cst_242 = arith.constant dense<0.000000e+00> : vector<25xf32>
    %674 = vector.multi_reduction <add>, %673, %cst_242 [1] : vector<25x64xf32> to vector<25xf32>
    %675 = vector.shape_cast %674 : vector<25xf32> to vector<25x1xf32>
    %cst_243 = arith.constant 6.400000e+01 : f32
    %676 = vector.broadcast %cst_243 : f32 to vector<25x1xf32>
    %677 = arith.divf %675, %676 : vector<25x1xf32>
    %678 = vector.broadcast %677 : vector<25x1xf32> to vector<25x64xf32>
    %679 = arith.subf %673, %678 : vector<25x64xf32>
    %680 = arith.mulf %679, %679 : vector<25x64xf32>
    %cst_244 = arith.constant dense<0.000000e+00> : vector<25xf32>
    %681 = vector.multi_reduction <add>, %680, %cst_244 [1] : vector<25x64xf32> to vector<25xf32>
    %682 = vector.shape_cast %681 : vector<25xf32> to vector<25x1xf32>
    %cst_245 = arith.constant 6.400000e+01 : f32
    %683 = vector.broadcast %cst_245 : f32 to vector<25x1xf32>
    %684 = arith.divf %682, %683 : vector<25x1xf32>
    %685 = vector.broadcast %677 : vector<25x1xf32> to vector<25x64xf32>
    %686 = arith.subf %673, %685 : vector<25x64xf32>
    %cst_246 = arith.constant 9.99999974E-6 : f32
    %687 = vector.broadcast %cst_246 : f32 to vector<25x1xf32>
    %688 = arith.addf %684, %687 : vector<25x1xf32>
    %689 = math.rsqrt %688 : vector<25x1xf32>
    %690 = vector.broadcast %689 : vector<25x1xf32> to vector<25x64xf32>
    %691 = arith.mulf %686, %690 : vector<25x64xf32>
    %692 = vector.broadcast %549 : vector<1x64xf32> to vector<25x64xf32>
    %693 = arith.mulf %691, %692 : vector<25x64xf32>
    %694 = vector.broadcast %550 : vector<1x64xf32> to vector<25x64xf32>
    %695 = arith.addf %693, %694 : vector<25x64xf32>
    %696 = arith.truncf %695 : vector<25x64xf32> to vector<25x64xbf16>
    %c0_247 = arith.constant 0 : index
    %c0_248 = arith.constant 0 : index
    %c0_249 = arith.constant 0 : index
    %697 = vector.load %arg8[%c0_247, %c0_248, %c0_249] : memref<2x64x128xbf16, #tpu.memory_space<vmem>>, vector<1x64x128xbf16>
    %698 = vector.shape_cast %697 : vector<1x64x128xbf16> to vector<64x128xbf16>
    %cst_250 = arith.constant dense<0.000000e+00> : vector<25x128xf32>
    %699 = tpu.matmul %696, %698, %cst_250 {dimension_numbers = #tpu.dot_dimension_numbers<[1], [0], [0], [1], [0, 0, 1, 1], [], []>} : vector<25x64xbf16>, vector<64x128xbf16>, vector<25x128xf32> -> vector<25x128xf32>
    %700 = vector.broadcast %553 : vector<1x128xf32> to vector<25x128xf32>
    %701 = arith.addf %699, %700 : vector<25x128xf32>
    %cst_251 = arith.constant 5.000000e-01 : f32
    %702 = vector.broadcast %cst_251 : f32 to vector<25x128xf32>
    %703 = arith.mulf %702, %701 : vector<25x128xf32>
    %cst_252 = arith.constant 4.471500e-02 : f32
    %704 = vector.broadcast %cst_252 : f32 to vector<25x128xf32>
    %705 = arith.mulf %704, %701 : vector<25x128xf32>
    %706 = arith.mulf %705, %701 : vector<25x128xf32>
    %707 = arith.mulf %706, %701 : vector<25x128xf32>
    %708 = arith.addf %701, %707 : vector<25x128xf32>
    %cst_253 = arith.constant 0.797884583 : f32
    %709 = vector.broadcast %cst_253 : f32 to vector<25x128xf32>
    %710 = arith.mulf %709, %708 : vector<25x128xf32>
    %711 = math.tanh %710 : vector<25x128xf32>
    %cst_254 = arith.constant 1.000000e+00 : f32
    %712 = vector.broadcast %cst_254 : f32 to vector<25x128xf32>
    %713 = arith.addf %712, %711 : vector<25x128xf32>
    %714 = arith.mulf %703, %713 : vector<25x128xf32>
    %715 = arith.truncf %714 : vector<25x128xf32> to vector<25x128xbf16>
    %c0_255 = arith.constant 0 : index
    %c0_256 = arith.constant 0 : index
    %c0_257 = arith.constant 0 : index
    %716 = vector.load %arg9[%c0_255, %c0_256, %c0_257] : memref<2x128x64xbf16, #tpu.memory_space<vmem>>, vector<1x128x64xbf16>
    %717 = vector.shape_cast %716 : vector<1x128x64xbf16> to vector<128x64xbf16>
    %cst_258 = arith.constant dense<0.000000e+00> : vector<25x64xf32>
    %718 = tpu.matmul %715, %717, %cst_258 {dimension_numbers = #tpu.dot_dimension_numbers<[1], [0], [0], [1], [0, 0, 1, 1], [], []>} : vector<25x128xbf16>, vector<128x64xbf16>, vector<25x64xf32> -> vector<25x64xf32>
    %719 = arith.addf %673, %718 : vector<25x64xf32>
    %720 = vector.broadcast %551 : vector<1x64xf32> to vector<25x64xf32>
    %721 = arith.addf %719, %720 : vector<25x64xf32>
    %c55_259 = arith.constant 55 : index
    %c0_260 = arith.constant 0 : index
    %722 = vector.load %arg5[%c55_259, %c0_260] : memref<64x64xf32, #tpu.memory_space<vmem>>, vector<1x64xf32>
    %c56_261 = arith.constant 56 : index
    %c0_262 = arith.constant 0 : index
    %723 = vector.load %arg5[%c56_261, %c0_262] : memref<64x64xf32, #tpu.memory_space<vmem>>, vector<1x64xf32>
    %c57_263 = arith.constant 57 : index
    %c0_264 = arith.constant 0 : index
    %724 = vector.load %arg5[%c57_263, %c0_264] : memref<64x64xf32, #tpu.memory_space<vmem>>, vector<1x64xf32>
    %c58_265 = arith.constant 58 : index
    %c0_266 = arith.constant 0 : index
    %725 = vector.load %arg5[%c58_265, %c0_266] : memref<64x64xf32, #tpu.memory_space<vmem>>, vector<1x64xf32>
    %c59_267 = arith.constant 59 : index
    %c0_268 = arith.constant 0 : index
    %726 = vector.load %arg5[%c59_267, %c0_268] : memref<64x64xf32, #tpu.memory_space<vmem>>, vector<1x64xf32>
    %c60_269 = arith.constant 60 : index
    %c0_270 = arith.constant 0 : index
    %727 = vector.load %arg5[%c60_269, %c0_270] : memref<64x64xf32, #tpu.memory_space<vmem>>, vector<1x64xf32>
    %c1_271 = arith.constant 1 : index
    %c0_272 = arith.constant 0 : index
    %728 = vector.load %arg10[%c1_271, %c0_272] : memref<4x192xf32, #tpu.memory_space<vmem>>, vector<1x192xf32>
    %c3_273 = arith.constant 3 : index
    %c0_274 = arith.constant 0 : index
    %729 = vector.load %arg10[%c3_273, %c0_274] : memref<4x192xf32, #tpu.memory_space<vmem>>, vector<1x128xf32>
    %cst_275 = arith.constant dense<0.000000e+00> : vector<25xf32>
    %730 = vector.multi_reduction <add>, %721, %cst_275 [1] : vector<25x64xf32> to vector<25xf32>
    %731 = vector.shape_cast %730 : vector<25xf32> to vector<25x1xf32>
    %cst_276 = arith.constant 6.400000e+01 : f32
    %732 = vector.broadcast %cst_276 : f32 to vector<25x1xf32>
    %733 = arith.divf %731, %732 : vector<25x1xf32>
    %734 = vector.broadcast %733 : vector<25x1xf32> to vector<25x64xf32>
    %735 = arith.subf %721, %734 : vector<25x64xf32>
    %736 = arith.mulf %735, %735 : vector<25x64xf32>
    %cst_277 = arith.constant dense<0.000000e+00> : vector<25xf32>
    %737 = vector.multi_reduction <add>, %736, %cst_277 [1] : vector<25x64xf32> to vector<25xf32>
    %738 = vector.shape_cast %737 : vector<25xf32> to vector<25x1xf32>
    %cst_278 = arith.constant 6.400000e+01 : f32
    %739 = vector.broadcast %cst_278 : f32 to vector<25x1xf32>
    %740 = arith.divf %738, %739 : vector<25x1xf32>
    %741 = vector.broadcast %733 : vector<25x1xf32> to vector<25x64xf32>
    %742 = arith.subf %721, %741 : vector<25x64xf32>
    %cst_279 = arith.constant 9.99999974E-6 : f32
    %743 = vector.broadcast %cst_279 : f32 to vector<25x1xf32>
    %744 = arith.addf %740, %743 : vector<25x1xf32>
    %745 = math.rsqrt %744 : vector<25x1xf32>
    %746 = vector.broadcast %745 : vector<25x1xf32> to vector<25x64xf32>
    %747 = arith.mulf %742, %746 : vector<25x64xf32>
    %748 = vector.broadcast %722 : vector<1x64xf32> to vector<25x64xf32>
    %749 = arith.mulf %747, %748 : vector<25x64xf32>
    %750 = vector.broadcast %723 : vector<1x64xf32> to vector<25x64xf32>
    %751 = arith.addf %749, %750 : vector<25x64xf32>
    %752 = arith.truncf %751 : vector<25x64xf32> to vector<25x64xbf16>
    %c1_280 = arith.constant 1 : index
    %c0_281 = arith.constant 0 : index
    %c0_282 = arith.constant 0 : index
    %753 = vector.load %arg6[%c1_280, %c0_281, %c0_282] : memref<2x64x192xbf16, #tpu.memory_space<vmem>>, vector<1x64x192xbf16>
    %754 = vector.shape_cast %753 : vector<1x64x192xbf16> to vector<64x192xbf16>
    %cst_283 = arith.constant dense<0.000000e+00> : vector<25x192xf32>
    %755 = tpu.matmul %752, %754, %cst_283 {dimension_numbers = #tpu.dot_dimension_numbers<[1], [0], [0], [1], [0, 0, 1, 1], [], []>} : vector<25x64xbf16>, vector<64x192xbf16>, vector<25x192xf32> -> vector<25x192xf32>
    %756 = vector.broadcast %728 : vector<1x192xf32> to vector<25x192xf32>
    %757 = arith.addf %755, %756 : vector<25x192xf32>
    %758 = vector.extract_strided_slice %757 {offsets = [0, 0], sizes = [25, 16], strides = [1, 1]} : vector<25x192xf32> to vector<25x16xf32>
    %759 = arith.truncf %758 : vector<25x16xf32> to vector<25x16xbf16>
    %760 = vector.extract_strided_slice %757 {offsets = [0, 64], sizes = [25, 16], strides = [1, 1]} : vector<25x192xf32> to vector<25x16xf32>
    %761 = arith.truncf %760 : vector<25x16xf32> to vector<25x16xbf16>
    %762 = vector.extract_strided_slice %757 {offsets = [0, 128], sizes = [25, 16], strides = [1, 1]} : vector<25x192xf32> to vector<25x16xf32>
    %763 = arith.truncf %762 : vector<25x16xf32> to vector<25x16xbf16>
    "tpu.trace_start"() <{level = 10 : i32, message = "pd,qd->pq"}> : () -> ()
    %cst_284 = arith.constant dense<0.000000e+00> : vector<25x25xf32>
    %764 = tpu.matmul %759, %761, %cst_284 {dimension_numbers = #tpu.dot_dimension_numbers<[1], [1], [0], [0], [0, 0, 1, 0], [], []>} : vector<25x16xbf16>, vector<25x16xbf16>, vector<25x25xf32> -> vector<25x25xf32>
    "tpu.trace_stop"() : () -> ()
    %cst_285 = arith.constant 2.500000e-01 : f32
    %765 = vector.broadcast %cst_285 : f32 to vector<25x25xf32>
    %766 = arith.mulf %764, %765 : vector<25x25xf32>
    %cst_286 = arith.constant dense<0xFF800000> : vector<25xf32>
    %767 = vector.multi_reduction <maximumf>, %766, %cst_286 [1] : vector<25x25xf32> to vector<25xf32>
    %768 = vector.shape_cast %767 : vector<25xf32> to vector<25x1xf32>
    %769 = vector.broadcast %768 : vector<25x1xf32> to vector<25x25xf32>
    %770 = arith.subf %766, %769 : vector<25x25xf32>
    %771 = math.exp %770 : vector<25x25xf32>
    %cst_287 = arith.constant dense<0.000000e+00> : vector<25xf32>
    %772 = vector.multi_reduction <add>, %771, %cst_287 [1] : vector<25x25xf32> to vector<25xf32>
    %773 = vector.shape_cast %772 : vector<25xf32> to vector<25x1xf32>
    %774 = tpu.reciprocal %773 {approx = true} : vector<25x1xf32> -> vector<25x1xf32>
    %775 = vector.broadcast %774 : vector<25x1xf32> to vector<25x25xf32>
    %776 = arith.mulf %771, %775 : vector<25x25xf32>
    %777 = arith.truncf %776 : vector<25x25xf32> to vector<25x25xbf16>
    %cst_288 = arith.constant dense<0.000000e+00> : vector<25x16xf32>
    %778 = tpu.matmul %777, %763, %cst_288 {dimension_numbers = #tpu.dot_dimension_numbers<[1], [0], [0], [1], [0, 0, 1, 1], [], []>} : vector<25x25xbf16>, vector<25x16xbf16>, vector<25x16xf32> -> vector<25x16xf32>
    %779 = vector.extract_strided_slice %757 {offsets = [0, 16], sizes = [25, 16], strides = [1, 1]} : vector<25x192xf32> to vector<25x16xf32>
    %780 = arith.truncf %779 : vector<25x16xf32> to vector<25x16xbf16>
    %781 = vector.extract_strided_slice %757 {offsets = [0, 80], sizes = [25, 16], strides = [1, 1]} : vector<25x192xf32> to vector<25x16xf32>
    %782 = arith.truncf %781 : vector<25x16xf32> to vector<25x16xbf16>
    %783 = vector.extract_strided_slice %757 {offsets = [0, 144], sizes = [25, 16], strides = [1, 1]} : vector<25x192xf32> to vector<25x16xf32>
    %784 = arith.truncf %783 : vector<25x16xf32> to vector<25x16xbf16>
    "tpu.trace_start"() <{level = 10 : i32, message = "pd,qd->pq"}> : () -> ()
    %cst_289 = arith.constant dense<0.000000e+00> : vector<25x25xf32>
    %785 = tpu.matmul %780, %782, %cst_289 {dimension_numbers = #tpu.dot_dimension_numbers<[1], [1], [0], [0], [0, 0, 1, 0], [], []>} : vector<25x16xbf16>, vector<25x16xbf16>, vector<25x25xf32> -> vector<25x25xf32>
    "tpu.trace_stop"() : () -> ()
    %cst_290 = arith.constant 2.500000e-01 : f32
    %786 = vector.broadcast %cst_290 : f32 to vector<25x25xf32>
    %787 = arith.mulf %785, %786 : vector<25x25xf32>
    %cst_291 = arith.constant dense<0xFF800000> : vector<25xf32>
    %788 = vector.multi_reduction <maximumf>, %787, %cst_291 [1] : vector<25x25xf32> to vector<25xf32>
    %789 = vector.shape_cast %788 : vector<25xf32> to vector<25x1xf32>
    %790 = vector.broadcast %789 : vector<25x1xf32> to vector<25x25xf32>
    %791 = arith.subf %787, %790 : vector<25x25xf32>
    %792 = math.exp %791 : vector<25x25xf32>
    %cst_292 = arith.constant dense<0.000000e+00> : vector<25xf32>
    %793 = vector.multi_reduction <add>, %792, %cst_292 [1] : vector<25x25xf32> to vector<25xf32>
    %794 = vector.shape_cast %793 : vector<25xf32> to vector<25x1xf32>
    %795 = tpu.reciprocal %794 {approx = true} : vector<25x1xf32> -> vector<25x1xf32>
    %796 = vector.broadcast %795 : vector<25x1xf32> to vector<25x25xf32>
    %797 = arith.mulf %792, %796 : vector<25x25xf32>
    %798 = arith.truncf %797 : vector<25x25xf32> to vector<25x25xbf16>
    %cst_293 = arith.constant dense<0.000000e+00> : vector<25x16xf32>
    %799 = tpu.matmul %798, %784, %cst_293 {dimension_numbers = #tpu.dot_dimension_numbers<[1], [0], [0], [1], [0, 0, 1, 1], [], []>} : vector<25x25xbf16>, vector<25x16xbf16>, vector<25x16xf32> -> vector<25x16xf32>
    %800 = vector.extract_strided_slice %757 {offsets = [0, 32], sizes = [25, 16], strides = [1, 1]} : vector<25x192xf32> to vector<25x16xf32>
    %801 = arith.truncf %800 : vector<25x16xf32> to vector<25x16xbf16>
    %802 = vector.extract_strided_slice %757 {offsets = [0, 96], sizes = [25, 16], strides = [1, 1]} : vector<25x192xf32> to vector<25x16xf32>
    %803 = arith.truncf %802 : vector<25x16xf32> to vector<25x16xbf16>
    %804 = vector.extract_strided_slice %757 {offsets = [0, 160], sizes = [25, 16], strides = [1, 1]} : vector<25x192xf32> to vector<25x16xf32>
    %805 = arith.truncf %804 : vector<25x16xf32> to vector<25x16xbf16>
    "tpu.trace_start"() <{level = 10 : i32, message = "pd,qd->pq"}> : () -> ()
    %cst_294 = arith.constant dense<0.000000e+00> : vector<25x25xf32>
    %806 = tpu.matmul %801, %803, %cst_294 {dimension_numbers = #tpu.dot_dimension_numbers<[1], [1], [0], [0], [0, 0, 1, 0], [], []>} : vector<25x16xbf16>, vector<25x16xbf16>, vector<25x25xf32> -> vector<25x25xf32>
    "tpu.trace_stop"() : () -> ()
    %cst_295 = arith.constant 2.500000e-01 : f32
    %807 = vector.broadcast %cst_295 : f32 to vector<25x25xf32>
    %808 = arith.mulf %806, %807 : vector<25x25xf32>
    %cst_296 = arith.constant dense<0xFF800000> : vector<25xf32>
    %809 = vector.multi_reduction <maximumf>, %808, %cst_296 [1] : vector<25x25xf32> to vector<25xf32>
    %810 = vector.shape_cast %809 : vector<25xf32> to vector<25x1xf32>
    %811 = vector.broadcast %810 : vector<25x1xf32> to vector<25x25xf32>
    %812 = arith.subf %808, %811 : vector<25x25xf32>
    %813 = math.exp %812 : vector<25x25xf32>
    %cst_297 = arith.constant dense<0.000000e+00> : vector<25xf32>
    %814 = vector.multi_reduction <add>, %813, %cst_297 [1] : vector<25x25xf32> to vector<25xf32>
    %815 = vector.shape_cast %814 : vector<25xf32> to vector<25x1xf32>
    %816 = tpu.reciprocal %815 {approx = true} : vector<25x1xf32> -> vector<25x1xf32>
    %817 = vector.broadcast %816 : vector<25x1xf32> to vector<25x25xf32>
    %818 = arith.mulf %813, %817 : vector<25x25xf32>
    %819 = arith.truncf %818 : vector<25x25xf32> to vector<25x25xbf16>
    %cst_298 = arith.constant dense<0.000000e+00> : vector<25x16xf32>
    %820 = tpu.matmul %819, %805, %cst_298 {dimension_numbers = #tpu.dot_dimension_numbers<[1], [0], [0], [1], [0, 0, 1, 1], [], []>} : vector<25x25xbf16>, vector<25x16xbf16>, vector<25x16xf32> -> vector<25x16xf32>
    %821 = vector.extract_strided_slice %757 {offsets = [0, 48], sizes = [25, 16], strides = [1, 1]} : vector<25x192xf32> to vector<25x16xf32>
    %822 = arith.truncf %821 : vector<25x16xf32> to vector<25x16xbf16>
    %823 = vector.extract_strided_slice %757 {offsets = [0, 112], sizes = [25, 16], strides = [1, 1]} : vector<25x192xf32> to vector<25x16xf32>
    %824 = arith.truncf %823 : vector<25x16xf32> to vector<25x16xbf16>
    %825 = vector.extract_strided_slice %757 {offsets = [0, 176], sizes = [25, 16], strides = [1, 1]} : vector<25x192xf32> to vector<25x16xf32>
    %826 = arith.truncf %825 : vector<25x16xf32> to vector<25x16xbf16>
    "tpu.trace_start"() <{level = 10 : i32, message = "pd,qd->pq"}> : () -> ()
    %cst_299 = arith.constant dense<0.000000e+00> : vector<25x25xf32>
    %827 = tpu.matmul %822, %824, %cst_299 {dimension_numbers = #tpu.dot_dimension_numbers<[1], [1], [0], [0], [0, 0, 1, 0], [], []>} : vector<25x16xbf16>, vector<25x16xbf16>, vector<25x25xf32> -> vector<25x25xf32>
    "tpu.trace_stop"() : () -> ()
    %cst_300 = arith.constant 2.500000e-01 : f32
    %828 = vector.broadcast %cst_300 : f32 to vector<25x25xf32>
    %829 = arith.mulf %827, %828 : vector<25x25xf32>
    %cst_301 = arith.constant dense<0xFF800000> : vector<25xf32>
    %830 = vector.multi_reduction <maximumf>, %829, %cst_301 [1] : vector<25x25xf32> to vector<25xf32>
    %831 = vector.shape_cast %830 : vector<25xf32> to vector<25x1xf32>
    %832 = vector.broadcast %831 : vector<25x1xf32> to vector<25x25xf32>
    %833 = arith.subf %829, %832 : vector<25x25xf32>
    %834 = math.exp %833 : vector<25x25xf32>
    %cst_302 = arith.constant dense<0.000000e+00> : vector<25xf32>
    %835 = vector.multi_reduction <add>, %834, %cst_302 [1] : vector<25x25xf32> to vector<25xf32>
    %836 = vector.shape_cast %835 : vector<25xf32> to vector<25x1xf32>
    %837 = tpu.reciprocal %836 {approx = true} : vector<25x1xf32> -> vector<25x1xf32>
    %838 = vector.broadcast %837 : vector<25x1xf32> to vector<25x25xf32>
    %839 = arith.mulf %834, %838 : vector<25x25xf32>
    %840 = arith.truncf %839 : vector<25x25xf32> to vector<25x25xbf16>
    %cst_303 = arith.constant dense<0.000000e+00> : vector<25x16xf32>
    %841 = tpu.matmul %840, %826, %cst_303 {dimension_numbers = #tpu.dot_dimension_numbers<[1], [0], [0], [1], [0, 0, 1, 1], [], []>} : vector<25x25xbf16>, vector<25x16xbf16>, vector<25x16xf32> -> vector<25x16xf32>
    %842 = tpu.concatenate %778, %799, %820, %841 in 1 : vector<25x16xf32>, vector<25x16xf32>, vector<25x16xf32>, vector<25x16xf32> -> vector<25x64xf32>
    %843 = arith.truncf %842 : vector<25x64xf32> to vector<25x64xbf16>
    %c1_304 = arith.constant 1 : index
    %c0_305 = arith.constant 0 : index
    %c0_306 = arith.constant 0 : index
    %844 = vector.load %arg7[%c1_304, %c0_305, %c0_306] : memref<2x64x64xbf16, #tpu.memory_space<vmem>>, vector<1x64x64xbf16>
    %845 = vector.shape_cast %844 : vector<1x64x64xbf16> to vector<64x64xbf16>
    %cst_307 = arith.constant dense<0.000000e+00> : vector<25x64xf32>
    %846 = tpu.matmul %843, %845, %cst_307 {dimension_numbers = #tpu.dot_dimension_numbers<[1], [0], [0], [1], [0, 0, 1, 1], [], []>} : vector<25x64xbf16>, vector<64x64xbf16>, vector<25x64xf32> -> vector<25x64xf32>
    %847 = arith.addf %721, %846 : vector<25x64xf32>
    %848 = vector.broadcast %724 : vector<1x64xf32> to vector<25x64xf32>
    %849 = arith.addf %847, %848 : vector<25x64xf32>
    %cst_308 = arith.constant dense<0.000000e+00> : vector<25xf32>
    %850 = vector.multi_reduction <add>, %849, %cst_308 [1] : vector<25x64xf32> to vector<25xf32>
    %851 = vector.shape_cast %850 : vector<25xf32> to vector<25x1xf32>
    %cst_309 = arith.constant 6.400000e+01 : f32
    %852 = vector.broadcast %cst_309 : f32 to vector<25x1xf32>
    %853 = arith.divf %851, %852 : vector<25x1xf32>
    %854 = vector.broadcast %853 : vector<25x1xf32> to vector<25x64xf32>
    %855 = arith.subf %849, %854 : vector<25x64xf32>
    %856 = arith.mulf %855, %855 : vector<25x64xf32>
    %cst_310 = arith.constant dense<0.000000e+00> : vector<25xf32>
    %857 = vector.multi_reduction <add>, %856, %cst_310 [1] : vector<25x64xf32> to vector<25xf32>
    %858 = vector.shape_cast %857 : vector<25xf32> to vector<25x1xf32>
    %cst_311 = arith.constant 6.400000e+01 : f32
    %859 = vector.broadcast %cst_311 : f32 to vector<25x1xf32>
    %860 = arith.divf %858, %859 : vector<25x1xf32>
    %861 = vector.broadcast %853 : vector<25x1xf32> to vector<25x64xf32>
    %862 = arith.subf %849, %861 : vector<25x64xf32>
    %cst_312 = arith.constant 9.99999974E-6 : f32
    %863 = vector.broadcast %cst_312 : f32 to vector<25x1xf32>
    %864 = arith.addf %860, %863 : vector<25x1xf32>
    %865 = math.rsqrt %864 : vector<25x1xf32>
    %866 = vector.broadcast %865 : vector<25x1xf32> to vector<25x64xf32>
    %867 = arith.mulf %862, %866 : vector<25x64xf32>
    %868 = vector.broadcast %725 : vector<1x64xf32> to vector<25x64xf32>
    %869 = arith.mulf %867, %868 : vector<25x64xf32>
    %870 = vector.broadcast %726 : vector<1x64xf32> to vector<25x64xf32>
    %871 = arith.addf %869, %870 : vector<25x64xf32>
    %872 = arith.truncf %871 : vector<25x64xf32> to vector<25x64xbf16>
    %c1_313 = arith.constant 1 : index
    %c0_314 = arith.constant 0 : index
    %c0_315 = arith.constant 0 : index
    %873 = vector.load %arg8[%c1_313, %c0_314, %c0_315] : memref<2x64x128xbf16, #tpu.memory_space<vmem>>, vector<1x64x128xbf16>
    %874 = vector.shape_cast %873 : vector<1x64x128xbf16> to vector<64x128xbf16>
    %cst_316 = arith.constant dense<0.000000e+00> : vector<25x128xf32>
    %875 = tpu.matmul %872, %874, %cst_316 {dimension_numbers = #tpu.dot_dimension_numbers<[1], [0], [0], [1], [0, 0, 1, 1], [], []>} : vector<25x64xbf16>, vector<64x128xbf16>, vector<25x128xf32> -> vector<25x128xf32>
    %876 = vector.broadcast %729 : vector<1x128xf32> to vector<25x128xf32>
    %877 = arith.addf %875, %876 : vector<25x128xf32>
    %cst_317 = arith.constant 5.000000e-01 : f32
    %878 = vector.broadcast %cst_317 : f32 to vector<25x128xf32>
    %879 = arith.mulf %878, %877 : vector<25x128xf32>
    %cst_318 = arith.constant 4.471500e-02 : f32
    %880 = vector.broadcast %cst_318 : f32 to vector<25x128xf32>
    %881 = arith.mulf %880, %877 : vector<25x128xf32>
    %882 = arith.mulf %881, %877 : vector<25x128xf32>
    %883 = arith.mulf %882, %877 : vector<25x128xf32>
    %884 = arith.addf %877, %883 : vector<25x128xf32>
    %cst_319 = arith.constant 0.797884583 : f32
    %885 = vector.broadcast %cst_319 : f32 to vector<25x128xf32>
    %886 = arith.mulf %885, %884 : vector<25x128xf32>
    %887 = math.tanh %886 : vector<25x128xf32>
    %cst_320 = arith.constant 1.000000e+00 : f32
    %888 = vector.broadcast %cst_320 : f32 to vector<25x128xf32>
    %889 = arith.addf %888, %887 : vector<25x128xf32>
    %890 = arith.mulf %879, %889 : vector<25x128xf32>
    %891 = arith.truncf %890 : vector<25x128xf32> to vector<25x128xbf16>
    %c1_321 = arith.constant 1 : index
    %c0_322 = arith.constant 0 : index
    %c0_323 = arith.constant 0 : index
    %892 = vector.load %arg9[%c1_321, %c0_322, %c0_323] : memref<2x128x64xbf16, #tpu.memory_space<vmem>>, vector<1x128x64xbf16>
    %893 = vector.shape_cast %892 : vector<1x128x64xbf16> to vector<128x64xbf16>
    %cst_324 = arith.constant dense<0.000000e+00> : vector<25x64xf32>
    %894 = tpu.matmul %891, %893, %cst_324 {dimension_numbers = #tpu.dot_dimension_numbers<[1], [0], [0], [1], [0, 0, 1, 1], [], []>} : vector<25x128xbf16>, vector<128x64xbf16>, vector<25x64xf32> -> vector<25x64xf32>
    %895 = arith.addf %849, %894 : vector<25x64xf32>
    %896 = vector.broadcast %727 : vector<1x64xf32> to vector<25x64xf32>
    %897 = arith.addf %895, %896 : vector<25x64xf32>
    %cst_325 = arith.constant dense<0.000000e+00> : vector<25xf32>
    %898 = vector.multi_reduction <add>, %897, %cst_325 [1] : vector<25x64xf32> to vector<25xf32>
    %899 = vector.shape_cast %898 : vector<25xf32> to vector<25x1xf32>
    %cst_326 = arith.constant 6.400000e+01 : f32
    %900 = vector.broadcast %cst_326 : f32 to vector<25x1xf32>
    %901 = arith.divf %899, %900 : vector<25x1xf32>
    %902 = vector.broadcast %901 : vector<25x1xf32> to vector<25x64xf32>
    %903 = arith.subf %897, %902 : vector<25x64xf32>
    %904 = arith.mulf %903, %903 : vector<25x64xf32>
    %cst_327 = arith.constant dense<0.000000e+00> : vector<25xf32>
    %905 = vector.multi_reduction <add>, %904, %cst_327 [1] : vector<25x64xf32> to vector<25xf32>
    %906 = vector.shape_cast %905 : vector<25xf32> to vector<25x1xf32>
    %cst_328 = arith.constant 6.400000e+01 : f32
    %907 = vector.broadcast %cst_328 : f32 to vector<25x1xf32>
    %908 = arith.divf %906, %907 : vector<25x1xf32>
    %909 = vector.broadcast %901 : vector<25x1xf32> to vector<25x64xf32>
    %910 = arith.subf %897, %909 : vector<25x64xf32>
    %cst_329 = arith.constant 9.99999974E-6 : f32
    %911 = vector.broadcast %cst_329 : f32 to vector<25x1xf32>
    %912 = arith.addf %908, %911 : vector<25x1xf32>
    %913 = math.rsqrt %912 : vector<25x1xf32>
    %914 = vector.broadcast %913 : vector<25x1xf32> to vector<25x64xf32>
    %915 = arith.mulf %910, %914 : vector<25x64xf32>
    %916 = vector.broadcast %139 : vector<1x64xf32> to vector<25x64xf32>
    %917 = arith.mulf %915, %916 : vector<25x64xf32>
    %918 = vector.broadcast %140 : vector<1x64xf32> to vector<25x64xf32>
    %919 = arith.addf %917, %918 : vector<25x64xf32>
    %920 = vector.extract_strided_slice %919 {offsets = [24, 0], sizes = [1, 64], strides = [1, 1]} : vector<25x64xf32> to vector<1x64xf32>
    %921 = tpu.concatenate %530, %920 in 0 : vector<1x64xf32>, vector<1x64xf32> -> vector<2x64xf32>
    %922 = arith.truncf %921 : vector<2x64xf32> to vector<2x64xbf16>
    %c0_330 = arith.constant 0 : index
    %c0_331 = arith.constant 0 : index
    %923 = vector.load %arg11[%c0_330, %c0_331] : memref<64x21xbf16, #tpu.memory_space<vmem>>, vector<64x21xbf16>
    %cst_332 = arith.constant dense<0.000000e+00> : vector<2x21xf32>
    %924 = tpu.matmul %922, %923, %cst_332 {dimension_numbers = #tpu.dot_dimension_numbers<[1], [0], [0], [1], [0, 0, 1, 1], [], []>} : vector<2x64xbf16>, vector<64x21xbf16>, vector<2x21xf32> -> vector<2x21xf32>
    %c3_333 = arith.constant 3 : index
    %c0_334 = arith.constant 0 : index
    %925 = vector.load %arg5[%c3_333, %c0_334] : memref<64x64xf32, #tpu.memory_space<vmem>>, vector<1x21xf32>
    %926 = vector.broadcast %925 : vector<1x21xf32> to vector<2x21xf32>
    %927 = arith.addf %924, %926 : vector<2x21xf32>
    %cst_335 = arith.constant dense<0xFF800000> : vector<2xf32>
    %928 = vector.multi_reduction <maximumf>, %927, %cst_335 [1] : vector<2x21xf32> to vector<2xf32>
    %929 = vector.shape_cast %928 : vector<2xf32> to vector<2x1xf32>
    %930 = vector.broadcast %929 : vector<2x1xf32> to vector<2x21xf32>
    %931 = arith.subf %927, %930 : vector<2x21xf32>
    %932 = math.exp %931 : vector<2x21xf32>
    %cst_336 = arith.constant dense<0.000000e+00> : vector<2xf32>
    %933 = vector.multi_reduction <add>, %932, %cst_336 [1] : vector<2x21xf32> to vector<2xf32>
    %934 = vector.shape_cast %933 : vector<2xf32> to vector<2x1xf32>
    %935 = tpu.reciprocal %934 {approx = true} : vector<2x1xf32> -> vector<2x1xf32>
    %936 = vector.broadcast %935 : vector<2x1xf32> to vector<2x21xf32>
    %937 = arith.mulf %932, %936 : vector<2x21xf32>
    %c4 = arith.constant 4 : index
    %c0_337 = arith.constant 0 : index
    %938 = vector.load %arg5[%c4, %c0_337] : memref<64x64xf32, #tpu.memory_space<vmem>>, vector<1x21xf32>
    %939 = vector.broadcast %938 : vector<1x21xf32> to vector<2x21xf32>
    %940 = arith.mulf %937, %939 : vector<2x21xf32>
    %cst_338 = arith.constant dense<0.000000e+00> : vector<2xf32>
    %941 = vector.multi_reduction <add>, %940, %cst_338 [1] : vector<2x21xf32> to vector<2xf32>
    %942 = vector.shape_cast %941 : vector<2xf32> to vector<2x1xf32>
    %cst_339 = arith.constant 0.000000e+00 : f32
    %943 = vector.broadcast %cst_339 : f32 to vector<2x85xf32>
    %944 = tpu.concatenate %927, %937, %942, %943 in 1 : vector<2x21xf32>, vector<2x21xf32>, vector<2x1xf32>, vector<2x85xf32> -> vector<2x128xf32>
    %945 = vector.extract_strided_slice %944 {offsets = [0, 0], sizes = [1, 128], strides = [1, 1]} : vector<2x128xf32> to vector<1x128xf32>
    %c0_340 = arith.constant 0 : index
    %c0_341 = arith.constant 0 : index
    %c0_342 = arith.constant 0 : index
    %946 = vector.load %arg13[%c0_340, %c0_341, %c0_342] : memref<2x1x128xf32, #tpu.memory_space<vmem>>, vector<1x1x128xf32>
    %947 = vector.shape_cast %946 : vector<1x1x128xf32> to vector<1x128xf32>
    %948 = vector.shape_cast %945 : vector<1x128xf32> to vector<1x1x128xf32>
    tpu.vector_store %arg13[%c0_340, %c0_341, %c0_342], %948 {strides = array<i32>} : memref<2x1x128xf32, #tpu.memory_space<vmem>>, vector<1x1x128xf32>,
    %949 = vector.extract_strided_slice %944 {offsets = [1, 0], sizes = [1, 128], strides = [1, 1]} : vector<2x128xf32> to vector<1x128xf32>
    %c1_343 = arith.constant 1 : index
    %c0_344 = arith.constant 0 : index
    %c0_345 = arith.constant 0 : index
    %950 = vector.load %arg13[%c1_343, %c0_344, %c0_345] : memref<2x1x128xf32, #tpu.memory_space<vmem>>, vector<1x1x128xf32>
    %951 = vector.shape_cast %950 : vector<1x1x128xf32> to vector<1x128xf32>
    %952 = vector.shape_cast %949 : vector<1x128xf32> to vector<1x1x128xf32>
    tpu.vector_store %arg13[%c1_343, %c0_344, %c0_345], %952 {strides = array<i32>} : memref<2x1x128xf32, #tpu.memory_space<vmem>>, vector<1x1x128xf32>,
    return
  }
  func.func @transform_0(%arg0: i32) -> (i32, i32) {
    %c0_i32 = arith.constant 0 : i32
    %c0_i32_0 = arith.constant 0 : i32
    return %arg0, %c0_i32 : i32, i32
  }
  func.func @transform_1(%arg0: i32) -> (i32, i32) {
    %c0_i32 = arith.constant 0 : i32
    %c0_i32_0 = arith.constant 0 : i32
    return %arg0, %c0_i32 : i32, i32
  }
  func.func @transform_2(%arg0: i32) -> (i32, i32) {
    %c0_i32 = arith.constant 0 : i32
    %c0_i32_0 = arith.constant 0 : i32
    return %arg0, %c0_i32 : i32, i32
  }
  func.func @transform_3(%arg0: i32) -> (i32, i32, i32) {
    %c0_i32 = arith.constant 0 : i32
    %c0_i32_0 = arith.constant 0 : i32
    %c0_i32_1 = arith.constant 0 : i32
    %c0_i32_2 = arith.constant 0 : i32
    return %c0_i32, %c0_i32_0, %c0_i32_1 : i32, i32, i32
  }
  func.func @transform_4(%arg0: i32) -> (i32, i32) {
    %c0_i32 = arith.constant 0 : i32
    %c0_i32_0 = arith.constant 0 : i32
    %c0_i32_1 = arith.constant 0 : i32
    return %c0_i32, %c0_i32_0 : i32, i32
  }
  func.func @transform_5(%arg0: i32) -> (i32, i32, i32) {
    %c0_i32 = arith.constant 0 : i32
    %c0_i32_0 = arith.constant 0 : i32
    %c0_i32_1 = arith.constant 0 : i32
    %c0_i32_2 = arith.constant 0 : i32
    return %c0_i32, %c0_i32_0, %c0_i32_1 : i32, i32, i32
  }
  func.func @transform_6(%arg0: i32) -> (i32, i32, i32) {
    %c0_i32 = arith.constant 0 : i32
    %c0_i32_0 = arith.constant 0 : i32
    %c0_i32_1 = arith.constant 0 : i32
    %c0_i32_2 = arith.constant 0 : i32
    return %c0_i32, %c0_i32_0, %c0_i32_1 : i32, i32, i32
  }
  func.func @transform_7(%arg0: i32) -> (i32, i32, i32) {
    %c0_i32 = arith.constant 0 : i32
    %c0_i32_0 = arith.constant 0 : i32
    %c0_i32_1 = arith.constant 0 : i32
    %c0_i32_2 = arith.constant 0 : i32
    return %c0_i32, %c0_i32_0, %c0_i32_1 : i32, i32, i32
  }
  func.func @transform_8(%arg0: i32) -> (i32, i32, i32) {
    %c0_i32 = arith.constant 0 : i32
    %c0_i32_0 = arith.constant 0 : i32
    %c0_i32_1 = arith.constant 0 : i32
    %c0_i32_2 = arith.constant 0 : i32
    return %c0_i32, %c0_i32_0, %c0_i32_1 : i32, i32, i32
  }
  func.func @transform_9(%arg0: i32) -> (i32, i32) {
    %c0_i32 = arith.constant 0 : i32
    %c0_i32_0 = arith.constant 0 : i32
    %c0_i32_1 = arith.constant 0 : i32
    return %c0_i32, %c0_i32_0 : i32, i32
  }
  func.func @transform_10(%arg0: i32) -> (i32, i32) {
    %c0_i32 = arith.constant 0 : i32
    %c0_i32_0 = arith.constant 0 : i32
    %c0_i32_1 = arith.constant 0 : i32
    return %c0_i32, %c0_i32_0 : i32, i32
  }
  func.func @transform_11(%arg0: i32) -> (i32, i32, i32) {
    %c0_i32 = arith.constant 0 : i32
    %c0_i32_0 = arith.constant 0 : i32
    %c0_i32_1 = arith.constant 0 : i32
    return %arg0, %c0_i32, %c0_i32_0 : i32, i32, i32
  }
  func.func @transform_12(%arg0: i32) -> (i32, i32, i32) {
    %c0_i32 = arith.constant 0 : i32
    %c0_i32_0 = arith.constant 0 : i32
    %c0_i32_1 = arith.constant 0 : i32
    return %arg0, %c0_i32, %c0_i32_0 : i32, i32, i32
  }
}

</mosaic_0001>

<llo_original>
// kernel: esl_ccmt_forward.1
$region0: #{esl_ccmt_forward.1}
  #allocation0 [shape = 'u32[]', space=smem, size = 0x4, offset = 0x4, fixed_abs, tag = 'smem constant byte address 0x4 - core index']
  #allocation1 [shape = 'u32[72,128]{1,0:T(1,128)}', space=vmem, size = 0x9000, scoped, tag = 'internal scratch']
  %s0 = inlined_call_operand.vmem [shape: f32[16,96], index: 0, kind: input, shape index: {}]
  %s1 = inlined_call_operand.vmem [shape: f32[16,80], index: 1, kind: input, shape index: {}]
  %s2 = inlined_call_operand.vmem [shape: f32[16,80], index: 2, kind: input, shape index: {}]
  %s3 = inlined_call_operand.vmem [shape: bf16[3,96,64], index: 3, kind: input, shape index: {}]
  %s4 = inlined_call_operand.vmem [shape: f32[64,64], index: 4, kind: input, shape index: {}]
  %s5 = inlined_call_operand.vmem [shape: bf16[2,64,192], index: 5, kind: input, shape index: {}]
  %s6 = inlined_call_operand.vmem [shape: bf16[2,64,64], index: 6, kind: input, shape index: {}]
  %s7 = inlined_call_operand.vmem [shape: bf16[2,64,128], index: 7, kind: input, shape index: {}]
  %s8 = inlined_call_operand.vmem [shape: bf16[2,128,64], index: 8, kind: input, shape index: {}]
  %s9 = inlined_call_operand.vmem [shape: f32[4,192], index: 9, kind: input, shape index: {}]
  %s10 = inlined_call_operand.vmem [shape: bf16[64,21], index: 10, kind: input, shape index: {}]
  %s11 = inlined_call_operand.hbm [shape: f32[2,24,64], index: 11, kind: output, shape index: {0}]
  %s12 = inlined_call_operand.vmem [shape: f32[2,1,128], index: 12, kind: output, shape index: {1}]
  %13 = xla_tuple %s11, %s12
  %s14 = sld [smem:[#allocation0]]
  $region62: #{esl_ccmt_forward.1} parent=0
    _
  %s16 = ssub.s32 1, %s14
  %s17 = scalar_select 0, %s16, %s14
  $region1: #{esl_ccmt_forward.1} parent=0
    #allocation2 [shape = 'u8[24576]{0}', space=vmem, size = 0x6000, scoped, tag = 'output window, operand 0, single buffered']
    #allocation3 [shape = 's32[1]{0}', space=sflag, size = 0x4, scoped, tag = 'scoped memory for esl_ccmt_forward.1']
    %18 = vsyncpa [#allocation3], 0
    // Predicated region
    $region2: #{esl_ccmt_forward.1} parent=1 // pred_check
      _
    $region3: #{esl_ccmt_forward.1} parent=1 // pred_check_branch
      %20 = sbr.rel (0) target = $region5
    $region4: #{esl_ccmt_forward.1} parent=1 // pred_region
      _
    $region5: #{esl_ccmt_forward.1} parent=1 // pred_fallthru
      _
    // Predicated region
    $region6: #{esl_ccmt_forward.1} parent=1 // pred_check
      _
    $region7: #{esl_ccmt_forward.1} parent=1 // pred_check_branch
      %22 = sbr.rel (0) target = $region9
    $region8: #{esl_ccmt_forward.1} parent=1 // pred_region
      _
    $region9: #{esl_ccmt_forward.1} parent=1 // pred_fallthru
      _
    // Predicated region
    $region10: #{esl_ccmt_forward.1} parent=1 // pred_check
      _
    $region11: #{esl_ccmt_forward.1} parent=1 // pred_check_branch
      %24 = sbr.rel (0) target = $region13
    $region12: #{esl_ccmt_forward.1} parent=1 // pred_region
      _
    $region13: #{esl_ccmt_forward.1} parent=1 // pred_fallthru
      _
    // Predicated region
    $region14: #{esl_ccmt_forward.1} parent=1 // pred_check
      _
    $region15: #{esl_ccmt_forward.1} parent=1 // pred_check_branch
      %26 = sbr.rel (0) target = $region17
    $region16: #{esl_ccmt_forward.1} parent=1 // pred_region
      _
    $region17: #{esl_ccmt_forward.1} parent=1 // pred_fallthru
      _
    // Predicated region
    $region18: #{esl_ccmt_forward.1} parent=1 // pred_check
      _
    $region19: #{esl_ccmt_forward.1} parent=1 // pred_check_branch
      %28 = sbr.rel (0) target = $region21
    $region20: #{esl_ccmt_forward.1} parent=1 // pred_region
      _
    $region21: #{esl_ccmt_forward.1} parent=1 // pred_fallthru
      _
    // Predicated region
    $region22: #{esl_ccmt_forward.1} parent=1 // pred_check
      _
    $region23: #{esl_ccmt_forward.1} parent=1 // pred_check_branch
      %30 = sbr.rel (0) target = $region25
    $region24: #{esl_ccmt_forward.1} parent=1 // pred_region
      _
    $region25: #{esl_ccmt_forward.1} parent=1 // pred_fallthru
      _
    // Predicated region
    $region26: #{esl_ccmt_forward.1} parent=1 // pred_check
      _
    $region27: #{esl_ccmt_forward.1} parent=1 // pred_check_branch
      %32 = sbr.rel (0) target = $region29
    $region28: #{esl_ccmt_forward.1} parent=1 // pred_region
      _
    $region29: #{esl_ccmt_forward.1} parent=1 // pred_fallthru
      _
    // Predicated region
    $region30: #{esl_ccmt_forward.1} parent=1 // pred_check
      _
    $region31: #{esl_ccmt_forward.1} parent=1 // pred_check_branch
      %34 = sbr.rel (0) target = $region33
    $region32: #{esl_ccmt_forward.1} parent=1 // pred_region
      _
    $region33: #{esl_ccmt_forward.1} parent=1 // pred_fallthru
      _
    // Predicated region
    $region34: #{esl_ccmt_forward.1} parent=1 // pred_check
      _
    $region35: #{esl_ccmt_forward.1} parent=1 // pred_check_branch
      %36 = sbr.rel (0) target = $region37
    $region36: #{esl_ccmt_forward.1} parent=1 // pred_region
      _
    $region37: #{esl_ccmt_forward.1} parent=1 // pred_fallthru
      _
    // Predicated region
    $region38: #{esl_ccmt_forward.1} parent=1 // pred_check
      _
    $region39: #{esl_ccmt_forward.1} parent=1 // pred_check_branch
      %38 = sbr.rel (0) target = $region41
    $region40: #{esl_ccmt_forward.1} parent=1 // pred_region
      _
    $region41: #{esl_ccmt_forward.1} parent=1 // pred_fallthru
      _
    // Predicated region
    $region42: #{esl_ccmt_forward.1} parent=1 // pred_check
      _
    $region43: #{esl_ccmt_forward.1} parent=1 // pred_check_branch
      %40 = sbr.rel (0) target = $region45
    $region44: #{esl_ccmt_forward.1} parent=1 // pred_region
      _
    $region45: #{esl_ccmt_forward.1} parent=1 // pred_fallthru
      _
    %v42 = vld [vmem:[%s3] sm:$0xf]
    %v43 = vld [vmem:[%s3 + $0x4] sm:$0xf]
    %v44 = vld [vmem:[%s3 + $0x8] sm:$0xf]
    %v45 = vld [vmem:[%s3 + $0xc] sm:$0xf]
    %v46 = vld [vmem:[%s3 + $0x10] sm:$0xf]
    %v47 = vld [vmem:[%s3 + $0x14] sm:$0xf]
    %v48 = vld [vmem:[%s3 + $0x18] sm:$0xf]
    %v49 = vld [vmem:[%s3 + $0x1c] sm:$0xf]
    %v50 = vld [vmem:[%s3 + $0x20] sm:$0xf]
    %v51 = vld [vmem:[%s3 + $0x24] sm:$0xf]
    %v52 = vld [vmem:[%s3 + $0x28] sm:$0xf]
    %v53 = vld [vmem:[%s3 + $0x2c] sm:$0xf]
    %v54 = vld [vmem:[%s4 + $0x28] sm:$0x1]
    %v55 = vld [vmem:[%s4 + $0x2b] sm:$0x1]
    %v56 = vld [vmem:[%s4 + $0x2e] sm:$0x1]
    %v57 = vld [vmem:[%s0] sm:$0xff]
    %v58 = vld [vmem:[%s0 + $0x8] sm:$0xff]
    %v59 = vpack.c.bf16 %v58, %v57
    %v60 = vperm.slane %v54, 0
    %v73 = vunpack.c.l.b16 %v42
    %v74 = vunpack.c.l.b16 %v43
    %v75 = vunpack.c.l.b16 %v44
    %v76 = vunpack.c.l.b16 %v45
    %v77 = vunpack.c.l.b16 %v46
    %v78 = vunpack.c.l.b16 %v47
    %v79 = vunpack.c.l.b16 %v48
    %v80 = vunpack.c.l.b16 %v49
    %v81 = vunpack.c.l.b16 %v50
    %v82 = vunpack.c.l.b16 %v51
    %v83 = vunpack.c.l.b16 %v52
    %v84 = vunpack.c.l.b16 %v53
    %v85 = vpack.c.b16 %v74, %v73
    %v86 = vpack.c.b16 %v76, %v75
    %v87 = vpack.c.b16 %v78, %v77
    %v88 = vpack.c.b16 %v80, %v79
    %v89 = vpack.c.b16 %v82, %v81
    %v90 = vpack.c.b16 %v84, %v83
    %vm97 = vcmask 785408
    %v99 = vsel %vm97, %v59, 0
    %101 = vmatpush.bf16.msra.mxu0 0
    %102 = vmatpush.bf16.msra.mxu0 0
    %103 = vmatpush.bf16.msra.mxu0 %v90
    %104 = vmatpush.bf16.msra.mxu0 %v89
    %105 = vmatpush.bf16.msra.mxu0 %v88
    %106 = vmatpush.bf16.msra.mxu0 %v87
    %107 = vmatpush.bf16.msra.mxu0 %v86
    %108 = vmatpush.bf16.msra.mxu0 %v85
    %109 = vmatmul.bf16.gmra.mxu0 %v99
    %v110 = vpop.f32.mrf.mxu0
    %v111 = vadd.f32 %v60, %v110
    %v112 = vpop.f32.mrf.mxu0
    %v113 = vadd.f32 %v60, %v112
    %114 = vdwg.mxu0
    %vm115 = vcmask 523264
    %v116 = vsel %vm115, %v111, 0.0
    %117 = vadd.xlane.f32.xlu0 %v116
    %v118 = vpop.xlane.xlu0 %117
    %v119 = vsel %vm115, %v113, 0.0
    %120 = vadd.xlane.f32.xlu0 %v119
    %v121 = vpop.xlane.xlu0 %120
    %v122 = vrcp.pop 64.0
    %v123 = vmul.f32 64.0, %v122
    %v124 = vsub.f32 1.0, %v123
    %v125 = vmul.f32 %v122, %v124
    %v126 = vadd.f32 %v122, %v125
    %vm127 = vweird.f32 %v122
    %v128 = vsel %vm127, %v122, %v126
    %v129 = vmul.f32 %v118, %v128
    %v130 = vmul.f32 %v121, %v128
    %v131 = vsub.f32 %v111, %v129
    %v132 = vsub.f32 %v113, %v130
    %v133 = vmul.f32 %v131, %v131
    %v134 = vmul.f32 %v132, %v132
    %v135 = vsel %vm115, %v133, 0.0
    %136 = vadd.xlane.f32.xlu0 %v135
    %v137 = vpop.xlane.xlu0 %136
    %v138 = vsel %vm115, %v134, 0.0
    %139 = vadd.xlane.f32.xlu0 %v138
    %v140 = vpop.xlane.xlu0 %139
    %v141 = vmul.f32 %v137, %v128
    %v142 = vmul.f32 %v140, %v128
    %v143 = vadd.f32 %v141, 1e-05
    %v144 = vadd.f32 %v142, 1e-05
    %v145 = vrsqrt.pop %v143
    %v146 = vmul.f32 %v145, %v143
    %v147 = vmul.f32 %v146, %v145
    %v148 = vmul.f32 0.5, %v147
    %v149 = vsub.f32 1.5, %v148
    %v150 = vmul.f32 %v145, %v149
    %vm151 = vweird.f32 %v143
    %vm152 = vweird.f32 %v145
    %vm153 = vmor %vm151, %vm152
    %v154 = vsel %vm153, %v145, %v150
    %v155 = vrsqrt.pop %v144
    %v156 = vmul.f32 %v155, %v144
    %v157 = vmul.f32 %v156, %v155
    %v158 = vmul.f32 0.5, %v157
    %v159 = vsub.f32 1.5, %v158
    %v160 = vmul.f32 %v155, %v159
    %vm161 = vweird.f32 %v144
    %vm162 = vweird.f32 %v155
    %vm163 = vmor %vm161, %vm162
    %v164 = vsel %vm163, %v155, %v160
    %v165 = vmul.f32 %v131, %v154
    %v166 = vmul.f32 %v132, %v164
    %v167 = vperm.slane %v55, 0
    %v168 = vmul.f32 %v165, %v167
    %v169 = vmul.f32 %v166, %v167
    %v170 = vperm.slane %v56, 0
    %v171 = vadd.f32 %v168, %v170
    %v172 = vadd.f32 %v169, %v170
    %v173 = vmul.f32 %v171, 0.5
    %v174 = vmul.f32 %v172, 0.5
    %v175 = vmul.f32 %v171, 0.044715
    %v176 = vmul.f32 %v172, 0.044715
    %v177 = vmul.f32 %v175, %v171
    %v178 = vmul.f32 %v176, %v172
    %v179 = vmul.f32 %v177, %v171
    %v180 = vmul.f32 %v178, %v172
    %v181 = vadd.f32 %v171, %v179
    %v182 = vadd.f32 %v172, %v180
    %v183 = vmul.f32 %v181, 0.7978846
    %v184 = vmul.f32 %v182, 0.7978846
    %v185 = vtanh.pop %v183
    %v186 = vtanh.pop %v184
    %v187 = vadd.f32 %v185, 1.0
    %v188 = vadd.f32 %v186, 1.0
    %v189 = vmul.f32 %v173, %v187
    %v190 = vmul.f32 %v174, %v188
    %s191 = scalar_lea.vmem %s3, 48
    %v192 = vld [vmem:[%s191] sm:$0xf]
    %v193 = vld [vmem:[%s191 + $0x4] sm:$0xf]
    %v194 = vld [vmem:[%s191 + $0x8] sm:$0xf]
    %v195 = vld [vmem:[%s191 + $0xc] sm:$0xf]
    %v196 = vld [vmem:[%s191 + $0x10] sm:$0xf]
    %v197 = vld [vmem:[%s191 + $0x14] sm:$0xf]
    %v198 = vld [vmem:[%s191 + $0x18] sm:$0xf]
    %v199 = vld [vmem:[%s191 + $0x1c] sm:$0xf]
    %v200 = vld [vmem:[%s191 + $0x20] sm:$0xf]
    %v201 = vld [vmem:[%s191 + $0x24] sm:$0xf]
    %v202 = vld [vmem:[%s4 + $0x29] sm:$0x1]
    %v203 = vld [vmem:[%s4 + $0x2c] sm:$0x1]
    %v204 = vld [vmem:[%s4 + $0x2f] sm:$0x1]
    %v205 = vld [vmem:[%s1] sm:$0xff]
    %v206 = vld [vmem:[%s1 + $0x8] sm:$0xff]
    %v207 = vpack.c.bf16 %v206, %v205
    %v208 = vperm.slane %v202, 0
    %v219 = vunpack.c.l.b16 %v192
    %v220 = vunpack.c.l.b16 %v193
    %v221 = vunpack.c.l.b16 %v194
    %v222 = vunpack.c.l.b16 %v195
    %v223 = vunpack.c.l.b16 %v196
    %v224 = vunpack.c.l.b16 %v197
    %v225 = vunpack.c.l.b16 %v198
    %v226 = vunpack.c.l.b16 %v199
    %v227 = vunpack.c.l.b16 %v200
    %v228 = vunpack.c.l.b16 %v201
    %v229 = vpack.c.b16 %v220, %v219
    %v230 = vpack.c.b16 %v222, %v221
    %v231 = vpack.c.b16 %v224, %v223
    %v232 = vpack.c.b16 %v226, %v225
    %v233 = vpack.c.b16 %v228, %v227
    %vm239 = vcmask 654336
    %v241 = vsel %vm239, %v207, 0
    %243 = vmatpush.bf16.msra.mxu0 0
    %244 = vmatpush.bf16.msra.mxu0 0
    %245 = vmatpush.bf16.msra.mxu0 0
    %246 = vmatpush.bf16.msra.mxu0 %v233
    %247 = vmatpush.bf16.msra.mxu0 %v232
    %248 = vmatpush.bf16.msra.mxu0 %v231
    %249 = vmatpush.bf16.msra.mxu0 %v230
    %250 = vmatpush.bf16.msra.mxu0 %v229
    %251 = vmatmul.bf16.gmra.mxu0 %v241
    %v252 = vpop.f32.mrf.mxu0
    %v253 = vadd.f32 %v208, %v252
    %v254 = vpop.f32.mrf.mxu0
    %v255 = vadd.f32 %v208, %v254
    %256 = vdwg.mxu0
    %v257 = vsel %vm115, %v253, 0.0
    %258 = vadd.xlane.f32.xlu0 %v257
    %v259 = vpop.xlane.xlu0 %258
    %v260 = vsel %vm115, %v255, 0.0
    %261 = vadd.xlane.f32.xlu0 %v260
    %v262 = vpop.xlane.xlu0 %261
    %v263 = vmul.f32 %v259, %v128
    %v264 = vmul.f32 %v262, %v128
    %v265 = vsub.f32 %v253, %v263
    %v266 = vsub.f32 %v255, %v264
    %v267 = vmul.f32 %v265, %v265
    %v268 = vmul.f32 %v266, %v266
    %v269 = vsel %vm115, %v267, 0.0
    %270 = vadd.xlane.f32.xlu0 %v269
    %v271 = vpop.xlane.xlu0 %270
    %v272 = vsel %vm115, %v268, 0.0
    %273 = vadd.xlane.f32.xlu0 %v272
    %v274 = vpop.xlane.xlu0 %273
    %v275 = vmul.f32 %v271, %v128
    %v276 = vmul.f32 %v274, %v128
    %v277 = vadd.f32 %v275, 1e-05
    %v278 = vadd.f32 %v276, 1e-05
    %v279 = vrsqrt.pop %v277
    %v280 = vmul.f32 %v279, %v277
    %v281 = vmul.f32 %v280, %v279
    %v282 = vmul.f32 0.5, %v281
    %v283 = vsub.f32 1.5, %v282
    %v284 = vmul.f32 %v279, %v283
    %vm285 = vweird.f32 %v277
    %vm286 = vweird.f32 %v279
    %vm287 = vmor %vm285, %vm286
    %v288 = vsel %vm287, %v279, %v284
    %v289 = vrsqrt.pop %v278
    %v290 = vmul.f32 %v289, %v278
    %v291 = vmul.f32 %v290, %v289
    %v292 = vmul.f32 0.5, %v291
    %v293 = vsub.f32 1.5, %v292
    %v294 = vmul.f32 %v289, %v293
    %vm295 = vweird.f32 %v278
    %vm296 = vweird.f32 %v289
    %vm297 = vmor %vm295, %vm296
    %v298 = vsel %vm297, %v289, %v294
    %v299 = vmul.f32 %v265, %v288
    %v300 = vmul.f32 %v266, %v298
    %v301 = vperm.slane %v203, 0
    %v302 = vmul.f32 %v299, %v301
    %v303 = vmul.f32 %v300, %v301
    %v304 = vperm.slane %v204, 0
    %v305 = vadd.f32 %v302, %v304
    %v306 = vadd.f32 %v303, %v304
    %v307 = vmul.f32 %v305, 0.5
    %v308 = vmul.f32 %v306, 0.5
    %v309 = vmul.f32 %v305, 0.044715
    %v310 = vmul.f32 %v306, 0.044715
    %v311 = vmul.f32 %v309, %v305
    %v312 = vmul.f32 %v310, %v306
    %v313 = vmul.f32 %v311, %v305
    %v314 = vmul.f32 %v312, %v306
    %v315 = vadd.f32 %v305, %v313
    %v316 = vadd.f32 %v306, %v314
    %v317 = vmul.f32 %v315, 0.7978846
    %v318 = vmul.f32 %v316, 0.7978846
    %v319 = vtanh.pop %v317
    %v320 = vtanh.pop %v318
    %v321 = vadd.f32 %v319, 1.0
    %v322 = vadd.f32 %v320, 1.0
    %v323 = vmul.f32 %v307, %v321
    %v324 = vmul.f32 %v308, %v322
    %s325 = scalar_lea.vmem %s3, 96
    %v326 = vld [vmem:[%s325] sm:$0xf]
    %v327 = vld [vmem:[%s325 + $0x4] sm:$0xf]
    %v328 = vld [vmem:[%s325 + $0x8] sm:$0xf]
    %v329 = vld [vmem:[%s325 + $0xc] sm:$0xf]
    %v330 = vld [vmem:[%s325 + $0x10] sm:$0xf]
    %v331 = vld [vmem:[%s325 + $0x14] sm:$0xf]
    %v332 = vld [vmem:[%s325 + $0x18] sm:$0xf]
    %v333 = vld [vmem:[%s325 + $0x1c] sm:$0xf]
    %v334 = vld [vmem:[%s325 + $0x20] sm:$0xf]
    %v335 = vld [vmem:[%s325 + $0x24] sm:$0xf]
    %v336 = vld [vmem:[%s4 + $0x2a] sm:$0x1]
    %v337 = vld [vmem:[%s4 + $0x2d] sm:$0x1]
    %v338 = vld [vmem:[%s4 + $0x30] sm:$0x1]
    %v339 = vld [vmem:[%s2] sm:$0xff]
    %v340 = vld [vmem:[%s2 + $0x8] sm:$0xff]
    %v341 = vpack.c.bf16 %v340, %v339
    %v342 = vperm.slane %v336, 0
    %v353 = vunpack.c.l.b16 %v326
    %v354 = vunpack.c.l.b16 %v327
    %v355 = vunpack.c.l.b16 %v328
    %v356 = vunpack.c.l.b16 %v329
    %v357 = vunpack.c.l.b16 %v330
    %v358 = vunpack.c.l.b16 %v331
    %v359 = vunpack.c.l.b16 %v332
    %v360 = vunpack.c.l.b16 %v333
    %v361 = vunpack.c.l.b16 %v334
    %v362 = vunpack.c.l.b16 %v335
    %v363 = vpack.c.b16 %v354, %v353
    %v364 = vpack.c.b16 %v356, %v355
    %v365 = vpack.c.b16 %v358, %v357
    %v366 = vpack.c.b16 %v360, %v359
    %v367 = vpack.c.b16 %v362, %v361
    %v374 = vsel %vm239, %v341, 0
    %376 = vmatpush.bf16.msra.mxu0 0
    %377 = vmatpush.bf16.msra.mxu0 0
    %378 = vmatpush.bf16.msra.mxu0 0
    %379 = vmatpush.bf16.msra.mxu0 %v367
    %380 = vmatpush.bf16.msra.mxu0 %v366
    %381 = vmatpush.bf16.msra.mxu0 %v365
    %382 = vmatpush.bf16.msra.mxu0 %v364
    %383 = vmatpush.bf16.msra.mxu0 %v363
    %384 = vmatmul.bf16.gmra.mxu0 %v374
    %v385 = vpop.f32.mrf.mxu0
    %v386 = vadd.f32 %v342, %v385
    %v387 = vpop.f32.mrf.mxu0
    %v388 = vadd.f32 %v342, %v387
    %389 = vdwg.mxu0
    %v390 = vsel %vm115, %v386, 0.0
    %391 = vadd.xlane.f32.xlu0 %v390
    %v392 = vpop.xlane.xlu0 %391
    %v393 = vsel %vm115, %v388, 0.0
    %394 = vadd.xlane.f32.xlu0 %v393
    %v395 = vpop.xlane.xlu0 %394
    %v396 = vmul.f32 %v392, %v128
    %v397 = vmul.f32 %v395, %v128
    %v398 = vsub.f32 %v386, %v396
    %v399 = vsub.f32 %v388, %v397
    %v400 = vmul.f32 %v398, %v398
    %v401 = vmul.f32 %v399, %v399
    %v402 = vsel %vm115, %v400, 0.0
    %403 = vadd.xlane.f32.xlu0 %v402
    %v404 = vpop.xlane.xlu0 %403
    %v405 = vsel %vm115, %v401, 0.0
    %406 = vadd.xlane.f32.xlu0 %v405
    %v407 = vpop.xlane.xlu0 %406
    %v408 = vmul.f32 %v404, %v128
    %v409 = vmul.f32 %v407, %v128
    %v410 = vadd.f32 %v408, 1e-05
    %v411 = vadd.f32 %v409, 1e-05
    %v412 = vrsqrt.pop %v410
    %v413 = vmul.f32 %v412, %v410
    %v414 = vmul.f32 %v413, %v412
    %v415 = vmul.f32 0.5, %v414
    %v416 = vsub.f32 1.5, %v415
    %v417 = vmul.f32 %v412, %v416
    %vm418 = vweird.f32 %v410
    %vm419 = vweird.f32 %v412
    %vm420 = vmor %vm418, %vm419
    %v421 = vsel %vm420, %v412, %v417
    %v422 = vrsqrt.pop %v411
    %v423 = vmul.f32 %v422, %v411
    %v424 = vmul.f32 %v423, %v422
    %v425 = vmul.f32 0.5, %v424
    %v426 = vsub.f32 1.5, %v425
    %v427 = vmul.f32 %v422, %v426
    %vm428 = vweird.f32 %v411
    %vm429 = vweird.f32 %v422
    %vm430 = vmor %vm428, %vm429
    %v431 = vsel %vm430, %v422, %v427
    %v432 = vmul.f32 %v398, %v421
    %v433 = vmul.f32 %v399, %v431
    %v434 = vperm.slane %v337, 0
    %v435 = vmul.f32 %v432, %v434
    %v436 = vmul.f32 %v433, %v434
    %v437 = vperm.slane %v338, 0
    %v438 = vadd.f32 %v435, %v437
    %v439 = vadd.f32 %v436, %v437
    %v440 = vmul.f32 %v438, 0.5
    %v441 = vmul.f32 %v439, 0.5
    %v442 = vmul.f32 %v438, 0.044715
    %v443 = vmul.f32 %v439, 0.044715
    %v444 = vmul.f32 %v442, %v438
    %v445 = vmul.f32 %v443, %v439
    %v446 = vmul.f32 %v444, %v438
    %v447 = vmul.f32 %v445, %v439
    %v448 = vadd.f32 %v438, %v446
    %v449 = vadd.f32 %v439, %v447
    %v450 = vmul.f32 %v448, 0.7978846
    %v451 = vmul.f32 %v449, 0.7978846
    %v452 = vtanh.pop %v450
    %v453 = vtanh.pop %v451
    %v454 = vadd.f32 %v452, 1.0
    %v455 = vadd.f32 %v453, 1.0
    %v456 = vmul.f32 %v440, %v454
    %v457 = vmul.f32 %v441, %v455
    %v458 = vld [vmem:[%s4] sm:$0x1]
    %v459 = vld [vmem:[%s4 + $0x8] sm:$0xff]
    %v460 = vld [vmem:[%s4 + $0x10] sm:$0xff]
    %v461 = vld [vmem:[%s4 + $0x18] sm:$0xff]
    %v462 = vld [vmem:[%s4 + $0x20] sm:$0x1]
    %v463 = vld [vmem:[%s4 + $0x1] sm:$0x1]
    %v464 = vld [vmem:[%s4 + $0x2] sm:$0x1]
    %vm465 = vcmask 1046528
    %v466 = vsel %vm465, %v323, 0.0
    %vm467 = vcmask 1044480
    %v468 = vsel %vm467, %v456, 0.0
    %vm469 = vcmask 1045504
    %v470 = vsel %vm469, %v189, 0.0
    %471 = vst.msk [vmem:[#allocation2] sm:$0xff] %vm115, %v466
    %472 = vst.msk [vmem:[#allocation2 + $0x8] sm:$0xff] %vm115, %v468
    %473 = vst.msk [vmem:[#allocation2 + $0x10] sm:$0xff] %vm115, %v470
    %v474 = vadd.f32 %v466, %v459
    %v475 = vadd.f32 %v468, %v460
    %v476 = vadd.f32 %v470, %v461
    %v477 = vadd.f32 %v458, %v462
    %v478 = vld [vmem:[%s4 + $0x31] sm:$0x1]
    %v479 = vld [vmem:[%s4 + $0x32] sm:$0x1]
    %v480 = vld [vmem:[%s4 + $0x33] sm:$0x1]
    %v481 = vld [vmem:[%s4 + $0x34] sm:$0x1]
    %v482 = vld [vmem:[%s4 + $0x35] sm:$0x1]
    %v483 = vld [vmem:[%s4 + $0x36] sm:$0x1]
    %v484 = vld [vmem:[%s9] ss:$4 sm:$0x3]
    %v485 = vld [vmem:[%s9 + $0x2] sm:$0x1]
    %v486 = vsel %vm115, %v474, 0.0
    %487 = vadd.xlane.f32.xlu0 %v486
    %v488 = vpop.xlane.xlu0 %487
    %v489 = vsel %vm115, %v475, 0.0
    %490 = vadd.xlane.f32.xlu0 %v489
    %v491 = vpop.xlane.xlu0 %490
    %v492 = vsel %vm115, %v476, 0.0
    %493 = vadd.xlane.f32.xlu0 %v492
    %v494 = vpop.xlane.xlu0 %493
    %vm495 = vcmask 516096
    %v496 = vsel %vm495, %v477, 0.0
    %497 = vadd.xlane.f32.xlu0 %v496
    %v498 = vpop.xlane.xlu0 %497
    %v499 = vmul.f32 %v488, %v128
    %v500 = vmul.f32 %v491, %v128
    %v501 = vmul.f32 %v494, %v128
    %v502 = vmul.f32 %v498, %v128
    %v503 = vsub.f32 %v474, %v499
    %v504 = vsub.f32 %v475, %v500
    %v505 = vsub.f32 %v476, %v501
    %v506 = vsub.f32 %v477, %v502
    %v507 = vmul.f32 %v503, %v503
    %v508 = vmul.f32 %v504, %v504
    %v509 = vmul.f32 %v505, %v505
    %v510 = vmul.f32 %v506, %v506
    %v511 = vsel %vm115, %v507, 0.0
    %512 = vadd.xlane.f32.xlu0 %v511
    %v513 = vpop.xlane.xlu0 %512
    %v514 = vsel %vm115, %v508, 0.0
    %515 = vadd.xlane.f32.xlu0 %v514
    %v516 = vpop.xlane.xlu0 %515
    %v517 = vsel %vm115, %v509, 0.0
    %518 = vadd.xlane.f32.xlu0 %v517
    %v519 = vpop.xlane.xlu0 %518
    %v520 = vsel %vm495, %v510, 0.0
    %521 = vadd.xlane.f32.xlu0 %v520
    %v522 = vpop.xlane.xlu0 %521
    %v523 = vmul.f32 %v513, %v128
    %v524 = vmul.f32 %v516, %v128
    %v525 = vmul.f32 %v519, %v128
    %v526 = vmul.f32 %v522, %v128
    %v527 = vadd.f32 %v523, 1e-05
    %v528 = vadd.f32 %v524, 1e-05
    %v529 = vadd.f32 %v525, 1e-05
    %v530 = vadd.f32 %v526, 1e-05
    %v531 = vrsqrt.pop %v527
    %v532 = vmul.f32 %v531, %v527
    %v533 = vmul.f32 %v532, %v531
    %v534 = vmul.f32 0.5, %v533
    %v535 = vsub.f32 1.5, %v534
    %v536 = vmul.f32 %v531, %v535
    %vm537 = vweird.f32 %v527
    %vm538 = vweird.f32 %v531
    %vm539 = vmor %vm537, %vm538
    %v540 = vsel %vm539, %v531, %v536
    %v541 = vrsqrt.pop %v528
    %v542 = vmul.f32 %v541, %v528
    %v543 = vmul.f32 %v542, %v541
    %v544 = vmul.f32 0.5, %v543
    %v545 = vsub.f32 1.5, %v544
    %v546 = vmul.f32 %v541, %v545
    %vm547 = vweird.f32 %v528
    %vm548 = vweird.f32 %v541
    %vm549 = vmor %vm547, %vm548
    %v550 = vsel %vm549, %v541, %v546
    %v551 = vrsqrt.pop %v529
    %v552 = vmul.f32 %v551, %v529
    %v553 = vmul.f32 %v552, %v551
    %v554 = vmul.f32 0.5, %v553
    %v555 = vsub.f32 1.5, %v554
    %v556 = vmul.f32 %v551, %v555
    %vm557 = vweird.f32 %v529
    %vm558 = vweird.f32 %v551
    %vm559 = vmor %vm557, %vm558
    %v560 = vsel %vm559, %v551, %v556
    %v561 = vrsqrt.pop %v530
    %v562 = vmul.f32 %v561, %v530
    %v563 = vmul.f32 %v562, %v561
    %v564 = vmul.f32 0.5, %v563
    %v565 = vsub.f32 1.5, %v564
    %v566 = vmul.f32 %v561, %v565
    %vm567 = vweird.f32 %v530
    %vm568 = vweird.f32 %v561
    %vm569 = vmor %vm567, %vm568
    %v570 = vsel %vm569, %v561, %v566
    %v571 = vmul.f32 %v503, %v540
    %v572 = vmul.f32 %v504, %v550
    %v573 = vmul.f32 %v505, %v560
    %v574 = vmul.f32 %v506, %v570
    %v575 = vperm.slane %v478, 0
    %v576 = vmul.f32 %v571, %v575
    %v577 = vmul.f32 %v572, %v575
    %v578 = vmul.f32 %v573, %v575
    %v579 = vmul.f32 %v574, %v575
    %v580 = vperm.slane %v479, 0
    %v581 = vadd.f32 %v576, %v580
    %v582 = vadd.f32 %v577, %v580
    %v583 = vadd.f32 %v578, %v580
    %v584 = vadd.f32 %v579, %v580
    %v585 = vpack.c.bf16 %v582, %v581
    %v586 = vpack.c.bf16 %v584, %v583
    %v587 = vld [vmem:[%s5] sm:$0xff]
    %v588 = vld [vmem:[%s5 + $0x8] sm:$0xff]
    %v589 = vld [vmem:[%s5 + $0x10] sm:$0xff]
    %v590 = vld [vmem:[%s5 + $0x18] sm:$0xff]
    %v591 = vld [vmem:[%s5 + $0x20] sm:$0xff]
    %v592 = vld [vmem:[%s5 + $0x28] sm:$0xff]
    %v593 = vld [vmem:[%s5 + $0x30] sm:$0xff]
    %v594 = vld [vmem:[%s5 + $0x38] sm:$0xff]
    %v596 = vperm.slane %v484, 0
    %v597 = vperm.slane %v484, 1
    %v608 = vunpack.c.l.b16 %v587
    %v609 = vunpack.c.h.b16 %v587
    %v610 = vunpack.c.l.b16 %v588
    %v611 = vunpack.c.h.b16 %v588
    %v612 = vunpack.c.l.b16 %v589
    %v613 = vunpack.c.h.b16 %v589
    %v614 = vunpack.c.l.b16 %v590
    %v615 = vunpack.c.h.b16 %v590
    %v616 = vunpack.c.l.b16 %v591
    %v617 = vunpack.c.h.b16 %v591
    %v618 = vunpack.c.l.b16 %v592
    %v619 = vunpack.c.h.b16 %v592
    %v620 = vunpack.c.l.b16 %v593
    %v621 = vunpack.c.h.b16 %v593
    %v622 = vunpack.c.l.b16 %v594
    %v623 = vunpack.c.h.b16 %v594
    %v624 = vpack.c.b16 %v610, %v608
    %v625 = vpack.c.b16 %v611, %v609
    %v626 = vpack.c.b16 %v614, %v612
    %v627 = vpack.c.b16 %v615, %v613
    %v628 = vpack.c.b16 %v618, %v616
    %v629 = vpack.c.b16 %v619, %v617
    %v630 = vpack.c.b16 %v622, %v620
    %v631 = vpack.c.b16 %v623, %v621
    %v641 = vsel %vm115, %v585, 0
    %v644 = vsel %vm115, %v586, 0
    %646 = vmatpush.bf16.msra.mxu0 0
    %647 = vmatpush.bf16.msra.mxu0 0
    %648 = vmatpush.bf16.msra.mxu0 0
    %649 = vmatpush.bf16.msra.mxu0 0
    %650 = vmatpush.bf16.msra.mxu0 %v630
    %651 = vmatpush.bf16.msra.mxu0 %v628
    %652 = vmatpush.bf16.msra.mxu0 %v626
    %653 = vmatpush.bf16.msra.mxu0 %v624
    %654 = vmatmul.bf16.gmra.mxu0 %v641
    %v655 = vpop.f32.mrf.mxu0
    %v656 = vadd.f32 %v596, %v655
    %v657 = vpop.f32.mrf.mxu0
    %v658 = vadd.f32 %v596, %v657
    %659 = vmatmul.bf16.gmra.mxu0 %v644
    %v660 = vpop.f32.mrf.mxu0
    %v661 = vadd.f32 %v596, %v660
    %v662 = vpop.f32.mrf.mxu0
    %v663 = vadd.f32 %v596, %v662
    %664 = vdwg.mxu0
    %665 = vmatpush.bf16.msra.mxu0 0
    %666 = vmatpush.bf16.msra.mxu0 0
    %667 = vmatpush.bf16.msra.mxu0 0
    %668 = vmatpush.bf16.msra.mxu0 0
    %669 = vmatpush.bf16.msra.mxu0 %v631
    %670 = vmatpush.bf16.msra.mxu0 %v629
    %671 = vmatpush.bf16.msra.mxu0 %v627
    %672 = vmatpush.bf16.msra.mxu0 %v625
    %673 = vmatmul.bf16.gmra.mxu0 %v641
    %v674 = vpop.f32.mrf.mxu0
    %v675 = vadd.f32 %v597, %v674
    %v676 = vpop.f32.mrf.mxu0
    %v677 = vadd.f32 %v597, %v676
    %678 = vmatmul.bf16.gmra.mxu0 %v644
    %v679 = vpop.f32.mrf.mxu0
    %v680 = vadd.f32 %v597, %v679
    %v681 = vpop.f32.mrf.mxu0
    %v682 = vadd.f32 %v597, %v681
    %683 = vdwg.mxu0
    %v684 = vpack.c.bf16 %v658, %v656
    %v685 = vpack.c.bf16 %v663, %v661
    %v686 = vpack.c.bf16 %v677, %v675
    %v687 = vpack.c.bf16 %v682, %v680
    %690 = vrot.lane.b32.xlu0 %v684, 64
    %v691 = vpop.permute.xlu0 %690
    %692 = vrot.lane.b32.xlu0 %v685, 64
    %v693 = vpop.permute.xlu0 %692
    %vm694 = vcmask 130048
    %v696 = vsel %vm694, %v684, 0
    %v699 = vsel %vm694, %v685, 0
    %v702 = vsel %vm694, %v691, 0
    %v705 = vsel %vm694, %v693, 0
    %707 = vmatpush.bf16.xpose.msra.mxu0 0
    %708 = vmatpush.bf16.xpose.msra.mxu0 0
    %709 = vmatpush.bf16.xpose.msra.mxu0 0
    %710 = vmatpush.bf16.xpose.msra.mxu0 0
    %711 = vmatpush.bf16.xpose.msra.mxu0 0
    %712 = vmatpush.bf16.xpose.msra.mxu0 0
    %713 = vmatpush.bf16.xpose.msra.mxu0 %v705
    %714 = vmatpush.bf16.xpose.msra.mxu0 %v702
    %715 = vmatmul.bf16.gmra.mxu0 %v696
    %v716 = vpop.f32.mrf.mxu0
    %v717 = vadd.f32 0.0, %v716
    %v718 = vpop.f32.mrf.mxu0
    %v719 = vadd.f32 0.0, %v718
    %720 = vmatmul.bf16.gmra.mxu0 %v699
    %v721 = vpop.f32.mrf.mxu0
    %v722 = vadd.f32 0.0, %v721
    %v723 = vpop.f32.mrf.mxu0
    %v724 = vadd.f32 0.0, %v723
    %725 = vdwg.mxu0
    %v726 = vmul.f32 %v717, 0.25
    %v727 = vmul.f32 %v719, 0.25
    %v728 = vmul.f32 %v722, 0.25
    %v729 = vmul.f32 %v724, 0.25
    %vm730 = vcmask 203776
    %v731 = vsel %vm730, %v726, -inf
    %732 = vmax.xlane.f32.xlu0 %v731
    %v733 = vpop.xlane.xlu0 %732
    %v734 = vsel %vm730, %v727, -inf
    %735 = vmax.xlane.f32.xlu0 %v734
    %v736 = vpop.xlane.xlu0 %735
    %v737 = vsel %vm730, %v728, -inf
    %738 = vmax.xlane.f32.xlu0 %v737
    %v739 = vpop.xlane.xlu0 %738
    %vm740 = vcmask 196608
    %v741 = vsel %vm740, %v729, -inf
    %742 = vmax.xlane.f32.xlu0 %v741
    %v743 = vpop.xlane.xlu0 %742
    %v744 = vsub.f32 %v726, %v733
    %v745 = vsub.f32 %v727, %v736
    %v746 = vsub.f32 %v728, %v739
    %v747 = vsub.f32 %v729, %v743
    %v748 = vmul.f32 %v744, 1.442695
    %v749 = vpow.pop %v748
    %v750 = vmul.f32 %v745, 1.442695
    %v751 = vpow.pop %v750
    %v752 = vmul.f32 %v746, 1.442695
    %v753 = vpow.pop %v752
    %v754 = vmul.f32 %v747, 1.442695
    %v755 = vpow.pop %v754
    %v756 = vsel %vm730, %v749, 0.0
    %757 = vadd.xlane.f32.xlu0 %v756
    %v758 = vpop.xlane.xlu0 %757
    %v759 = vsel %vm730, %v751, 0.0
    %760 = vadd.xlane.f32.xlu0 %v759
    %v761 = vpop.xlane.xlu0 %760
    %v762 = vsel %vm730, %v753, 0.0
    %763 = vadd.xlane.f32.xlu0 %v762
    %v764 = vpop.xlane.xlu0 %763
    %v765 = vsel %vm740, %v755, 0.0
    %766 = vadd.xlane.f32.xlu0 %v765
    %v767 = vpop.xlane.xlu0 %766
    %v768 = vrcp.pop %v758
    %v769 = vrcp.pop %v761
    %v770 = vrcp.pop %v764
    %v771 = vrcp.pop %v767
    %v772 = vmul.f32 %v749, %v768
    %v773 = vmul.f32 %v751, %v769
    %v774 = vmul.f32 %v753, %v770
    %v775 = vmul.f32 %v755, %v771
    %v776 = vpack.c.bf16 %v773, %v772
    %v777 = vpack.c.bf16 %v775, %v774
    %v779 = vsel %vm730, %v776, 0
    %v782 = vsel %vm730, %v777, 0
    %vm784 = vcmask 1043456
    %v785 = vsel %vm784, 4294967295, 65535
    %v786 = vsel %vm467, %v785, 0
    %v788 = vand.u32 %v687, %v786
    %790 = vmatpush.bf16.msra.mxu0 0
    %791 = vmatpush.bf16.msra.mxu0 0
    %792 = vmatpush.bf16.msra.mxu0 0
    %793 = vmatpush.bf16.msra.mxu0 0
    %794 = vmatpush.bf16.msra.mxu0 0
    %795 = vmatpush.bf16.msra.mxu0 0
    %796 = vmatpush.bf16.msra.mxu0 %v788
    %797 = vmatpush.bf16.msra.mxu0 %v686
    %798 = vmatmul.bf16.gmra.mxu0 %v779
    %v799 = vpop.f32.mrf.mxu0
    %v800 = vadd.f32 0.0, %v799
    %v801 = vpop.f32.mrf.mxu0
    %v802 = vadd.f32 0.0, %v801
    %803 = vmatmul.bf16.gmra.mxu0 %v782
    %v804 = vpop.f32.mrf.mxu0
    %v805 = vadd.f32 0.0, %v804
    %v806 = vpop.f32.mrf.mxu0
    %v807 = vadd.f32 0.0, %v806
    %808 = vdwg.mxu0
    %809 = vrot.lane.b32.xlu0 %v684, 112
    %v810 = vpop.permute.xlu0 %809
    %811 = vrot.lane.b32.xlu0 %v685, 112
    %v812 = vpop.permute.xlu0 %811
    %813 = vrot.lane.b32.xlu0 %v684, 48
    %v814 = vpop.permute.xlu0 %813
    %815 = vrot.lane.b32.xlu0 %v685, 48
    %v816 = vpop.permute.xlu0 %815
    %v818 = vsel %vm694, %v810, 0
    %v821 = vsel %vm694, %v812, 0
    %v824 = vsel %vm694, %v814, 0
    %v827 = vsel %vm694, %v816, 0
    %829 = vmatpush.bf16.xpose.msra.mxu0 0
    %830 = vmatpush.bf16.xpose.msra.mxu0 0
    %831 = vmatpush.bf16.xpose.msra.mxu0 0
    %832 = vmatpush.bf16.xpose.msra.mxu0 0
    %833 = vmatpush.bf16.xpose.msra.mxu0 0
    %834 = vmatpush.bf16.xpose.msra.mxu0 0
    %835 = vmatpush.bf16.xpose.msra.mxu0 %v827
    %836 = vmatpush.bf16.xpose.msra.mxu0 %v824
    %837 = vmatmul.bf16.gmra.mxu0 %v818
    %v838 = vpop.f32.mrf.mxu0
    %v839 = vadd.f32 0.0, %v838
    %v840 = vpop.f32.mrf.mxu0
    %v841 = vadd.f32 0.0, %v840
    %842 = vmatmul.bf16.gmra.mxu0 %v821
    %v843 = vpop.f32.mrf.mxu0
    %v844 = vadd.f32 0.0, %v843
    %v845 = vpop.f32.mrf.mxu0
    %v846 = vadd.f32 0.0, %v845
    %847 = vdwg.mxu0
    %v848 = vmul.f32 %v839, 0.25
    %v849 = vmul.f32 %v841, 0.25
    %v850 = vmul.f32 %v844, 0.25
    %v851 = vmul.f32 %v846, 0.25
    %v852 = vsel %vm730, %v848, -inf
    %853 = vmax.xlane.f32.xlu0 %v852
    %v854 = vpop.xlane.xlu0 %853
    %v855 = vsel %vm730, %v849, -inf
    %856 = vmax.xlane.f32.xlu0 %v855
    %v857 = vpop.xlane.xlu0 %856
    %v858 = vsel %vm730, %v850, -inf
    %859 = vmax.xlane.f32.xlu0 %v858
    %v860 = vpop.xlane.xlu0 %859
    %v861 = vsel %vm740, %v851, -inf
    %862 = vmax.xlane.f32.xlu0 %v861
    %v863 = vpop.xlane.xlu0 %862
    %v864 = vsub.f32 %v848, %v854
    %v865 = vsub.f32 %v849, %v857
    %v866 = vsub.f32 %v850, %v860
    %v867 = vsub.f32 %v851, %v863
    %v868 = vmul.f32 %v864, 1.442695
    %v869 = vpow.pop %v868
    %v870 = vmul.f32 %v865, 1.442695
    %v871 = vpow.pop %v870
    %v872 = vmul.f32 %v866, 1.442695
    %v873 = vpow.pop %v872
    %v874 = vmul.f32 %v867, 1.442695
    %v875 = vpow.pop %v874
    %v876 = vsel %vm730, %v869, 0.0
    %877 = vadd.xlane.f32.xlu0 %v876
    %v878 = vpop.xlane.xlu0 %877
    %v879 = vsel %vm730, %v871, 0.0
    %880 = vadd.xlane.f32.xlu0 %v879
    %v881 = vpop.xlane.xlu0 %880
    %v882 = vsel %vm730, %v873, 0.0
    %883 = vadd.xlane.f32.xlu0 %v882
    %v884 = vpop.xlane.xlu0 %883
    %v885 = vsel %vm740, %v875, 0.0
    %886 = vadd.xlane.f32.xlu0 %v885
    %v887 = vpop.xlane.xlu0 %886
    %v888 = vrcp.pop %v878
    %v889 = vrcp.pop %v881
    %v890 = vrcp.pop %v884
    %v891 = vrcp.pop %v887
    %v892 = vmul.f32 %v869, %v888
    %v893 = vmul.f32 %v871, %v889
    %v894 = vmul.f32 %v873, %v890
    %v895 = vmul.f32 %v875, %v891
    %v896 = vpack.c.bf16 %v893, %v892
    %v897 = vpack.c.bf16 %v895, %v894
    %900 = vrot.lane.b32.xlu0 %v686, 112
    %v901 = vpop.permute.xlu0 %900
    %902 = vrot.lane.b32.xlu0 %v687, 112
    %v903 = vpop.permute.xlu0 %902
    %v906 = vsel %vm730, %v896, 0
    %v909 = vsel %vm730, %v897, 0
    %v912 = vand.u32 %v903, %v786
    %914 = vmatpush.bf16.msra.mxu0 0
    %915 = vmatpush.bf16.msra.mxu0 0
    %916 = vmatpush.bf16.msra.mxu0 0
    %917 = vmatpush.bf16.msra.mxu0 0
    %918 = vmatpush.bf16.msra.mxu0 0
    %919 = vmatpush.bf16.msra.mxu0 0
    %920 = vmatpush.bf16.msra.mxu0 %v912
    %921 = vmatpush.bf16.msra.mxu0 %v901
    %922 = vmatmul.bf16.gmra.mxu0 %v906
    %v923 = vpop.f32.mrf.mxu0
    %v924 = vadd.f32 0.0, %v923
    %v925 = vpop.f32.mrf.mxu0
    %v926 = vadd.f32 0.0, %v925
    %927 = vmatmul.bf16.gmra.mxu0 %v909
    %v928 = vpop.f32.mrf.mxu0
    %v929 = vadd.f32 0.0, %v928
    %v930 = vpop.f32.mrf.mxu0
    %v931 = vadd.f32 0.0, %v930
    %932 = vdwg.mxu0
    %933 = vrot.lane.b32.xlu0 %v684, 96
    %v934 = vpop.permute.xlu0 %933
    %935 = vrot.lane.b32.xlu0 %v685, 96
    %v936 = vpop.permute.xlu0 %935
    %937 = vrot.lane.b32.xlu0 %v684, 32
    %v938 = vpop.permute.xlu0 %937
    %939 = vrot.lane.b32.xlu0 %v685, 32
    %v940 = vpop.permute.xlu0 %939
    %v942 = vsel %vm694, %v934, 0
    %v945 = vsel %vm694, %v936, 0
    %v948 = vsel %vm694, %v938, 0
    %v951 = vsel %vm694, %v940, 0
    %953 = vmatpush.bf16.xpose.msra.mxu0 0
    %954 = vmatpush.bf16.xpose.msra.mxu0 0
    %955 = vmatpush.bf16.xpose.msra.mxu0 0
    %956 = vmatpush.bf16.xpose.msra.mxu0 0
    %957 = vmatpush.bf16.xpose.msra.mxu0 0
    %958 = vmatpush.bf16.xpose.msra.mxu0 0
    %959 = vmatpush.bf16.xpose.msra.mxu0 %v951
    %960 = vmatpush.bf16.xpose.msra.mxu0 %v948
    %961 = vmatmul.bf16.gmra.mxu0 %v942
    %v962 = vpop.f32.mrf.mxu0
    %v963 = vadd.f32 0.0, %v962
    %v964 = vpop.f32.mrf.mxu0
    %v965 = vadd.f32 0.0, %v964
    %966 = vmatmul.bf16.gmra.mxu0 %v945
    %v967 = vpop.f32.mrf.mxu0
    %v968 = vadd.f32 0.0, %v967
    %v969 = vpop.f32.mrf.mxu0
    %v970 = vadd.f32 0.0, %v969
    %971 = vdwg.mxu0
    %v972 = vmul.f32 %v963, 0.25
    %v973 = vmul.f32 %v965, 0.25
    %v974 = vmul.f32 %v968, 0.25
    %v975 = vmul.f32 %v970, 0.25
    %v976 = vsel %vm730, %v972, -inf
    %977 = vmax.xlane.f32.xlu0 %v976
    %v978 = vpop.xlane.xlu0 %977
    %v979 = vsel %vm730, %v973, -inf
    %980 = vmax.xlane.f32.xlu0 %v979
    %v981 = vpop.xlane.xlu0 %980
    %v982 = vsel %vm730, %v974, -inf
    %983 = vmax.xlane.f32.xlu0 %v982
    %v984 = vpop.xlane.xlu0 %983
    %v985 = vsel %vm740, %v975, -inf
    %986 = vmax.xlane.f32.xlu0 %v985
    %v987 = vpop.xlane.xlu0 %986
    %v988 = vsub.f32 %v972, %v978
    %v989 = vsub.f32 %v973, %v981
    %v990 = vsub.f32 %v974, %v984
    %v991 = vsub.f32 %v975, %v987
    %v992 = vmul.f32 %v988, 1.442695
    %v993 = vpow.pop %v992
    %v994 = vmul.f32 %v989, 1.442695
    %v995 = vpow.pop %v994
    %v996 = vmul.f32 %v990, 1.442695
    %v997 = vpow.pop %v996
    %v998 = vmul.f32 %v991, 1.442695
    %v999 = vpow.pop %v998
    %v1000 = vsel %vm730, %v993, 0.0
    %1001 = vadd.xlane.f32.xlu0 %v1000
    %v1002 = vpop.xlane.xlu0 %1001
    %v1003 = vsel %vm730, %v995, 0.0
    %1004 = vadd.xlane.f32.xlu0 %v1003
    %v1005 = vpop.xlane.xlu0 %1004
    %v1006 = vsel %vm730, %v997, 0.0
    %1007 = vadd.xlane.f32.xlu0 %v1006
    %v1008 = vpop.xlane.xlu0 %1007
    %v1009 = vsel %vm740, %v999, 0.0
    %1010 = vadd.xlane.f32.xlu0 %v1009
    %v1011 = vpop.xlane.xlu0 %1010
    %v1012 = vrcp.pop %v1002
    %v1013 = vrcp.pop %v1005
    %v1014 = vrcp.pop %v1008
    %v1015 = vrcp.pop %v1011
    %v1016 = vmul.f32 %v993, %v1012
    %v1017 = vmul.f32 %v995, %v1013
    %v1018 = vmul.f32 %v997, %v1014
    %v1019 = vmul.f32 %v999, %v1015
    %v1020 = vpack.c.bf16 %v1017, %v1016
    %v1021 = vpack.c.bf16 %v1019, %v1018
    %1022 = vrot.lane.b32.xlu0 %v686, 96
    %v1023 = vpop.permute.xlu0 %1022
    %1024 = vrot.lane.b32.xlu0 %v687, 96
    %v1025 = vpop.permute.xlu0 %1024
    %v1028 = vsel %vm730, %v1020, 0
    %v1031 = vsel %vm730, %v1021, 0
    %v1034 = vand.u32 %v1025, %v786
    %1036 = vmatpush.bf16.msra.mxu0 0
    %1037 = vmatpush.bf16.msra.mxu0 0
    %1038 = vmatpush.bf16.msra.mxu0 0
    %1039 = vmatpush.bf16.msra.mxu0 0
    %1040 = vmatpush.bf16.msra.mxu0 0
    %1041 = vmatpush.bf16.msra.mxu0 0
    %1042 = vmatpush.bf16.msra.mxu0 %v1034
    %1043 = vmatpush.bf16.msra.mxu0 %v1023
    %1044 = vmatmul.bf16.gmra.mxu0 %v1028
    %v1045 = vpop.f32.mrf.mxu0
    %v1046 = vadd.f32 0.0, %v1045
    %v1047 = vpop.f32.mrf.mxu0
    %v1048 = vadd.f32 0.0, %v1047
    %1049 = vmatmul.bf16.gmra.mxu0 %v1031
    %v1050 = vpop.f32.mrf.mxu0
    %v1051 = vadd.f32 0.0, %v1050
    %v1052 = vpop.f32.mrf.mxu0
    %v1053 = vadd.f32 0.0, %v1052
    %1054 = vdwg.mxu0
    %1055 = vrot.lane.b32.xlu0 %v684, 80
    %v1056 = vpop.permute.xlu0 %1055
    %1057 = vrot.lane.b32.xlu0 %v685, 80
    %v1058 = vpop.permute.xlu0 %1057
    %1059 = vrot.lane.b32.xlu0 %v684, 16
    %v1060 = vpop.permute.xlu0 %1059
    %1061 = vrot.lane.b32.xlu0 %v685, 16
    %v1062 = vpop.permute.xlu0 %1061
    %v1064 = vsel %vm694, %v1056, 0
    %v1067 = vsel %vm694, %v1058, 0
    %v1070 = vsel %vm694, %v1060, 0
    %v1073 = vsel %vm694, %v1062, 0
    %1075 = vmatpush.bf16.xpose.msra.mxu0 0
    %1076 = vmatpush.bf16.xpose.msra.mxu0 0
    %1077 = vmatpush.bf16.xpose.msra.mxu0 0
    %1078 = vmatpush.bf16.xpose.msra.mxu0 0
    %1079 = vmatpush.bf16.xpose.msra.mxu0 0
    %1080 = vmatpush.bf16.xpose.msra.mxu0 0
    %1081 = vmatpush.bf16.xpose.msra.mxu0 %v1073
    %1082 = vmatpush.bf16.xpose.msra.mxu0 %v1070
    %1083 = vmatmul.bf16.gmra.mxu0 %v1064
    %v1084 = vpop.f32.mrf.mxu0
    %v1085 = vadd.f32 0.0, %v1084
    %v1086 = vpop.f32.mrf.mxu0
    %v1087 = vadd.f32 0.0, %v1086
    %1088 = vmatmul.bf16.gmra.mxu0 %v1067
    %v1089 = vpop.f32.mrf.mxu0
    %v1090 = vadd.f32 0.0, %v1089
    %v1091 = vpop.f32.mrf.mxu0
    %v1092 = vadd.f32 0.0, %v1091
    %1093 = vdwg.mxu0
    %v1094 = vmul.f32 %v1085, 0.25
    %v1095 = vmul.f32 %v1087, 0.25
    %v1096 = vmul.f32 %v1090, 0.25
    %v1097 = vmul.f32 %v1092, 0.25
    %v1098 = vsel %vm730, %v1094, -inf
    %1099 = vmax.xlane.f32.xlu0 %v1098
    %v1100 = vpop.xlane.xlu0 %1099
    %v1101 = vsel %vm730, %v1095, -inf
    %1102 = vmax.xlane.f32.xlu0 %v1101
    %v1103 = vpop.xlane.xlu0 %1102
    %v1104 = vsel %vm730, %v1096, -inf
    %1105 = vmax.xlane.f32.xlu0 %v1104
    %v1106 = vpop.xlane.xlu0 %1105
    %v1107 = vsel %vm740, %v1097, -inf
    %1108 = vmax.xlane.f32.xlu0 %v1107
    %v1109 = vpop.xlane.xlu0 %1108
    %v1110 = vsub.f32 %v1094, %v1100
    %v1111 = vsub.f32 %v1095, %v1103
    %v1112 = vsub.f32 %v1096, %v1106
    %v1113 = vsub.f32 %v1097, %v1109
    %v1114 = vmul.f32 %v1110, 1.442695
    %v1115 = vpow.pop %v1114
    %v1116 = vmul.f32 %v1111, 1.442695
    %v1117 = vpow.pop %v1116
    %v1118 = vmul.f32 %v1112, 1.442695
    %v1119 = vpow.pop %v1118
    %v1120 = vmul.f32 %v1113, 1.442695
    %v1121 = vpow.pop %v1120
    %v1122 = vsel %vm730, %v1115, 0.0
    %1123 = vadd.xlane.f32.xlu0 %v1122
    %v1124 = vpop.xlane.xlu0 %1123
    %v1125 = vsel %vm730, %v1117, 0.0
    %1126 = vadd.xlane.f32.xlu0 %v1125
    %v1127 = vpop.xlane.xlu0 %1126
    %v1128 = vsel %vm730, %v1119, 0.0
    %1129 = vadd.xlane.f32.xlu0 %v1128
    %v1130 = vpop.xlane.xlu0 %1129
    %v1131 = vsel %vm740, %v1121, 0.0
    %1132 = vadd.xlane.f32.xlu0 %v1131
    %v1133 = vpop.xlane.xlu0 %1132
    %v1134 = vrcp.pop %v1124
    %v1135 = vrcp.pop %v1127
    %v1136 = vrcp.pop %v1130
    %v1137 = vrcp.pop %v1133
    %v1138 = vmul.f32 %v1115, %v1134
    %v1139 = vmul.f32 %v1117, %v1135
    %v1140 = vmul.f32 %v1119, %v1136
    %v1141 = vmul.f32 %v1121, %v1137
    %v1142 = vpack.c.bf16 %v1139, %v1138
    %v1143 = vpack.c.bf16 %v1141, %v1140
    %1144 = vrot.lane.b32.xlu0 %v686, 80
    %v1145 = vpop.permute.xlu0 %1144
    %1146 = vrot.lane.b32.xlu0 %v687, 80
    %v1147 = vpop.permute.xlu0 %1146
    %v1150 = vsel %vm730, %v1142, 0
    %v1153 = vsel %vm730, %v1143, 0
    %v1156 = vand.u32 %v1147, %v786
    %1158 = vmatpush.bf16.msra.mxu0 0
    %1159 = vmatpush.bf16.msra.mxu0 0
    %1160 = vmatpush.bf16.msra.mxu0 0
    %1161 = vmatpush.bf16.msra.mxu0 0
    %1162 = vmatpush.bf16.msra.mxu0 0
    %1163 = vmatpush.bf16.msra.mxu0 0
    %1164 = vmatpush.bf16.msra.mxu0 %v1156
    %1165 = vmatpush.bf16.msra.mxu0 %v1145
    %1166 = vmatmul.bf16.gmra.mxu0 %v1150
    %v1167 = vpop.f32.mrf.mxu0
    %v1168 = vadd.f32 0.0, %v1167
    %v1169 = vpop.f32.mrf.mxu0
    %v1170 = vadd.f32 0.0, %v1169
    %1171 = vmatmul.bf16.gmra.mxu0 %v1153
    %v1172 = vpop.f32.mrf.mxu0
    %v1173 = vadd.f32 0.0, %v1172
    %v1174 = vpop.f32.mrf.mxu0
    %v1175 = vadd.f32 0.0, %v1174
    %1176 = vdwg.mxu0
    %1181 = vrot.lane.b32.xlu0 %v924, 16
    %v1182 = vpop.permute.xlu0 %1181
    %1183 = vrot.lane.b32.xlu0 %v926, 16
    %v1184 = vpop.permute.xlu0 %1183
    %1185 = vrot.lane.b32.xlu0 %v929, 16
    %v1186 = vpop.permute.xlu0 %1185
    %1187 = vrot.lane.b32.xlu0 %v931, 16
    %v1188 = vpop.permute.xlu0 %1187
    %1197 = vrot.lane.b32.xlu0 %v1046, 32
    %v1198 = vpop.permute.xlu0 %1197
    %1199 = vrot.lane.b32.xlu0 %v1048, 32
    %v1200 = vpop.permute.xlu0 %1199
    %1201 = vrot.lane.b32.xlu0 %v1051, 32
    %v1202 = vpop.permute.xlu0 %1201
    %1203 = vrot.lane.b32.xlu0 %v1053, 32
    %v1204 = vpop.permute.xlu0 %1203
    %1213 = vrot.lane.b32.xlu0 %v1168, 48
    %v1214 = vpop.permute.xlu0 %1213
    %1215 = vrot.lane.b32.xlu0 %v1170, 48
    %v1216 = vpop.permute.xlu0 %1215
    %1217 = vrot.lane.b32.xlu0 %v1173, 48
    %v1218 = vpop.permute.xlu0 %1217
    %1219 = vrot.lane.b32.xlu0 %v1175, 48
    %v1220 = vpop.permute.xlu0 %1219
    %v1225 = vsel %vm694, %v800, %v1182
    %v1226 = vsel %vm694, %v802, %v1184
    %v1227 = vsel %vm694, %v805, %v1186
    %v1228 = vsel %vm694, %v807, %v1188
    %vm1229 = vcmask 261120
    %v1230 = vsel %vm1229, %v1225, %v1198
    %v1231 = vsel %vm1229, %v1226, %v1200
    %v1232 = vsel %vm1229, %v1227, %v1202
    %v1233 = vsel %vm1229, %v1228, %v1204
    %vm1234 = vcmask 392192
    %v1235 = vsel %vm1234, %v1230, %v1214
    %v1236 = vsel %vm1234, %v1231, %v1216
    %v1237 = vsel %vm1234, %v1232, %v1218
    %v1238 = vsel %vm1234, %v1233, %v1220
    %v1239 = vpack.c.bf16 %v1236, %v1235
    %v1240 = vpack.c.bf16 %v1238, %v1237
    %v1241 = vld [vmem:[%s6] sm:$0xf]
    %v1242 = vld [vmem:[%s6 + $0x4] sm:$0xf]
    %v1243 = vld [vmem:[%s6 + $0x8] sm:$0xf]
    %v1244 = vld [vmem:[%s6 + $0xc] sm:$0xf]
    %v1245 = vld [vmem:[%s6 + $0x10] sm:$0xf]
    %v1246 = vld [vmem:[%s6 + $0x14] sm:$0xf]
    %v1247 = vld [vmem:[%s6 + $0x18] sm:$0xf]
    %v1248 = vld [vmem:[%s6 + $0x1c] sm:$0xf]
    %v1257 = vunpack.c.l.b16 %v1241
    %v1258 = vunpack.c.l.b16 %v1242
    %v1259 = vunpack.c.l.b16 %v1243
    %v1260 = vunpack.c.l.b16 %v1244
    %v1261 = vunpack.c.l.b16 %v1245
    %v1262 = vunpack.c.l.b16 %v1246
    %v1263 = vunpack.c.l.b16 %v1247
    %v1264 = vunpack.c.l.b16 %v1248
    %v1265 = vpack.c.b16 %v1258, %v1257
    %v1266 = vpack.c.b16 %v1260, %v1259
    %v1267 = vpack.c.b16 %v1262, %v1261
    %v1268 = vpack.c.b16 %v1264, %v1263
    %v1274 = vsel %vm115, %v1239, 0
    %v1277 = vsel %vm115, %v1240, 0
    %1279 = vmatpush.bf16.msra.mxu0 0
    %1280 = vmatpush.bf16.msra.mxu0 0
    %1281 = vmatpush.bf16.msra.mxu0 0
    %1282 = vmatpush.bf16.msra.mxu0 0
    %1283 = vmatpush.bf16.msra.mxu0 %v1268
    %1284 = vmatpush.bf16.msra.mxu0 %v1267
    %1285 = vmatpush.bf16.msra.mxu0 %v1266
    %1286 = vmatpush.bf16.msra.mxu0 %v1265
    %1287 = vmatmul.bf16.gmra.mxu0 %v1274
    %v1288 = vpop.f32.mrf.mxu0
    %v1289 = vadd.f32 0.0, %v1288
    %v1290 = vpop.f32.mrf.mxu0
    %v1291 = vadd.f32 0.0, %v1290
    %1292 = vmatmul.bf16.gmra.mxu0 %v1277
    %v1293 = vpop.f32.mrf.mxu0
    %v1294 = vadd.f32 0.0, %v1293
    %v1295 = vpop.f32.mrf.mxu0
    %v1296 = vadd.f32 0.0, %v1295
    %1297 = vdwg.mxu0
    %v1298 = vadd.f32 %v474, %v1289
    %v1299 = vadd.f32 %v475, %v1291
    %v1300 = vadd.f32 %v476, %v1294
    %v1301 = vadd.f32 %v477, %v1296
    %v1302 = vperm.slane %v480, 0
    %v1303 = vadd.f32 %v1298, %v1302
    %v1304 = vadd.f32 %v1299, %v1302
    %v1305 = vadd.f32 %v1300, %v1302
    %v1306 = vadd.f32 %v1301, %v1302
    %v1307 = vsel %vm115, %v1303, 0.0
    %1308 = vadd.xlane.f32.xlu0 %v1307
    %v1309 = vpop.xlane.xlu0 %1308
    %v1310 = vsel %vm115, %v1304, 0.0
    %1311 = vadd.xlane.f32.xlu0 %v1310
    %v1312 = vpop.xlane.xlu0 %1311
    %v1313 = vsel %vm115, %v1305, 0.0
    %1314 = vadd.xlane.f32.xlu0 %v1313
    %v1315 = vpop.xlane.xlu0 %1314
    %v1316 = vsel %vm495, %v1306, 0.0
    %1317 = vadd.xlane.f32.xlu0 %v1316
    %v1318 = vpop.xlane.xlu0 %1317
    %v1319 = vmul.f32 %v1309, %v128
    %v1320 = vmul.f32 %v1312, %v128
    %v1321 = vmul.f32 %v1315, %v128
    %v1322 = vmul.f32 %v1318, %v128
    %v1323 = vsub.f32 %v1303, %v1319
    %v1324 = vsub.f32 %v1304, %v1320
    %v1325 = vsub.f32 %v1305, %v1321
    %v1326 = vsub.f32 %v1306, %v1322
    %v1327 = vmul.f32 %v1323, %v1323
    %v1328 = vmul.f32 %v1324, %v1324
    %v1329 = vmul.f32 %v1325, %v1325
    %v1330 = vmul.f32 %v1326, %v1326
    %v1331 = vsel %vm115, %v1327, 0.0
    %1332 = vadd.xlane.f32.xlu0 %v1331
    %v1333 = vpop.xlane.xlu0 %1332
    %v1334 = vsel %vm115, %v1328, 0.0
    %1335 = vadd.xlane.f32.xlu0 %v1334
    %v1336 = vpop.xlane.xlu0 %1335
    %v1337 = vsel %vm115, %v1329, 0.0
    %1338 = vadd.xlane.f32.xlu0 %v1337
    %v1339 = vpop.xlane.xlu0 %1338
    %v1340 = vsel %vm495, %v1330, 0.0
    %1341 = vadd.xlane.f32.xlu0 %v1340
    %v1342 = vpop.xlane.xlu0 %1341
    %v1343 = vmul.f32 %v1333, %v128
    %v1344 = vmul.f32 %v1336, %v128
    %v1345 = vmul.f32 %v1339, %v128
    %v1346 = vmul.f32 %v1342, %v128
    %v1347 = vadd.f32 %v1343, 1e-05
    %v1348 = vadd.f32 %v1344, 1e-05
    %v1349 = vadd.f32 %v1345, 1e-05
    %v1350 = vadd.f32 %v1346, 1e-05
    %v1351 = vrsqrt.pop %v1347
    %v1352 = vmul.f32 %v1351, %v1347
    %v1353 = vmul.f32 %v1352, %v1351
    %v1354 = vmul.f32 0.5, %v1353
    %v1355 = vsub.f32 1.5, %v1354
    %v1356 = vmul.f32 %v1351, %v1355
    %vm1357 = vweird.f32 %v1347
    %vm1358 = vweird.f32 %v1351
    %vm1359 = vmor %vm1357, %vm1358
    %v1360 = vsel %vm1359, %v1351, %v1356
    %v1361 = vrsqrt.pop %v1348
    %v1362 = vmul.f32 %v1361, %v1348
    %v1363 = vmul.f32 %v1362, %v1361
    %v1364 = vmul.f32 0.5, %v1363
    %v1365 = vsub.f32 1.5, %v1364
    %v1366 = vmul.f32 %v1361, %v1365
    %vm1367 = vweird.f32 %v1348
    %vm1368 = vweird.f32 %v1361
    %vm1369 = vmor %vm1367, %vm1368
    %v1370 = vsel %vm1369, %v1361, %v1366
    %v1371 = vrsqrt.pop %v1349
    %v1372 = vmul.f32 %v1371, %v1349
    %v1373 = vmul.f32 %v1372, %v1371
    %v1374 = vmul.f32 0.5, %v1373
    %v1375 = vsub.f32 1.5, %v1374
    %v1376 = vmul.f32 %v1371, %v1375
    %vm1377 = vweird.f32 %v1349
    %vm1378 = vweird.f32 %v1371
    %vm1379 = vmor %vm1377, %vm1378
    %v1380 = vsel %vm1379, %v1371, %v1376
    %v1381 = vrsqrt.pop %v1350
    %v1382 = vmul.f32 %v1381, %v1350
    %v1383 = vmul.f32 %v1382, %v1381
    %v1384 = vmul.f32 0.5, %v1383
    %v1385 = vsub.f32 1.5, %v1384
    %v1386 = vmul.f32 %v1381, %v1385
    %vm1387 = vweird.f32 %v1350
    %vm1388 = vweird.f32 %v1381
    %vm1389 = vmor %vm1387, %vm1388
    %v1390 = vsel %vm1389, %v1381, %v1386
    %v1391 = vmul.f32 %v1323, %v1360
    %v1392 = vmul.f32 %v1324, %v1370
    %v1393 = vmul.f32 %v1325, %v1380
    %v1394 = vmul.f32 %v1326, %v1390
    %v1395 = vperm.slane %v481, 0
    %v1396 = vmul.f32 %v1391, %v1395
    %v1397 = vmul.f32 %v1392, %v1395
    %v1398 = vmul.f32 %v1393, %v1395
    %v1399 = vmul.f32 %v1394, %v1395
    %v1400 = vperm.slane %v482, 0
    %v1401 = vadd.f32 %v1396, %v1400
    %v1402 = vadd.f32 %v1397, %v1400
    %v1403 = vadd.f32 %v1398, %v1400
    %v1404 = vadd.f32 %v1399, %v1400
    %v1405 = vpack.c.bf16 %v1402, %v1401
    %v1406 = vpack.c.bf16 %v1404, %v1403
    %v1407 = vld [vmem:[%s7] sm:$0xf]
    %v1408 = vld [vmem:[%s7 + $0x4] sm:$0xf]
    %v1409 = vld [vmem:[%s7 + $0x8] sm:$0xf]
    %v1410 = vld [vmem:[%s7 + $0xc] sm:$0xf]
    %v1411 = vld [vmem:[%s7 + $0x10] sm:$0xf]
    %v1412 = vld [vmem:[%s7 + $0x14] sm:$0xf]
    %v1413 = vld [vmem:[%s7 + $0x18] sm:$0xf]
    %v1414 = vld [vmem:[%s7 + $0x1c] sm:$0xf]
    %v1415 = vperm.slane %v485, 0
    %v1424 = vunpack.c.l.b16 %v1407
    %v1425 = vunpack.c.l.b16 %v1408
    %v1426 = vunpack.c.l.b16 %v1409
    %v1427 = vunpack.c.l.b16 %v1410
    %v1428 = vunpack.c.l.b16 %v1411
    %v1429 = vunpack.c.l.b16 %v1412
    %v1430 = vunpack.c.l.b16 %v1413
    %v1431 = vunpack.c.l.b16 %v1414
    %v1432 = vpack.c.b16 %v1425, %v1424
    %v1433 = vpack.c.b16 %v1427, %v1426
    %v1434 = vpack.c.b16 %v1429, %v1428
    %v1435 = vpack.c.b16 %v1431, %v1430
    %v1441 = vsel %vm115, %v1405, 0
    %v1444 = vsel %vm115, %v1406, 0
    %1446 = vmatpush.bf16.msra.mxu0 0
    %1447 = vmatpush.bf16.msra.mxu0 0
    %1448 = vmatpush.bf16.msra.mxu0 0
    %1449 = vmatpush.bf16.msra.mxu0 0
    %1450 = vmatpush.bf16.msra.mxu0 %v1435
    %1451 = vmatpush.bf16.msra.mxu0 %v1434
    %1452 = vmatpush.bf16.msra.mxu0 %v1433
    %1453 = vmatpush.bf16.msra.mxu0 %v1432
    %1454 = vmatmul.bf16.gmra.mxu0 %v1441
    %v1455 = vpop.f32.mrf.mxu0
    %v1456 = vadd.f32 %v1415, %v1455
    %v1457 = vpop.f32.mrf.mxu0
    %v1458 = vadd.f32 %v1415, %v1457
    %1459 = vmatmul.bf16.gmra.mxu0 %v1444
    %v1460 = vpop.f32.mrf.mxu0
    %v1461 = vadd.f32 %v1415, %v1460
    %v1462 = vpop.f32.mrf.mxu0
    %v1463 = vadd.f32 %v1415, %v1462
    %1464 = vdwg.mxu0
    %v1465 = vmul.f32 %v1456, 0.5
    %v1466 = vmul.f32 %v1458, 0.5
    %v1467 = vmul.f32 %v1461, 0.5
    %v1468 = vmul.f32 %v1463, 0.5
    %v1469 = vmul.f32 %v1456, 0.044715
    %v1470 = vmul.f32 %v1458, 0.044715
    %v1471 = vmul.f32 %v1461, 0.044715
    %v1472 = vmul.f32 %v1463, 0.044715
    %v1473 = vmul.f32 %v1469, %v1456
    %v1474 = vmul.f32 %v1470, %v1458
    %v1475 = vmul.f32 %v1471, %v1461
    %v1476 = vmul.f32 %v1472, %v1463
    %v1477 = vmul.f32 %v1473, %v1456
    %v1478 = vmul.f32 %v1474, %v1458
    %v1479 = vmul.f32 %v1475, %v1461
    %v1480 = vmul.f32 %v1476, %v1463
    %v1481 = vadd.f32 %v1456, %v1477
    %v1482 = vadd.f32 %v1458, %v1478
    %v1483 = vadd.f32 %v1461, %v1479
    %v1484 = vadd.f32 %v1463, %v1480
    %v1485 = vmul.f32 %v1481, 0.7978846
    %v1486 = vmul.f32 %v1482, 0.7978846
    %v1487 = vmul.f32 %v1483, 0.7978846
    %v1488 = vmul.f32 %v1484, 0.7978846
    %v1489 = vtanh.pop %v1485
    %v1490 = vtanh.pop %v1486
    %v1491 = vtanh.pop %v1487
    %v1492 = vtanh.pop %v1488
    %v1493 = vadd.f32 %v1489, 1.0
    %v1494 = vadd.f32 %v1490, 1.0
    %v1495 = vadd.f32 %v1491, 1.0
    %v1496 = vadd.f32 %v1492, 1.0
    %v1497 = vmul.f32 %v1465, %v1493
    %v1498 = vmul.f32 %v1466, %v1494
    %v1499 = vmul.f32 %v1467, %v1495
    %v1500 = vmul.f32 %v1468, %v1496
    %v1501 = vpack.c.bf16 %v1498, %v1497
    %v1502 = vpack.c.bf16 %v1500, %v1499
    %v1503 = vld [vmem:[%s8] sm:$0xf]
    %v1504 = vld [vmem:[%s8 + $0x4] sm:$0xf]
    %v1505 = vld [vmem:[%s8 + $0x8] sm:$0xf]
    %v1506 = vld [vmem:[%s8 + $0xc] sm:$0xf]
    %v1507 = vld [vmem:[%s8 + $0x10] sm:$0xf]
    %v1508 = vld [vmem:[%s8 + $0x14] sm:$0xf]
    %v1509 = vld [vmem:[%s8 + $0x18] sm:$0xf]
    %v1510 = vld [vmem:[%s8 + $0x1c] sm:$0xf]
    %v1511 = vld [vmem:[%s8 + $0x20] sm:$0xf]
    %v1512 = vld [vmem:[%s8 + $0x24] sm:$0xf]
    %v1513 = vld [vmem:[%s8 + $0x28] sm:$0xf]
    %v1514 = vld [vmem:[%s8 + $0x2c] sm:$0xf]
    %v1515 = vld [vmem:[%s8 + $0x30] sm:$0xf]
    %v1516 = vld [vmem:[%s8 + $0x34] sm:$0xf]
    %v1517 = vld [vmem:[%s8 + $0x38] sm:$0xf]
    %v1518 = vld [vmem:[%s8 + $0x3c] sm:$0xf]
    %v1535 = vunpack.c.l.b16 %v1503
    %v1536 = vunpack.c.l.b16 %v1504
    %v1537 = vunpack.c.l.b16 %v1505
    %v1538 = vunpack.c.l.b16 %v1506
    %v1539 = vunpack.c.l.b16 %v1507
    %v1540 = vunpack.c.l.b16 %v1508
    %v1541 = vunpack.c.l.b16 %v1509
    %v1542 = vunpack.c.l.b16 %v1510
    %v1543 = vunpack.c.l.b16 %v1511
    %v1544 = vunpack.c.l.b16 %v1512
    %v1545 = vunpack.c.l.b16 %v1513
    %v1546 = vunpack.c.l.b16 %v1514
    %v1547 = vunpack.c.l.b16 %v1515
    %v1548 = vunpack.c.l.b16 %v1516
    %v1549 = vunpack.c.l.b16 %v1517
    %v1550 = vunpack.c.l.b16 %v1518
    %v1551 = vpack.c.b16 %v1536, %v1535
    %v1552 = vpack.c.b16 %v1538, %v1537
    %v1553 = vpack.c.b16 %v1540, %v1539
    %v1554 = vpack.c.b16 %v1542, %v1541
    %v1555 = vpack.c.b16 %v1544, %v1543
    %v1556 = vpack.c.b16 %v1546, %v1545
    %v1557 = vpack.c.b16 %v1548, %v1547
    %v1558 = vpack.c.b16 %v1550, %v1549
    %1567 = vmatpush.bf16.msra.mxu0 %v1558
    %1568 = vmatpush.bf16.msra.mxu0 %v1557
    %1569 = vmatpush.bf16.msra.mxu0 %v1556
    %1570 = vmatpush.bf16.msra.mxu0 %v1555
    %1571 = vmatpush.bf16.msra.mxu0 %v1554
    %1572 = vmatpush.bf16.msra.mxu0 %v1553
    %1573 = vmatpush.bf16.msra.mxu0 %v1552
    %1574 = vmatpush.bf16.msra.mxu0 %v1551
    %1575 = vmatmul.bf16.gmra.mxu0 %v1501
    %v1576 = vpop.f32.mrf.mxu0
    %v1577 = vadd.f32 0.0, %v1576
    %v1578 = vpop.f32.mrf.mxu0
    %v1579 = vadd.f32 0.0, %v1578
    %1580 = vmatmul.bf16.gmra.mxu0 %v1502
    %v1581 = vpop.f32.mrf.mxu0
    %v1582 = vadd.f32 0.0, %v1581
    %v1583 = vpop.f32.mrf.mxu0
    %v1584 = vadd.f32 0.0, %v1583
    %1585 = vdwg.mxu0
    %v1586 = vadd.f32 %v1303, %v1577
    %v1587 = vadd.f32 %v1304, %v1579
    %v1588 = vadd.f32 %v1305, %v1582
    %v1589 = vadd.f32 %v1306, %v1584
    %v1590 = vperm.slane %v483, 0
    %v1591 = vadd.f32 %v1586, %v1590
    %v1592 = vadd.f32 %v1587, %v1590
    %v1593 = vadd.f32 %v1588, %v1590
    %v1594 = vadd.f32 %v1589, %v1590
    %v1595 = vld [vmem:[%s4 + $0x37] sm:$0x1]
    %v1596 = vld [vmem:[%s4 + $0x38] sm:$0x1]
    %v1597 = vld [vmem:[%s4 + $0x39] sm:$0x1]
    %v1598 = vld [vmem:[%s4 + $0x3a] sm:$0x1]
    %v1599 = vld [vmem:[%s4 + $0x3b] sm:$0x1]
    %v1600 = vld [vmem:[%s4 + $0x3c] sm:$0x1]
    %s1601 = scalar_lea.vmem %s9, 1
    %v1602 = vld [vmem:[%s1601] ss:$4 sm:$0x3]
    %v1603 = vld [vmem:[%s9 + $0x3] sm:$0x1]
    %v1604 = vsel %vm115, %v1591, 0.0
    %1605 = vadd.xlane.f32.xlu0 %v1604
    %v1606 = vpop.xlane.xlu0 %1605
    %v1607 = vsel %vm115, %v1592, 0.0
    %1608 = vadd.xlane.f32.xlu0 %v1607
    %v1609 = vpop.xlane.xlu0 %1608
    %v1610 = vsel %vm115, %v1593, 0.0
    %1611 = vadd.xlane.f32.xlu0 %v1610
    %v1612 = vpop.xlane.xlu0 %1611
    %v1613 = vsel %vm495, %v1594, 0.0
    %1614 = vadd.xlane.f32.xlu0 %v1613
    %v1615 = vpop.xlane.xlu0 %1614
    %v1616 = vmul.f32 %v1606, %v128
    %v1617 = vmul.f32 %v1609, %v128
    %v1618 = vmul.f32 %v1612, %v128
    %v1619 = vmul.f32 %v1615, %v128
    %v1620 = vsub.f32 %v1591, %v1616
    %v1621 = vsub.f32 %v1592, %v1617
    %v1622 = vsub.f32 %v1593, %v1618
    %v1623 = vsub.f32 %v1594, %v1619
    %v1624 = vmul.f32 %v1620, %v1620
    %v1625 = vmul.f32 %v1621, %v1621
    %v1626 = vmul.f32 %v1622, %v1622
    %v1627 = vmul.f32 %v1623, %v1623
    %v1628 = vsel %vm115, %v1624, 0.0
    %1629 = vadd.xlane.f32.xlu0 %v1628
    %v1630 = vpop.xlane.xlu0 %1629
    %v1631 = vsel %vm115, %v1625, 0.0
    %1632 = vadd.xlane.f32.xlu0 %v1631
    %v1633 = vpop.xlane.xlu0 %1632
    %v1634 = vsel %vm115, %v1626, 0.0
    %1635 = vadd.xlane.f32.xlu0 %v1634
    %v1636 = vpop.xlane.xlu0 %1635
    %v1637 = vsel %vm495, %v1627, 0.0
    %1638 = vadd.xlane.f32.xlu0 %v1637
    %v1639 = vpop.xlane.xlu0 %1638
    %v1640 = vmul.f32 %v1630, %v128
    %v1641 = vmul.f32 %v1633, %v128
    %v1642 = vmul.f32 %v1636, %v128
    %v1643 = vmul.f32 %v1639, %v128
    %v1644 = vadd.f32 %v1640, 1e-05
    %v1645 = vadd.f32 %v1641, 1e-05
    %v1646 = vadd.f32 %v1642, 1e-05
    %v1647 = vadd.f32 %v1643, 1e-05
    %v1648 = vrsqrt.pop %v1644
    %v1649 = vmul.f32 %v1648, %v1644
    %v1650 = vmul.f32 %v1649, %v1648
    %v1651 = vmul.f32 0.5, %v1650
    %v1652 = vsub.f32 1.5, %v1651
    %v1653 = vmul.f32 %v1648, %v1652
    %vm1654 = vweird.f32 %v1644
    %vm1655 = vweird.f32 %v1648
    %vm1656 = vmor %vm1654, %vm1655
    %v1657 = vsel %vm1656, %v1648, %v1653
    %v1658 = vrsqrt.pop %v1645
    %v1659 = vmul.f32 %v1658, %v1645
    %v1660 = vmul.f32 %v1659, %v1658
    %v1661 = vmul.f32 0.5, %v1660
    %v1662 = vsub.f32 1.5, %v1661
    %v1663 = vmul.f32 %v1658, %v1662
    %vm1664 = vweird.f32 %v1645
    %vm1665 = vweird.f32 %v1658
    %vm1666 = vmor %vm1664, %vm1665
    %v1667 = vsel %vm1666, %v1658, %v1663
    %v1668 = vrsqrt.pop %v1646
    %v1669 = vmul.f32 %v1668, %v1646
    %v1670 = vmul.f32 %v1669, %v1668
    %v1671 = vmul.f32 0.5, %v1670
    %v1672 = vsub.f32 1.5, %v1671
    %v1673 = vmul.f32 %v1668, %v1672
    %vm1674 = vweird.f32 %v1646
    %vm1675 = vweird.f32 %v1668
    %vm1676 = vmor %vm1674, %vm1675
    %v1677 = vsel %vm1676, %v1668, %v1673
    %v1678 = vrsqrt.pop %v1647
    %v1679 = vmul.f32 %v1678, %v1647
    %v1680 = vmul.f32 %v1679, %v1678
    %v1681 = vmul.f32 0.5, %v1680
    %v1682 = vsub.f32 1.5, %v1681
    %v1683 = vmul.f32 %v1678, %v1682
    %vm1684 = vweird.f32 %v1647
    %vm1685 = vweird.f32 %v1678
    %vm1686 = vmor %vm1684, %vm1685
    %v1687 = vsel %vm1686, %v1678, %v1683
    %v1688 = vmul.f32 %v1620, %v1657
    %v1689 = vmul.f32 %v1621, %v1667
    %v1690 = vmul.f32 %v1622, %v1677
    %v1691 = vmul.f32 %v1623, %v1687
    %v1692 = vperm.slane %v1595, 0
    %v1693 = vmul.f32 %v1688, %v1692
    %v1694 = vmul.f32 %v1689, %v1692
    %v1695 = vmul.f32 %v1690, %v1692
    %v1696 = vmul.f32 %v1691, %v1692
    %v1697 = vperm.slane %v1596, 0
    %v1698 = vadd.f32 %v1693, %v1697
    %v1699 = vadd.f32 %v1694, %v1697
    %v1700 = vadd.f32 %v1695, %v1697
    %v1701 = vadd.f32 %v1696, %v1697
    %v1702 = vpack.c.bf16 %v1699, %v1698
    %v1703 = vpack.c.bf16 %v1701, %v1700
    %s1704 = scalar_lea.vmem %s5, 64
    %v1705 = vld [vmem:[%s1704] sm:$0xff]
    %v1706 = vld [vmem:[%s1704 + $0x8] sm:$0xff]
    %v1707 = vld [vmem:[%s1704 + $0x10] sm:$0xff]
    %v1708 = vld [vmem:[%s1704 + $0x18] sm:$0xff]
    %v1709 = vld [vmem:[%s1704 + $0x20] sm:$0xff]
    %v1710 = vld [vmem:[%s1704 + $0x28] sm:$0xff]
    %v1711 = vld [vmem:[%s1704 + $0x30] sm:$0xff]
    %v1712 = vld [vmem:[%s1704 + $0x38] sm:$0xff]
    %v1714 = vperm.slane %v1602, 0
    %v1715 = vperm.slane %v1602, 1
    %v1726 = vunpack.c.l.b16 %v1705
    %v1727 = vunpack.c.h.b16 %v1705
    %v1728 = vunpack.c.l.b16 %v1706
    %v1729 = vunpack.c.h.b16 %v1706
    %v1730 = vunpack.c.l.b16 %v1707
    %v1731 = vunpack.c.h.b16 %v1707
    %v1732 = vunpack.c.l.b16 %v1708
    %v1733 = vunpack.c.h.b16 %v1708
    %v1734 = vunpack.c.l.b16 %v1709
    %v1735 = vunpack.c.h.b16 %v1709
    %v1736 = vunpack.c.l.b16 %v1710
    %v1737 = vunpack.c.h.b16 %v1710
    %v1738 = vunpack.c.l.b16 %v1711
    %v1739 = vunpack.c.h.b16 %v1711
    %v1740 = vunpack.c.l.b16 %v1712
    %v1741 = vunpack.c.h.b16 %v1712
    %v1742 = vpack.c.b16 %v1728, %v1726
    %v1743 = vpack.c.b16 %v1729, %v1727
    %v1744 = vpack.c.b16 %v1732, %v1730
    %v1745 = vpack.c.b16 %v1733, %v1731
    %v1746 = vpack.c.b16 %v1736, %v1734
    %v1747 = vpack.c.b16 %v1737, %v1735
    %v1748 = vpack.c.b16 %v1740, %v1738
    %v1749 = vpack.c.b16 %v1741, %v1739
    %v1759 = vsel %vm115, %v1702, 0
    %v1762 = vsel %vm115, %v1703, 0
    %1764 = vmatpush.bf16.msra.mxu0 0
    %1765 = vmatpush.bf16.msra.mxu0 0
    %1766 = vmatpush.bf16.msra.mxu0 0
    %1767 = vmatpush.bf16.msra.mxu0 0
    %1768 = vmatpush.bf16.msra.mxu0 %v1748
    %1769 = vmatpush.bf16.msra.mxu0 %v1746
    %1770 = vmatpush.bf16.msra.mxu0 %v1744
    %1771 = vmatpush.bf16.msra.mxu0 %v1742
    %1772 = vmatmul.bf16.gmra.mxu0 %v1759
    %v1773 = vpop.f32.mrf.mxu0
    %v1774 = vadd.f32 %v1714, %v1773
    %v1775 = vpop.f32.mrf.mxu0
    %v1776 = vadd.f32 %v1714, %v1775
    %1777 = vmatmul.bf16.gmra.mxu0 %v1762
    %v1778 = vpop.f32.mrf.mxu0
    %v1779 = vadd.f32 %v1714, %v1778
    %v1780 = vpop.f32.mrf.mxu0
    %v1781 = vadd.f32 %v1714, %v1780
    %1782 = vdwg.mxu0
    %1783 = vmatpush.bf16.msra.mxu0 0
    %1784 = vmatpush.bf16.msra.mxu0 0
    %1785 = vmatpush.bf16.msra.mxu0 0
    %1786 = vmatpush.bf16.msra.mxu0 0
    %1787 = vmatpush.bf16.msra.mxu0 %v1749
    %1788 = vmatpush.bf16.msra.mxu0 %v1747
    %1789 = vmatpush.bf16.msra.mxu0 %v1745
    %1790 = vmatpush.bf16.msra.mxu0 %v1743
    %1791 = vmatmul.bf16.gmra.mxu0 %v1759
    %v1792 = vpop.f32.mrf.mxu0
    %v1793 = vadd.f32 %v1715, %v1792
    %v1794 = vpop.f32.mrf.mxu0
    %v1795 = vadd.f32 %v1715, %v1794
    %1796 = vmatmul.bf16.gmra.mxu0 %v1762
    %v1797 = vpop.f32.mrf.mxu0
    %v1798 = vadd.f32 %v1715, %v1797
    %v1799 = vpop.f32.mrf.mxu0
    %v1800 = vadd.f32 %v1715, %v1799
    %1801 = vdwg.mxu0
    %v1802 = vpack.c.bf16 %v1776, %v1774
    %v1803 = vpack.c.bf16 %v1781, %v1779
    %v1804 = vpack.c.bf16 %v1795, %v1793
    %v1805 = vpack.c.bf16 %v1800, %v1798
    %1808 = vrot.lane.b32.xlu0 %v1802, 64
    %v1809 = vpop.permute.xlu0 %1808
    %1810 = vrot.lane.b32.xlu0 %v1803, 64
    %v1811 = vpop.permute.xlu0 %1810
    %v1813 = vsel %vm694, %v1802, 0
    %v1816 = vsel %vm694, %v1803, 0
    %v1819 = vsel %vm694, %v1809, 0
    %v1822 = vsel %vm694, %v1811, 0
    %1824 = vmatpush.bf16.xpose.msra.mxu0 0
    %1825 = vmatpush.bf16.xpose.msra.mxu0 0
    %1826 = vmatpush.bf16.xpose.msra.mxu0 0
    %1827 = vmatpush.bf16.xpose.msra.mxu0 0
    %1828 = vmatpush.bf16.xpose.msra.mxu0 0
    %1829 = vmatpush.bf16.xpose.msra.mxu0 0
    %1830 = vmatpush.bf16.xpose.msra.mxu0 %v1822
    %1831 = vmatpush.bf16.xpose.msra.mxu0 %v1819
    %1832 = vmatmul.bf16.gmra.mxu0 %v1813
    %v1833 = vpop.f32.mrf.mxu0
    %v1834 = vadd.f32 0.0, %v1833
    %v1835 = vpop.f32.mrf.mxu0
    %v1836 = vadd.f32 0.0, %v1835
    %1837 = vmatmul.bf16.gmra.mxu0 %v1816
    %v1838 = vpop.f32.mrf.mxu0
    %v1839 = vadd.f32 0.0, %v1838
    %v1840 = vpop.f32.mrf.mxu0
    %v1841 = vadd.f32 0.0, %v1840
    %1842 = vdwg.mxu0
    %v1843 = vmul.f32 %v1834, 0.25
    %v1844 = vmul.f32 %v1836, 0.25
    %v1845 = vmul.f32 %v1839, 0.25
    %v1846 = vmul.f32 %v1841, 0.25
    %v1847 = vsel %vm730, %v1843, -inf
    %1848 = vmax.xlane.f32.xlu0 %v1847
    %v1849 = vpop.xlane.xlu0 %1848
    %v1850 = vsel %vm730, %v1844, -inf
    %1851 = vmax.xlane.f32.xlu0 %v1850
    %v1852 = vpop.xlane.xlu0 %1851
    %v1853 = vsel %vm730, %v1845, -inf
    %1854 = vmax.xlane.f32.xlu0 %v1853
    %v1855 = vpop.xlane.xlu0 %1854
    %v1856 = vsel %vm740, %v1846, -inf
    %1857 = vmax.xlane.f32.xlu0 %v1856
    %v1858 = vpop.xlane.xlu0 %1857
    %v1859 = vsub.f32 %v1843, %v1849
    %v1860 = vsub.f32 %v1844, %v1852
    %v1861 = vsub.f32 %v1845, %v1855
    %v1862 = vsub.f32 %v1846, %v1858
    %v1863 = vmul.f32 %v1859, 1.442695
    %v1864 = vpow.pop %v1863
    %v1865 = vmul.f32 %v1860, 1.442695
    %v1866 = vpow.pop %v1865
    %v1867 = vmul.f32 %v1861, 1.442695
    %v1868 = vpow.pop %v1867
    %v1869 = vmul.f32 %v1862, 1.442695
    %v1870 = vpow.pop %v1869
    %v1871 = vsel %vm730, %v1864, 0.0
    %1872 = vadd.xlane.f32.xlu0 %v1871
    %v1873 = vpop.xlane.xlu0 %1872
    %v1874 = vsel %vm730, %v1866, 0.0
    %1875 = vadd.xlane.f32.xlu0 %v1874
    %v1876 = vpop.xlane.xlu0 %1875
    %v1877 = vsel %vm730, %v1868, 0.0
    %1878 = vadd.xlane.f32.xlu0 %v1877
    %v1879 = vpop.xlane.xlu0 %1878
    %v1880 = vsel %vm740, %v1870, 0.0
    %1881 = vadd.xlane.f32.xlu0 %v1880
    %v1882 = vpop.xlane.xlu0 %1881
    %v1883 = vrcp.pop %v1873
    %v1884 = vrcp.pop %v1876
    %v1885 = vrcp.pop %v1879
    %v1886 = vrcp.pop %v1882
    %v1887 = vmul.f32 %v1864, %v1883
    %v1888 = vmul.f32 %v1866, %v1884
    %v1889 = vmul.f32 %v1868, %v1885
    %v1890 = vmul.f32 %v1870, %v1886
    %v1891 = vpack.c.bf16 %v1888, %v1887
    %v1892 = vpack.c.bf16 %v1890, %v1889
    %v1894 = vsel %vm730, %v1891, 0
    %v1897 = vsel %vm730, %v1892, 0
    %v1900 = vand.u32 %v1805, %v786
    %1902 = vmatpush.bf16.msra.mxu0 0
    %1903 = vmatpush.bf16.msra.mxu0 0
    %1904 = vmatpush.bf16.msra.mxu0 0
    %1905 = vmatpush.bf16.msra.mxu0 0
    %1906 = vmatpush.bf16.msra.mxu0 0
    %1907 = vmatpush.bf16.msra.mxu0 0
    %1908 = vmatpush.bf16.msra.mxu0 %v1900
    %1909 = vmatpush.bf16.msra.mxu0 %v1804
    %1910 = vmatmul.bf16.gmra.mxu0 %v1894
    %v1911 = vpop.f32.mrf.mxu0
    %v1912 = vadd.f32 0.0, %v1911
    %v1913 = vpop.f32.mrf.mxu0
    %v1914 = vadd.f32 0.0, %v1913
    %1915 = vmatmul.bf16.gmra.mxu0 %v1897
    %v1916 = vpop.f32.mrf.mxu0
    %v1917 = vadd.f32 0.0, %v1916
    %v1918 = vpop.f32.mrf.mxu0
    %v1919 = vadd.f32 0.0, %v1918
    %1920 = vdwg.mxu0
    %1921 = vrot.lane.b32.xlu0 %v1802, 112
    %v1922 = vpop.permute.xlu0 %1921
    %1923 = vrot.lane.b32.xlu0 %v1803, 112
    %v1924 = vpop.permute.xlu0 %1923
    %1925 = vrot.lane.b32.xlu0 %v1802, 48
    %v1926 = vpop.permute.xlu0 %1925
    %1927 = vrot.lane.b32.xlu0 %v1803, 48
    %v1928 = vpop.permute.xlu0 %1927
    %v1930 = vsel %vm694, %v1922, 0
    %v1933 = vsel %vm694, %v1924, 0
    %v1936 = vsel %vm694, %v1926, 0
    %v1939 = vsel %vm694, %v1928, 0
    %1941 = vmatpush.bf16.xpose.msra.mxu0 0
    %1942 = vmatpush.bf16.xpose.msra.mxu0 0
    %1943 = vmatpush.bf16.xpose.msra.mxu0 0
    %1944 = vmatpush.bf16.xpose.msra.mxu0 0
    %1945 = vmatpush.bf16.xpose.msra.mxu0 0
    %1946 = vmatpush.bf16.xpose.msra.mxu0 0
    %1947 = vmatpush.bf16.xpose.msra.mxu0 %v1939
    %1948 = vmatpush.bf16.xpose.msra.mxu0 %v1936
    %1949 = vmatmul.bf16.gmra.mxu0 %v1930
    %v1950 = vpop.f32.mrf.mxu0
    %v1951 = vadd.f32 0.0, %v1950
    %v1952 = vpop.f32.mrf.mxu0
    %v1953 = vadd.f32 0.0, %v1952
    %1954 = vmatmul.bf16.gmra.mxu0 %v1933
    %v1955 = vpop.f32.mrf.mxu0
    %v1956 = vadd.f32 0.0, %v1955
    %v1957 = vpop.f32.mrf.mxu0
    %v1958 = vadd.f32 0.0, %v1957
    %1959 = vdwg.mxu0
    %v1960 = vmul.f32 %v1951, 0.25
    %v1961 = vmul.f32 %v1953, 0.25
    %v1962 = vmul.f32 %v1956, 0.25
    %v1963 = vmul.f32 %v1958, 0.25
    %v1964 = vsel %vm730, %v1960, -inf
    %1965 = vmax.xlane.f32.xlu0 %v1964
    %v1966 = vpop.xlane.xlu0 %1965
    %v1967 = vsel %vm730, %v1961, -inf
    %1968 = vmax.xlane.f32.xlu0 %v1967
    %v1969 = vpop.xlane.xlu0 %1968
    %v1970 = vsel %vm730, %v1962, -inf
    %1971 = vmax.xlane.f32.xlu0 %v1970
    %v1972 = vpop.xlane.xlu0 %1971
    %v1973 = vsel %vm740, %v1963, -inf
    %1974 = vmax.xlane.f32.xlu0 %v1973
    %v1975 = vpop.xlane.xlu0 %1974
    %v1976 = vsub.f32 %v1960, %v1966
    %v1977 = vsub.f32 %v1961, %v1969
    %v1978 = vsub.f32 %v1962, %v1972
    %v1979 = vsub.f32 %v1963, %v1975
    %v1980 = vmul.f32 %v1976, 1.442695
    %v1981 = vpow.pop %v1980
    %v1982 = vmul.f32 %v1977, 1.442695
    %v1983 = vpow.pop %v1982
    %v1984 = vmul.f32 %v1978, 1.442695
    %v1985 = vpow.pop %v1984
    %v1986 = vmul.f32 %v1979, 1.442695
    %v1987 = vpow.pop %v1986
    %v1988 = vsel %vm730, %v1981, 0.0
    %1989 = vadd.xlane.f32.xlu0 %v1988
    %v1990 = vpop.xlane.xlu0 %1989
    %v1991 = vsel %vm730, %v1983, 0.0
    %1992 = vadd.xlane.f32.xlu0 %v1991
    %v1993 = vpop.xlane.xlu0 %1992
    %v1994 = vsel %vm730, %v1985, 0.0
    %1995 = vadd.xlane.f32.xlu0 %v1994
    %v1996 = vpop.xlane.xlu0 %1995
    %v1997 = vsel %vm740, %v1987, 0.0
    %1998 = vadd.xlane.f32.xlu0 %v1997
    %v1999 = vpop.xlane.xlu0 %1998
    %v2000 = vrcp.pop %v1990
    %v2001 = vrcp.pop %v1993
    %v2002 = vrcp.pop %v1996
    %v2003 = vrcp.pop %v1999
    %v2004 = vmul.f32 %v1981, %v2000
    %v2005 = vmul.f32 %v1983, %v2001
    %v2006 = vmul.f32 %v1985, %v2002
    %v2007 = vmul.f32 %v1987, %v2003
    %v2008 = vpack.c.bf16 %v2005, %v2004
    %v2009 = vpack.c.bf16 %v2007, %v2006
    %2012 = vrot.lane.b32.xlu0 %v1804, 112
    %v2013 = vpop.permute.xlu0 %2012
    %2014 = vrot.lane.b32.xlu0 %v1805, 112
    %v2015 = vpop.permute.xlu0 %2014
    %v2018 = vsel %vm730, %v2008, 0
    %v2021 = vsel %vm730, %v2009, 0
    %v2024 = vand.u32 %v2015, %v786
    %2026 = vmatpush.bf16.msra.mxu0 0
    %2027 = vmatpush.bf16.msra.mxu0 0
    %2028 = vmatpush.bf16.msra.mxu0 0
    %2029 = vmatpush.bf16.msra.mxu0 0
    %2030 = vmatpush.bf16.msra.mxu0 0
    %2031 = vmatpush.bf16.msra.mxu0 0
    %2032 = vmatpush.bf16.msra.mxu0 %v2024
    %2033 = vmatpush.bf16.msra.mxu0 %v2013
    %2034 = vmatmul.bf16.gmra.mxu0 %v2018
    %v2035 = vpop.f32.mrf.mxu0
    %v2036 = vadd.f32 0.0, %v2035
    %v2037 = vpop.f32.mrf.mxu0
    %v2038 = vadd.f32 0.0, %v2037
    %2039 = vmatmul.bf16.gmra.mxu0 %v2021
    %v2040 = vpop.f32.mrf.mxu0
    %v2041 = vadd.f32 0.0, %v2040
    %v2042 = vpop.f32.mrf.mxu0
    %v2043 = vadd.f32 0.0, %v2042
    %2044 = vdwg.mxu0
    %2045 = vrot.lane.b32.xlu0 %v1802, 96
    %v2046 = vpop.permute.xlu0 %2045
    %2047 = vrot.lane.b32.xlu0 %v1803, 96
    %v2048 = vpop.permute.xlu0 %2047
    %2049 = vrot.lane.b32.xlu0 %v1802, 32
    %v2050 = vpop.permute.xlu0 %2049
    %2051 = vrot.lane.b32.xlu0 %v1803, 32
    %v2052 = vpop.permute.xlu0 %2051
    %v2054 = vsel %vm694, %v2046, 0
    %v2057 = vsel %vm694, %v2048, 0
    %v2060 = vsel %vm694, %v2050, 0
    %v2063 = vsel %vm694, %v2052, 0
    %2065 = vmatpush.bf16.xpose.msra.mxu0 0
    %2066 = vmatpush.bf16.xpose.msra.mxu0 0
    %2067 = vmatpush.bf16.xpose.msra.mxu0 0
    %2068 = vmatpush.bf16.xpose.msra.mxu0 0
    %2069 = vmatpush.bf16.xpose.msra.mxu0 0
    %2070 = vmatpush.bf16.xpose.msra.mxu0 0
    %2071 = vmatpush.bf16.xpose.msra.mxu0 %v2063
    %2072 = vmatpush.bf16.xpose.msra.mxu0 %v2060
    %2073 = vmatmul.bf16.gmra.mxu0 %v2054
    %v2074 = vpop.f32.mrf.mxu0
    %v2075 = vadd.f32 0.0, %v2074
    %v2076 = vpop.f32.mrf.mxu0
    %v2077 = vadd.f32 0.0, %v2076
    %2078 = vmatmul.bf16.gmra.mxu0 %v2057
    %v2079 = vpop.f32.mrf.mxu0
    %v2080 = vadd.f32 0.0, %v2079
    %v2081 = vpop.f32.mrf.mxu0
    %v2082 = vadd.f32 0.0, %v2081
    %2083 = vdwg.mxu0
    %v2084 = vmul.f32 %v2075, 0.25
    %v2085 = vmul.f32 %v2077, 0.25
    %v2086 = vmul.f32 %v2080, 0.25
    %v2087 = vmul.f32 %v2082, 0.25
    %v2088 = vsel %vm730, %v2084, -inf
    %2089 = vmax.xlane.f32.xlu0 %v2088
    %v2090 = vpop.xlane.xlu0 %2089
    %v2091 = vsel %vm730, %v2085, -inf
    %2092 = vmax.xlane.f32.xlu0 %v2091
    %v2093 = vpop.xlane.xlu0 %2092
    %v2094 = vsel %vm730, %v2086, -inf
    %2095 = vmax.xlane.f32.xlu0 %v2094
    %v2096 = vpop.xlane.xlu0 %2095
    %v2097 = vsel %vm740, %v2087, -inf
    %2098 = vmax.xlane.f32.xlu0 %v2097
    %v2099 = vpop.xlane.xlu0 %2098
    %v2100 = vsub.f32 %v2084, %v2090
    %v2101 = vsub.f32 %v2085, %v2093
    %v2102 = vsub.f32 %v2086, %v2096
    %v2103 = vsub.f32 %v2087, %v2099
    %v2104 = vmul.f32 %v2100, 1.442695
    %v2105 = vpow.pop %v2104
    %v2106 = vmul.f32 %v2101, 1.442695
    %v2107 = vpow.pop %v2106
    %v2108 = vmul.f32 %v2102, 1.442695
    %v2109 = vpow.pop %v2108
    %v2110 = vmul.f32 %v2103, 1.442695
    %v2111 = vpow.pop %v2110
    %v2112 = vsel %vm730, %v2105, 0.0
    %2113 = vadd.xlane.f32.xlu0 %v2112
    %v2114 = vpop.xlane.xlu0 %2113
    %v2115 = vsel %vm730, %v2107, 0.0
    %2116 = vadd.xlane.f32.xlu0 %v2115
    %v2117 = vpop.xlane.xlu0 %2116
    %v2118 = vsel %vm730, %v2109, 0.0
    %2119 = vadd.xlane.f32.xlu0 %v2118
    %v2120 = vpop.xlane.xlu0 %2119
    %v2121 = vsel %vm740, %v2111, 0.0
    %2122 = vadd.xlane.f32.xlu0 %v2121
    %v2123 = vpop.xlane.xlu0 %2122
    %v2124 = vrcp.pop %v2114
    %v2125 = vrcp.pop %v2117
    %v2126 = vrcp.pop %v2120
    %v2127 = vrcp.pop %v2123
    %v2128 = vmul.f32 %v2105, %v2124
    %v2129 = vmul.f32 %v2107, %v2125
    %v2130 = vmul.f32 %v2109, %v2126
    %v2131 = vmul.f32 %v2111, %v2127
    %v2132 = vpack.c.bf16 %v2129, %v2128
    %v2133 = vpack.c.bf16 %v2131, %v2130
    %2134 = vrot.lane.b32.xlu0 %v1804, 96
    %v2135 = vpop.permute.xlu0 %2134
    %2136 = vrot.lane.b32.xlu0 %v1805, 96
    %v2137 = vpop.permute.xlu0 %2136
    %v2140 = vsel %vm730, %v2132, 0
    %v2143 = vsel %vm730, %v2133, 0
    %v2146 = vand.u32 %v2137, %v786
    %2148 = vmatpush.bf16.msra.mxu0 0
    %2149 = vmatpush.bf16.msra.mxu0 0
    %2150 = vmatpush.bf16.msra.mxu0 0
    %2151 = vmatpush.bf16.msra.mxu0 0
    %2152 = vmatpush.bf16.msra.mxu0 0
    %2153 = vmatpush.bf16.msra.mxu0 0
    %2154 = vmatpush.bf16.msra.mxu0 %v2146
    %2155 = vmatpush.bf16.msra.mxu0 %v2135
    %2156 = vmatmul.bf16.gmra.mxu0 %v2140
    %v2157 = vpop.f32.mrf.mxu0
    %v2158 = vadd.f32 0.0, %v2157
    %v2159 = vpop.f32.mrf.mxu0
    %v2160 = vadd.f32 0.0, %v2159
    %2161 = vmatmul.bf16.gmra.mxu0 %v2143
    %v2162 = vpop.f32.mrf.mxu0
    %v2163 = vadd.f32 0.0, %v2162
    %v2164 = vpop.f32.mrf.mxu0
    %v2165 = vadd.f32 0.0, %v2164
    %2166 = vdwg.mxu0
    %2167 = vrot.lane.b32.xlu0 %v1802, 80
    %v2168 = vpop.permute.xlu0 %2167
    %2169 = vrot.lane.b32.xlu0 %v1803, 80
    %v2170 = vpop.permute.xlu0 %2169
    %2171 = vrot.lane.b32.xlu0 %v1802, 16
    %v2172 = vpop.permute.xlu0 %2171
    %2173 = vrot.lane.b32.xlu0 %v1803, 16
    %v2174 = vpop.permute.xlu0 %2173
    %v2176 = vsel %vm694, %v2168, 0
    %v2179 = vsel %vm694, %v2170, 0
    %v2182 = vsel %vm694, %v2172, 0
    %v2185 = vsel %vm694, %v2174, 0
    %2187 = vmatpush.bf16.xpose.msra.mxu0 0
    %2188 = vmatpush.bf16.xpose.msra.mxu0 0
    %2189 = vmatpush.bf16.xpose.msra.mxu0 0
    %2190 = vmatpush.bf16.xpose.msra.mxu0 0
    %2191 = vmatpush.bf16.xpose.msra.mxu0 0
    %2192 = vmatpush.bf16.xpose.msra.mxu0 0
    %2193 = vmatpush.bf16.xpose.msra.mxu0 %v2185
    %2194 = vmatpush.bf16.xpose.msra.mxu0 %v2182
    %2195 = vmatmul.bf16.gmra.mxu0 %v2176
    %v2196 = vpop.f32.mrf.mxu0
    %v2197 = vadd.f32 0.0, %v2196
    %v2198 = vpop.f32.mrf.mxu0
    %v2199 = vadd.f32 0.0, %v2198
    %2200 = vmatmul.bf16.gmra.mxu0 %v2179
    %v2201 = vpop.f32.mrf.mxu0
    %v2202 = vadd.f32 0.0, %v2201
    %v2203 = vpop.f32.mrf.mxu0
    %v2204 = vadd.f32 0.0, %v2203
    %2205 = vdwg.mxu0
    %v2206 = vmul.f32 %v2197, 0.25
    %v2207 = vmul.f32 %v2199, 0.25
    %v2208 = vmul.f32 %v2202, 0.25
    %v2209 = vmul.f32 %v2204, 0.25
    %v2210 = vsel %vm730, %v2206, -inf
    %2211 = vmax.xlane.f32.xlu0 %v2210
    %v2212 = vpop.xlane.xlu0 %2211
    %v2213 = vsel %vm730, %v2207, -inf
    %2214 = vmax.xlane.f32.xlu0 %v2213
    %v2215 = vpop.xlane.xlu0 %2214
    %v2216 = vsel %vm730, %v2208, -inf
    %2217 = vmax.xlane.f32.xlu0 %v2216
    %v2218 = vpop.xlane.xlu0 %2217
    %v2219 = vsel %vm740, %v2209, -inf
    %2220 = vmax.xlane.f32.xlu0 %v2219
    %v2221 = vpop.xlane.xlu0 %2220
    %v2222 = vsub.f32 %v2206, %v2212
    %v2223 = vsub.f32 %v2207, %v2215
    %v2224 = vsub.f32 %v2208, %v2218
    %v2225 = vsub.f32 %v2209, %v2221
    %v2226 = vmul.f32 %v2222, 1.442695
    %v2227 = vpow.pop %v2226
    %v2228 = vmul.f32 %v2223, 1.442695
    %v2229 = vpow.pop %v2228
    %v2230 = vmul.f32 %v2224, 1.442695
    %v2231 = vpow.pop %v2230
    %v2232 = vmul.f32 %v2225, 1.442695
    %v2233 = vpow.pop %v2232
    %v2234 = vsel %vm730, %v2227, 0.0
    %2235 = vadd.xlane.f32.xlu0 %v2234
    %v2236 = vpop.xlane.xlu0 %2235
    %v2237 = vsel %vm730, %v2229, 0.0
    %2238 = vadd.xlane.f32.xlu0 %v2237
    %v2239 = vpop.xlane.xlu0 %2238
    %v2240 = vsel %vm730, %v2231, 0.0
    %2241 = vadd.xlane.f32.xlu0 %v2240
    %v2242 = vpop.xlane.xlu0 %2241
    %v2243 = vsel %vm740, %v2233, 0.0
    %2244 = vadd.xlane.f32.xlu0 %v2243
    %v2245 = vpop.xlane.xlu0 %2244
    %v2246 = vrcp.pop %v2236
    %v2247 = vrcp.pop %v2239
    %v2248 = vrcp.pop %v2242
    %v2249 = vrcp.pop %v2245
    %v2250 = vmul.f32 %v2227, %v2246
    %v2251 = vmul.f32 %v2229, %v2247
    %v2252 = vmul.f32 %v2231, %v2248
    %v2253 = vmul.f32 %v2233, %v2249
    %v2254 = vpack.c.bf16 %v2251, %v2250
    %v2255 = vpack.c.bf16 %v2253, %v2252
    %2256 = vrot.lane.b32.xlu0 %v1804, 80
    %v2257 = vpop.permute.xlu0 %2256
    %2258 = vrot.lane.b32.xlu0 %v1805, 80
    %v2259 = vpop.permute.xlu0 %2258
    %v2262 = vsel %vm730, %v2254, 0
    %v2265 = vsel %vm730, %v2255, 0
    %v2268 = vand.u32 %v2259, %v786
    %2270 = vmatpush.bf16.msra.mxu0 0
    %2271 = vmatpush.bf16.msra.mxu0 0
    %2272 = vmatpush.bf16.msra.mxu0 0
    %2273 = vmatpush.bf16.msra.mxu0 0
    %2274 = vmatpush.bf16.msra.mxu0 0
    %2275 = vmatpush.bf16.msra.mxu0 0
    %2276 = vmatpush.bf16.msra.mxu0 %v2268
    %2277 = vmatpush.bf16.msra.mxu0 %v2257
    %2278 = vmatmul.bf16.gmra.mxu0 %v2262
    %v2279 = vpop.f32.mrf.mxu0
    %v2280 = vadd.f32 0.0, %v2279
    %v2281 = vpop.f32.mrf.mxu0
    %v2282 = vadd.f32 0.0, %v2281
    %2283 = vmatmul.bf16.gmra.mxu0 %v2265
    %v2284 = vpop.f32.mrf.mxu0
    %v2285 = vadd.f32 0.0, %v2284
    %v2286 = vpop.f32.mrf.mxu0
    %v2287 = vadd.f32 0.0, %v2286
    %2288 = vdwg.mxu0
    %2293 = vrot.lane.b32.xlu0 %v2036, 16
    %v2294 = vpop.permute.xlu0 %2293
    %2295 = vrot.lane.b32.xlu0 %v2038, 16
    %v2296 = vpop.permute.xlu0 %2295
    %2297 = vrot.lane.b32.xlu0 %v2041, 16
    %v2298 = vpop.permute.xlu0 %2297
    %2299 = vrot.lane.b32.xlu0 %v2043, 16
    %v2300 = vpop.permute.xlu0 %2299
    %2309 = vrot.lane.b32.xlu0 %v2158, 32
    %v2310 = vpop.permute.xlu0 %2309
    %2311 = vrot.lane.b32.xlu0 %v2160, 32
    %v2312 = vpop.permute.xlu0 %2311
    %2313 = vrot.lane.b32.xlu0 %v2163, 32
    %v2314 = vpop.permute.xlu0 %2313
    %2315 = vrot.lane.b32.xlu0 %v2165, 32
    %v2316 = vpop.permute.xlu0 %2315
    %2325 = vrot.lane.b32.xlu0 %v2280, 48
    %v2326 = vpop.permute.xlu0 %2325
    %2327 = vrot.lane.b32.xlu0 %v2282, 48
    %v2328 = vpop.permute.xlu0 %2327
    %2329 = vrot.lane.b32.xlu0 %v2285, 48
    %v2330 = vpop.permute.xlu0 %2329
    %2331 = vrot.lane.b32.xlu0 %v2287, 48
    %v2332 = vpop.permute.xlu0 %2331
    %v2337 = vsel %vm694, %v1912, %v2294
    %v2338 = vsel %vm694, %v1914, %v2296
    %v2339 = vsel %vm694, %v1917, %v2298
    %v2340 = vsel %vm694, %v1919, %v2300
    %v2341 = vsel %vm1229, %v2337, %v2310
    %v2342 = vsel %vm1229, %v2338, %v2312
    %v2343 = vsel %vm1229, %v2339, %v2314
    %v2344 = vsel %vm1229, %v2340, %v2316
    %v2345 = vsel %vm1234, %v2341, %v2326
    %v2346 = vsel %vm1234, %v2342, %v2328
    %v2347 = vsel %vm1234, %v2343, %v2330
    %v2348 = vsel %vm1234, %v2344, %v2332
    %v2349 = vpack.c.bf16 %v2346, %v2345
    %v2350 = vpack.c.bf16 %v2348, %v2347
    %s2351 = scalar_lea.vmem %s6, 32
    %v2352 = vld [vmem:[%s2351] sm:$0xf]
    %v2353 = vld [vmem:[%s2351 + $0x4] sm:$0xf]
    %v2354 = vld [vmem:[%s2351 + $0x8] sm:$0xf]
    %v2355 = vld [vmem:[%s2351 + $0xc] sm:$0xf]
    %v2356 = vld [vmem:[%s2351 + $0x10] sm:$0xf]
    %v2357 = vld [vmem:[%s2351 + $0x14] sm:$0xf]
    %v2358 = vld [vmem:[%s2351 + $0x18] sm:$0xf]
    %v2359 = vld [vmem:[%s2351 + $0x1c] sm:$0xf]
    %v2368 = vunpack.c.l.b16 %v2352
    %v2369 = vunpack.c.l.b16 %v2353
    %v2370 = vunpack.c.l.b16 %v2354
    %v2371 = vunpack.c.l.b16 %v2355
    %v2372 = vunpack.c.l.b16 %v2356
    %v2373 = vunpack.c.l.b16 %v2357
    %v2374 = vunpack.c.l.b16 %v2358
    %v2375 = vunpack.c.l.b16 %v2359
    %v2376 = vpack.c.b16 %v2369, %v2368
    %v2377 = vpack.c.b16 %v2371, %v2370
    %v2378 = vpack.c.b16 %v2373, %v2372
    %v2379 = vpack.c.b16 %v2375, %v2374
    %v2385 = vsel %vm115, %v2349, 0
    %v2388 = vsel %vm115, %v2350, 0
    %2390 = vmatpush.bf16.msra.mxu0 0
    %2391 = vmatpush.bf16.msra.mxu0 0
    %2392 = vmatpush.bf16.msra.mxu0 0
    %2393 = vmatpush.bf16.msra.mxu0 0
    %2394 = vmatpush.bf16.msra.mxu0 %v2379
    %2395 = vmatpush.bf16.msra.mxu0 %v2378
    %2396 = vmatpush.bf16.msra.mxu0 %v2377
    %2397 = vmatpush.bf16.msra.mxu0 %v2376
    %2398 = vmatmul.bf16.gmra.mxu0 %v2385
    %v2399 = vpop.f32.mrf.mxu0
    %v2400 = vadd.f32 0.0, %v2399
    %v2401 = vpop.f32.mrf.mxu0
    %v2402 = vadd.f32 0.0, %v2401
    %2403 = vmatmul.bf16.gmra.mxu0 %v2388
    %v2404 = vpop.f32.mrf.mxu0
    %v2405 = vadd.f32 0.0, %v2404
    %v2406 = vpop.f32.mrf.mxu0
    %v2407 = vadd.f32 0.0, %v2406
    %2408 = vdwg.mxu0
    %v2409 = vadd.f32 %v1591, %v2400
    %v2410 = vadd.f32 %v1592, %v2402
    %v2411 = vadd.f32 %v1593, %v2405
    %v2412 = vadd.f32 %v1594, %v2407
    %v2413 = vperm.slane %v1597, 0
    %v2414 = vadd.f32 %v2409, %v2413
    %v2415 = vadd.f32 %v2410, %v2413
    %v2416 = vadd.f32 %v2411, %v2413
    %v2417 = vadd.f32 %v2412, %v2413
    %v2418 = vsel %vm115, %v2414, 0.0
    %2419 = vadd.xlane.f32.xlu0 %v2418
    %v2420 = vpop.xlane.xlu0 %2419
    %v2421 = vsel %vm115, %v2415, 0.0
    %2422 = vadd.xlane.f32.xlu0 %v2421
    %v2423 = vpop.xlane.xlu0 %2422
    %v2424 = vsel %vm115, %v2416, 0.0
    %2425 = vadd.xlane.f32.xlu0 %v2424
    %v2426 = vpop.xlane.xlu0 %2425
    %v2427 = vsel %vm495, %v2417, 0.0
    %2428 = vadd.xlane.f32.xlu0 %v2427
    %v2429 = vpop.xlane.xlu0 %2428
    %v2430 = vmul.f32 %v2420, %v128
    %v2431 = vmul.f32 %v2423, %v128
    %v2432 = vmul.f32 %v2426, %v128
    %v2433 = vmul.f32 %v2429, %v128
    %v2434 = vsub.f32 %v2414, %v2430
    %v2435 = vsub.f32 %v2415, %v2431
    %v2436 = vsub.f32 %v2416, %v2432
    %v2437 = vsub.f32 %v2417, %v2433
    %v2438 = vmul.f32 %v2434, %v2434
    %v2439 = vmul.f32 %v2435, %v2435
    %v2440 = vmul.f32 %v2436, %v2436
    %v2441 = vmul.f32 %v2437, %v2437
    %v2442 = vsel %vm115, %v2438, 0.0
    %2443 = vadd.xlane.f32.xlu0 %v2442
    %v2444 = vpop.xlane.xlu0 %2443
    %v2445 = vsel %vm115, %v2439, 0.0
    %2446 = vadd.xlane.f32.xlu0 %v2445
    %v2447 = vpop.xlane.xlu0 %2446
    %v2448 = vsel %vm115, %v2440, 0.0
    %2449 = vadd.xlane.f32.xlu0 %v2448
    %v2450 = vpop.xlane.xlu0 %2449
    %v2451 = vsel %vm495, %v2441, 0.0
    %2452 = vadd.xlane.f32.xlu0 %v2451
    %v2453 = vpop.xlane.xlu0 %2452
    %v2454 = vmul.f32 %v2444, %v128
    %v2455 = vmul.f32 %v2447, %v128
    %v2456 = vmul.f32 %v2450, %v128
    %v2457 = vmul.f32 %v2453, %v128
    %v2458 = vadd.f32 %v2454, 1e-05
    %v2459 = vadd.f32 %v2455, 1e-05
    %v2460 = vadd.f32 %v2456, 1e-05
    %v2461 = vadd.f32 %v2457, 1e-05
    %v2462 = vrsqrt.pop %v2458
    %v2463 = vmul.f32 %v2462, %v2458
    %v2464 = vmul.f32 %v2463, %v2462
    %v2465 = vmul.f32 0.5, %v2464
    %v2466 = vsub.f32 1.5, %v2465
    %v2467 = vmul.f32 %v2462, %v2466
    %vm2468 = vweird.f32 %v2458
    %vm2469 = vweird.f32 %v2462
    %vm2470 = vmor %vm2468, %vm2469
    %v2471 = vsel %vm2470, %v2462, %v2467
    %v2472 = vrsqrt.pop %v2459
    %v2473 = vmul.f32 %v2472, %v2459
    %v2474 = vmul.f32 %v2473, %v2472
    %v2475 = vmul.f32 0.5, %v2474
    %v2476 = vsub.f32 1.5, %v2475
    %v2477 = vmul.f32 %v2472, %v2476
    %vm2478 = vweird.f32 %v2459
    %vm2479 = vweird.f32 %v2472
    %vm2480 = vmor %vm2478, %vm2479
    %v2481 = vsel %vm2480, %v2472, %v2477
    %v2482 = vrsqrt.pop %v2460
    %v2483 = vmul.f32 %v2482, %v2460
    %v2484 = vmul.f32 %v2483, %v2482
    %v2485 = vmul.f32 0.5, %v2484
    %v2486 = vsub.f32 1.5, %v2485
    %v2487 = vmul.f32 %v2482, %v2486
    %vm2488 = vweird.f32 %v2460
    %vm2489 = vweird.f32 %v2482
    %vm2490 = vmor %vm2488, %vm2489
    %v2491 = vsel %vm2490, %v2482, %v2487
    %v2492 = vrsqrt.pop %v2461
    %v2493 = vmul.f32 %v2492, %v2461
    %v2494 = vmul.f32 %v2493, %v2492
    %v2495 = vmul.f32 0.5, %v2494
    %v2496 = vsub.f32 1.5, %v2495
    %v2497 = vmul.f32 %v2492, %v2496
    %vm2498 = vweird.f32 %v2461
    %vm2499 = vweird.f32 %v2492
    %vm2500 = vmor %vm2498, %vm2499
    %v2501 = vsel %vm2500, %v2492, %v2497
    %v2502 = vmul.f32 %v2434, %v2471
    %v2503 = vmul.f32 %v2435, %v2481
    %v2504 = vmul.f32 %v2436, %v2491
    %v2505 = vmul.f32 %v2437, %v2501
    %v2506 = vperm.slane %v1598, 0
    %v2507 = vmul.f32 %v2502, %v2506
    %v2508 = vmul.f32 %v2503, %v2506
    %v2509 = vmul.f32 %v2504, %v2506
    %v2510 = vmul.f32 %v2505, %v2506
    %v2511 = vperm.slane %v1599, 0
    %v2512 = vadd.f32 %v2507, %v2511
    %v2513 = vadd.f32 %v2508, %v2511
    %v2514 = vadd.f32 %v2509, %v2511
    %v2515 = vadd.f32 %v2510, %v2511
    %v2516 = vpack.c.bf16 %v2513, %v2512
    %v2517 = vpack.c.bf16 %v2515, %v2514
    %s2518 = scalar_lea.vmem %s7, 32
    %v2519 = vld [vmem:[%s2518] sm:$0xf]
    %v2520 = vld [vmem:[%s2518 + $0x4] sm:$0xf]
    %v2521 = vld [vmem:[%s2518 + $0x8] sm:$0xf]
    %v2522 = vld [vmem:[%s2518 + $0xc] sm:$0xf]
    %v2523 = vld [vmem:[%s2518 + $0x10] sm:$0xf]
    %v2524 = vld [vmem:[%s2518 + $0x14] sm:$0xf]
    %v2525 = vld [vmem:[%s2518 + $0x18] sm:$0xf]
    %v2526 = vld [vmem:[%s2518 + $0x1c] sm:$0xf]
    %v2527 = vperm.slane %v1603, 0
    %v2536 = vunpack.c.l.b16 %v2519
    %v2537 = vunpack.c.l.b16 %v2520
    %v2538 = vunpack.c.l.b16 %v2521
    %v2539 = vunpack.c.l.b16 %v2522
    %v2540 = vunpack.c.l.b16 %v2523
    %v2541 = vunpack.c.l.b16 %v2524
    %v2542 = vunpack.c.l.b16 %v2525
    %v2543 = vunpack.c.l.b16 %v2526
    %v2544 = vpack.c.b16 %v2537, %v2536
    %v2545 = vpack.c.b16 %v2539, %v2538
    %v2546 = vpack.c.b16 %v2541, %v2540
    %v2547 = vpack.c.b16 %v2543, %v2542
    %v2553 = vsel %vm115, %v2516, 0
    %v2556 = vsel %vm115, %v2517, 0
    %2558 = vmatpush.bf16.msra.mxu0 0
    %2559 = vmatpush.bf16.msra.mxu0 0
    %2560 = vmatpush.bf16.msra.mxu0 0
    %2561 = vmatpush.bf16.msra.mxu0 0
    %2562 = vmatpush.bf16.msra.mxu0 %v2547
    %2563 = vmatpush.bf16.msra.mxu0 %v2546
    %2564 = vmatpush.bf16.msra.mxu0 %v2545
    %2565 = vmatpush.bf16.msra.mxu0 %v2544
    %2566 = vmatmul.bf16.gmra.mxu0 %v2553
    %v2567 = vpop.f32.mrf.mxu0
    %v2568 = vadd.f32 %v2527, %v2567
    %v2569 = vpop.f32.mrf.mxu0
    %v2570 = vadd.f32 %v2527, %v2569
    %2571 = vmatmul.bf16.gmra.mxu0 %v2556
    %v2572 = vpop.f32.mrf.mxu0
    %v2573 = vadd.f32 %v2527, %v2572
    %v2574 = vpop.f32.mrf.mxu0
    %v2575 = vadd.f32 %v2527, %v2574
    %2576 = vdwg.mxu0
    %v2577 = vmul.f32 %v2568, 0.5
    %v2578 = vmul.f32 %v2570, 0.5
    %v2579 = vmul.f32 %v2573, 0.5
    %v2580 = vmul.f32 %v2575, 0.5
    %v2581 = vmul.f32 %v2568, 0.044715
    %v2582 = vmul.f32 %v2570, 0.044715
    %v2583 = vmul.f32 %v2573, 0.044715
    %v2584 = vmul.f32 %v2575, 0.044715
    %v2585 = vmul.f32 %v2581, %v2568
    %v2586 = vmul.f32 %v2582, %v2570
    %v2587 = vmul.f32 %v2583, %v2573
    %v2588 = vmul.f32 %v2584, %v2575
    %v2589 = vmul.f32 %v2585, %v2568
    %v2590 = vmul.f32 %v2586, %v2570
    %v2591 = vmul.f32 %v2587, %v2573
    %v2592 = vmul.f32 %v2588, %v2575
    %v2593 = vadd.f32 %v2568, %v2589
    %v2594 = vadd.f32 %v2570, %v2590
    %v2595 = vadd.f32 %v2573, %v2591
    %v2596 = vadd.f32 %v2575, %v2592
    %v2597 = vmul.f32 %v2593, 0.7978846
    %v2598 = vmul.f32 %v2594, 0.7978846
    %v2599 = vmul.f32 %v2595, 0.7978846
    %v2600 = vmul.f32 %v2596, 0.7978846
    %v2601 = vtanh.pop %v2597
    %v2602 = vtanh.pop %v2598
    %v2603 = vtanh.pop %v2599
    %v2604 = vtanh.pop %v2600
    %v2605 = vadd.f32 %v2601, 1.0
    %v2606 = vadd.f32 %v2602, 1.0
    %v2607 = vadd.f32 %v2603, 1.0
    %v2608 = vadd.f32 %v2604, 1.0
    %v2609 = vmul.f32 %v2577, %v2605
    %v2610 = vmul.f32 %v2578, %v2606
    %v2611 = vmul.f32 %v2579, %v2607
    %v2612 = vmul.f32 %v2580, %v2608
    %v2613 = vpack.c.bf16 %v2610, %v2609
    %v2614 = vpack.c.bf16 %v2612, %v2611
    %s2615 = scalar_lea.vmem %s8, 64
    %v2616 = vld [vmem:[%s2615] sm:$0xf]
    %v2617 = vld [vmem:[%s2615 + $0x4] sm:$0xf]
    %v2618 = vld [vmem:[%s2615 + $0x8] sm:$0xf]
    %v2619 = vld [vmem:[%s2615 + $0xc] sm:$0xf]
    %v2620 = vld [vmem:[%s2615 + $0x10] sm:$0xf]
    %v2621 = vld [vmem:[%s2615 + $0x14] sm:$0xf]
    %v2622 = vld [vmem:[%s2615 + $0x18] sm:$0xf]
    %v2623 = vld [vmem:[%s2615 + $0x1c] sm:$0xf]
    %v2624 = vld [vmem:[%s2615 + $0x20] sm:$0xf]
    %v2625 = vld [vmem:[%s2615 + $0x24] sm:$0xf]
    %v2626 = vld [vmem:[%s2615 + $0x28] sm:$0xf]
    %v2627 = vld [vmem:[%s2615 + $0x2c] sm:$0xf]
    %v2628 = vld [vmem:[%s2615 + $0x30] sm:$0xf]
    %v2629 = vld [vmem:[%s2615 + $0x34] sm:$0xf]
    %v2630 = vld [vmem:[%s2615 + $0x38] sm:$0xf]
    %v2631 = vld [vmem:[%s2615 + $0x3c] sm:$0xf]
    %v2648 = vunpack.c.l.b16 %v2616
    %v2649 = vunpack.c.l.b16 %v2617
    %v2650 = vunpack.c.l.b16 %v2618
    %v2651 = vunpack.c.l.b16 %v2619
    %v2652 = vunpack.c.l.b16 %v2620
    %v2653 = vunpack.c.l.b16 %v2621
    %v2654 = vunpack.c.l.b16 %v2622
    %v2655 = vunpack.c.l.b16 %v2623
    %v2656 = vunpack.c.l.b16 %v2624
    %v2657 = vunpack.c.l.b16 %v2625
    %v2658 = vunpack.c.l.b16 %v2626
    %v2659 = vunpack.c.l.b16 %v2627
    %v2660 = vunpack.c.l.b16 %v2628
    %v2661 = vunpack.c.l.b16 %v2629
    %v2662 = vunpack.c.l.b16 %v2630
    %v2663 = vunpack.c.l.b16 %v2631
    %v2664 = vpack.c.b16 %v2649, %v2648
    %v2665 = vpack.c.b16 %v2651, %v2650
    %v2666 = vpack.c.b16 %v2653, %v2652
    %v2667 = vpack.c.b16 %v2655, %v2654
    %v2668 = vpack.c.b16 %v2657, %v2656
    %v2669 = vpack.c.b16 %v2659, %v2658
    %v2670 = vpack.c.b16 %v2661, %v2660
    %v2671 = vpack.c.b16 %v2663, %v2662
    %2680 = vmatpush.bf16.msra.mxu0 %v2671
    %2681 = vmatpush.bf16.msra.mxu0 %v2670
    %2682 = vmatpush.bf16.msra.mxu0 %v2669
    %2683 = vmatpush.bf16.msra.mxu0 %v2668
    %2684 = vmatpush.bf16.msra.mxu0 %v2667
    %2685 = vmatpush.bf16.msra.mxu0 %v2666
    %2686 = vmatpush.bf16.msra.mxu0 %v2665
    %2687 = vmatpush.bf16.msra.mxu0 %v2664
    %2688 = vmatmul.bf16.gmra.mxu0 %v2613
    %v2689 = vpop.f32.mrf.mxu0
    %v2690 = vpop.f32.mrf.mxu0
    %2691 = vmatmul.bf16.gmra.mxu0 %v2614
    %v2692 = vpop.f32.mrf.mxu0
    %v2693 = vpop.f32.mrf.mxu0
    %v2694 = vadd.f32 0.0, %v2693
    %2695 = vdwg.mxu0
    %v2696 = vadd.f32 %v2417, %v2694
    %v2697 = vperm.slane %v1600, 0
    %v2698 = vadd.f32 %v2696, %v2697
    %v2699 = vsel %vm495, %v2698, 0.0
    %2700 = vadd.xlane.f32.xlu0 %v2699
    %v2701 = vpop.xlane.xlu0 %2700
    %v2702 = vmul.f32 %v2701, %v128
    %v2703 = vsub.f32 %v2698, %v2702
    %v2704 = vmul.f32 %v2703, %v2703
    %v2705 = vsel %vm495, %v2704, 0.0
    %2706 = vadd.xlane.f32.xlu0 %v2705
    %v2707 = vpop.xlane.xlu0 %2706
    %v2708 = vmul.f32 %v2707, %v128
    %v2709 = vadd.f32 %v2708, 1e-05
    %v2710 = vrsqrt.pop %v2709
    %v2711 = vmul.f32 %v2710, %v2709
    %v2712 = vmul.f32 %v2711, %v2710
    %v2713 = vmul.f32 0.5, %v2712
    %v2714 = vsub.f32 1.5, %v2713
    %v2715 = vmul.f32 %v2710, %v2714
    %vm2716 = vweird.f32 %v2709
    %vm2717 = vweird.f32 %v2710
    %vm2718 = vmor %vm2716, %vm2717
    %v2719 = vsel %vm2718, %v2710, %v2715
    %v2720 = vmul.f32 %v2703, %v2719
    %v2721 = vperm.slane %v463, 0
    %v2722 = vmul.f32 %v2720, %v2721
    %v2723 = vperm.slane %v464, 0
    %v2724 = vadd.f32 %v2722, %v2723
    %v2725 = vsel %vm465, %v324, 0.0
    %v2726 = vsel %vm467, %v457, 0.0
    %v2727 = vsel %vm469, %v190, 0.0
    %s2728 = scalar_lea.vmem [#allocation2], 24
    %2729 = vst.msk [vmem:[%s2728] sm:$0xff] %vm115, %v2725
    %2730 = vst.msk [vmem:[%s2728 + $0x8] sm:$0xff] %vm115, %v2726
    %2731 = vst.msk [vmem:[%s2728 + $0x10] sm:$0xff] %vm115, %v2727
    %v2732 = vadd.f32 %v2725, %v459
    %v2733 = vadd.f32 %v2726, %v460
    %v2734 = vadd.f32 %v2727, %v461
    %v2735 = vld [vmem:[%s4 + $0x31] sm:$0x1]
    %v2736 = vld [vmem:[%s4 + $0x32] sm:$0x1]
    %v2737 = vld [vmem:[%s4 + $0x33] sm:$0x1]
    %v2738 = vld [vmem:[%s4 + $0x34] sm:$0x1]
    %v2739 = vld [vmem:[%s4 + $0x35] sm:$0x1]
    %v2740 = vld [vmem:[%s4 + $0x36] sm:$0x1]
    %v2741 = vld [vmem:[%s9] ss:$4 sm:$0x3]
    %v2742 = vld [vmem:[%s9 + $0x2] sm:$0x1]
    %v2743 = vsel %vm115, %v2732, 0.0
    %2744 = vadd.xlane.f32.xlu0 %v2743
    %v2745 = vpop.xlane.xlu0 %2744
    %v2746 = vsel %vm115, %v2733, 0.0
    %2747 = vadd.xlane.f32.xlu0 %v2746
    %v2748 = vpop.xlane.xlu0 %2747
    %v2749 = vsel %vm115, %v2734, 0.0
    %2750 = vadd.xlane.f32.xlu0 %v2749
    %v2751 = vpop.xlane.xlu0 %2750
    %v2752 = vmul.f32 %v2745, %v128
    %v2753 = vmul.f32 %v2748, %v128
    %v2754 = vmul.f32 %v2751, %v128
    %v2755 = vsub.f32 %v2732, %v2752
    %v2756 = vsub.f32 %v2733, %v2753
    %v2757 = vsub.f32 %v2734, %v2754
    %v2758 = vmul.f32 %v2755, %v2755
    %v2759 = vmul.f32 %v2756, %v2756
    %v2760 = vmul.f32 %v2757, %v2757
    %v2761 = vsel %vm115, %v2758, 0.0
    %2762 = vadd.xlane.f32.xlu0 %v2761
    %v2763 = vpop.xlane.xlu0 %2762
    %v2764 = vsel %vm115, %v2759, 0.0
    %2765 = vadd.xlane.f32.xlu0 %v2764
    %v2766 = vpop.xlane.xlu0 %2765
    %v2767 = vsel %vm115, %v2760, 0.0
    %2768 = vadd.xlane.f32.xlu0 %v2767
    %v2769 = vpop.xlane.xlu0 %2768
    %v2770 = vmul.f32 %v2763, %v128
    %v2771 = vmul.f32 %v2766, %v128
    %v2772 = vmul.f32 %v2769, %v128
    %v2773 = vadd.f32 %v2770, 1e-05
    %v2774 = vadd.f32 %v2771, 1e-05
    %v2775 = vadd.f32 %v2772, 1e-05
    %v2776 = vrsqrt.pop %v2773
    %v2777 = vmul.f32 %v2776, %v2773
    %v2778 = vmul.f32 %v2777, %v2776
    %v2779 = vmul.f32 0.5, %v2778
    %v2780 = vsub.f32 1.5, %v2779
    %v2781 = vmul.f32 %v2776, %v2780
    %vm2782 = vweird.f32 %v2773
    %vm2783 = vweird.f32 %v2776
    %vm2784 = vmor %vm2782, %vm2783
    %v2785 = vsel %vm2784, %v2776, %v2781
    %v2786 = vrsqrt.pop %v2774
    %v2787 = vmul.f32 %v2786, %v2774
    %v2788 = vmul.f32 %v2787, %v2786
    %v2789 = vmul.f32 0.5, %v2788
    %v2790 = vsub.f32 1.5, %v2789
    %v2791 = vmul.f32 %v2786, %v2790
    %vm2792 = vweird.f32 %v2774
    %vm2793 = vweird.f32 %v2786
    %vm2794 = vmor %vm2792, %vm2793
    %v2795 = vsel %vm2794, %v2786, %v2791
    %v2796 = vrsqrt.pop %v2775
    %v2797 = vmul.f32 %v2796, %v2775
    %v2798 = vmul.f32 %v2797, %v2796
    %v2799 = vmul.f32 0.5, %v2798
    %v2800 = vsub.f32 1.5, %v2799
    %v2801 = vmul.f32 %v2796, %v2800
    %vm2802 = vweird.f32 %v2775
    %vm2803 = vweird.f32 %v2796
    %vm2804 = vmor %vm2802, %vm2803
    %v2805 = vsel %vm2804, %v2796, %v2801
    %v2806 = vmul.f32 %v2755, %v2785
    %v2807 = vmul.f32 %v2756, %v2795
    %v2808 = vmul.f32 %v2757, %v2805
    %v2809 = vperm.slane %v2735, 0
    %v2810 = vmul.f32 %v2806, %v2809
    %v2811 = vmul.f32 %v2807, %v2809
    %v2812 = vmul.f32 %v2808, %v2809
    %v2813 = vmul.f32 %v574, %v2809
    %v2814 = vperm.slane %v2736, 0
    %v2815 = vadd.f32 %v2810, %v2814
    %v2816 = vadd.f32 %v2811, %v2814
    %v2817 = vadd.f32 %v2812, %v2814
    %v2818 = vadd.f32 %v2813, %v2814
    %v2819 = vpack.c.bf16 %v2816, %v2815
    %v2820 = vpack.c.bf16 %v2818, %v2817
    %v2821 = vld [vmem:[%s5] sm:$0xff]
    %v2822 = vld [vmem:[%s5 + $0x8] sm:$0xff]
    %v2823 = vld [vmem:[%s5 + $0x10] sm:$0xff]
    %v2824 = vld [vmem:[%s5 + $0x18] sm:$0xff]
    %v2825 = vld [vmem:[%s5 + $0x20] sm:$0xff]
    %v2826 = vld [vmem:[%s5 + $0x28] sm:$0xff]
    %v2827 = vld [vmem:[%s5 + $0x30] sm:$0xff]
    %v2828 = vld [vmem:[%s5 + $0x38] sm:$0xff]
    %v2830 = vperm.slane %v2741, 0
    %v2831 = vperm.slane %v2741, 1
    %v2842 = vunpack.c.l.b16 %v2821
    %v2843 = vunpack.c.h.b16 %v2821
    %v2844 = vunpack.c.l.b16 %v2822
    %v2845 = vunpack.c.h.b16 %v2822
    %v2846 = vunpack.c.l.b16 %v2823
    %v2847 = vunpack.c.h.b16 %v2823
    %v2848 = vunpack.c.l.b16 %v2824
    %v2849 = vunpack.c.h.b16 %v2824
    %v2850 = vunpack.c.l.b16 %v2825
    %v2851 = vunpack.c.h.b16 %v2825
    %v2852 = vunpack.c.l.b16 %v2826
    %v2853 = vunpack.c.h.b16 %v2826
    %v2854 = vunpack.c.l.b16 %v2827
    %v2855 = vunpack.c.h.b16 %v2827
    %v2856 = vunpack.c.l.b16 %v2828
    %v2857 = vunpack.c.h.b16 %v2828
    %v2858 = vpack.c.b16 %v2844, %v2842
    %v2859 = vpack.c.b16 %v2845, %v2843
    %v2860 = vpack.c.b16 %v2848, %v2846
    %v2861 = vpack.c.b16 %v2849, %v2847
    %v2862 = vpack.c.b16 %v2852, %v2850
    %v2863 = vpack.c.b16 %v2853, %v2851
    %v2864 = vpack.c.b16 %v2856, %v2854
    %v2865 = vpack.c.b16 %v2857, %v2855
    %v2875 = vsel %vm115, %v2819, 0
    %v2878 = vsel %vm115, %v2820, 0
    %2880 = vmatpush.bf16.msra.mxu0 0
    %2881 = vmatpush.bf16.msra.mxu0 0
    %2882 = vmatpush.bf16.msra.mxu0 0
    %2883 = vmatpush.bf16.msra.mxu0 0
    %2884 = vmatpush.bf16.msra.mxu0 %v2864
    %2885 = vmatpush.bf16.msra.mxu0 %v2862
    %2886 = vmatpush.bf16.msra.mxu0 %v2860
    %2887 = vmatpush.bf16.msra.mxu0 %v2858
    %2888 = vmatmul.bf16.gmra.mxu0 %v2875
    %v2889 = vpop.f32.mrf.mxu0
    %v2890 = vadd.f32 %v2830, %v2889
    %v2891 = vpop.f32.mrf.mxu0
    %v2892 = vadd.f32 %v2830, %v2891
    %2893 = vmatmul.bf16.gmra.mxu0 %v2878
    %v2894 = vpop.f32.mrf.mxu0
    %v2895 = vadd.f32 %v2830, %v2894
    %v2896 = vpop.f32.mrf.mxu0
    %v2897 = vadd.f32 %v2830, %v2896
    %2898 = vdwg.mxu0
    %2899 = vmatpush.bf16.msra.mxu0 0
    %2900 = vmatpush.bf16.msra.mxu0 0
    %2901 = vmatpush.bf16.msra.mxu0 0
    %2902 = vmatpush.bf16.msra.mxu0 0
    %2903 = vmatpush.bf16.msra.mxu0 %v2865
    %2904 = vmatpush.bf16.msra.mxu0 %v2863
    %2905 = vmatpush.bf16.msra.mxu0 %v2861
    %2906 = vmatpush.bf16.msra.mxu0 %v2859
    %2907 = vmatmul.bf16.gmra.mxu0 %v2875
    %v2908 = vpop.f32.mrf.mxu0
    %v2909 = vadd.f32 %v2831, %v2908
    %v2910 = vpop.f32.mrf.mxu0
    %v2911 = vadd.f32 %v2831, %v2910
    %2912 = vmatmul.bf16.gmra.mxu0 %v2878
    %v2913 = vpop.f32.mrf.mxu0
    %v2914 = vadd.f32 %v2831, %v2913
    %v2915 = vpop.f32.mrf.mxu0
    %v2916 = vadd.f32 %v2831, %v2915
    %2917 = vdwg.mxu0
    %v2918 = vpack.c.bf16 %v2892, %v2890
    %v2919 = vpack.c.bf16 %v2897, %v2895
    %v2920 = vpack.c.bf16 %v2911, %v2909
    %v2921 = vpack.c.bf16 %v2916, %v2914
    %2924 = vrot.lane.b32.xlu0 %v2918, 64
    %v2925 = vpop.permute.xlu0 %2924
    %2926 = vrot.lane.b32.xlu0 %v2919, 64
    %v2927 = vpop.permute.xlu0 %2926
    %v2929 = vsel %vm694, %v2918, 0
    %v2932 = vsel %vm694, %v2919, 0
    %v2935 = vsel %vm694, %v2925, 0
    %v2938 = vsel %vm694, %v2927, 0
    %2940 = vmatpush.bf16.xpose.msra.mxu0 0
    %2941 = vmatpush.bf16.xpose.msra.mxu0 0
    %2942 = vmatpush.bf16.xpose.msra.mxu0 0
    %2943 = vmatpush.bf16.xpose.msra.mxu0 0
    %2944 = vmatpush.bf16.xpose.msra.mxu0 0
    %2945 = vmatpush.bf16.xpose.msra.mxu0 0
    %2946 = vmatpush.bf16.xpose.msra.mxu0 %v2938
    %2947 = vmatpush.bf16.xpose.msra.mxu0 %v2935
    %2948 = vmatmul.bf16.gmra.mxu0 %v2929
    %v2949 = vpop.f32.mrf.mxu0
    %v2950 = vadd.f32 0.0, %v2949
    %v2951 = vpop.f32.mrf.mxu0
    %v2952 = vadd.f32 0.0, %v2951
    %2953 = vmatmul.bf16.gmra.mxu0 %v2932
    %v2954 = vpop.f32.mrf.mxu0
    %v2955 = vadd.f32 0.0, %v2954
    %v2956 = vpop.f32.mrf.mxu0
    %v2957 = vadd.f32 0.0, %v2956
    %2958 = vdwg.mxu0
    %v2959 = vmul.f32 %v2950, 0.25
    %v2960 = vmul.f32 %v2952, 0.25
    %v2961 = vmul.f32 %v2955, 0.25
    %v2962 = vmul.f32 %v2957, 0.25
    %v2963 = vsel %vm730, %v2959, -inf
    %2964 = vmax.xlane.f32.xlu0 %v2963
    %v2965 = vpop.xlane.xlu0 %2964
    %v2966 = vsel %vm730, %v2960, -inf
    %2967 = vmax.xlane.f32.xlu0 %v2966
    %v2968 = vpop.xlane.xlu0 %2967
    %v2969 = vsel %vm730, %v2961, -inf
    %2970 = vmax.xlane.f32.xlu0 %v2969
    %v2971 = vpop.xlane.xlu0 %2970
    %v2972 = vsel %vm740, %v2962, -inf
    %2973 = vmax.xlane.f32.xlu0 %v2972
    %v2974 = vpop.xlane.xlu0 %2973
    %v2975 = vsub.f32 %v2959, %v2965
    %v2976 = vsub.f32 %v2960, %v2968
    %v2977 = vsub.f32 %v2961, %v2971
    %v2978 = vsub.f32 %v2962, %v2974
    %v2979 = vmul.f32 %v2975, 1.442695
    %v2980 = vpow.pop %v2979
    %v2981 = vmul.f32 %v2976, 1.442695
    %v2982 = vpow.pop %v2981
    %v2983 = vmul.f32 %v2977, 1.442695
    %v2984 = vpow.pop %v2983
    %v2985 = vmul.f32 %v2978, 1.442695
    %v2986 = vpow.pop %v2985
    %v2987 = vsel %vm730, %v2980, 0.0
    %2988 = vadd.xlane.f32.xlu0 %v2987
    %v2989 = vpop.xlane.xlu0 %2988
    %v2990 = vsel %vm730, %v2982, 0.0
    %2991 = vadd.xlane.f32.xlu0 %v2990
    %v2992 = vpop.xlane.xlu0 %2991
    %v2993 = vsel %vm730, %v2984, 0.0
    %2994 = vadd.xlane.f32.xlu0 %v2993
    %v2995 = vpop.xlane.xlu0 %2994
    %v2996 = vsel %vm740, %v2986, 0.0
    %2997 = vadd.xlane.f32.xlu0 %v2996
    %v2998 = vpop.xlane.xlu0 %2997
    %v2999 = vrcp.pop %v2989
    %v3000 = vrcp.pop %v2992
    %v3001 = vrcp.pop %v2995
    %v3002 = vrcp.pop %v2998
    %v3003 = vmul.f32 %v2980, %v2999
    %v3004 = vmul.f32 %v2982, %v3000
    %v3005 = vmul.f32 %v2984, %v3001
    %v3006 = vmul.f32 %v2986, %v3002
    %v3007 = vpack.c.bf16 %v3004, %v3003
    %v3008 = vpack.c.bf16 %v3006, %v3005
    %v3010 = vsel %vm730, %v3007, 0
    %v3013 = vsel %vm730, %v3008, 0
    %v3016 = vand.u32 %v2921, %v786
    %3018 = vmatpush.bf16.msra.mxu0 0
    %3019 = vmatpush.bf16.msra.mxu0 0
    %3020 = vmatpush.bf16.msra.mxu0 0
    %3021 = vmatpush.bf16.msra.mxu0 0
    %3022 = vmatpush.bf16.msra.mxu0 0
    %3023 = vmatpush.bf16.msra.mxu0 0
    %3024 = vmatpush.bf16.msra.mxu0 %v3016
    %3025 = vmatpush.bf16.msra.mxu0 %v2920
    %3026 = vmatmul.bf16.gmra.mxu0 %v3010
    %v3027 = vpop.f32.mrf.mxu0
    %v3028 = vadd.f32 0.0, %v3027
    %v3029 = vpop.f32.mrf.mxu0
    %v3030 = vadd.f32 0.0, %v3029
    %3031 = vmatmul.bf16.gmra.mxu0 %v3013
    %v3032 = vpop.f32.mrf.mxu0
    %v3033 = vadd.f32 0.0, %v3032
    %v3034 = vpop.f32.mrf.mxu0
    %v3035 = vadd.f32 0.0, %v3034
    %3036 = vdwg.mxu0
    %3037 = vrot.lane.b32.xlu0 %v2918, 112
    %v3038 = vpop.permute.xlu0 %3037
    %3039 = vrot.lane.b32.xlu0 %v2919, 112
    %v3040 = vpop.permute.xlu0 %3039
    %3041 = vrot.lane.b32.xlu0 %v2918, 48
    %v3042 = vpop.permute.xlu0 %3041
    %3043 = vrot.lane.b32.xlu0 %v2919, 48
    %v3044 = vpop.permute.xlu0 %3043
    %v3046 = vsel %vm694, %v3038, 0
    %v3049 = vsel %vm694, %v3040, 0
    %v3052 = vsel %vm694, %v3042, 0
    %v3055 = vsel %vm694, %v3044, 0
    %3057 = vmatpush.bf16.xpose.msra.mxu0 0
    %3058 = vmatpush.bf16.xpose.msra.mxu0 0
    %3059 = vmatpush.bf16.xpose.msra.mxu0 0
    %3060 = vmatpush.bf16.xpose.msra.mxu0 0
    %3061 = vmatpush.bf16.xpose.msra.mxu0 0
    %3062 = vmatpush.bf16.xpose.msra.mxu0 0
    %3063 = vmatpush.bf16.xpose.msra.mxu0 %v3055
    %3064 = vmatpush.bf16.xpose.msra.mxu0 %v3052
    %3065 = vmatmul.bf16.gmra.mxu0 %v3046
    %v3066 = vpop.f32.mrf.mxu0
    %v3067 = vadd.f32 0.0, %v3066
    %v3068 = vpop.f32.mrf.mxu0
    %v3069 = vadd.f32 0.0, %v3068
    %3070 = vmatmul.bf16.gmra.mxu0 %v3049
    %v3071 = vpop.f32.mrf.mxu0
    %v3072 = vadd.f32 0.0, %v3071
    %v3073 = vpop.f32.mrf.mxu0
    %v3074 = vadd.f32 0.0, %v3073
    %3075 = vdwg.mxu0
    %v3076 = vmul.f32 %v3067, 0.25
    %v3077 = vmul.f32 %v3069, 0.25
    %v3078 = vmul.f32 %v3072, 0.25
    %v3079 = vmul.f32 %v3074, 0.25
    %v3080 = vsel %vm730, %v3076, -inf
    %3081 = vmax.xlane.f32.xlu0 %v3080
    %v3082 = vpop.xlane.xlu0 %3081
    %v3083 = vsel %vm730, %v3077, -inf
    %3084 = vmax.xlane.f32.xlu0 %v3083
    %v3085 = vpop.xlane.xlu0 %3084
    %v3086 = vsel %vm730, %v3078, -inf
    %3087 = vmax.xlane.f32.xlu0 %v3086
    %v3088 = vpop.xlane.xlu0 %3087
    %v3089 = vsel %vm740, %v3079, -inf
    %3090 = vmax.xlane.f32.xlu0 %v3089
    %v3091 = vpop.xlane.xlu0 %3090
    %v3092 = vsub.f32 %v3076, %v3082
    %v3093 = vsub.f32 %v3077, %v3085
    %v3094 = vsub.f32 %v3078, %v3088
    %v3095 = vsub.f32 %v3079, %v3091
    %v3096 = vmul.f32 %v3092, 1.442695
    %v3097 = vpow.pop %v3096
    %v3098 = vmul.f32 %v3093, 1.442695
    %v3099 = vpow.pop %v3098
    %v3100 = vmul.f32 %v3094, 1.442695
    %v3101 = vpow.pop %v3100
    %v3102 = vmul.f32 %v3095, 1.442695
    %v3103 = vpow.pop %v3102
    %v3104 = vsel %vm730, %v3097, 0.0
    %3105 = vadd.xlane.f32.xlu0 %v3104
    %v3106 = vpop.xlane.xlu0 %3105
    %v3107 = vsel %vm730, %v3099, 0.0
    %3108 = vadd.xlane.f32.xlu0 %v3107
    %v3109 = vpop.xlane.xlu0 %3108
    %v3110 = vsel %vm730, %v3101, 0.0
    %3111 = vadd.xlane.f32.xlu0 %v3110
    %v3112 = vpop.xlane.xlu0 %3111
    %v3113 = vsel %vm740, %v3103, 0.0
    %3114 = vadd.xlane.f32.xlu0 %v3113
    %v3115 = vpop.xlane.xlu0 %3114
    %v3116 = vrcp.pop %v3106
    %v3117 = vrcp.pop %v3109
    %v3118 = vrcp.pop %v3112
    %v3119 = vrcp.pop %v3115
    %v3120 = vmul.f32 %v3097, %v3116
    %v3121 = vmul.f32 %v3099, %v3117
    %v3122 = vmul.f32 %v3101, %v3118
    %v3123 = vmul.f32 %v3103, %v3119
    %v3124 = vpack.c.bf16 %v3121, %v3120
    %v3125 = vpack.c.bf16 %v3123, %v3122
    %3128 = vrot.lane.b32.xlu0 %v2920, 112
    %v3129 = vpop.permute.xlu0 %3128
    %3130 = vrot.lane.b32.xlu0 %v2921, 112
    %v3131 = vpop.permute.xlu0 %3130
    %v3134 = vsel %vm730, %v3124, 0
    %v3137 = vsel %vm730, %v3125, 0
    %v3140 = vand.u32 %v3131, %v786
    %3142 = vmatpush.bf16.msra.mxu0 0
    %3143 = vmatpush.bf16.msra.mxu0 0
    %3144 = vmatpush.bf16.msra.mxu0 0
    %3145 = vmatpush.bf16.msra.mxu0 0
    %3146 = vmatpush.bf16.msra.mxu0 0
    %3147 = vmatpush.bf16.msra.mxu0 0
    %3148 = vmatpush.bf16.msra.mxu0 %v3140
    %3149 = vmatpush.bf16.msra.mxu0 %v3129
    %3150 = vmatmul.bf16.gmra.mxu0 %v3134
    %v3151 = vpop.f32.mrf.mxu0
    %v3152 = vadd.f32 0.0, %v3151
    %v3153 = vpop.f32.mrf.mxu0
    %v3154 = vadd.f32 0.0, %v3153
    %3155 = vmatmul.bf16.gmra.mxu0 %v3137
    %v3156 = vpop.f32.mrf.mxu0
    %v3157 = vadd.f32 0.0, %v3156
    %v3158 = vpop.f32.mrf.mxu0
    %v3159 = vadd.f32 0.0, %v3158
    %3160 = vdwg.mxu0
    %3161 = vrot.lane.b32.xlu0 %v2918, 96
    %v3162 = vpop.permute.xlu0 %3161
    %3163 = vrot.lane.b32.xlu0 %v2919, 96
    %v3164 = vpop.permute.xlu0 %3163
    %3165 = vrot.lane.b32.xlu0 %v2918, 32
    %v3166 = vpop.permute.xlu0 %3165
    %3167 = vrot.lane.b32.xlu0 %v2919, 32
    %v3168 = vpop.permute.xlu0 %3167
    %v3170 = vsel %vm694, %v3162, 0
    %v3173 = vsel %vm694, %v3164, 0
    %v3176 = vsel %vm694, %v3166, 0
    %v3179 = vsel %vm694, %v3168, 0
    %3181 = vmatpush.bf16.xpose.msra.mxu0 0
    %3182 = vmatpush.bf16.xpose.msra.mxu0 0
    %3183 = vmatpush.bf16.xpose.msra.mxu0 0
    %3184 = vmatpush.bf16.xpose.msra.mxu0 0
    %3185 = vmatpush.bf16.xpose.msra.mxu0 0
    %3186 = vmatpush.bf16.xpose.msra.mxu0 0
    %3187 = vmatpush.bf16.xpose.msra.mxu0 %v3179
    %3188 = vmatpush.bf16.xpose.msra.mxu0 %v3176
    %3189 = vmatmul.bf16.gmra.mxu0 %v3170
    %v3190 = vpop.f32.mrf.mxu0
    %v3191 = vadd.f32 0.0, %v3190
    %v3192 = vpop.f32.mrf.mxu0
    %v3193 = vadd.f32 0.0, %v3192
    %3194 = vmatmul.bf16.gmra.mxu0 %v3173
    %v3195 = vpop.f32.mrf.mxu0
    %v3196 = vadd.f32 0.0, %v3195
    %v3197 = vpop.f32.mrf.mxu0
    %v3198 = vadd.f32 0.0, %v3197
    %3199 = vdwg.mxu0
    %v3200 = vmul.f32 %v3191, 0.25
    %v3201 = vmul.f32 %v3193, 0.25
    %v3202 = vmul.f32 %v3196, 0.25
    %v3203 = vmul.f32 %v3198, 0.25
    %v3204 = vsel %vm730, %v3200, -inf
    %3205 = vmax.xlane.f32.xlu0 %v3204
    %v3206 = vpop.xlane.xlu0 %3205
    %v3207 = vsel %vm730, %v3201, -inf
    %3208 = vmax.xlane.f32.xlu0 %v3207
    %v3209 = vpop.xlane.xlu0 %3208
    %v3210 = vsel %vm730, %v3202, -inf
    %3211 = vmax.xlane.f32.xlu0 %v3210
    %v3212 = vpop.xlane.xlu0 %3211
    %v3213 = vsel %vm740, %v3203, -inf
    %3214 = vmax.xlane.f32.xlu0 %v3213
    %v3215 = vpop.xlane.xlu0 %3214
    %v3216 = vsub.f32 %v3200, %v3206
    %v3217 = vsub.f32 %v3201, %v3209
    %v3218 = vsub.f32 %v3202, %v3212
    %v3219 = vsub.f32 %v3203, %v3215
    %v3220 = vmul.f32 %v3216, 1.442695
    %v3221 = vpow.pop %v3220
    %v3222 = vmul.f32 %v3217, 1.442695
    %v3223 = vpow.pop %v3222
    %v3224 = vmul.f32 %v3218, 1.442695
    %v3225 = vpow.pop %v3224
    %v3226 = vmul.f32 %v3219, 1.442695
    %v3227 = vpow.pop %v3226
    %v3228 = vsel %vm730, %v3221, 0.0
    %3229 = vadd.xlane.f32.xlu0 %v3228
    %v3230 = vpop.xlane.xlu0 %3229
    %v3231 = vsel %vm730, %v3223, 0.0
    %3232 = vadd.xlane.f32.xlu0 %v3231
    %v3233 = vpop.xlane.xlu0 %3232
    %v3234 = vsel %vm730, %v3225, 0.0
    %3235 = vadd.xlane.f32.xlu0 %v3234
    %v3236 = vpop.xlane.xlu0 %3235
    %v3237 = vsel %vm740, %v3227, 0.0
    %3238 = vadd.xlane.f32.xlu0 %v3237
    %v3239 = vpop.xlane.xlu0 %3238
    %v3240 = vrcp.pop %v3230
    %v3241 = vrcp.pop %v3233
    %v3242 = vrcp.pop %v3236
    %v3243 = vrcp.pop %v3239
    %v3244 = vmul.f32 %v3221, %v3240
    %v3245 = vmul.f32 %v3223, %v3241
    %v3246 = vmul.f32 %v3225, %v3242
    %v3247 = vmul.f32 %v3227, %v3243
    %v3248 = vpack.c.bf16 %v3245, %v3244
    %v3249 = vpack.c.bf16 %v3247, %v3246
    %3250 = vrot.lane.b32.xlu0 %v2920, 96
    %v3251 = vpop.permute.xlu0 %3250
    %3252 = vrot.lane.b32.xlu0 %v2921, 96
    %v3253 = vpop.permute.xlu0 %3252
    %v3256 = vsel %vm730, %v3248, 0
    %v3259 = vsel %vm730, %v3249, 0
    %v3262 = vand.u32 %v3253, %v786
    %3264 = vmatpush.bf16.msra.mxu0 0
    %3265 = vmatpush.bf16.msra.mxu0 0
    %3266 = vmatpush.bf16.msra.mxu0 0
    %3267 = vmatpush.bf16.msra.mxu0 0
    %3268 = vmatpush.bf16.msra.mxu0 0
    %3269 = vmatpush.bf16.msra.mxu0 0
    %3270 = vmatpush.bf16.msra.mxu0 %v3262
    %3271 = vmatpush.bf16.msra.mxu0 %v3251
    %3272 = vmatmul.bf16.gmra.mxu0 %v3256
    %v3273 = vpop.f32.mrf.mxu0
    %v3274 = vadd.f32 0.0, %v3273
    %v3275 = vpop.f32.mrf.mxu0
    %v3276 = vadd.f32 0.0, %v3275
    %3277 = vmatmul.bf16.gmra.mxu0 %v3259
    %v3278 = vpop.f32.mrf.mxu0
    %v3279 = vadd.f32 0.0, %v3278
    %v3280 = vpop.f32.mrf.mxu0
    %v3281 = vadd.f32 0.0, %v3280
    %3282 = vdwg.mxu0
    %3283 = vrot.lane.b32.xlu0 %v2918, 80
    %v3284 = vpop.permute.xlu0 %3283
    %3285 = vrot.lane.b32.xlu0 %v2919, 80
    %v3286 = vpop.permute.xlu0 %3285
    %3287 = vrot.lane.b32.xlu0 %v2918, 16
    %v3288 = vpop.permute.xlu0 %3287
    %3289 = vrot.lane.b32.xlu0 %v2919, 16
    %v3290 = vpop.permute.xlu0 %3289
    %v3292 = vsel %vm694, %v3284, 0
    %v3295 = vsel %vm694, %v3286, 0
    %v3298 = vsel %vm694, %v3288, 0
    %v3301 = vsel %vm694, %v3290, 0
    %3303 = vmatpush.bf16.xpose.msra.mxu0 0
    %3304 = vmatpush.bf16.xpose.msra.mxu0 0
    %3305 = vmatpush.bf16.xpose.msra.mxu0 0
    %3306 = vmatpush.bf16.xpose.msra.mxu0 0
    %3307 = vmatpush.bf16.xpose.msra.mxu0 0
    %3308 = vmatpush.bf16.xpose.msra.mxu0 0
    %3309 = vmatpush.bf16.xpose.msra.mxu0 %v3301
    %3310 = vmatpush.bf16.xpose.msra.mxu0 %v3298
    %3311 = vmatmul.bf16.gmra.mxu0 %v3292
    %v3312 = vpop.f32.mrf.mxu0
    %v3313 = vadd.f32 0.0, %v3312
    %v3314 = vpop.f32.mrf.mxu0
    %v3315 = vadd.f32 0.0, %v3314
    %3316 = vmatmul.bf16.gmra.mxu0 %v3295
    %v3317 = vpop.f32.mrf.mxu0
    %v3318 = vadd.f32 0.0, %v3317
    %v3319 = vpop.f32.mrf.mxu0
    %v3320 = vadd.f32 0.0, %v3319
    %3321 = vdwg.mxu0
    %v3322 = vmul.f32 %v3313, 0.25
    %v3323 = vmul.f32 %v3315, 0.25
    %v3324 = vmul.f32 %v3318, 0.25
    %v3325 = vmul.f32 %v3320, 0.25
    %v3326 = vsel %vm730, %v3322, -inf
    %3327 = vmax.xlane.f32.xlu0 %v3326
    %v3328 = vpop.xlane.xlu0 %3327
    %v3329 = vsel %vm730, %v3323, -inf
    %3330 = vmax.xlane.f32.xlu0 %v3329
    %v3331 = vpop.xlane.xlu0 %3330
    %v3332 = vsel %vm730, %v3324, -inf
    %3333 = vmax.xlane.f32.xlu0 %v3332
    %v3334 = vpop.xlane.xlu0 %3333
    %v3335 = vsel %vm740, %v3325, -inf
    %3336 = vmax.xlane.f32.xlu0 %v3335
    %v3337 = vpop.xlane.xlu0 %3336
    %v3338 = vsub.f32 %v3322, %v3328
    %v3339 = vsub.f32 %v3323, %v3331
    %v3340 = vsub.f32 %v3324, %v3334
    %v3341 = vsub.f32 %v3325, %v3337
    %v3342 = vmul.f32 %v3338, 1.442695
    %v3343 = vpow.pop %v3342
    %v3344 = vmul.f32 %v3339, 1.442695
    %v3345 = vpow.pop %v3344
    %v3346 = vmul.f32 %v3340, 1.442695
    %v3347 = vpow.pop %v3346
    %v3348 = vmul.f32 %v3341, 1.442695
    %v3349 = vpow.pop %v3348
    %v3350 = vsel %vm730, %v3343, 0.0
    %3351 = vadd.xlane.f32.xlu0 %v3350
    %v3352 = vpop.xlane.xlu0 %3351
    %v3353 = vsel %vm730, %v3345, 0.0
    %3354 = vadd.xlane.f32.xlu0 %v3353
    %v3355 = vpop.xlane.xlu0 %3354
    %v3356 = vsel %vm730, %v3347, 0.0
    %3357 = vadd.xlane.f32.xlu0 %v3356
    %v3358 = vpop.xlane.xlu0 %3357
    %v3359 = vsel %vm740, %v3349, 0.0
    %3360 = vadd.xlane.f32.xlu0 %v3359
    %v3361 = vpop.xlane.xlu0 %3360
    %v3362 = vrcp.pop %v3352
    %v3363 = vrcp.pop %v3355
    %v3364 = vrcp.pop %v3358
    %v3365 = vrcp.pop %v3361
    %v3366 = vmul.f32 %v3343, %v3362
    %v3367 = vmul.f32 %v3345, %v3363
    %v3368 = vmul.f32 %v3347, %v3364
    %v3369 = vmul.f32 %v3349, %v3365
    %v3370 = vpack.c.bf16 %v3367, %v3366
    %v3371 = vpack.c.bf16 %v3369, %v3368
    %3372 = vrot.lane.b32.xlu0 %v2920, 80
    %v3373 = vpop.permute.xlu0 %3372
    %3374 = vrot.lane.b32.xlu0 %v2921, 80
    %v3375 = vpop.permute.xlu0 %3374
    %v3378 = vsel %vm730, %v3370, 0
    %v3381 = vsel %vm730, %v3371, 0
    %v3384 = vand.u32 %v3375, %v786
    %3386 = vmatpush.bf16.msra.mxu0 0
    %3387 = vmatpush.bf16.msra.mxu0 0
    %3388 = vmatpush.bf16.msra.mxu0 0
    %3389 = vmatpush.bf16.msra.mxu0 0
    %3390 = vmatpush.bf16.msra.mxu0 0
    %3391 = vmatpush.bf16.msra.mxu0 0
    %3392 = vmatpush.bf16.msra.mxu0 %v3384
    %3393 = vmatpush.bf16.msra.mxu0 %v3373
    %3394 = vmatmul.bf16.gmra.mxu0 %v3378
    %v3395 = vpop.f32.mrf.mxu0
    %v3396 = vadd.f32 0.0, %v3395
    %v3397 = vpop.f32.mrf.mxu0
    %v3398 = vadd.f32 0.0, %v3397
    %3399 = vmatmul.bf16.gmra.mxu0 %v3381
    %v3400 = vpop.f32.mrf.mxu0
    %v3401 = vadd.f32 0.0, %v3400
    %v3402 = vpop.f32.mrf.mxu0
    %v3403 = vadd.f32 0.0, %v3402
    %3404 = vdwg.mxu0
    %3409 = vrot.lane.b32.xlu0 %v3152, 16
    %v3410 = vpop.permute.xlu0 %3409
    %3411 = vrot.lane.b32.xlu0 %v3154, 16
    %v3412 = vpop.permute.xlu0 %3411
    %3413 = vrot.lane.b32.xlu0 %v3157, 16
    %v3414 = vpop.permute.xlu0 %3413
    %3415 = vrot.lane.b32.xlu0 %v3159, 16
    %v3416 = vpop.permute.xlu0 %3415
    %3425 = vrot.lane.b32.xlu0 %v3274, 32
    %v3426 = vpop.permute.xlu0 %3425
    %3427 = vrot.lane.b32.xlu0 %v3276, 32
    %v3428 = vpop.permute.xlu0 %3427
    %3429 = vrot.lane.b32.xlu0 %v3279, 32
    %v3430 = vpop.permute.xlu0 %3429
    %3431 = vrot.lane.b32.xlu0 %v3281, 32
    %v3432 = vpop.permute.xlu0 %3431
    %3441 = vrot.lane.b32.xlu0 %v3396, 48
    %v3442 = vpop.permute.xlu0 %3441
    %3443 = vrot.lane.b32.xlu0 %v3398, 48
    %v3444 = vpop.permute.xlu0 %3443
    %3445 = vrot.lane.b32.xlu0 %v3401, 48
    %v3446 = vpop.permute.xlu0 %3445
    %3447 = vrot.lane.b32.xlu0 %v3403, 48
    %v3448 = vpop.permute.xlu0 %3447
    %v3453 = vsel %vm694, %v3028, %v3410
    %v3454 = vsel %vm694, %v3030, %v3412
    %v3455 = vsel %vm694, %v3033, %v3414
    %v3456 = vsel %vm694, %v3035, %v3416
    %v3457 = vsel %vm1229, %v3453, %v3426
    %v3458 = vsel %vm1229, %v3454, %v3428
    %v3459 = vsel %vm1229, %v3455, %v3430
    %v3460 = vsel %vm1229, %v3456, %v3432
    %v3461 = vsel %vm1234, %v3457, %v3442
    %v3462 = vsel %vm1234, %v3458, %v3444
    %v3463 = vsel %vm1234, %v3459, %v3446
    %v3464 = vsel %vm1234, %v3460, %v3448
    %v3465 = vpack.c.bf16 %v3462, %v3461
    %v3466 = vpack.c.bf16 %v3464, %v3463
    %v3467 = vld [vmem:[%s6] sm:$0xf]
    %v3468 = vld [vmem:[%s6 + $0x4] sm:$0xf]
    %v3469 = vld [vmem:[%s6 + $0x8] sm:$0xf]
    %v3470 = vld [vmem:[%s6 + $0xc] sm:$0xf]
    %v3471 = vld [vmem:[%s6 + $0x10] sm:$0xf]
    %v3472 = vld [vmem:[%s6 + $0x14] sm:$0xf]
    %v3473 = vld [vmem:[%s6 + $0x18] sm:$0xf]
    %v3474 = vld [vmem:[%s6 + $0x1c] sm:$0xf]
    %v3483 = vunpack.c.l.b16 %v3467
    %v3484 = vunpack.c.l.b16 %v3468
    %v3485 = vunpack.c.l.b16 %v3469
    %v3486 = vunpack.c.l.b16 %v3470
    %v3487 = vunpack.c.l.b16 %v3471
    %v3488 = vunpack.c.l.b16 %v3472
    %v3489 = vunpack.c.l.b16 %v3473
    %v3490 = vunpack.c.l.b16 %v3474
    %v3491 = vpack.c.b16 %v3484, %v3483
    %v3492 = vpack.c.b16 %v3486, %v3485
    %v3493 = vpack.c.b16 %v3488, %v3487
    %v3494 = vpack.c.b16 %v3490, %v3489
    %v3500 = vsel %vm115, %v3465, 0
    %v3503 = vsel %vm115, %v3466, 0
    %3505 = vmatpush.bf16.msra.mxu0 0
    %3506 = vmatpush.bf16.msra.mxu0 0
    %3507 = vmatpush.bf16.msra.mxu0 0
    %3508 = vmatpush.bf16.msra.mxu0 0
    %3509 = vmatpush.bf16.msra.mxu0 %v3494
    %3510 = vmatpush.bf16.msra.mxu0 %v3493
    %3511 = vmatpush.bf16.msra.mxu0 %v3492
    %3512 = vmatpush.bf16.msra.mxu0 %v3491
    %3513 = vmatmul.bf16.gmra.mxu0 %v3500
    %v3514 = vpop.f32.mrf.mxu0
    %v3515 = vadd.f32 0.0, %v3514
    %v3516 = vpop.f32.mrf.mxu0
    %v3517 = vadd.f32 0.0, %v3516
    %3518 = vmatmul.bf16.gmra.mxu0 %v3503
    %v3519 = vpop.f32.mrf.mxu0
    %v3520 = vadd.f32 0.0, %v3519
    %v3521 = vpop.f32.mrf.mxu0
    %v3522 = vadd.f32 0.0, %v3521
    %3523 = vdwg.mxu0
    %v3524 = vadd.f32 %v2732, %v3515
    %v3525 = vadd.f32 %v2733, %v3517
    %v3526 = vadd.f32 %v2734, %v3520
    %v3527 = vadd.f32 %v477, %v3522
    %v3528 = vperm.slane %v2737, 0
    %v3529 = vadd.f32 %v3524, %v3528
    %v3530 = vadd.f32 %v3525, %v3528
    %v3531 = vadd.f32 %v3526, %v3528
    %v3532 = vadd.f32 %v3527, %v3528
    %v3533 = vsel %vm115, %v3529, 0.0
    %3534 = vadd.xlane.f32.xlu0 %v3533
    %v3535 = vpop.xlane.xlu0 %3534
    %v3536 = vsel %vm115, %v3530, 0.0
    %3537 = vadd.xlane.f32.xlu0 %v3536
    %v3538 = vpop.xlane.xlu0 %3537
    %v3539 = vsel %vm115, %v3531, 0.0
    %3540 = vadd.xlane.f32.xlu0 %v3539
    %v3541 = vpop.xlane.xlu0 %3540
    %v3542 = vsel %vm495, %v3532, 0.0
    %3543 = vadd.xlane.f32.xlu0 %v3542
    %v3544 = vpop.xlane.xlu0 %3543
    %v3545 = vmul.f32 %v3535, %v128
    %v3546 = vmul.f32 %v3538, %v128
    %v3547 = vmul.f32 %v3541, %v128
    %v3548 = vmul.f32 %v3544, %v128
    %v3549 = vsub.f32 %v3529, %v3545
    %v3550 = vsub.f32 %v3530, %v3546
    %v3551 = vsub.f32 %v3531, %v3547
    %v3552 = vsub.f32 %v3532, %v3548
    %v3553 = vmul.f32 %v3549, %v3549
    %v3554 = vmul.f32 %v3550, %v3550
    %v3555 = vmul.f32 %v3551, %v3551
    %v3556 = vmul.f32 %v3552, %v3552
    %v3557 = vsel %vm115, %v3553, 0.0
    %3558 = vadd.xlane.f32.xlu0 %v3557
    %v3559 = vpop.xlane.xlu0 %3558
    %v3560 = vsel %vm115, %v3554, 0.0
    %3561 = vadd.xlane.f32.xlu0 %v3560
    %v3562 = vpop.xlane.xlu0 %3561
    %v3563 = vsel %vm115, %v3555, 0.0
    %3564 = vadd.xlane.f32.xlu0 %v3563
    %v3565 = vpop.xlane.xlu0 %3564
    %v3566 = vsel %vm495, %v3556, 0.0
    %3567 = vadd.xlane.f32.xlu0 %v3566
    %v3568 = vpop.xlane.xlu0 %3567
    %v3569 = vmul.f32 %v3559, %v128
    %v3570 = vmul.f32 %v3562, %v128
    %v3571 = vmul.f32 %v3565, %v128
    %v3572 = vmul.f32 %v3568, %v128
    %v3573 = vadd.f32 %v3569, 1e-05
    %v3574 = vadd.f32 %v3570, 1e-05
    %v3575 = vadd.f32 %v3571, 1e-05
    %v3576 = vadd.f32 %v3572, 1e-05
    %v3577 = vrsqrt.pop %v3573
    %v3578 = vmul.f32 %v3577, %v3573
    %v3579 = vmul.f32 %v3578, %v3577
    %v3580 = vmul.f32 0.5, %v3579
    %v3581 = vsub.f32 1.5, %v3580
    %v3582 = vmul.f32 %v3577, %v3581
    %vm3583 = vweird.f32 %v3573
    %vm3584 = vweird.f32 %v3577
    %vm3585 = vmor %vm3583, %vm3584
    %v3586 = vsel %vm3585, %v3577, %v3582
    %v3587 = vrsqrt.pop %v3574
    %v3588 = vmul.f32 %v3587, %v3574
    %v3589 = vmul.f32 %v3588, %v3587
    %v3590 = vmul.f32 0.5, %v3589
    %v3591 = vsub.f32 1.5, %v3590
    %v3592 = vmul.f32 %v3587, %v3591
    %vm3593 = vweird.f32 %v3574
    %vm3594 = vweird.f32 %v3587
    %vm3595 = vmor %vm3593, %vm3594
    %v3596 = vsel %vm3595, %v3587, %v3592
    %v3597 = vrsqrt.pop %v3575
    %v3598 = vmul.f32 %v3597, %v3575
    %v3599 = vmul.f32 %v3598, %v3597
    %v3600 = vmul.f32 0.5, %v3599
    %v3601 = vsub.f32 1.5, %v3600
    %v3602 = vmul.f32 %v3597, %v3601
    %vm3603 = vweird.f32 %v3575
    %vm3604 = vweird.f32 %v3597
    %vm3605 = vmor %vm3603, %vm3604
    %v3606 = vsel %vm3605, %v3597, %v3602
    %v3607 = vrsqrt.pop %v3576
    %v3608 = vmul.f32 %v3607, %v3576
    %v3609 = vmul.f32 %v3608, %v3607
    %v3610 = vmul.f32 0.5, %v3609
    %v3611 = vsub.f32 1.5, %v3610
    %v3612 = vmul.f32 %v3607, %v3611
    %vm3613 = vweird.f32 %v3576
    %vm3614 = vweird.f32 %v3607
    %vm3615 = vmor %vm3613, %vm3614
    %v3616 = vsel %vm3615, %v3607, %v3612
    %v3617 = vmul.f32 %v3549, %v3586
    %v3618 = vmul.f32 %v3550, %v3596
    %v3619 = vmul.f32 %v3551, %v3606
    %v3620 = vmul.f32 %v3552, %v3616
    %v3621 = vperm.slane %v2738, 0
    %v3622 = vmul.f32 %v3617, %v3621
    %v3623 = vmul.f32 %v3618, %v3621
    %v3624 = vmul.f32 %v3619, %v3621
    %v3625 = vmul.f32 %v3620, %v3621
    %v3626 = vperm.slane %v2739, 0
    %v3627 = vadd.f32 %v3622, %v3626
    %v3628 = vadd.f32 %v3623, %v3626
    %v3629 = vadd.f32 %v3624, %v3626
    %v3630 = vadd.f32 %v3625, %v3626
    %v3631 = vpack.c.bf16 %v3628, %v3627
    %v3632 = vpack.c.bf16 %v3630, %v3629
    %v3633 = vld [vmem:[%s7] sm:$0xf]
    %v3634 = vld [vmem:[%s7 + $0x4] sm:$0xf]
    %v3635 = vld [vmem:[%s7 + $0x8] sm:$0xf]
    %v3636 = vld [vmem:[%s7 + $0xc] sm:$0xf]
    %v3637 = vld [vmem:[%s7 + $0x10] sm:$0xf]
    %v3638 = vld [vmem:[%s7 + $0x14] sm:$0xf]
    %v3639 = vld [vmem:[%s7 + $0x18] sm:$0xf]
    %v3640 = vld [vmem:[%s7 + $0x1c] sm:$0xf]
    %v3641 = vperm.slane %v2742, 0
    %v3650 = vunpack.c.l.b16 %v3633
    %v3651 = vunpack.c.l.b16 %v3634
    %v3652 = vunpack.c.l.b16 %v3635
    %v3653 = vunpack.c.l.b16 %v3636
    %v3654 = vunpack.c.l.b16 %v3637
    %v3655 = vunpack.c.l.b16 %v3638
    %v3656 = vunpack.c.l.b16 %v3639
    %v3657 = vunpack.c.l.b16 %v3640
    %v3658 = vpack.c.b16 %v3651, %v3650
    %v3659 = vpack.c.b16 %v3653, %v3652
    %v3660 = vpack.c.b16 %v3655, %v3654
    %v3661 = vpack.c.b16 %v3657, %v3656
    %v3667 = vsel %vm115, %v3631, 0
    %v3670 = vsel %vm115, %v3632, 0
    %3672 = vmatpush.bf16.msra.mxu0 0
    %3673 = vmatpush.bf16.msra.mxu0 0
    %3674 = vmatpush.bf16.msra.mxu0 0
    %3675 = vmatpush.bf16.msra.mxu0 0
    %3676 = vmatpush.bf16.msra.mxu0 %v3661
    %3677 = vmatpush.bf16.msra.mxu0 %v3660
    %3678 = vmatpush.bf16.msra.mxu0 %v3659
    %3679 = vmatpush.bf16.msra.mxu0 %v3658
    %3680 = vmatmul.bf16.gmra.mxu0 %v3667
    %v3681 = vpop.f32.mrf.mxu0
    %v3682 = vadd.f32 %v3641, %v3681
    %v3683 = vpop.f32.mrf.mxu0
    %v3684 = vadd.f32 %v3641, %v3683
    %3685 = vmatmul.bf16.gmra.mxu0 %v3670
    %v3686 = vpop.f32.mrf.mxu0
    %v3687 = vadd.f32 %v3641, %v3686
    %v3688 = vpop.f32.mrf.mxu0
    %v3689 = vadd.f32 %v3641, %v3688
    %3690 = vdwg.mxu0
    %v3691 = vmul.f32 %v3682, 0.5
    %v3692 = vmul.f32 %v3684, 0.5
    %v3693 = vmul.f32 %v3687, 0.5
    %v3694 = vmul.f32 %v3689, 0.5
    %v3695 = vmul.f32 %v3682, 0.044715
    %v3696 = vmul.f32 %v3684, 0.044715
    %v3697 = vmul.f32 %v3687, 0.044715
    %v3698 = vmul.f32 %v3689, 0.044715
    %v3699 = vmul.f32 %v3695, %v3682
    %v3700 = vmul.f32 %v3696, %v3684
    %v3701 = vmul.f32 %v3697, %v3687
    %v3702 = vmul.f32 %v3698, %v3689
    %v3703 = vmul.f32 %v3699, %v3682
    %v3704 = vmul.f32 %v3700, %v3684
    %v3705 = vmul.f32 %v3701, %v3687
    %v3706 = vmul.f32 %v3702, %v3689
    %v3707 = vadd.f32 %v3682, %v3703
    %v3708 = vadd.f32 %v3684, %v3704
    %v3709 = vadd.f32 %v3687, %v3705
    %v3710 = vadd.f32 %v3689, %v3706
    %v3711 = vmul.f32 %v3707, 0.7978846
    %v3712 = vmul.f32 %v3708, 0.7978846
    %v3713 = vmul.f32 %v3709, 0.7978846
    %v3714 = vmul.f32 %v3710, 0.7978846
    %v3715 = vtanh.pop %v3711
    %v3716 = vtanh.pop %v3712
    %v3717 = vtanh.pop %v3713
    %v3718 = vtanh.pop %v3714
    %v3719 = vadd.f32 %v3715, 1.0
    %v3720 = vadd.f32 %v3716, 1.0
    %v3721 = vadd.f32 %v3717, 1.0
    %v3722 = vadd.f32 %v3718, 1.0
    %v3723 = vmul.f32 %v3691, %v3719
    %v3724 = vmul.f32 %v3692, %v3720
    %v3725 = vmul.f32 %v3693, %v3721
    %v3726 = vmul.f32 %v3694, %v3722
    %v3727 = vpack.c.bf16 %v3724, %v3723
    %v3728 = vpack.c.bf16 %v3726, %v3725
    %v3729 = vld [vmem:[%s8] sm:$0xf]
    %v3730 = vld [vmem:[%s8 + $0x4] sm:$0xf]
    %v3731 = vld [vmem:[%s8 + $0x8] sm:$0xf]
    %v3732 = vld [vmem:[%s8 + $0xc] sm:$0xf]
    %v3733 = vld [vmem:[%s8 + $0x10] sm:$0xf]
    %v3734 = vld [vmem:[%s8 + $0x14] sm:$0xf]
    %v3735 = vld [vmem:[%s8 + $0x18] sm:$0xf]
    %v3736 = vld [vmem:[%s8 + $0x1c] sm:$0xf]
    %v3737 = vld [vmem:[%s8 + $0x20] sm:$0xf]
    %v3738 = vld [vmem:[%s8 + $0x24] sm:$0xf]
    %v3739 = vld [vmem:[%s8 + $0x28] sm:$0xf]
    %v3740 = vld [vmem:[%s8 + $0x2c] sm:$0xf]
    %v3741 = vld [vmem:[%s8 + $0x30] sm:$0xf]
    %v3742 = vld [vmem:[%s8 + $0x34] sm:$0xf]
    %v3743 = vld [vmem:[%s8 + $0x38] sm:$0xf]
    %v3744 = vld [vmem:[%s8 + $0x3c] sm:$0xf]
    %v3761 = vunpack.c.l.b16 %v3729
    %v3762 = vunpack.c.l.b16 %v3730
    %v3763 = vunpack.c.l.b16 %v3731
    %v3764 = vunpack.c.l.b16 %v3732
    %v3765 = vunpack.c.l.b16 %v3733
    %v3766 = vunpack.c.l.b16 %v3734
    %v3767 = vunpack.c.l.b16 %v3735
    %v3768 = vunpack.c.l.b16 %v3736
    %v3769 = vunpack.c.l.b16 %v3737
    %v3770 = vunpack.c.l.b16 %v3738
    %v3771 = vunpack.c.l.b16 %v3739
    %v3772 = vunpack.c.l.b16 %v3740
    %v3773 = vunpack.c.l.b16 %v3741
    %v3774 = vunpack.c.l.b16 %v3742
    %v3775 = vunpack.c.l.b16 %v3743
    %v3776 = vunpack.c.l.b16 %v3744
    %v3777 = vpack.c.b16 %v3762, %v3761
    %v3778 = vpack.c.b16 %v3764, %v3763
    %v3779 = vpack.c.b16 %v3766, %v3765
    %v3780 = vpack.c.b16 %v3768, %v3767
    %v3781 = vpack.c.b16 %v3770, %v3769
    %v3782 = vpack.c.b16 %v3772, %v3771
    %v3783 = vpack.c.b16 %v3774, %v3773
    %v3784 = vpack.c.b16 %v3776, %v3775
    %3793 = vmatpush.bf16.msra.mxu0 %v3784
    %3794 = vmatpush.bf16.msra.mxu0 %v3783
    %3795 = vmatpush.bf16.msra.mxu0 %v3782
    %3796 = vmatpush.bf16.msra.mxu0 %v3781
    %3797 = vmatpush.bf16.msra.mxu0 %v3780
    %3798 = vmatpush.bf16.msra.mxu0 %v3779
    %3799 = vmatpush.bf16.msra.mxu0 %v3778
    %3800 = vmatpush.bf16.msra.mxu0 %v3777
    %3801 = vmatmul.bf16.gmra.mxu0 %v3727
    %v3802 = vpop.f32.mrf.mxu0
    %v3803 = vadd.f32 0.0, %v3802
    %v3804 = vpop.f32.mrf.mxu0
    %v3805 = vadd.f32 0.0, %v3804
    %3806 = vmatmul.bf16.gmra.mxu0 %v3728
    %v3807 = vpop.f32.mrf.mxu0
    %v3808 = vadd.f32 0.0, %v3807
    %v3809 = vpop.f32.mrf.mxu0
    %v3810 = vadd.f32 0.0, %v3809
    %3811 = vdwg.mxu0
    %v3812 = vadd.f32 %v3529, %v3803
    %v3813 = vadd.f32 %v3530, %v3805
    %v3814 = vadd.f32 %v3531, %v3808
    %v3815 = vadd.f32 %v3532, %v3810
    %v3816 = vperm.slane %v2740, 0
    %v3817 = vadd.f32 %v3812, %v3816
    %v3818 = vadd.f32 %v3813, %v3816
    %v3819 = vadd.f32 %v3814, %v3816
    %v3820 = vadd.f32 %v3815, %v3816
    %v3821 = vld [vmem:[%s4 + $0x37] sm:$0x1]
    %v3822 = vld [vmem:[%s4 + $0x38] sm:$0x1]
    %v3823 = vld [vmem:[%s4 + $0x39] sm:$0x1]
    %v3824 = vld [vmem:[%s4 + $0x3a] sm:$0x1]
    %v3825 = vld [vmem:[%s4 + $0x3b] sm:$0x1]
    %v3826 = vld [vmem:[%s4 + $0x3c] sm:$0x1]
    %v3827 = vld [vmem:[%s1601] ss:$4 sm:$0x3]
    %v3828 = vld [vmem:[%s9 + $0x3] sm:$0x1]
    %v3829 = vsel %vm115, %v3817, 0.0
    %3830 = vadd.xlane.f32.xlu0 %v3829
    %v3831 = vpop.xlane.xlu0 %3830
    %v3832 = vsel %vm115, %v3818, 0.0
    %3833 = vadd.xlane.f32.xlu0 %v3832
    %v3834 = vpop.xlane.xlu0 %3833
    %v3835 = vsel %vm115, %v3819, 0.0
    %3836 = vadd.xlane.f32.xlu0 %v3835
    %v3837 = vpop.xlane.xlu0 %3836
    %v3838 = vsel %vm495, %v3820, 0.0
    %3839 = vadd.xlane.f32.xlu0 %v3838
    %v3840 = vpop.xlane.xlu0 %3839
    %v3841 = vmul.f32 %v3831, %v128
    %v3842 = vmul.f32 %v3834, %v128
    %v3843 = vmul.f32 %v3837, %v128
    %v3844 = vmul.f32 %v3840, %v128
    %v3845 = vsub.f32 %v3817, %v3841
    %v3846 = vsub.f32 %v3818, %v3842
    %v3847 = vsub.f32 %v3819, %v3843
    %v3848 = vsub.f32 %v3820, %v3844
    %v3849 = vmul.f32 %v3845, %v3845
    %v3850 = vmul.f32 %v3846, %v3846
    %v3851 = vmul.f32 %v3847, %v3847
    %v3852 = vmul.f32 %v3848, %v3848
    %v3853 = vsel %vm115, %v3849, 0.0
    %3854 = vadd.xlane.f32.xlu0 %v3853
    %v3855 = vpop.xlane.xlu0 %3854
    %v3856 = vsel %vm115, %v3850, 0.0
    %3857 = vadd.xlane.f32.xlu0 %v3856
    %v3858 = vpop.xlane.xlu0 %3857
    %v3859 = vsel %vm115, %v3851, 0.0
    %3860 = vadd.xlane.f32.xlu0 %v3859
    %v3861 = vpop.xlane.xlu0 %3860
    %v3862 = vsel %vm495, %v3852, 0.0
    %3863 = vadd.xlane.f32.xlu0 %v3862
    %v3864 = vpop.xlane.xlu0 %3863
    %v3865 = vmul.f32 %v3855, %v128
    %v3866 = vmul.f32 %v3858, %v128
    %v3867 = vmul.f32 %v3861, %v128
    %v3868 = vmul.f32 %v3864, %v128
    %v3869 = vadd.f32 %v3865, 1e-05
    %v3870 = vadd.f32 %v3866, 1e-05
    %v3871 = vadd.f32 %v3867, 1e-05
    %v3872 = vadd.f32 %v3868, 1e-05
    %v3873 = vrsqrt.pop %v3869
    %v3874 = vmul.f32 %v3873, %v3869
    %v3875 = vmul.f32 %v3874, %v3873
    %v3876 = vmul.f32 0.5, %v3875
    %v3877 = vsub.f32 1.5, %v3876
    %v3878 = vmul.f32 %v3873, %v3877
    %vm3879 = vweird.f32 %v3869
    %vm3880 = vweird.f32 %v3873
    %vm3881 = vmor %vm3879, %vm3880
    %v3882 = vsel %vm3881, %v3873, %v3878
    %v3883 = vrsqrt.pop %v3870
    %v3884 = vmul.f32 %v3883, %v3870
    %v3885 = vmul.f32 %v3884, %v3883
    %v3886 = vmul.f32 0.5, %v3885
    %v3887 = vsub.f32 1.5, %v3886
    %v3888 = vmul.f32 %v3883, %v3887
    %vm3889 = vweird.f32 %v3870
    %vm3890 = vweird.f32 %v3883
    %vm3891 = vmor %vm3889, %vm3890
    %v3892 = vsel %vm3891, %v3883, %v3888
    %v3893 = vrsqrt.pop %v3871
    %v3894 = vmul.f32 %v3893, %v3871
    %v3895 = vmul.f32 %v3894, %v3893
    %v3896 = vmul.f32 0.5, %v3895
    %v3897 = vsub.f32 1.5, %v3896
    %v3898 = vmul.f32 %v3893, %v3897
    %vm3899 = vweird.f32 %v3871
    %vm3900 = vweird.f32 %v3893
    %vm3901 = vmor %vm3899, %vm3900
    %v3902 = vsel %vm3901, %v3893, %v3898
    %v3903 = vrsqrt.pop %v3872
    %v3904 = vmul.f32 %v3903, %v3872
    %v3905 = vmul.f32 %v3904, %v3903
    %v3906 = vmul.f32 0.5, %v3905
    %v3907 = vsub.f32 1.5, %v3906
    %v3908 = vmul.f32 %v3903, %v3907
    %vm3909 = vweird.f32 %v3872
    %vm3910 = vweird.f32 %v3903
    %vm3911 = vmor %vm3909, %vm3910
    %v3912 = vsel %vm3911, %v3903, %v3908
    %v3913 = vmul.f32 %v3845, %v3882
    %v3914 = vmul.f32 %v3846, %v3892
    %v3915 = vmul.f32 %v3847, %v3902
    %v3916 = vmul.f32 %v3848, %v3912
    %v3917 = vperm.slane %v3821, 0
    %v3918 = vmul.f32 %v3913, %v3917
    %v3919 = vmul.f32 %v3914, %v3917
    %v3920 = vmul.f32 %v3915, %v3917
    %v3921 = vmul.f32 %v3916, %v3917
    %v3922 = vperm.slane %v3822, 0
    %v3923 = vadd.f32 %v3918, %v3922
    %v3924 = vadd.f32 %v3919, %v3922
    %v3925 = vadd.f32 %v3920, %v3922
    %v3926 = vadd.f32 %v3921, %v3922
    %v3927 = vpack.c.bf16 %v3924, %v3923
    %v3928 = vpack.c.bf16 %v3926, %v3925
    %v3929 = vld [vmem:[%s1704] sm:$0xff]
    %v3930 = vld [vmem:[%s1704 + $0x8] sm:$0xff]
    %v3931 = vld [vmem:[%s1704 + $0x10] sm:$0xff]
    %v3932 = vld [vmem:[%s1704 + $0x18] sm:$0xff]
    %v3933 = vld [vmem:[%s1704 + $0x20] sm:$0xff]
    %v3934 = vld [vmem:[%s1704 + $0x28] sm:$0xff]
    %v3935 = vld [vmem:[%s1704 + $0x30] sm:$0xff]
    %v3936 = vld [vmem:[%s1704 + $0x38] sm:$0xff]
    %v3938 = vperm.slane %v3827, 0
    %v3939 = vperm.slane %v3827, 1
    %v3950 = vunpack.c.l.b16 %v3929
    %v3951 = vunpack.c.h.b16 %v3929
    %v3952 = vunpack.c.l.b16 %v3930
    %v3953 = vunpack.c.h.b16 %v3930
    %v3954 = vunpack.c.l.b16 %v3931
    %v3955 = vunpack.c.h.b16 %v3931
    %v3956 = vunpack.c.l.b16 %v3932
    %v3957 = vunpack.c.h.b16 %v3932
    %v3958 = vunpack.c.l.b16 %v3933
    %v3959 = vunpack.c.h.b16 %v3933
    %v3960 = vunpack.c.l.b16 %v3934
    %v3961 = vunpack.c.h.b16 %v3934
    %v3962 = vunpack.c.l.b16 %v3935
    %v3963 = vunpack.c.h.b16 %v3935
    %v3964 = vunpack.c.l.b16 %v3936
    %v3965 = vunpack.c.h.b16 %v3936
    %v3966 = vpack.c.b16 %v3952, %v3950
    %v3967 = vpack.c.b16 %v3953, %v3951
    %v3968 = vpack.c.b16 %v3956, %v3954
    %v3969 = vpack.c.b16 %v3957, %v3955
    %v3970 = vpack.c.b16 %v3960, %v3958
    %v3971 = vpack.c.b16 %v3961, %v3959
    %v3972 = vpack.c.b16 %v3964, %v3962
    %v3973 = vpack.c.b16 %v3965, %v3963
    %v3983 = vsel %vm115, %v3927, 0
    %v3986 = vsel %vm115, %v3928, 0
    %3988 = vmatpush.bf16.msra.mxu0 0
    %3989 = vmatpush.bf16.msra.mxu0 0
    %3990 = vmatpush.bf16.msra.mxu0 0
    %3991 = vmatpush.bf16.msra.mxu0 0
    %3992 = vmatpush.bf16.msra.mxu0 %v3972
    %3993 = vmatpush.bf16.msra.mxu0 %v3970
    %3994 = vmatpush.bf16.msra.mxu0 %v3968
    %3995 = vmatpush.bf16.msra.mxu0 %v3966
    %3996 = vmatmul.bf16.gmra.mxu0 %v3983
    %v3997 = vpop.f32.mrf.mxu0
    %v3998 = vadd.f32 %v3938, %v3997
    %v3999 = vpop.f32.mrf.mxu0
    %v4000 = vadd.f32 %v3938, %v3999
    %4001 = vmatmul.bf16.gmra.mxu0 %v3986
    %v4002 = vpop.f32.mrf.mxu0
    %v4003 = vadd.f32 %v3938, %v4002
    %v4004 = vpop.f32.mrf.mxu0
    %v4005 = vadd.f32 %v3938, %v4004
    %4006 = vdwg.mxu0
    %4007 = vmatpush.bf16.msra.mxu0 0
    %4008 = vmatpush.bf16.msra.mxu0 0
    %4009 = vmatpush.bf16.msra.mxu0 0
    %4010 = vmatpush.bf16.msra.mxu0 0
    %4011 = vmatpush.bf16.msra.mxu0 %v3973
    %4012 = vmatpush.bf16.msra.mxu0 %v3971
    %4013 = vmatpush.bf16.msra.mxu0 %v3969
    %4014 = vmatpush.bf16.msra.mxu0 %v3967
    %4015 = vmatmul.bf16.gmra.mxu0 %v3983
    %v4016 = vpop.f32.mrf.mxu0
    %v4017 = vadd.f32 %v3939, %v4016
    %v4018 = vpop.f32.mrf.mxu0
    %v4019 = vadd.f32 %v3939, %v4018
    %4020 = vmatmul.bf16.gmra.mxu0 %v3986
    %v4021 = vpop.f32.mrf.mxu0
    %v4022 = vadd.f32 %v3939, %v4021
    %v4023 = vpop.f32.mrf.mxu0
    %v4024 = vadd.f32 %v3939, %v4023
    %4025 = vdwg.mxu0
    %v4026 = vpack.c.bf16 %v4000, %v3998
    %v4027 = vpack.c.bf16 %v4005, %v4003
    %v4028 = vpack.c.bf16 %v4019, %v4017
    %v4029 = vpack.c.bf16 %v4024, %v4022
    %4032 = vrot.lane.b32.xlu0 %v4026, 64
    %v4033 = vpop.permute.xlu0 %4032
    %4034 = vrot.lane.b32.xlu0 %v4027, 64
    %v4035 = vpop.permute.xlu0 %4034
    %v4037 = vsel %vm694, %v4026, 0
    %v4040 = vsel %vm694, %v4027, 0
    %v4043 = vsel %vm694, %v4033, 0
    %v4046 = vsel %vm694, %v4035, 0
    %4048 = vmatpush.bf16.xpose.msra.mxu0 0
    %4049 = vmatpush.bf16.xpose.msra.mxu0 0
    %4050 = vmatpush.bf16.xpose.msra.mxu0 0
    %4051 = vmatpush.bf16.xpose.msra.mxu0 0
    %4052 = vmatpush.bf16.xpose.msra.mxu0 0
    %4053 = vmatpush.bf16.xpose.msra.mxu0 0
    %4054 = vmatpush.bf16.xpose.msra.mxu0 %v4046
    %4055 = vmatpush.bf16.xpose.msra.mxu0 %v4043
    %4056 = vmatmul.bf16.gmra.mxu0 %v4037
    %v4057 = vpop.f32.mrf.mxu0
    %v4058 = vadd.f32 0.0, %v4057
    %v4059 = vpop.f32.mrf.mxu0
    %v4060 = vadd.f32 0.0, %v4059
    %4061 = vmatmul.bf16.gmra.mxu0 %v4040
    %v4062 = vpop.f32.mrf.mxu0
    %v4063 = vadd.f32 0.0, %v4062
    %v4064 = vpop.f32.mrf.mxu0
    %v4065 = vadd.f32 0.0, %v4064
    %4066 = vdwg.mxu0
    %v4067 = vmul.f32 %v4058, 0.25
    %v4068 = vmul.f32 %v4060, 0.25
    %v4069 = vmul.f32 %v4063, 0.25
    %v4070 = vmul.f32 %v4065, 0.25
    %v4071 = vsel %vm730, %v4067, -inf
    %4072 = vmax.xlane.f32.xlu0 %v4071
    %v4073 = vpop.xlane.xlu0 %4072
    %v4074 = vsel %vm730, %v4068, -inf
    %4075 = vmax.xlane.f32.xlu0 %v4074
    %v4076 = vpop.xlane.xlu0 %4075
    %v4077 = vsel %vm730, %v4069, -inf
    %4078 = vmax.xlane.f32.xlu0 %v4077
    %v4079 = vpop.xlane.xlu0 %4078
    %v4080 = vsel %vm740, %v4070, -inf
    %4081 = vmax.xlane.f32.xlu0 %v4080
    %v4082 = vpop.xlane.xlu0 %4081
    %v4083 = vsub.f32 %v4067, %v4073
    %v4084 = vsub.f32 %v4068, %v4076
    %v4085 = vsub.f32 %v4069, %v4079
    %v4086 = vsub.f32 %v4070, %v4082
    %v4087 = vmul.f32 %v4083, 1.442695
    %v4088 = vpow.pop %v4087
    %v4089 = vmul.f32 %v4084, 1.442695
    %v4090 = vpow.pop %v4089
    %v4091 = vmul.f32 %v4085, 1.442695
    %v4092 = vpow.pop %v4091
    %v4093 = vmul.f32 %v4086, 1.442695
    %v4094 = vpow.pop %v4093
    %v4095 = vsel %vm730, %v4088, 0.0
    %4096 = vadd.xlane.f32.xlu0 %v4095
    %v4097 = vpop.xlane.xlu0 %4096
    %v4098 = vsel %vm730, %v4090, 0.0
    %4099 = vadd.xlane.f32.xlu0 %v4098
    %v4100 = vpop.xlane.xlu0 %4099
    %v4101 = vsel %vm730, %v4092, 0.0
    %4102 = vadd.xlane.f32.xlu0 %v4101
    %v4103 = vpop.xlane.xlu0 %4102
    %v4104 = vsel %vm740, %v4094, 0.0
    %4105 = vadd.xlane.f32.xlu0 %v4104
    %v4106 = vpop.xlane.xlu0 %4105
    %v4107 = vrcp.pop %v4097
    %v4108 = vrcp.pop %v4100
    %v4109 = vrcp.pop %v4103
    %v4110 = vrcp.pop %v4106
    %v4111 = vmul.f32 %v4088, %v4107
    %v4112 = vmul.f32 %v4090, %v4108
    %v4113 = vmul.f32 %v4092, %v4109
    %v4114 = vmul.f32 %v4094, %v4110
    %v4115 = vpack.c.bf16 %v4112, %v4111
    %v4116 = vpack.c.bf16 %v4114, %v4113
    %v4118 = vsel %vm730, %v4115, 0
    %v4121 = vsel %vm730, %v4116, 0
    %v4124 = vand.u32 %v4029, %v786
    %4126 = vmatpush.bf16.msra.mxu0 0
    %4127 = vmatpush.bf16.msra.mxu0 0
    %4128 = vmatpush.bf16.msra.mxu0 0
    %4129 = vmatpush.bf16.msra.mxu0 0
    %4130 = vmatpush.bf16.msra.mxu0 0
    %4131 = vmatpush.bf16.msra.mxu0 0
    %4132 = vmatpush.bf16.msra.mxu0 %v4124
    %4133 = vmatpush.bf16.msra.mxu0 %v4028
    %4134 = vmatmul.bf16.gmra.mxu0 %v4118
    %v4135 = vpop.f32.mrf.mxu0
    %v4136 = vadd.f32 0.0, %v4135
    %v4137 = vpop.f32.mrf.mxu0
    %v4138 = vadd.f32 0.0, %v4137
    %4139 = vmatmul.bf16.gmra.mxu0 %v4121
    %v4140 = vpop.f32.mrf.mxu0
    %v4141 = vadd.f32 0.0, %v4140
    %v4142 = vpop.f32.mrf.mxu0
    %v4143 = vadd.f32 0.0, %v4142
    %4144 = vdwg.mxu0
    %4145 = vrot.lane.b32.xlu0 %v4026, 112
    %v4146 = vpop.permute.xlu0 %4145
    %4147 = vrot.lane.b32.xlu0 %v4027, 112
    %v4148 = vpop.permute.xlu0 %4147
    %4149 = vrot.lane.b32.xlu0 %v4026, 48
    %v4150 = vpop.permute.xlu0 %4149
    %4151 = vrot.lane.b32.xlu0 %v4027, 48
    %v4152 = vpop.permute.xlu0 %4151
    %v4154 = vsel %vm694, %v4146, 0
    %v4157 = vsel %vm694, %v4148, 0
    %v4160 = vsel %vm694, %v4150, 0
    %v4163 = vsel %vm694, %v4152, 0
    %4165 = vmatpush.bf16.xpose.msra.mxu0 0
    %4166 = vmatpush.bf16.xpose.msra.mxu0 0
    %4167 = vmatpush.bf16.xpose.msra.mxu0 0
    %4168 = vmatpush.bf16.xpose.msra.mxu0 0
    %4169 = vmatpush.bf16.xpose.msra.mxu0 0
    %4170 = vmatpush.bf16.xpose.msra.mxu0 0
    %4171 = vmatpush.bf16.xpose.msra.mxu0 %v4163
    %4172 = vmatpush.bf16.xpose.msra.mxu0 %v4160
    %4173 = vmatmul.bf16.gmra.mxu0 %v4154
    %v4174 = vpop.f32.mrf.mxu0
    %v4175 = vadd.f32 0.0, %v4174
    %v4176 = vpop.f32.mrf.mxu0
    %v4177 = vadd.f32 0.0, %v4176
    %4178 = vmatmul.bf16.gmra.mxu0 %v4157
    %v4179 = vpop.f32.mrf.mxu0
    %v4180 = vadd.f32 0.0, %v4179
    %v4181 = vpop.f32.mrf.mxu0
    %v4182 = vadd.f32 0.0, %v4181
    %4183 = vdwg.mxu0
    %v4184 = vmul.f32 %v4175, 0.25
    %v4185 = vmul.f32 %v4177, 0.25
    %v4186 = vmul.f32 %v4180, 0.25
    %v4187 = vmul.f32 %v4182, 0.25
    %v4188 = vsel %vm730, %v4184, -inf
    %4189 = vmax.xlane.f32.xlu0 %v4188
    %v4190 = vpop.xlane.xlu0 %4189
    %v4191 = vsel %vm730, %v4185, -inf
    %4192 = vmax.xlane.f32.xlu0 %v4191
    %v4193 = vpop.xlane.xlu0 %4192
    %v4194 = vsel %vm730, %v4186, -inf
    %4195 = vmax.xlane.f32.xlu0 %v4194
    %v4196 = vpop.xlane.xlu0 %4195
    %v4197 = vsel %vm740, %v4187, -inf
    %4198 = vmax.xlane.f32.xlu0 %v4197
    %v4199 = vpop.xlane.xlu0 %4198
    %v4200 = vsub.f32 %v4184, %v4190
    %v4201 = vsub.f32 %v4185, %v4193
    %v4202 = vsub.f32 %v4186, %v4196
    %v4203 = vsub.f32 %v4187, %v4199
    %v4204 = vmul.f32 %v4200, 1.442695
    %v4205 = vpow.pop %v4204
    %v4206 = vmul.f32 %v4201, 1.442695
    %v4207 = vpow.pop %v4206
    %v4208 = vmul.f32 %v4202, 1.442695
    %v4209 = vpow.pop %v4208
    %v4210 = vmul.f32 %v4203, 1.442695
    %v4211 = vpow.pop %v4210
    %v4212 = vsel %vm730, %v4205, 0.0
    %4213 = vadd.xlane.f32.xlu0 %v4212
    %v4214 = vpop.xlane.xlu0 %4213
    %v4215 = vsel %vm730, %v4207, 0.0
    %4216 = vadd.xlane.f32.xlu0 %v4215
    %v4217 = vpop.xlane.xlu0 %4216
    %v4218 = vsel %vm730, %v4209, 0.0
    %4219 = vadd.xlane.f32.xlu0 %v4218
    %v4220 = vpop.xlane.xlu0 %4219
    %v4221 = vsel %vm740, %v4211, 0.0
    %4222 = vadd.xlane.f32.xlu0 %v4221
    %v4223 = vpop.xlane.xlu0 %4222
    %v4224 = vrcp.pop %v4214
    %v4225 = vrcp.pop %v4217
    %v4226 = vrcp.pop %v4220
    %v4227 = vrcp.pop %v4223
    %v4228 = vmul.f32 %v4205, %v4224
    %v4229 = vmul.f32 %v4207, %v4225
    %v4230 = vmul.f32 %v4209, %v4226
    %v4231 = vmul.f32 %v4211, %v4227
    %v4232 = vpack.c.bf16 %v4229, %v4228
    %v4233 = vpack.c.bf16 %v4231, %v4230
    %4236 = vrot.lane.b32.xlu0 %v4028, 112
    %v4237 = vpop.permute.xlu0 %4236
    %4238 = vrot.lane.b32.xlu0 %v4029, 112
    %v4239 = vpop.permute.xlu0 %4238
    %v4242 = vsel %vm730, %v4232, 0
    %v4245 = vsel %vm730, %v4233, 0
    %v4248 = vand.u32 %v4239, %v786
    %4250 = vmatpush.bf16.msra.mxu0 0
    %4251 = vmatpush.bf16.msra.mxu0 0
    %4252 = vmatpush.bf16.msra.mxu0 0
    %4253 = vmatpush.bf16.msra.mxu0 0
    %4254 = vmatpush.bf16.msra.mxu0 0
    %4255 = vmatpush.bf16.msra.mxu0 0
    %4256 = vmatpush.bf16.msra.mxu0 %v4248
    %4257 = vmatpush.bf16.msra.mxu0 %v4237
    %4258 = vmatmul.bf16.gmra.mxu0 %v4242
    %v4259 = vpop.f32.mrf.mxu0
    %v4260 = vadd.f32 0.0, %v4259
    %v4261 = vpop.f32.mrf.mxu0
    %v4262 = vadd.f32 0.0, %v4261
    %4263 = vmatmul.bf16.gmra.mxu0 %v4245
    %v4264 = vpop.f32.mrf.mxu0
    %v4265 = vadd.f32 0.0, %v4264
    %v4266 = vpop.f32.mrf.mxu0
    %v4267 = vadd.f32 0.0, %v4266
    %4268 = vdwg.mxu0
    %4269 = vrot.lane.b32.xlu0 %v4026, 96
    %v4270 = vpop.permute.xlu0 %4269
    %4271 = vrot.lane.b32.xlu0 %v4027, 96
    %v4272 = vpop.permute.xlu0 %4271
    %4273 = vrot.lane.b32.xlu0 %v4026, 32
    %v4274 = vpop.permute.xlu0 %4273
    %4275 = vrot.lane.b32.xlu0 %v4027, 32
    %v4276 = vpop.permute.xlu0 %4275
    %v4278 = vsel %vm694, %v4270, 0
    %v4281 = vsel %vm694, %v4272, 0
    %v4284 = vsel %vm694, %v4274, 0
    %v4287 = vsel %vm694, %v4276, 0
    %4289 = vmatpush.bf16.xpose.msra.mxu0 0
    %4290 = vmatpush.bf16.xpose.msra.mxu0 0
    %4291 = vmatpush.bf16.xpose.msra.mxu0 0
    %4292 = vmatpush.bf16.xpose.msra.mxu0 0
    %4293 = vmatpush.bf16.xpose.msra.mxu0 0
    %4294 = vmatpush.bf16.xpose.msra.mxu0 0
    %4295 = vmatpush.bf16.xpose.msra.mxu0 %v4287
    %4296 = vmatpush.bf16.xpose.msra.mxu0 %v4284
    %4297 = vmatmul.bf16.gmra.mxu0 %v4278
    %v4298 = vpop.f32.mrf.mxu0
    %v4299 = vadd.f32 0.0, %v4298
    %v4300 = vpop.f32.mrf.mxu0
    %v4301 = vadd.f32 0.0, %v4300
    %4302 = vmatmul.bf16.gmra.mxu0 %v4281
    %v4303 = vpop.f32.mrf.mxu0
    %v4304 = vadd.f32 0.0, %v4303
    %v4305 = vpop.f32.mrf.mxu0
    %v4306 = vadd.f32 0.0, %v4305
    %4307 = vdwg.mxu0
    %v4308 = vmul.f32 %v4299, 0.25
    %v4309 = vmul.f32 %v4301, 0.25
    %v4310 = vmul.f32 %v4304, 0.25
    %v4311 = vmul.f32 %v4306, 0.25
    %v4312 = vsel %vm730, %v4308, -inf
    %4313 = vmax.xlane.f32.xlu0 %v4312
    %v4314 = vpop.xlane.xlu0 %4313
    %v4315 = vsel %vm730, %v4309, -inf
    %4316 = vmax.xlane.f32.xlu0 %v4315
    %v4317 = vpop.xlane.xlu0 %4316
    %v4318 = vsel %vm730, %v4310, -inf
    %4319 = vmax.xlane.f32.xlu0 %v4318
    %v4320 = vpop.xlane.xlu0 %4319
    %v4321 = vsel %vm740, %v4311, -inf
    %4322 = vmax.xlane.f32.xlu0 %v4321
    %v4323 = vpop.xlane.xlu0 %4322
    %v4324 = vsub.f32 %v4308, %v4314
    %v4325 = vsub.f32 %v4309, %v4317
    %v4326 = vsub.f32 %v4310, %v4320
    %v4327 = vsub.f32 %v4311, %v4323
    %v4328 = vmul.f32 %v4324, 1.442695
    %v4329 = vpow.pop %v4328
    %v4330 = vmul.f32 %v4325, 1.442695
    %v4331 = vpow.pop %v4330
    %v4332 = vmul.f32 %v4326, 1.442695
    %v4333 = vpow.pop %v4332
    %v4334 = vmul.f32 %v4327, 1.442695
    %v4335 = vpow.pop %v4334
    %v4336 = vsel %vm730, %v4329, 0.0
    %4337 = vadd.xlane.f32.xlu0 %v4336
    %v4338 = vpop.xlane.xlu0 %4337
    %v4339 = vsel %vm730, %v4331, 0.0
    %4340 = vadd.xlane.f32.xlu0 %v4339
    %v4341 = vpop.xlane.xlu0 %4340
    %v4342 = vsel %vm730, %v4333, 0.0
    %4343 = vadd.xlane.f32.xlu0 %v4342
    %v4344 = vpop.xlane.xlu0 %4343
    %v4345 = vsel %vm740, %v4335, 0.0
    %4346 = vadd.xlane.f32.xlu0 %v4345
    %v4347 = vpop.xlane.xlu0 %4346
    %v4348 = vrcp.pop %v4338
    %v4349 = vrcp.pop %v4341
    %v4350 = vrcp.pop %v4344
    %v4351 = vrcp.pop %v4347
    %v4352 = vmul.f32 %v4329, %v4348
    %v4353 = vmul.f32 %v4331, %v4349
    %v4354 = vmul.f32 %v4333, %v4350
    %v4355 = vmul.f32 %v4335, %v4351
    %v4356 = vpack.c.bf16 %v4353, %v4352
    %v4357 = vpack.c.bf16 %v4355, %v4354
    %4358 = vrot.lane.b32.xlu0 %v4028, 96
    %v4359 = vpop.permute.xlu0 %4358
    %4360 = vrot.lane.b32.xlu0 %v4029, 96
    %v4361 = vpop.permute.xlu0 %4360
    %v4364 = vsel %vm730, %v4356, 0
    %v4367 = vsel %vm730, %v4357, 0
    %v4370 = vand.u32 %v4361, %v786
    %4372 = vmatpush.bf16.msra.mxu0 0
    %4373 = vmatpush.bf16.msra.mxu0 0
    %4374 = vmatpush.bf16.msra.mxu0 0
    %4375 = vmatpush.bf16.msra.mxu0 0
    %4376 = vmatpush.bf16.msra.mxu0 0
    %4377 = vmatpush.bf16.msra.mxu0 0
    %4378 = vmatpush.bf16.msra.mxu0 %v4370
    %4379 = vmatpush.bf16.msra.mxu0 %v4359
    %4380 = vmatmul.bf16.gmra.mxu0 %v4364
    %v4381 = vpop.f32.mrf.mxu0
    %v4382 = vadd.f32 0.0, %v4381
    %v4383 = vpop.f32.mrf.mxu0
    %v4384 = vadd.f32 0.0, %v4383
    %4385 = vmatmul.bf16.gmra.mxu0 %v4367
    %v4386 = vpop.f32.mrf.mxu0
    %v4387 = vadd.f32 0.0, %v4386
    %v4388 = vpop.f32.mrf.mxu0
    %v4389 = vadd.f32 0.0, %v4388
    %4390 = vdwg.mxu0
    %4391 = vrot.lane.b32.xlu0 %v4026, 80
    %v4392 = vpop.permute.xlu0 %4391
    %4393 = vrot.lane.b32.xlu0 %v4027, 80
    %v4394 = vpop.permute.xlu0 %4393
    %4395 = vrot.lane.b32.xlu0 %v4026, 16
    %v4396 = vpop.permute.xlu0 %4395
    %4397 = vrot.lane.b32.xlu0 %v4027, 16
    %v4398 = vpop.permute.xlu0 %4397
    %v4400 = vsel %vm694, %v4392, 0
    %v4403 = vsel %vm694, %v4394, 0
    %v4406 = vsel %vm694, %v4396, 0
    %v4409 = vsel %vm694, %v4398, 0
    %4411 = vmatpush.bf16.xpose.msra.mxu0 0
    %4412 = vmatpush.bf16.xpose.msra.mxu0 0
    %4413 = vmatpush.bf16.xpose.msra.mxu0 0
    %4414 = vmatpush.bf16.xpose.msra.mxu0 0
    %4415 = vmatpush.bf16.xpose.msra.mxu0 0
    %4416 = vmatpush.bf16.xpose.msra.mxu0 0
    %4417 = vmatpush.bf16.xpose.msra.mxu0 %v4409
    %4418 = vmatpush.bf16.xpose.msra.mxu0 %v4406
    %4419 = vmatmul.bf16.gmra.mxu0 %v4400
    %v4420 = vpop.f32.mrf.mxu0
    %v4421 = vadd.f32 0.0, %v4420
    %v4422 = vpop.f32.mrf.mxu0
    %v4423 = vadd.f32 0.0, %v4422
    %4424 = vmatmul.bf16.gmra.mxu0 %v4403
    %v4425 = vpop.f32.mrf.mxu0
    %v4426 = vadd.f32 0.0, %v4425
    %v4427 = vpop.f32.mrf.mxu0
    %v4428 = vadd.f32 0.0, %v4427
    %4429 = vdwg.mxu0
    %v4430 = vmul.f32 %v4421, 0.25
    %v4431 = vmul.f32 %v4423, 0.25
    %v4432 = vmul.f32 %v4426, 0.25
    %v4433 = vmul.f32 %v4428, 0.25
    %v4434 = vsel %vm730, %v4430, -inf
    %4435 = vmax.xlane.f32.xlu0 %v4434
    %v4436 = vpop.xlane.xlu0 %4435
    %v4437 = vsel %vm730, %v4431, -inf
    %4438 = vmax.xlane.f32.xlu0 %v4437
    %v4439 = vpop.xlane.xlu0 %4438
    %v4440 = vsel %vm730, %v4432, -inf
    %4441 = vmax.xlane.f32.xlu0 %v4440
    %v4442 = vpop.xlane.xlu0 %4441
    %v4443 = vsel %vm740, %v4433, -inf
    %4444 = vmax.xlane.f32.xlu0 %v4443
    %v4445 = vpop.xlane.xlu0 %4444
    %v4446 = vsub.f32 %v4430, %v4436
    %v4447 = vsub.f32 %v4431, %v4439
    %v4448 = vsub.f32 %v4432, %v4442
    %v4449 = vsub.f32 %v4433, %v4445
    %v4450 = vmul.f32 %v4446, 1.442695
    %v4451 = vpow.pop %v4450
    %v4452 = vmul.f32 %v4447, 1.442695
    %v4453 = vpow.pop %v4452
    %v4454 = vmul.f32 %v4448, 1.442695
    %v4455 = vpow.pop %v4454
    %v4456 = vmul.f32 %v4449, 1.442695
    %v4457 = vpow.pop %v4456
    %v4458 = vsel %vm730, %v4451, 0.0
    %4459 = vadd.xlane.f32.xlu0 %v4458
    %v4460 = vpop.xlane.xlu0 %4459
    %v4461 = vsel %vm730, %v4453, 0.0
    %4462 = vadd.xlane.f32.xlu0 %v4461
    %v4463 = vpop.xlane.xlu0 %4462
    %v4464 = vsel %vm730, %v4455, 0.0
    %4465 = vadd.xlane.f32.xlu0 %v4464
    %v4466 = vpop.xlane.xlu0 %4465
    %v4467 = vsel %vm740, %v4457, 0.0
    %4468 = vadd.xlane.f32.xlu0 %v4467
    %v4469 = vpop.xlane.xlu0 %4468
    %v4470 = vrcp.pop %v4460
    %v4471 = vrcp.pop %v4463
    %v4472 = vrcp.pop %v4466
    %v4473 = vrcp.pop %v4469
    %v4474 = vmul.f32 %v4451, %v4470
    %v4475 = vmul.f32 %v4453, %v4471
    %v4476 = vmul.f32 %v4455, %v4472
    %v4477 = vmul.f32 %v4457, %v4473
    %v4478 = vpack.c.bf16 %v4475, %v4474
    %v4479 = vpack.c.bf16 %v4477, %v4476
    %4480 = vrot.lane.b32.xlu0 %v4028, 80
    %v4481 = vpop.permute.xlu0 %4480
    %4482 = vrot.lane.b32.xlu0 %v4029, 80
    %v4483 = vpop.permute.xlu0 %4482
    %v4486 = vsel %vm730, %v4478, 0
    %v4489 = vsel %vm730, %v4479, 0
    %v4492 = vand.u32 %v4483, %v786
    %4494 = vmatpush.bf16.msra.mxu0 0
    %4495 = vmatpush.bf16.msra.mxu0 0
    %4496 = vmatpush.bf16.msra.mxu0 0
    %4497 = vmatpush.bf16.msra.mxu0 0
    %4498 = vmatpush.bf16.msra.mxu0 0
    %4499 = vmatpush.bf16.msra.mxu0 0
    %4500 = vmatpush.bf16.msra.mxu0 %v4492
    %4501 = vmatpush.bf16.msra.mxu0 %v4481
    %4502 = vmatmul.bf16.gmra.mxu0 %v4486
    %v4503 = vpop.f32.mrf.mxu0
    %v4504 = vadd.f32 0.0, %v4503
    %v4505 = vpop.f32.mrf.mxu0
    %v4506 = vadd.f32 0.0, %v4505
    %4507 = vmatmul.bf16.gmra.mxu0 %v4489
    %v4508 = vpop.f32.mrf.mxu0
    %v4509 = vadd.f32 0.0, %v4508
    %v4510 = vpop.f32.mrf.mxu0
    %v4511 = vadd.f32 0.0, %v4510
    %4512 = vdwg.mxu0
    %4517 = vrot.lane.b32.xlu0 %v4260, 16
    %v4518 = vpop.permute.xlu0 %4517
    %4519 = vrot.lane.b32.xlu0 %v4262, 16
    %v4520 = vpop.permute.xlu0 %4519
    %4521 = vrot.lane.b32.xlu0 %v4265, 16
    %v4522 = vpop.permute.xlu0 %4521
    %4523 = vrot.lane.b32.xlu0 %v4267, 16
    %v4524 = vpop.permute.xlu0 %4523
    %4533 = vrot.lane.b32.xlu0 %v4382, 32
    %v4534 = vpop.permute.xlu0 %4533
    %4535 = vrot.lane.b32.xlu0 %v4384, 32
    %v4536 = vpop.permute.xlu0 %4535
    %4537 = vrot.lane.b32.xlu0 %v4387, 32
    %v4538 = vpop.permute.xlu0 %4537
    %4539 = vrot.lane.b32.xlu0 %v4389, 32
    %v4540 = vpop.permute.xlu0 %4539
    %4549 = vrot.lane.b32.xlu0 %v4504, 48
    %v4550 = vpop.permute.xlu0 %4549
    %4551 = vrot.lane.b32.xlu0 %v4506, 48
    %v4552 = vpop.permute.xlu0 %4551
    %4553 = vrot.lane.b32.xlu0 %v4509, 48
    %v4554 = vpop.permute.xlu0 %4553
    %4555 = vrot.lane.b32.xlu0 %v4511, 48
    %v4556 = vpop.permute.xlu0 %4555
    %v4561 = vsel %vm694, %v4136, %v4518
    %v4562 = vsel %vm694, %v4138, %v4520
    %v4563 = vsel %vm694, %v4141, %v4522
    %v4564 = vsel %vm694, %v4143, %v4524
    %v4565 = vsel %vm1229, %v4561, %v4534
    %v4566 = vsel %vm1229, %v4562, %v4536
    %v4567 = vsel %vm1229, %v4563, %v4538
    %v4568 = vsel %vm1229, %v4564, %v4540
    %v4569 = vsel %vm1234, %v4565, %v4550
    %v4570 = vsel %vm1234, %v4566, %v4552
    %v4571 = vsel %vm1234, %v4567, %v4554
    %v4572 = vsel %vm1234, %v4568, %v4556
    %v4573 = vpack.c.bf16 %v4570, %v4569
    %v4574 = vpack.c.bf16 %v4572, %v4571
    %v4575 = vld [vmem:[%s2351] sm:$0xf]
    %v4576 = vld [vmem:[%s2351 + $0x4] sm:$0xf]
    %v4577 = vld [vmem:[%s2351 + $0x8] sm:$0xf]
    %v4578 = vld [vmem:[%s2351 + $0xc] sm:$0xf]
    %v4579 = vld [vmem:[%s2351 + $0x10] sm:$0xf]
    %v4580 = vld [vmem:[%s2351 + $0x14] sm:$0xf]
    %v4581 = vld [vmem:[%s2351 + $0x18] sm:$0xf]
    %v4582 = vld [vmem:[%s2351 + $0x1c] sm:$0xf]
    %v4591 = vunpack.c.l.b16 %v4575
    %v4592 = vunpack.c.l.b16 %v4576
    %v4593 = vunpack.c.l.b16 %v4577
    %v4594 = vunpack.c.l.b16 %v4578
    %v4595 = vunpack.c.l.b16 %v4579
    %v4596 = vunpack.c.l.b16 %v4580
    %v4597 = vunpack.c.l.b16 %v4581
    %v4598 = vunpack.c.l.b16 %v4582
    %v4599 = vpack.c.b16 %v4592, %v4591
    %v4600 = vpack.c.b16 %v4594, %v4593
    %v4601 = vpack.c.b16 %v4596, %v4595
    %v4602 = vpack.c.b16 %v4598, %v4597
    %v4608 = vsel %vm115, %v4573, 0
    %v4611 = vsel %vm115, %v4574, 0
    %4613 = vmatpush.bf16.msra.mxu0 0
    %4614 = vmatpush.bf16.msra.mxu0 0
    %4615 = vmatpush.bf16.msra.mxu0 0
    %4616 = vmatpush.bf16.msra.mxu0 0
    %4617 = vmatpush.bf16.msra.mxu0 %v4602
    %4618 = vmatpush.bf16.msra.mxu0 %v4601
    %4619 = vmatpush.bf16.msra.mxu0 %v4600
    %4620 = vmatpush.bf16.msra.mxu0 %v4599
    %4621 = vmatmul.bf16.gmra.mxu0 %v4608
    %v4622 = vpop.f32.mrf.mxu0
    %v4623 = vadd.f32 0.0, %v4622
    %v4624 = vpop.f32.mrf.mxu0
    %v4625 = vadd.f32 0.0, %v4624
    %4626 = vmatmul.bf16.gmra.mxu0 %v4611
    %v4627 = vpop.f32.mrf.mxu0
    %v4628 = vadd.f32 0.0, %v4627
    %v4629 = vpop.f32.mrf.mxu0
    %v4630 = vadd.f32 0.0, %v4629
    %4631 = vdwg.mxu0
    %v4632 = vadd.f32 %v3817, %v4623
    %v4633 = vadd.f32 %v3818, %v4625
    %v4634 = vadd.f32 %v3819, %v4628
    %v4635 = vadd.f32 %v3820, %v4630
    %v4636 = vperm.slane %v3823, 0
    %v4637 = vadd.f32 %v4632, %v4636
    %v4638 = vadd.f32 %v4633, %v4636
    %v4639 = vadd.f32 %v4634, %v4636
    %v4640 = vadd.f32 %v4635, %v4636
    %v4641 = vsel %vm115, %v4637, 0.0
    %4642 = vadd.xlane.f32.xlu0 %v4641
    %v4643 = vpop.xlane.xlu0 %4642
    %v4644 = vsel %vm115, %v4638, 0.0
    %4645 = vadd.xlane.f32.xlu0 %v4644
    %v4646 = vpop.xlane.xlu0 %4645
    %v4647 = vsel %vm115, %v4639, 0.0
    %4648 = vadd.xlane.f32.xlu0 %v4647
    %v4649 = vpop.xlane.xlu0 %4648
    %v4650 = vsel %vm495, %v4640, 0.0
    %4651 = vadd.xlane.f32.xlu0 %v4650
    %v4652 = vpop.xlane.xlu0 %4651
    %v4653 = vmul.f32 %v4643, %v128
    %v4654 = vmul.f32 %v4646, %v128
    %v4655 = vmul.f32 %v4649, %v128
    %v4656 = vmul.f32 %v4652, %v128
    %v4657 = vsub.f32 %v4637, %v4653
    %v4658 = vsub.f32 %v4638, %v4654
    %v4659 = vsub.f32 %v4639, %v4655
    %v4660 = vsub.f32 %v4640, %v4656
    %v4661 = vmul.f32 %v4657, %v4657
    %v4662 = vmul.f32 %v4658, %v4658
    %v4663 = vmul.f32 %v4659, %v4659
    %v4664 = vmul.f32 %v4660, %v4660
    %v4665 = vsel %vm115, %v4661, 0.0
    %4666 = vadd.xlane.f32.xlu0 %v4665
    %v4667 = vpop.xlane.xlu0 %4666
    %v4668 = vsel %vm115, %v4662, 0.0
    %4669 = vadd.xlane.f32.xlu0 %v4668
    %v4670 = vpop.xlane.xlu0 %4669
    %v4671 = vsel %vm115, %v4663, 0.0
    %4672 = vadd.xlane.f32.xlu0 %v4671
    %v4673 = vpop.xlane.xlu0 %4672
    %v4674 = vsel %vm495, %v4664, 0.0
    %4675 = vadd.xlane.f32.xlu0 %v4674
    %v4676 = vpop.xlane.xlu0 %4675
    %v4677 = vmul.f32 %v4667, %v128
    %v4678 = vmul.f32 %v4670, %v128
    %v4679 = vmul.f32 %v4673, %v128
    %v4680 = vmul.f32 %v4676, %v128
    %v4681 = vadd.f32 %v4677, 1e-05
    %v4682 = vadd.f32 %v4678, 1e-05
    %v4683 = vadd.f32 %v4679, 1e-05
    %v4684 = vadd.f32 %v4680, 1e-05
    %v4685 = vrsqrt.pop %v4681
    %v4686 = vmul.f32 %v4685, %v4681
    %v4687 = vmul.f32 %v4686, %v4685
    %v4688 = vmul.f32 0.5, %v4687
    %v4689 = vsub.f32 1.5, %v4688
    %v4690 = vmul.f32 %v4685, %v4689
    %vm4691 = vweird.f32 %v4681
    %vm4692 = vweird.f32 %v4685
    %vm4693 = vmor %vm4691, %vm4692
    %v4694 = vsel %vm4693, %v4685, %v4690
    %v4695 = vrsqrt.pop %v4682
    %v4696 = vmul.f32 %v4695, %v4682
    %v4697 = vmul.f32 %v4696, %v4695
    %v4698 = vmul.f32 0.5, %v4697
    %v4699 = vsub.f32 1.5, %v4698
    %v4700 = vmul.f32 %v4695, %v4699
    %vm4701 = vweird.f32 %v4682
    %vm4702 = vweird.f32 %v4695
    %vm4703 = vmor %vm4701, %vm4702
    %v4704 = vsel %vm4703, %v4695, %v4700
    %v4705 = vrsqrt.pop %v4683
    %v4706 = vmul.f32 %v4705, %v4683
    %v4707 = vmul.f32 %v4706, %v4705
    %v4708 = vmul.f32 0.5, %v4707
    %v4709 = vsub.f32 1.5, %v4708
    %v4710 = vmul.f32 %v4705, %v4709
    %vm4711 = vweird.f32 %v4683
    %vm4712 = vweird.f32 %v4705
    %vm4713 = vmor %vm4711, %vm4712
    %v4714 = vsel %vm4713, %v4705, %v4710
    %v4715 = vrsqrt.pop %v4684
    %v4716 = vmul.f32 %v4715, %v4684
    %v4717 = vmul.f32 %v4716, %v4715
    %v4718 = vmul.f32 0.5, %v4717
    %v4719 = vsub.f32 1.5, %v4718
    %v4720 = vmul.f32 %v4715, %v4719
    %vm4721 = vweird.f32 %v4684
    %vm4722 = vweird.f32 %v4715
    %vm4723 = vmor %vm4721, %vm4722
    %v4724 = vsel %vm4723, %v4715, %v4720
    %v4725 = vmul.f32 %v4657, %v4694
    %v4726 = vmul.f32 %v4658, %v4704
    %v4727 = vmul.f32 %v4659, %v4714
    %v4728 = vmul.f32 %v4660, %v4724
    %v4729 = vperm.slane %v3824, 0
    %v4730 = vmul.f32 %v4725, %v4729
    %v4731 = vmul.f32 %v4726, %v4729
    %v4732 = vmul.f32 %v4727, %v4729
    %v4733 = vmul.f32 %v4728, %v4729
    %v4734 = vperm.slane %v3825, 0
    %v4735 = vadd.f32 %v4730, %v4734
    %v4736 = vadd.f32 %v4731, %v4734
    %v4737 = vadd.f32 %v4732, %v4734
    %v4738 = vadd.f32 %v4733, %v4734
    %v4739 = vpack.c.bf16 %v4736, %v4735
    %v4740 = vpack.c.bf16 %v4738, %v4737
    %v4741 = vld [vmem:[%s2518] sm:$0xf]
    %v4742 = vld [vmem:[%s2518 + $0x4] sm:$0xf]
    %v4743 = vld [vmem:[%s2518 + $0x8] sm:$0xf]
    %v4744 = vld [vmem:[%s2518 + $0xc] sm:$0xf]
    %v4745 = vld [vmem:[%s2518 + $0x10] sm:$0xf]
    %v4746 = vld [vmem:[%s2518 + $0x14] sm:$0xf]
    %v4747 = vld [vmem:[%s2518 + $0x18] sm:$0xf]
    %v4748 = vld [vmem:[%s2518 + $0x1c] sm:$0xf]
    %v4749 = vperm.slane %v3828, 0
    %v4758 = vunpack.c.l.b16 %v4741
    %v4759 = vunpack.c.l.b16 %v4742
    %v4760 = vunpack.c.l.b16 %v4743
    %v4761 = vunpack.c.l.b16 %v4744
    %v4762 = vunpack.c.l.b16 %v4745
    %v4763 = vunpack.c.l.b16 %v4746
    %v4764 = vunpack.c.l.b16 %v4747
    %v4765 = vunpack.c.l.b16 %v4748
    %v4766 = vpack.c.b16 %v4759, %v4758
    %v4767 = vpack.c.b16 %v4761, %v4760
    %v4768 = vpack.c.b16 %v4763, %v4762
    %v4769 = vpack.c.b16 %v4765, %v4764
    %v4775 = vsel %vm115, %v4739, 0
    %v4778 = vsel %vm115, %v4740, 0
    %4780 = vmatpush.bf16.msra.mxu0 0
    %4781 = vmatpush.bf16.msra.mxu0 0
    %4782 = vmatpush.bf16.msra.mxu0 0
    %4783 = vmatpush.bf16.msra.mxu0 0
    %4784 = vmatpush.bf16.msra.mxu0 %v4769
    %4785 = vmatpush.bf16.msra.mxu0 %v4768
    %4786 = vmatpush.bf16.msra.mxu0 %v4767
    %4787 = vmatpush.bf16.msra.mxu0 %v4766
    %4788 = vmatmul.bf16.gmra.mxu0 %v4775
    %v4789 = vpop.f32.mrf.mxu0
    %v4790 = vadd.f32 %v4749, %v4789
    %v4791 = vpop.f32.mrf.mxu0
    %v4792 = vadd.f32 %v4749, %v4791
    %4793 = vmatmul.bf16.gmra.mxu0 %v4778
    %v4794 = vpop.f32.mrf.mxu0
    %v4795 = vadd.f32 %v4749, %v4794
    %v4796 = vpop.f32.mrf.mxu0
    %v4797 = vadd.f32 %v4749, %v4796
    %4798 = vdwg.mxu0
    %v4799 = vmul.f32 %v4790, 0.5
    %v4800 = vmul.f32 %v4792, 0.5
    %v4801 = vmul.f32 %v4795, 0.5
    %v4802 = vmul.f32 %v4797, 0.5
    %v4803 = vmul.f32 %v4790, 0.044715
    %v4804 = vmul.f32 %v4792, 0.044715
    %v4805 = vmul.f32 %v4795, 0.044715
    %v4806 = vmul.f32 %v4797, 0.044715
    %v4807 = vmul.f32 %v4803, %v4790
    %v4808 = vmul.f32 %v4804, %v4792
    %v4809 = vmul.f32 %v4805, %v4795
    %v4810 = vmul.f32 %v4806, %v4797
    %v4811 = vmul.f32 %v4807, %v4790
    %v4812 = vmul.f32 %v4808, %v4792
    %v4813 = vmul.f32 %v4809, %v4795
    %v4814 = vmul.f32 %v4810, %v4797
    %v4815 = vadd.f32 %v4790, %v4811
    %v4816 = vadd.f32 %v4792, %v4812
    %v4817 = vadd.f32 %v4795, %v4813
    %v4818 = vadd.f32 %v4797, %v4814
    %v4819 = vmul.f32 %v4815, 0.7978846
    %v4820 = vmul.f32 %v4816, 0.7978846
    %v4821 = vmul.f32 %v4817, 0.7978846
    %v4822 = vmul.f32 %v4818, 0.7978846
    %v4823 = vtanh.pop %v4819
    %v4824 = vtanh.pop %v4820
    %v4825 = vtanh.pop %v4821
    %v4826 = vtanh.pop %v4822
    %v4827 = vadd.f32 %v4823, 1.0
    %v4828 = vadd.f32 %v4824, 1.0
    %v4829 = vadd.f32 %v4825, 1.0
    %v4830 = vadd.f32 %v4826, 1.0
    %v4831 = vmul.f32 %v4799, %v4827
    %v4832 = vmul.f32 %v4800, %v4828
    %v4833 = vmul.f32 %v4801, %v4829
    %v4834 = vmul.f32 %v4802, %v4830
    %v4835 = vpack.c.bf16 %v4832, %v4831
    %v4836 = vpack.c.bf16 %v4834, %v4833
    %v4837 = vld [vmem:[%s2615] sm:$0xf]
    %v4838 = vld [vmem:[%s2615 + $0x4] sm:$0xf]
    %v4839 = vld [vmem:[%s2615 + $0x8] sm:$0xf]
    %v4840 = vld [vmem:[%s2615 + $0xc] sm:$0xf]
    %v4841 = vld [vmem:[%s2615 + $0x10] sm:$0xf]
    %v4842 = vld [vmem:[%s2615 + $0x14] sm:$0xf]
    %v4843 = vld [vmem:[%s2615 + $0x18] sm:$0xf]
    %v4844 = vld [vmem:[%s2615 + $0x1c] sm:$0xf]
    %v4845 = vld [vmem:[%s2615 + $0x20] sm:$0xf]
    %v4846 = vld [vmem:[%s2615 + $0x24] sm:$0xf]
    %v4847 = vld [vmem:[%s2615 + $0x28] sm:$0xf]
    %v4848 = vld [vmem:[%s2615 + $0x2c] sm:$0xf]
    %v4849 = vld [vmem:[%s2615 + $0x30] sm:$0xf]
    %v4850 = vld [vmem:[%s2615 + $0x34] sm:$0xf]
    %v4851 = vld [vmem:[%s2615 + $0x38] sm:$0xf]
    %v4852 = vld [vmem:[%s2615 + $0x3c] sm:$0xf]
    %v4869 = vunpack.c.l.b16 %v4837
    %v4870 = vunpack.c.l.b16 %v4838
    %v4871 = vunpack.c.l.b16 %v4839
    %v4872 = vunpack.c.l.b16 %v4840
    %v4873 = vunpack.c.l.b16 %v4841
    %v4874 = vunpack.c.l.b16 %v4842
    %v4875 = vunpack.c.l.b16 %v4843
    %v4876 = vunpack.c.l.b16 %v4844
    %v4877 = vunpack.c.l.b16 %v4845
    %v4878 = vunpack.c.l.b16 %v4846
    %v4879 = vunpack.c.l.b16 %v4847
    %v4880 = vunpack.c.l.b16 %v4848
    %v4881 = vunpack.c.l.b16 %v4849
    %v4882 = vunpack.c.l.b16 %v4850
    %v4883 = vunpack.c.l.b16 %v4851
    %v4884 = vunpack.c.l.b16 %v4852
    %v4885 = vpack.c.b16 %v4870, %v4869
    %v4886 = vpack.c.b16 %v4872, %v4871
    %v4887 = vpack.c.b16 %v4874, %v4873
    %v4888 = vpack.c.b16 %v4876, %v4875
    %v4889 = vpack.c.b16 %v4878, %v4877
    %v4890 = vpack.c.b16 %v4880, %v4879
    %v4891 = vpack.c.b16 %v4882, %v4881
    %v4892 = vpack.c.b16 %v4884, %v4883
    %4901 = vmatpush.bf16.msra.mxu0 %v4892
    %4902 = vmatpush.bf16.msra.mxu0 %v4891
    %4903 = vmatpush.bf16.msra.mxu0 %v4890
    %4904 = vmatpush.bf16.msra.mxu0 %v4889
    %4905 = vmatpush.bf16.msra.mxu0 %v4888
    %4906 = vmatpush.bf16.msra.mxu0 %v4887
    %4907 = vmatpush.bf16.msra.mxu0 %v4886
    %4908 = vmatpush.bf16.msra.mxu0 %v4885
    %4909 = vmatmul.bf16.gmra.mxu0 %v4835
    %v4910 = vpop.f32.mrf.mxu0
    %v4911 = vpop.f32.mrf.mxu0
    %4912 = vmatmul.bf16.gmra.mxu0 %v4836
    %v4913 = vpop.f32.mrf.mxu0
    %v4914 = vpop.f32.mrf.mxu0
    %v4915 = vadd.f32 0.0, %v4914
    %4916 = vdwg.mxu0
    %v4917 = vadd.f32 %v4640, %v4915
    %v4918 = vperm.slane %v3826, 0
    %v4919 = vadd.f32 %v4917, %v4918
    %v4920 = vsel %vm495, %v4919, 0.0
    %4921 = vadd.xlane.f32.xlu0 %v4920
    %v4922 = vpop.xlane.xlu0 %4921
    %v4923 = vmul.f32 %v4922, %v128
    %v4924 = vsub.f32 %v4919, %v4923
    %v4925 = vmul.f32 %v4924, %v4924
    %v4926 = vsel %vm495, %v4925, 0.0
    %4927 = vadd.xlane.f32.xlu0 %v4926
    %v4928 = vpop.xlane.xlu0 %4927
    %v4929 = vmul.f32 %v4928, %v128
    %v4930 = vadd.f32 %v4929, 1e-05
    %v4931 = vrsqrt.pop %v4930
    %v4932 = vmul.f32 %v4931, %v4930
    %v4933 = vmul.f32 %v4932, %v4931
    %v4934 = vmul.f32 0.5, %v4933
    %v4935 = vsub.f32 1.5, %v4934
    %v4936 = vmul.f32 %v4931, %v4935
    %vm4937 = vweird.f32 %v4930
    %vm4938 = vweird.f32 %v4931
    %vm4939 = vmor %vm4937, %vm4938
    %v4940 = vsel %vm4939, %v4931, %v4936
    %v4941 = vmul.f32 %v4924, %v4940
    %v4942 = vmul.f32 %v4941, %v2721
    %v4943 = vadd.f32 %v4942, %v2723
    %v4945 = vrot.slane %v4943, 7
    %vm4947 = vcmask 1040384
    %v4948 = vsel %vm4947, %v2724, %v4945
    %v4949 = vpack.c.bf16 %v4948, %v4948
    %v4950 = vld [vmem:[%s10] sm:$0xf]
    %v4951 = vld [vmem:[%s10 + $0x4] sm:$0xf]
    %v4952 = vld [vmem:[%s10 + $0x8] sm:$0xf]
    %v4953 = vld [vmem:[%s10 + $0xc] sm:$0xf]
    %v4954 = vld [vmem:[%s10 + $0x10] sm:$0xf]
    %v4955 = vld [vmem:[%s10 + $0x14] sm:$0xf]
    %v4956 = vld [vmem:[%s10 + $0x18] sm:$0xf]
    %v4957 = vld [vmem:[%s10 + $0x1c] sm:$0xf]
    %v4958 = vld [vmem:[%s4 + $0x3] sm:$0x1]
    %v4959 = vperm.slane %v4958, 0
    %v4968 = vunpack.c.l.b16 %v4950
    %v4969 = vunpack.c.l.b16 %v4951
    %v4970 = vunpack.c.l.b16 %v4952
    %v4971 = vunpack.c.l.b16 %v4953
    %v4972 = vunpack.c.l.b16 %v4954
    %v4973 = vunpack.c.l.b16 %v4955
    %v4974 = vunpack.c.l.b16 %v4956
    %v4975 = vunpack.c.l.b16 %v4957
    %v4976 = vpack.c.b16 %v4969, %v4968
    %v4977 = vpack.c.b16 %v4971, %v4970
    %v4978 = vpack.c.b16 %v4973, %v4972
    %v4979 = vpack.c.b16 %v4975, %v4974
    %v4985 = vsel %vm115, %v4949, 0
    %4987 = vmatpush.bf16.msra.mxu0 0
    %4988 = vmatpush.bf16.msra.mxu0 0
    %4989 = vmatpush.bf16.msra.mxu0 0
    %4990 = vmatpush.bf16.msra.mxu0 0
    %4991 = vmatpush.bf16.msra.mxu0 %v4979
    %4992 = vmatpush.bf16.msra.mxu0 %v4978
    %4993 = vmatpush.bf16.msra.mxu0 %v4977
    %4994 = vmatpush.bf16.msra.mxu0 %v4976
    %4995 = vmatmul.bf16.gmra.mxu0 %v4985
    %v4996 = vpop.f32.mrf.mxu0
    %v4997 = vadd.f32 %v4959, %v4996
    %v4998 = vpop.f32.mrf.mxu0
    %4999 = vdwg.mxu0
    %vm5000 = vcmask 164864
    %v5001 = vsel %vm5000, %v4997, -inf
    %5002 = vmax.xlane.f32.xlu0 %v5001
    %v5003 = vpop.xlane.xlu0 %5002
    %v5004 = vsub.f32 %v4997, %v5003
    %v5005 = vmul.f32 %v5004, 1.442695
    %v5006 = vpow.pop %v5005
    %v5007 = vsel %vm5000, %v5006, 0.0
    %5008 = vadd.xlane.f32.xlu0 %v5007
    %v5009 = vpop.xlane.xlu0 %5008
    %v5010 = vrcp.pop %v5009
    %v5011 = vmul.f32 %v5006, %v5010
    %v5012 = vld [vmem:[%s4 + $0x4] sm:$0x1]
    %v5013 = vperm.slane %v5012, 0
    %v5014 = vmul.f32 %v5011, %v5013
    %v5015 = vsel %vm5000, %v5014, 0.0
    %5016 = vadd.xlane.f32.xlu0 %v5015
    %v5017 = vpop.xlane.xlu0 %5016
    %5019 = vrot.lane.b32.xlu0 %v5011, 21
    %v5020 = vpop.permute.xlu0 %5019
    %vm5022 = vcmask 171008
    %v5023 = vsel %vm5022, %v4997, %v5020
    %vm5024 = vcmask 343040
    %v5025 = vsel %vm5024, %v5023, %v5017
    %vm5026 = vcmask 351232
    %v5027 = vsel %vm5026, %v5025, 0.0
    %5028 = vst [vmem:[%s12] sm:$0x1] %v5027
    %s5029 = scalar_lea.vmem %s12, 1
    %5030 = vst [vmem:[%s5029 - $0x1] sm:$0x2] %v5027
    // Predicated region
    $region46: #{esl_ccmt_forward.1} parent=1 // pred_check
      _
    $region47: #{esl_ccmt_forward.1} parent=1 // pred_check_branch
      %5032 = sbr.rel (0) target = $region49
    $region48: #{esl_ccmt_forward.1} parent=1 // pred_region
      %5034 = vsyncadd [#allocation3], 0
      %s5035 = sshll.u32 [#allocation2], 4
      %s5036 = int_to_ptr.vmem [resolvable:$true] %s5035
      %s5037 = sshll.u32 %s11, 4
      %s5038 = int_to_ptr.hbm [resolvable:$true] %s5037
      %5043 = dma.vmem_to_hbm [thread:$0]  %s5036, 768, %s5038, [#allocation3], 128, 128, 8
    $region49: #{esl_ccmt_forward.1} parent=1 // pred_fallthru
      _
    // Predicated region
    $region50: #{esl_ccmt_forward.1} parent=1 // pred_check
      _
    $region51: #{esl_ccmt_forward.1} parent=1 // pred_check_branch
      %5045 = sbr.rel (0) target = $region53
    $region52: #{esl_ccmt_forward.1} parent=1 // pred_region
      _
    $region53: #{esl_ccmt_forward.1} parent=1 // pred_fallthru
      _
    // Predicated region
    $region54: #{esl_ccmt_forward.1} parent=1 // pred_check
      _
    $region55: #{esl_ccmt_forward.1} parent=1 // pred_check_branch
      %5047 = sbr.rel (0) target = $region57
    $region56: #{esl_ccmt_forward.1} parent=1 // pred_region
      %5049 = dma.done [#allocation3], 768
    $region57: #{esl_ccmt_forward.1} parent=1 // pred_fallthru
      _
    // Predicated region
    $region58: #{esl_ccmt_forward.1} parent=1 // pred_check
      _
    $region59: #{esl_ccmt_forward.1} parent=1 // pred_check_branch
      %5051 = sbr.rel (0) target = $region61
    $region60: #{esl_ccmt_forward.1} parent=1 // pred_region
      _
    $region61: #{esl_ccmt_forward.1} parent=1 // pred_fallthru
      _
    %5052 = vsyncpa [#allocation3], 1

</llo_original>
